<compile_context>
chip_gen: v7x
topology: tpu7x:2x2x1
jax: 0.10.0
libtpu: 0.0.40
codegen_flags: <defaults>
</compile_context>

<pallas_src>
import functools

import jax
import jax.numpy as jnp
from jax.experimental import pallas as pl
from jax.experimental.pallas import tpu as pltpu


# Static model geometry (module defaults: hidden_channels=32, c_dim=latent_dim=20).
H0, W0 = 28, 56            # input spatial dims (pair of 28x28 digits)
C1, C2, C3 = 32, 64, 128   # conv output channels
H1, W1 = 14, 28            # after conv1 (k=4, s=2, p=1)
H2, W2 = 7, 14             # after conv2
H3, W3 = 3, 7              # after conv3
KH = KW = 4
FEAT = C3 * H3 * W3        # 2688
C_DIM = 20
LATENT = 20
NHEAD = C_DIM + 2 * LATENT     # 60
NHEAD_PAD = 128                # lane-dense fused dense-head width


# -----------------------------------------------------------------------------
# Fused kernel: whole forward for ONE sample, everything VMEM-resident.
#
# Activation layout:  act[w_pad, h_pad * C + c]  (width-major, zero ring).
# Stride-2 width gather:  g = S @ act, with S[kw*Wout + wo, 2*wo + kw] = 1, so
#   g[kw*Wout + wo, h_pad*C + c] = act_pad[h_pad, 2*wo + kw, c].
# A (Wout, 4*C) lane slice of g at h_pad window [2*ho, 2*ho+4) then covers all
# four kh taps for one kw, and is contracted with the (kw, kh, ci)-ordered
# conv-weight block.
# -----------------------------------------------------------------------------
def _encoder_kernel(cols1_ref, w1_ref, b1_ref, s2_ref, w2_ref, b2_ref,
                    s3_ref, w3_ref, b3_ref, wd_ref, bd_ref, out_ref,
                    act1_ref, act2_ref, feat_ref):
    f32 = jnp.float32

    # Zero the padded activation buffers every step: the zero ring must be
    # valid and scratch persists across grid steps (and per-core with a
    # "parallel" batch axis), so do not gate this on program_id == 0.
    act1_ref[...] = jnp.zeros_like(act1_ref)
    act2_ref[...] = jnp.zeros_like(act2_ref)

    # ---- conv1: (392, 16) @ (16, 32), then scatter rows into act1 interior.
    out1 = jnp.maximum(
        jnp.dot(cols1_ref[...], w1_ref[...], preferred_element_type=f32)
        + b1_ref[...], 0.0)                                   # (H1*W1, C1)
    for ho in range(H1):
        act1_ref[1:W1 + 1, (ho + 1) * C1:(ho + 2) * C1] = \
            out1[ho * W1:(ho + 1) * W1, :]

    # ---- conv2: constant W-gather matmul + 4 per-kw matmuls per output row.
    g2 = jnp.dot(s2_ref[...], act1_ref[...], preferred_element_type=f32)  # (56, 512)
    w2 = w2_ref[...]                                          # (512, 64), rows (kw,kh,ci)
    for ho2 in range(H2):
        acc = b2_ref[...]                                     # (1, C2) -> broadcast
        for kw in range(KW):
            lhs = g2[kw * W2:(kw + 1) * W2,
                     (2 * ho2) * C1:(2 * ho2 + KH) * C1]      # (W2, 4*C1)
            acc = acc + jnp.dot(lhs,
                                w2[kw * KH * C1:(kw + 1) * KH * C1, :],
                                preferred_element_type=f32)
        o2 = jnp.maximum(acc, 0.0)                            # (W2, C2)
        act2_ref[1:W2 + 1, (ho2 + 1) * C2:(ho2 + 2) * C2] = o2

    # ---- conv3: same scheme; results land lane-aligned in the flat feature.
    g3 = jnp.dot(s3_ref[...], act2_ref[...], preferred_element_type=f32)  # (28, 576)
    w3 = w3_ref[...]                                          # (1024, 128)
    for ho3 in range(H3):
        acc = b3_ref[...]                                     # (1, C3)
        for kw in range(KW):
            lhs = g3[kw * W3:(kw + 1) * W3,
                     (2 * ho3) * C2:(2 * ho3 + KH) * C2]      # (W3, 4*C2)
            acc = acc + jnp.dot(lhs,
                                w3[kw * KH * C2:(kw + 1) * KH * C2, :],
                                preferred_element_type=f32)
        o3 = jnp.maximum(acc, 0.0)                            # (W3, C3) = (7, 128)
        for wo3 in range(W3):
            p = ho3 * W3 + wo3
            feat_ref[:, p * C3:(p + 1) * C3] = o3[wo3:wo3 + 1, :]

    # ---- fused dense heads (c | mu | logvar), lane-padded to 128 outputs.
    out_ref[...] = jnp.dot(feat_ref[...], wd_ref[...],
                           preferred_element_type=f32) + bd_ref[...]


# -----------------------------------------------------------------------------
# Wrapper-side (one-time / raw-input) glue.
# -----------------------------------------------------------------------------
def _input_im2col(x_nchw):
    """Raw-input im2col for conv1 (C_in == 1): (B,1,28,56) -> (B, 392, 16).

    Row order (ho, wo); column order tap-major (kh, kw), matching w1m rows.
    """
    B = x_nchw.shape[0]
    xp = jnp.pad(x_nchw[:, 0], ((0, 0), (1, 1), (1, 1)))            # (B, 30, 58)
    taps = []
    for kh in range(KH):
        for kw in range(KW):
            taps.append(xp[:, kh:kh + 2 * H1:2, kw:kw + 2 * W1:2])  # (B, 14, 28)
    cols = jnp.stack(taps, axis=-1)                                 # (B, 14, 28, 16)
    return cols.reshape(B, H1 * W1, KH * KW)


def _sel_matrix(n_out, width_pad):
    """0/1 stride-2 selection matrix: S[kw*n_out + wo, 2*wo + kw] = 1."""
    base = 2 * jnp.arange(n_out)
    mats = [jax.nn.one_hot(base + kw, width_pad, dtype=jnp.float32)
            for kw in range(KW)]
    return jnp.concatenate(mats, axis=0)                            # (4*n_out, width_pad)


def prepare_params(params):
    """One-time weight layout prep (outside jit)."""
    def conv1_mat(w):      # torch (Cout, 1, 4, 4) -> (16, Cout), rows (kh, kw)
        return jnp.transpose(w, (2, 3, 1, 0)).reshape(KH * KW, w.shape[0])

    def conv_mat_kw_major(w):  # torch (Cout, Cin, 4, 4) -> (16*Cin, Cout), rows (kw, kh, ci)
        co, ci = w.shape[0], w.shape[1]
        return jnp.transpose(w, (3, 2, 1, 0)).reshape(KW * KH * ci, co)

    # Fused dense head: torch Flatten() is NCHW-major; the in-kernel feature is
    # NHWC-major, so permute the (constant) weight columns instead.
    wd = jnp.concatenate([params["wc"], params["wmu"], params["wlv"]], axis=0)  # (60, 2688)
    wd = wd.reshape(NHEAD, C3, H3, W3).transpose(2, 3, 1, 0).reshape(FEAT, NHEAD)
    wd = jnp.pad(wd, ((0, 0), (0, NHEAD_PAD - NHEAD)))
    bd = jnp.concatenate([params["bc"], params["bmu"], params["blv"]])
    bd = jnp.pad(bd, (0, NHEAD_PAD - NHEAD)).reshape(1, NHEAD_PAD)

    return {
        "w1m": conv1_mat(params["w1"]),        "b1": params["b1"].reshape(1, C1),
        "w2r": conv_mat_kw_major(params["w2"]), "b2": params["b2"].reshape(1, C2),
        "w3r": conv_mat_kw_major(params["w3"]), "b3": params["b3"].reshape(1, C3),
        "s2": _sel_matrix(W2, W1 + 2),          # (56, 30)
        "s3": _sel_matrix(W3, W2 + 2),          # (28, 16)
        "wdm": wd, "bd": bd,
    }


def encoder_forward(x_nchw, prep):
    B = x_nchw.shape[0]
    cols1 = _input_im2col(x_nchw.astype(jnp.float32))               # (B, 392, 16)

    flops = 2 * B * (H1 * W1 * (KH * KW) * C1
                     + (KW * W2) * (W1 + 2) * ((H1 + 2) * C1)
                     + H2 * W2 * (KH * KW * C1) * C2
                     + (KW * W3) * (W2 + 2) * ((H2 + 2) * C2)
                     + H3 * W3 * (KH * KW * C2) * C3
                     + FEAT * NHEAD_PAD)
    bytes_accessed = 4 * (B * H1 * W1 * KH * KW + B * NHEAD_PAD
                          + sum(int(prep[k].size) for k in
                                ("w1m", "b1", "s2", "w2r", "b2",
                                 "s3", "w3r", "b3", "wdm", "bd")))

    out = pl.pallas_call(
        _encoder_kernel,
        out_shape=jax.ShapeDtypeStruct((B, 1, NHEAD_PAD), jnp.float32),
        grid_spec=pltpu.PrefetchScalarGridSpec(
            num_scalar_prefetch=0,
            grid=(B,),
            in_specs=[
                pl.BlockSpec((None, H1 * W1, KH * KW), lambda b: (b, 0, 0)),  # cols1
                pl.BlockSpec((KH * KW, C1), lambda b: (0, 0)),                # w1m
                pl.BlockSpec((1, C1), lambda b: (0, 0)),                      # b1
                pl.BlockSpec((KW * W2, W1 + 2), lambda b: (0, 0)),            # s2
                pl.BlockSpec((KH * KW * C1, C2), lambda b: (0, 0)),           # w2r
                pl.BlockSpec((1, C2), lambda b: (0, 0)),                      # b2
                pl.BlockSpec((KW * W3, W2 + 2), lambda b: (0, 0)),            # s3
                pl.BlockSpec((KH * KW * C2, C3), lambda b: (0, 0)),           # w3r
                pl.BlockSpec((1, C3), lambda b: (0, 0)),                      # b3
                pl.BlockSpec((FEAT, NHEAD_PAD), lambda b: (0, 0)),            # wdm
                pl.BlockSpec((1, NHEAD_PAD), lambda b: (0, 0)),               # bd
            ],
            out_specs=pl.BlockSpec((None, 1, NHEAD_PAD), lambda b: (b, 0, 0)),
            scratch_shapes=[
                pltpu.VMEM((W1 + 2, (H1 + 2) * C1), jnp.float32),   # act1 (30, 512)
                pltpu.VMEM((W2 + 2, (H2 + 2) * C2), jnp.float32),   # act2 (16, 576)
                pltpu.VMEM((1, FEAT), jnp.float32),                 # flat feature
            ],
        ),
        compiler_params=pltpu.CompilerParams(
            dimension_semantics=("parallel",)),
        cost_estimate=pl.CostEstimate(flops=flops, transcendentals=0,
                                      bytes_accessed=bytes_accessed),
    )(cols1, prep["w1m"], prep["b1"], prep["s2"], prep["w2r"], prep["b2"],
      prep["s3"], prep["w3r"], prep["b3"], prep["wdm"], prep["bd"])

    out = out[:, 0, :]                                          # (B, 128)
    c = jnp.stack(jnp.split(out[:, :C_DIM], 2, axis=-1), axis=1)
    mu = jnp.stack(jnp.split(out[:, C_DIM:C_DIM + LATENT], 2, axis=-1), axis=1)
    logvar = jnp.stack(
        jnp.split(out[:, C_DIM + LATENT:C_DIM + 2 * LATENT], 2, axis=-1), axis=1)
    return c, mu, logvar


# -----------------------------------------------------------------------------
# Pure-JAX reference (for a loose numeric sanity check).
# -----------------------------------------------------------------------------
def reference_forward(x, params):
    hp = jax.lax.Precision.HIGHEST

    def conv(h, w, b):
        y = jax.lax.conv_general_dilated(
            h, w, window_strides=(2, 2), padding=((1, 1), (1, 1)),
            dimension_numbers=("NCHW", "OIHW", "NCHW"), precision=hp)
        return jnp.maximum(y + b[None, :, None, None], 0.0)

    h = conv(x, params["w1"], params["b1"])
    h = conv(h, params["w2"], params["b2"])
    h = conv(h, params["w3"], params["b3"])
    f = h.reshape(h.shape[0], -1)
    c = jnp.dot(f, params["wc"].T, precision=hp) + params["bc"]
    mu = jnp.dot(f, params["wmu"].T, precision=hp) + params["bmu"]
    lv = jnp.dot(f, params["wlv"].T, precision=hp) + params["blv"]
    stk = lambda t: jnp.stack(jnp.split(t, 2, axis=-1), axis=1)
    return stk(c), stk(mu), stk(lv)


# -----------------------------------------------------------------------------
# Deterministic synthetic parameters (torch shapes; no checkpoint load).
# -----------------------------------------------------------------------------
def init_params(key, img_channels=1, hidden_channels=32, c_dim=20, latent_dim=20):
    hc = hidden_channels
    feat_dim = 4 * hc * 3 * 7  # 2688
    shapes = {
        "w1": (hc, img_channels, 4, 4),      "b1": (hc,),
        "w2": (2 * hc, hc, 4, 4),            "b2": (2 * hc,),
        "w3": (4 * hc, 2 * hc, 4, 4),        "b3": (4 * hc,),
        "wc": (c_dim, feat_dim),             "bc": (c_dim,),
        "wmu": (latent_dim, feat_dim),       "bmu": (latent_dim,),
        "wlv": (latent_dim, feat_dim),       "blv": (latent_dim,),
    }
    params = {}
    for name, shp in shapes.items():
        key, sub = jax.random.split(key)
        fan_in = 1
        for d in shp[1:]:
            fan_in *= d
        scale = 1.0 / jnp.sqrt(jnp.maximum(fan_in, 1)).astype(jnp.float32)
        params[name] = scale * jax.random.normal(sub, shp, dtype=jnp.float32)
    return params


if __name__ == "__main__":
    key = jax.random.PRNGKey(0)
    pkey, xkey = jax.random.split(key)
    params = init_params(pkey)
    prep = prepare_params(params)

    # Input: pair of MNIST digits stacked side-by-side -> (B, 1, 28, 56), NCHW.
    x = jax.random.normal(xkey, (2, 1, 28, 56), dtype=jnp.float32)

    fwd = jax.jit(functools.partial(encoder_forward, prep=prep))
    c, mu, logvar = fwd(x)
    jax.block_until_ready((c, mu, logvar))

    assert c.shape == (2, 2, 10), c.shape
    assert mu.shape == (2, 2, 10), mu.shape
    assert logvar.shape == (2, 2, 10), logvar.shape
    assert c.dtype == jnp.float32
    assert bool(jnp.all(jnp.isfinite(c)))
    assert bool(jnp.all(jnp.isfinite(mu)))
    assert bool(jnp.all(jnp.isfinite(logvar)))

    # Loose numeric sanity check against a pure-JAX reference.
    c_ref, mu_ref, lv_ref = reference_forward(x, params)
    assert bool(jnp.allclose(c, c_ref, atol=5e-2, rtol=5e-2)), \
        float(jnp.max(jnp.abs(c - c_ref)))
    assert bool(jnp.allclose(mu, mu_ref, atol=5e-2, rtol=5e-2)), \
        float(jnp.max(jnp.abs(mu - mu_ref)))
    assert bool(jnp.allclose(logvar, lv_ref, atol=5e-2, rtol=5e-2)), \
        float(jnp.max(jnp.abs(logvar - lv_ref)))

    print("KERNEL_OK")
</pallas_src>

<mosaic_0001>
module attributes {stable_mosaic.version = 11 : i64} {
  func.func @_encoder_kernel(%arg0: i32, %arg1: memref<1x392x16xf32, #tpu.memory_space<vmem>>, %arg2: memref<16x32xf32, #tpu.memory_space<vmem>>, %arg3: memref<1x32xf32, #tpu.memory_space<vmem>>, %arg4: memref<56x30xf32, #tpu.memory_space<vmem>>, %arg5: memref<512x64xf32, #tpu.memory_space<vmem>>, %arg6: memref<1x64xf32, #tpu.memory_space<vmem>>, %arg7: memref<28x16xf32, #tpu.memory_space<vmem>>, %arg8: memref<1024x128xf32, #tpu.memory_space<vmem>>, %arg9: memref<1x128xf32, #tpu.memory_space<vmem>>, %arg10: memref<2688x128xf32, #tpu.memory_space<vmem>>, %arg11: memref<1x128xf32, #tpu.memory_space<vmem>>, %arg12: memref<1x1x128xf32, #tpu.memory_space<vmem>>, %arg13: memref<30x512xf32, #tpu.memory_space<vmem>>, %arg14: memref<16x576xf32, #tpu.memory_space<vmem>>, %arg15: memref<1x2688xf32, #tpu.memory_space<vmem>>) attributes {dimension_semantics = [#tpu.dimension_semantics<parallel>], iteration_bounds = array<i64: 2>, scalar_prefetch = 0 : i64, scratch_operands = 3 : i64, tpu.core_type = #tpu.core_type<tc>, window_params = [{transform_indices = @transform_0, window_bounds = array<i64: 1, 392, 16>}, {pipeline_mode = #tpu.pipeline_mode<synchronous>, transform_indices = @transform_1, window_bounds = array<i64: 16, 32>}, {pipeline_mode = #tpu.pipeline_mode<synchronous>, transform_indices = @transform_2, window_bounds = array<i64: 1, 32>}, {pipeline_mode = #tpu.pipeline_mode<synchronous>, transform_indices = @transform_3, window_bounds = array<i64: 56, 30>}, {pipeline_mode = #tpu.pipeline_mode<synchronous>, transform_indices = @transform_4, window_bounds = array<i64: 512, 64>}, {pipeline_mode = #tpu.pipeline_mode<synchronous>, transform_indices = @transform_5, window_bounds = array<i64: 1, 64>}, {pipeline_mode = #tpu.pipeline_mode<synchronous>, transform_indices = @transform_6, window_bounds = array<i64: 28, 16>}, {pipeline_mode = #tpu.pipeline_mode<synchronous>, transform_indices = @transform_7, window_bounds = array<i64: 1024, 128>}, {pipeline_mode = #tpu.pipeline_mode<synchronous>, transform_indices = @transform_8, window_bounds = array<i64: 1, 128>}, {pipeline_mode = #tpu.pipeline_mode<synchronous>, transform_indices = @transform_9, window_bounds = array<i64: 2688, 128>}, {pipeline_mode = #tpu.pipeline_mode<synchronous>, transform_indices = @transform_10, window_bounds = array<i64: 1, 128>}, {transform_indices = @transform_11, window_bounds = array<i64: 1, 1, 128>}]} {
    %cst = arith.constant 0.000000e+00 : f32
    %0 = vector.broadcast %cst : f32 to vector<30x512xf32>
    %c0 = arith.constant 0 : index
    %c0_0 = arith.constant 0 : index
    %1 = vector.load %arg13[%c0, %c0_0] : memref<30x512xf32, #tpu.memory_space<vmem>>, vector<30x512xf32>
    tpu.vector_store %arg13[%c0, %c0_0], %0 {strides = array<i32>} : memref<30x512xf32, #tpu.memory_space<vmem>>, vector<30x512xf32>,
    %cst_1 = arith.constant 0.000000e+00 : f32
    %2 = vector.broadcast %cst_1 : f32 to vector<16x576xf32>
    %c0_2 = arith.constant 0 : index
    %c0_3 = arith.constant 0 : index
    %3 = vector.load %arg14[%c0_2, %c0_3] : memref<16x576xf32, #tpu.memory_space<vmem>>, vector<16x576xf32>
    tpu.vector_store %arg14[%c0_2, %c0_3], %2 {strides = array<i32>} : memref<16x576xf32, #tpu.memory_space<vmem>>, vector<16x576xf32>,
    %c0_4 = arith.constant 0 : index
    %c0_5 = arith.constant 0 : index
    %c0_6 = arith.constant 0 : index
    %4 = vector.load %arg1[%c0_4, %c0_5, %c0_6] : memref<1x392x16xf32, #tpu.memory_space<vmem>>, vector<1x392x16xf32>
    %5 = vector.shape_cast %4 : vector<1x392x16xf32> to vector<392x16xf32>
    %c0_7 = arith.constant 0 : index
    %c0_8 = arith.constant 0 : index
    %6 = vector.load %arg2[%c0_7, %c0_8] : memref<16x32xf32, #tpu.memory_space<vmem>>, vector<16x32xf32>
    %cst_9 = arith.constant dense<0.000000e+00> : vector<392x32xf32>
    %7 = tpu.matmul %5, %6, %cst_9 {dimension_numbers = #tpu.dot_dimension_numbers<[1], [0], [0], [1], [0, 0, 1, 1], [], []>} : vector<392x16xf32>, vector<16x32xf32>, vector<392x32xf32> -> vector<392x32xf32>
    %c0_10 = arith.constant 0 : index
    %c0_11 = arith.constant 0 : index
    %8 = vector.load %arg3[%c0_10, %c0_11] : memref<1x32xf32, #tpu.memory_space<vmem>>, vector<1x32xf32>
    %9 = vector.broadcast %8 : vector<1x32xf32> to vector<392x32xf32>
    %10 = arith.addf %7, %9 : vector<392x32xf32>
    %cst_12 = arith.constant 0.000000e+00 : f32
    %11 = vector.broadcast %cst_12 : f32 to vector<392x32xf32>
    %12 = arith.maximumf %10, %11 : vector<392x32xf32>
    %13 = vector.extract_strided_slice %12 {offsets = [0, 0], sizes = [28, 32], strides = [1, 1]} : vector<392x32xf32> to vector<28x32xf32>
    %c1 = arith.constant 1 : index
    %c32 = arith.constant 32 : index
    %14 = vector.load %arg13[%c1, %c32] : memref<30x512xf32, #tpu.memory_space<vmem>>, vector<28x32xf32>
    tpu.vector_store %arg13[%c1, %c32], %13 {strides = array<i32>} : memref<30x512xf32, #tpu.memory_space<vmem>>, vector<28x32xf32>,
    %15 = vector.extract_strided_slice %12 {offsets = [28, 0], sizes = [28, 32], strides = [1, 1]} : vector<392x32xf32> to vector<28x32xf32>
    %c1_13 = arith.constant 1 : index
    %c64 = arith.constant 64 : index
    %16 = vector.load %arg13[%c1_13, %c64] : memref<30x512xf32, #tpu.memory_space<vmem>>, vector<28x32xf32>
    tpu.vector_store %arg13[%c1_13, %c64], %15 {strides = array<i32>} : memref<30x512xf32, #tpu.memory_space<vmem>>, vector<28x32xf32>,
    %17 = vector.extract_strided_slice %12 {offsets = [56, 0], sizes = [28, 32], strides = [1, 1]} : vector<392x32xf32> to vector<28x32xf32>
    %c1_14 = arith.constant 1 : index
    %c96 = arith.constant 96 : index
    %18 = vector.load %arg13[%c1_14, %c96] : memref<30x512xf32, #tpu.memory_space<vmem>>, vector<28x32xf32>
    tpu.vector_store %arg13[%c1_14, %c96], %17 {strides = array<i32>} : memref<30x512xf32, #tpu.memory_space<vmem>>, vector<28x32xf32>,
    %19 = vector.extract_strided_slice %12 {offsets = [84, 0], sizes = [28, 32], strides = [1, 1]} : vector<392x32xf32> to vector<28x32xf32>
    %c1_15 = arith.constant 1 : index
    %c128 = arith.constant 128 : index
    %20 = vector.load %arg13[%c1_15, %c128] : memref<30x512xf32, #tpu.memory_space<vmem>>, vector<28x32xf32>
    tpu.vector_store %arg13[%c1_15, %c128], %19 {strides = array<i32>} : memref<30x512xf32, #tpu.memory_space<vmem>>, vector<28x32xf32>,
    %21 = vector.extract_strided_slice %12 {offsets = [112, 0], sizes = [28, 32], strides = [1, 1]} : vector<392x32xf32> to vector<28x32xf32>
    %c1_16 = arith.constant 1 : index
    %c160 = arith.constant 160 : index
    %22 = vector.load %arg13[%c1_16, %c160] : memref<30x512xf32, #tpu.memory_space<vmem>>, vector<28x32xf32>
    tpu.vector_store %arg13[%c1_16, %c160], %21 {strides = array<i32>} : memref<30x512xf32, #tpu.memory_space<vmem>>, vector<28x32xf32>,
    %23 = vector.extract_strided_slice %12 {offsets = [140, 0], sizes = [28, 32], strides = [1, 1]} : vector<392x32xf32> to vector<28x32xf32>
    %c1_17 = arith.constant 1 : index
    %c192 = arith.constant 192 : index
    %24 = vector.load %arg13[%c1_17, %c192] : memref<30x512xf32, #tpu.memory_space<vmem>>, vector<28x32xf32>
    tpu.vector_store %arg13[%c1_17, %c192], %23 {strides = array<i32>} : memref<30x512xf32, #tpu.memory_space<vmem>>, vector<28x32xf32>,
    %25 = vector.extract_strided_slice %12 {offsets = [168, 0], sizes = [28, 32], strides = [1, 1]} : vector<392x32xf32> to vector<28x32xf32>
    %c1_18 = arith.constant 1 : index
    %c224 = arith.constant 224 : index
    %26 = vector.load %arg13[%c1_18, %c224] : memref<30x512xf32, #tpu.memory_space<vmem>>, vector<28x32xf32>
    tpu.vector_store %arg13[%c1_18, %c224], %25 {strides = array<i32>} : memref<30x512xf32, #tpu.memory_space<vmem>>, vector<28x32xf32>,
    %27 = vector.extract_strided_slice %12 {offsets = [196, 0], sizes = [28, 32], strides = [1, 1]} : vector<392x32xf32> to vector<28x32xf32>
    %c1_19 = arith.constant 1 : index
    %c256 = arith.constant 256 : index
    %28 = vector.load %arg13[%c1_19, %c256] : memref<30x512xf32, #tpu.memory_space<vmem>>, vector<28x32xf32>
    tpu.vector_store %arg13[%c1_19, %c256], %27 {strides = array<i32>} : memref<30x512xf32, #tpu.memory_space<vmem>>, vector<28x32xf32>,
    %29 = vector.extract_strided_slice %12 {offsets = [224, 0], sizes = [28, 32], strides = [1, 1]} : vector<392x32xf32> to vector<28x32xf32>
    %c1_20 = arith.constant 1 : index
    %c288 = arith.constant 288 : index
    %30 = vector.load %arg13[%c1_20, %c288] : memref<30x512xf32, #tpu.memory_space<vmem>>, vector<28x32xf32>
    tpu.vector_store %arg13[%c1_20, %c288], %29 {strides = array<i32>} : memref<30x512xf32, #tpu.memory_space<vmem>>, vector<28x32xf32>,
    %31 = vector.extract_strided_slice %12 {offsets = [252, 0], sizes = [28, 32], strides = [1, 1]} : vector<392x32xf32> to vector<28x32xf32>
    %c1_21 = arith.constant 1 : index
    %c320 = arith.constant 320 : index
    %32 = vector.load %arg13[%c1_21, %c320] : memref<30x512xf32, #tpu.memory_space<vmem>>, vector<28x32xf32>
    tpu.vector_store %arg13[%c1_21, %c320], %31 {strides = array<i32>} : memref<30x512xf32, #tpu.memory_space<vmem>>, vector<28x32xf32>,
    %33 = vector.extract_strided_slice %12 {offsets = [280, 0], sizes = [28, 32], strides = [1, 1]} : vector<392x32xf32> to vector<28x32xf32>
    %c1_22 = arith.constant 1 : index
    %c352 = arith.constant 352 : index
    %34 = vector.load %arg13[%c1_22, %c352] : memref<30x512xf32, #tpu.memory_space<vmem>>, vector<28x32xf32>
    tpu.vector_store %arg13[%c1_22, %c352], %33 {strides = array<i32>} : memref<30x512xf32, #tpu.memory_space<vmem>>, vector<28x32xf32>,
    %35 = vector.extract_strided_slice %12 {offsets = [308, 0], sizes = [28, 32], strides = [1, 1]} : vector<392x32xf32> to vector<28x32xf32>
    %c1_23 = arith.constant 1 : index
    %c384 = arith.constant 384 : index
    %36 = vector.load %arg13[%c1_23, %c384] : memref<30x512xf32, #tpu.memory_space<vmem>>, vector<28x32xf32>
    tpu.vector_store %arg13[%c1_23, %c384], %35 {strides = array<i32>} : memref<30x512xf32, #tpu.memory_space<vmem>>, vector<28x32xf32>,
    %37 = vector.extract_strided_slice %12 {offsets = [336, 0], sizes = [28, 32], strides = [1, 1]} : vector<392x32xf32> to vector<28x32xf32>
    %c1_24 = arith.constant 1 : index
    %c416 = arith.constant 416 : index
    %38 = vector.load %arg13[%c1_24, %c416] : memref<30x512xf32, #tpu.memory_space<vmem>>, vector<28x32xf32>
    tpu.vector_store %arg13[%c1_24, %c416], %37 {strides = array<i32>} : memref<30x512xf32, #tpu.memory_space<vmem>>, vector<28x32xf32>,
    %39 = vector.extract_strided_slice %12 {offsets = [364, 0], sizes = [28, 32], strides = [1, 1]} : vector<392x32xf32> to vector<28x32xf32>
    %c1_25 = arith.constant 1 : index
    %c448 = arith.constant 448 : index
    %40 = vector.load %arg13[%c1_25, %c448] : memref<30x512xf32, #tpu.memory_space<vmem>>, vector<28x32xf32>
    tpu.vector_store %arg13[%c1_25, %c448], %39 {strides = array<i32>} : memref<30x512xf32, #tpu.memory_space<vmem>>, vector<28x32xf32>,
    %c0_26 = arith.constant 0 : index
    %c0_27 = arith.constant 0 : index
    %41 = vector.load %arg4[%c0_26, %c0_27] : memref<56x30xf32, #tpu.memory_space<vmem>>, vector<56x30xf32>
    %c0_28 = arith.constant 0 : index
    %c0_29 = arith.constant 0 : index
    %42 = vector.load %arg13[%c0_28, %c0_29] : memref<30x512xf32, #tpu.memory_space<vmem>>, vector<30x512xf32>
    %cst_30 = arith.constant dense<0.000000e+00> : vector<56x512xf32>
    %43 = tpu.matmul %41, %42, %cst_30 {dimension_numbers = #tpu.dot_dimension_numbers<[1], [0], [0], [1], [0, 0, 1, 1], [], []>} : vector<56x30xf32>, vector<30x512xf32>, vector<56x512xf32> -> vector<56x512xf32>
    %c0_31 = arith.constant 0 : index
    %c0_32 = arith.constant 0 : index
    %44 = vector.load %arg5[%c0_31, %c0_32] : memref<512x64xf32, #tpu.memory_space<vmem>>, vector<512x64xf32>
    %c0_33 = arith.constant 0 : index
    %c0_34 = arith.constant 0 : index
    %45 = vector.load %arg6[%c0_33, %c0_34] : memref<1x64xf32, #tpu.memory_space<vmem>>, vector<1x64xf32>
    %46 = vector.extract_strided_slice %43 {offsets = [0, 0], sizes = [14, 128], strides = [1, 1]} : vector<56x512xf32> to vector<14x128xf32>
    %47 = vector.extract_strided_slice %44 {offsets = [0, 0], sizes = [128, 64], strides = [1, 1]} : vector<512x64xf32> to vector<128x64xf32>
    %cst_35 = arith.constant dense<0.000000e+00> : vector<14x64xf32>
    %48 = tpu.matmul %46, %47, %cst_35 {dimension_numbers = #tpu.dot_dimension_numbers<[1], [0], [0], [1], [0, 0, 1, 1], [], []>} : vector<14x128xf32>, vector<128x64xf32>, vector<14x64xf32> -> vector<14x64xf32>
    %49 = vector.broadcast %45 : vector<1x64xf32> to vector<14x64xf32>
    %50 = arith.addf %49, %48 : vector<14x64xf32>
    %51 = vector.extract_strided_slice %43 {offsets = [14, 0], sizes = [14, 128], strides = [1, 1]} : vector<56x512xf32> to vector<14x128xf32>
    %52 = vector.extract_strided_slice %44 {offsets = [128, 0], sizes = [128, 64], strides = [1, 1]} : vector<512x64xf32> to vector<128x64xf32>
    %cst_36 = arith.constant dense<0.000000e+00> : vector<14x64xf32>
    %53 = tpu.matmul %51, %52, %cst_36 {dimension_numbers = #tpu.dot_dimension_numbers<[1], [0], [0], [1], [0, 0, 1, 1], [], []>} : vector<14x128xf32>, vector<128x64xf32>, vector<14x64xf32> -> vector<14x64xf32>
    %54 = arith.addf %50, %53 : vector<14x64xf32>
    %55 = vector.extract_strided_slice %43 {offsets = [28, 0], sizes = [14, 128], strides = [1, 1]} : vector<56x512xf32> to vector<14x128xf32>
    %56 = vector.extract_strided_slice %44 {offsets = [256, 0], sizes = [128, 64], strides = [1, 1]} : vector<512x64xf32> to vector<128x64xf32>
    %cst_37 = arith.constant dense<0.000000e+00> : vector<14x64xf32>
    %57 = tpu.matmul %55, %56, %cst_37 {dimension_numbers = #tpu.dot_dimension_numbers<[1], [0], [0], [1], [0, 0, 1, 1], [], []>} : vector<14x128xf32>, vector<128x64xf32>, vector<14x64xf32> -> vector<14x64xf32>
    %58 = arith.addf %54, %57 : vector<14x64xf32>
    %59 = vector.extract_strided_slice %43 {offsets = [42, 0], sizes = [14, 128], strides = [1, 1]} : vector<56x512xf32> to vector<14x128xf32>
    %60 = vector.extract_strided_slice %44 {offsets = [384, 0], sizes = [128, 64], strides = [1, 1]} : vector<512x64xf32> to vector<128x64xf32>
    %cst_38 = arith.constant dense<0.000000e+00> : vector<14x64xf32>
    %61 = tpu.matmul %59, %60, %cst_38 {dimension_numbers = #tpu.dot_dimension_numbers<[1], [0], [0], [1], [0, 0, 1, 1], [], []>} : vector<14x128xf32>, vector<128x64xf32>, vector<14x64xf32> -> vector<14x64xf32>
    %62 = arith.addf %58, %61 : vector<14x64xf32>
    %cst_39 = arith.constant 0.000000e+00 : f32
    %63 = vector.broadcast %cst_39 : f32 to vector<14x64xf32>
    %64 = arith.maximumf %62, %63 : vector<14x64xf32>
    %c1_40 = arith.constant 1 : index
    %c64_41 = arith.constant 64 : index
    %65 = vector.load %arg14[%c1_40, %c64_41] : memref<16x576xf32, #tpu.memory_space<vmem>>, vector<14x64xf32>
    tpu.vector_store %arg14[%c1_40, %c64_41], %64 {strides = array<i32>} : memref<16x576xf32, #tpu.memory_space<vmem>>, vector<14x64xf32>,
    %c0_42 = arith.constant 0 : index
    %c0_43 = arith.constant 0 : index
    %66 = vector.load %arg6[%c0_42, %c0_43] : memref<1x64xf32, #tpu.memory_space<vmem>>, vector<1x64xf32>
    %67 = vector.extract_strided_slice %43 {offsets = [0, 64], sizes = [14, 128], strides = [1, 1]} : vector<56x512xf32> to vector<14x128xf32>
    %68 = vector.extract_strided_slice %44 {offsets = [0, 0], sizes = [128, 64], strides = [1, 1]} : vector<512x64xf32> to vector<128x64xf32>
    %cst_44 = arith.constant dense<0.000000e+00> : vector<14x64xf32>
    %69 = tpu.matmul %67, %68, %cst_44 {dimension_numbers = #tpu.dot_dimension_numbers<[1], [0], [0], [1], [0, 0, 1, 1], [], []>} : vector<14x128xf32>, vector<128x64xf32>, vector<14x64xf32> -> vector<14x64xf32>
    %70 = vector.broadcast %66 : vector<1x64xf32> to vector<14x64xf32>
    %71 = arith.addf %70, %69 : vector<14x64xf32>
    %72 = vector.extract_strided_slice %43 {offsets = [14, 64], sizes = [14, 128], strides = [1, 1]} : vector<56x512xf32> to vector<14x128xf32>
    %73 = vector.extract_strided_slice %44 {offsets = [128, 0], sizes = [128, 64], strides = [1, 1]} : vector<512x64xf32> to vector<128x64xf32>
    %cst_45 = arith.constant dense<0.000000e+00> : vector<14x64xf32>
    %74 = tpu.matmul %72, %73, %cst_45 {dimension_numbers = #tpu.dot_dimension_numbers<[1], [0], [0], [1], [0, 0, 1, 1], [], []>} : vector<14x128xf32>, vector<128x64xf32>, vector<14x64xf32> -> vector<14x64xf32>
    %75 = arith.addf %71, %74 : vector<14x64xf32>
    %76 = vector.extract_strided_slice %43 {offsets = [28, 64], sizes = [14, 128], strides = [1, 1]} : vector<56x512xf32> to vector<14x128xf32>
    %77 = vector.extract_strided_slice %44 {offsets = [256, 0], sizes = [128, 64], strides = [1, 1]} : vector<512x64xf32> to vector<128x64xf32>
    %cst_46 = arith.constant dense<0.000000e+00> : vector<14x64xf32>
    %78 = tpu.matmul %76, %77, %cst_46 {dimension_numbers = #tpu.dot_dimension_numbers<[1], [0], [0], [1], [0, 0, 1, 1], [], []>} : vector<14x128xf32>, vector<128x64xf32>, vector<14x64xf32> -> vector<14x64xf32>
    %79 = arith.addf %75, %78 : vector<14x64xf32>
    %80 = vector.extract_strided_slice %43 {offsets = [42, 64], sizes = [14, 128], strides = [1, 1]} : vector<56x512xf32> to vector<14x128xf32>
    %81 = vector.extract_strided_slice %44 {offsets = [384, 0], sizes = [128, 64], strides = [1, 1]} : vector<512x64xf32> to vector<128x64xf32>
    %cst_47 = arith.constant dense<0.000000e+00> : vector<14x64xf32>
    %82 = tpu.matmul %80, %81, %cst_47 {dimension_numbers = #tpu.dot_dimension_numbers<[1], [0], [0], [1], [0, 0, 1, 1], [], []>} : vector<14x128xf32>, vector<128x64xf32>, vector<14x64xf32> -> vector<14x64xf32>
    %83 = arith.addf %79, %82 : vector<14x64xf32>
    %cst_48 = arith.constant 0.000000e+00 : f32
    %84 = vector.broadcast %cst_48 : f32 to vector<14x64xf32>
    %85 = arith.maximumf %83, %84 : vector<14x64xf32>
    %c1_49 = arith.constant 1 : index
    %c128_50 = arith.constant 128 : index
    %86 = vector.load %arg14[%c1_49, %c128_50] : memref<16x576xf32, #tpu.memory_space<vmem>>, vector<14x64xf32>
    tpu.vector_store %arg14[%c1_49, %c128_50], %85 {strides = array<i32>} : memref<16x576xf32, #tpu.memory_space<vmem>>, vector<14x64xf32>,
    %c0_51 = arith.constant 0 : index
    %c0_52 = arith.constant 0 : index
    %87 = vector.load %arg6[%c0_51, %c0_52] : memref<1x64xf32, #tpu.memory_space<vmem>>, vector<1x64xf32>
    %88 = vector.extract_strided_slice %43 {offsets = [0, 128], sizes = [14, 128], strides = [1, 1]} : vector<56x512xf32> to vector<14x128xf32>
    %89 = vector.extract_strided_slice %44 {offsets = [0, 0], sizes = [128, 64], strides = [1, 1]} : vector<512x64xf32> to vector<128x64xf32>
    %cst_53 = arith.constant dense<0.000000e+00> : vector<14x64xf32>
    %90 = tpu.matmul %88, %89, %cst_53 {dimension_numbers = #tpu.dot_dimension_numbers<[1], [0], [0], [1], [0, 0, 1, 1], [], []>} : vector<14x128xf32>, vector<128x64xf32>, vector<14x64xf32> -> vector<14x64xf32>
    %91 = vector.broadcast %87 : vector<1x64xf32> to vector<14x64xf32>
    %92 = arith.addf %91, %90 : vector<14x64xf32>
    %93 = vector.extract_strided_slice %43 {offsets = [14, 128], sizes = [14, 128], strides = [1, 1]} : vector<56x512xf32> to vector<14x128xf32>
    %94 = vector.extract_strided_slice %44 {offsets = [128, 0], sizes = [128, 64], strides = [1, 1]} : vector<512x64xf32> to vector<128x64xf32>
    %cst_54 = arith.constant dense<0.000000e+00> : vector<14x64xf32>
    %95 = tpu.matmul %93, %94, %cst_54 {dimension_numbers = #tpu.dot_dimension_numbers<[1], [0], [0], [1], [0, 0, 1, 1], [], []>} : vector<14x128xf32>, vector<128x64xf32>, vector<14x64xf32> -> vector<14x64xf32>
    %96 = arith.addf %92, %95 : vector<14x64xf32>
    %97 = vector.extract_strided_slice %43 {offsets = [28, 128], sizes = [14, 128], strides = [1, 1]} : vector<56x512xf32> to vector<14x128xf32>
    %98 = vector.extract_strided_slice %44 {offsets = [256, 0], sizes = [128, 64], strides = [1, 1]} : vector<512x64xf32> to vector<128x64xf32>
    %cst_55 = arith.constant dense<0.000000e+00> : vector<14x64xf32>
    %99 = tpu.matmul %97, %98, %cst_55 {dimension_numbers = #tpu.dot_dimension_numbers<[1], [0], [0], [1], [0, 0, 1, 1], [], []>} : vector<14x128xf32>, vector<128x64xf32>, vector<14x64xf32> -> vector<14x64xf32>
    %100 = arith.addf %96, %99 : vector<14x64xf32>
    %101 = vector.extract_strided_slice %43 {offsets = [42, 128], sizes = [14, 128], strides = [1, 1]} : vector<56x512xf32> to vector<14x128xf32>
    %102 = vector.extract_strided_slice %44 {offsets = [384, 0], sizes = [128, 64], strides = [1, 1]} : vector<512x64xf32> to vector<128x64xf32>
    %cst_56 = arith.constant dense<0.000000e+00> : vector<14x64xf32>
    %103 = tpu.matmul %101, %102, %cst_56 {dimension_numbers = #tpu.dot_dimension_numbers<[1], [0], [0], [1], [0, 0, 1, 1], [], []>} : vector<14x128xf32>, vector<128x64xf32>, vector<14x64xf32> -> vector<14x64xf32>
    %104 = arith.addf %100, %103 : vector<14x64xf32>
    %cst_57 = arith.constant 0.000000e+00 : f32
    %105 = vector.broadcast %cst_57 : f32 to vector<14x64xf32>
    %106 = arith.maximumf %104, %105 : vector<14x64xf32>
    %c1_58 = arith.constant 1 : index
    %c192_59 = arith.constant 192 : index
    %107 = vector.load %arg14[%c1_58, %c192_59] : memref<16x576xf32, #tpu.memory_space<vmem>>, vector<14x64xf32>
    tpu.vector_store %arg14[%c1_58, %c192_59], %106 {strides = array<i32>} : memref<16x576xf32, #tpu.memory_space<vmem>>, vector<14x64xf32>,
    %c0_60 = arith.constant 0 : index
    %c0_61 = arith.constant 0 : index
    %108 = vector.load %arg6[%c0_60, %c0_61] : memref<1x64xf32, #tpu.memory_space<vmem>>, vector<1x64xf32>
    %109 = vector.extract_strided_slice %43 {offsets = [0, 192], sizes = [14, 128], strides = [1, 1]} : vector<56x512xf32> to vector<14x128xf32>
    %110 = vector.extract_strided_slice %44 {offsets = [0, 0], sizes = [128, 64], strides = [1, 1]} : vector<512x64xf32> to vector<128x64xf32>
    %cst_62 = arith.constant dense<0.000000e+00> : vector<14x64xf32>
    %111 = tpu.matmul %109, %110, %cst_62 {dimension_numbers = #tpu.dot_dimension_numbers<[1], [0], [0], [1], [0, 0, 1, 1], [], []>} : vector<14x128xf32>, vector<128x64xf32>, vector<14x64xf32> -> vector<14x64xf32>
    %112 = vector.broadcast %108 : vector<1x64xf32> to vector<14x64xf32>
    %113 = arith.addf %112, %111 : vector<14x64xf32>
    %114 = vector.extract_strided_slice %43 {offsets = [14, 192], sizes = [14, 128], strides = [1, 1]} : vector<56x512xf32> to vector<14x128xf32>
    %115 = vector.extract_strided_slice %44 {offsets = [128, 0], sizes = [128, 64], strides = [1, 1]} : vector<512x64xf32> to vector<128x64xf32>
    %cst_63 = arith.constant dense<0.000000e+00> : vector<14x64xf32>
    %116 = tpu.matmul %114, %115, %cst_63 {dimension_numbers = #tpu.dot_dimension_numbers<[1], [0], [0], [1], [0, 0, 1, 1], [], []>} : vector<14x128xf32>, vector<128x64xf32>, vector<14x64xf32> -> vector<14x64xf32>
    %117 = arith.addf %113, %116 : vector<14x64xf32>
    %118 = vector.extract_strided_slice %43 {offsets = [28, 192], sizes = [14, 128], strides = [1, 1]} : vector<56x512xf32> to vector<14x128xf32>
    %119 = vector.extract_strided_slice %44 {offsets = [256, 0], sizes = [128, 64], strides = [1, 1]} : vector<512x64xf32> to vector<128x64xf32>
    %cst_64 = arith.constant dense<0.000000e+00> : vector<14x64xf32>
    %120 = tpu.matmul %118, %119, %cst_64 {dimension_numbers = #tpu.dot_dimension_numbers<[1], [0], [0], [1], [0, 0, 1, 1], [], []>} : vector<14x128xf32>, vector<128x64xf32>, vector<14x64xf32> -> vector<14x64xf32>
    %121 = arith.addf %117, %120 : vector<14x64xf32>
    %122 = vector.extract_strided_slice %43 {offsets = [42, 192], sizes = [14, 128], strides = [1, 1]} : vector<56x512xf32> to vector<14x128xf32>
    %123 = vector.extract_strided_slice %44 {offsets = [384, 0], sizes = [128, 64], strides = [1, 1]} : vector<512x64xf32> to vector<128x64xf32>
    %cst_65 = arith.constant dense<0.000000e+00> : vector<14x64xf32>
    %124 = tpu.matmul %122, %123, %cst_65 {dimension_numbers = #tpu.dot_dimension_numbers<[1], [0], [0], [1], [0, 0, 1, 1], [], []>} : vector<14x128xf32>, vector<128x64xf32>, vector<14x64xf32> -> vector<14x64xf32>
    %125 = arith.addf %121, %124 : vector<14x64xf32>
    %cst_66 = arith.constant 0.000000e+00 : f32
    %126 = vector.broadcast %cst_66 : f32 to vector<14x64xf32>
    %127 = arith.maximumf %125, %126 : vector<14x64xf32>
    %c1_67 = arith.constant 1 : index
    %c256_68 = arith.constant 256 : index
    %128 = vector.load %arg14[%c1_67, %c256_68] : memref<16x576xf32, #tpu.memory_space<vmem>>, vector<14x64xf32>
    tpu.vector_store %arg14[%c1_67, %c256_68], %127 {strides = array<i32>} : memref<16x576xf32, #tpu.memory_space<vmem>>, vector<14x64xf32>,
    %c0_69 = arith.constant 0 : index
    %c0_70 = arith.constant 0 : index
    %129 = vector.load %arg6[%c0_69, %c0_70] : memref<1x64xf32, #tpu.memory_space<vmem>>, vector<1x64xf32>
    %130 = vector.extract_strided_slice %43 {offsets = [0, 256], sizes = [14, 128], strides = [1, 1]} : vector<56x512xf32> to vector<14x128xf32>
    %131 = vector.extract_strided_slice %44 {offsets = [0, 0], sizes = [128, 64], strides = [1, 1]} : vector<512x64xf32> to vector<128x64xf32>
    %cst_71 = arith.constant dense<0.000000e+00> : vector<14x64xf32>
    %132 = tpu.matmul %130, %131, %cst_71 {dimension_numbers = #tpu.dot_dimension_numbers<[1], [0], [0], [1], [0, 0, 1, 1], [], []>} : vector<14x128xf32>, vector<128x64xf32>, vector<14x64xf32> -> vector<14x64xf32>
    %133 = vector.broadcast %129 : vector<1x64xf32> to vector<14x64xf32>
    %134 = arith.addf %133, %132 : vector<14x64xf32>
    %135 = vector.extract_strided_slice %43 {offsets = [14, 256], sizes = [14, 128], strides = [1, 1]} : vector<56x512xf32> to vector<14x128xf32>
    %136 = vector.extract_strided_slice %44 {offsets = [128, 0], sizes = [128, 64], strides = [1, 1]} : vector<512x64xf32> to vector<128x64xf32>
    %cst_72 = arith.constant dense<0.000000e+00> : vector<14x64xf32>
    %137 = tpu.matmul %135, %136, %cst_72 {dimension_numbers = #tpu.dot_dimension_numbers<[1], [0], [0], [1], [0, 0, 1, 1], [], []>} : vector<14x128xf32>, vector<128x64xf32>, vector<14x64xf32> -> vector<14x64xf32>
    %138 = arith.addf %134, %137 : vector<14x64xf32>
    %139 = vector.extract_strided_slice %43 {offsets = [28, 256], sizes = [14, 128], strides = [1, 1]} : vector<56x512xf32> to vector<14x128xf32>
    %140 = vector.extract_strided_slice %44 {offsets = [256, 0], sizes = [128, 64], strides = [1, 1]} : vector<512x64xf32> to vector<128x64xf32>
    %cst_73 = arith.constant dense<0.000000e+00> : vector<14x64xf32>
    %141 = tpu.matmul %139, %140, %cst_73 {dimension_numbers = #tpu.dot_dimension_numbers<[1], [0], [0], [1], [0, 0, 1, 1], [], []>} : vector<14x128xf32>, vector<128x64xf32>, vector<14x64xf32> -> vector<14x64xf32>
    %142 = arith.addf %138, %141 : vector<14x64xf32>
    %143 = vector.extract_strided_slice %43 {offsets = [42, 256], sizes = [14, 128], strides = [1, 1]} : vector<56x512xf32> to vector<14x128xf32>
    %144 = vector.extract_strided_slice %44 {offsets = [384, 0], sizes = [128, 64], strides = [1, 1]} : vector<512x64xf32> to vector<128x64xf32>
    %cst_74 = arith.constant dense<0.000000e+00> : vector<14x64xf32>
    %145 = tpu.matmul %143, %144, %cst_74 {dimension_numbers = #tpu.dot_dimension_numbers<[1], [0], [0], [1], [0, 0, 1, 1], [], []>} : vector<14x128xf32>, vector<128x64xf32>, vector<14x64xf32> -> vector<14x64xf32>
    %146 = arith.addf %142, %145 : vector<14x64xf32>
    %cst_75 = arith.constant 0.000000e+00 : f32
    %147 = vector.broadcast %cst_75 : f32 to vector<14x64xf32>
    %148 = arith.maximumf %146, %147 : vector<14x64xf32>
    %c1_76 = arith.constant 1 : index
    %c320_77 = arith.constant 320 : index
    %149 = vector.load %arg14[%c1_76, %c320_77] : memref<16x576xf32, #tpu.memory_space<vmem>>, vector<14x64xf32>
    tpu.vector_store %arg14[%c1_76, %c320_77], %148 {strides = array<i32>} : memref<16x576xf32, #tpu.memory_space<vmem>>, vector<14x64xf32>,
    %c0_78 = arith.constant 0 : index
    %c0_79 = arith.constant 0 : index
    %150 = vector.load %arg6[%c0_78, %c0_79] : memref<1x64xf32, #tpu.memory_space<vmem>>, vector<1x64xf32>
    %151 = vector.extract_strided_slice %43 {offsets = [0, 320], sizes = [14, 128], strides = [1, 1]} : vector<56x512xf32> to vector<14x128xf32>
    %152 = vector.extract_strided_slice %44 {offsets = [0, 0], sizes = [128, 64], strides = [1, 1]} : vector<512x64xf32> to vector<128x64xf32>
    %cst_80 = arith.constant dense<0.000000e+00> : vector<14x64xf32>
    %153 = tpu.matmul %151, %152, %cst_80 {dimension_numbers = #tpu.dot_dimension_numbers<[1], [0], [0], [1], [0, 0, 1, 1], [], []>} : vector<14x128xf32>, vector<128x64xf32>, vector<14x64xf32> -> vector<14x64xf32>
    %154 = vector.broadcast %150 : vector<1x64xf32> to vector<14x64xf32>
    %155 = arith.addf %154, %153 : vector<14x64xf32>
    %156 = vector.extract_strided_slice %43 {offsets = [14, 320], sizes = [14, 128], strides = [1, 1]} : vector<56x512xf32> to vector<14x128xf32>
    %157 = vector.extract_strided_slice %44 {offsets = [128, 0], sizes = [128, 64], strides = [1, 1]} : vector<512x64xf32> to vector<128x64xf32>
    %cst_81 = arith.constant dense<0.000000e+00> : vector<14x64xf32>
    %158 = tpu.matmul %156, %157, %cst_81 {dimension_numbers = #tpu.dot_dimension_numbers<[1], [0], [0], [1], [0, 0, 1, 1], [], []>} : vector<14x128xf32>, vector<128x64xf32>, vector<14x64xf32> -> vector<14x64xf32>
    %159 = arith.addf %155, %158 : vector<14x64xf32>
    %160 = vector.extract_strided_slice %43 {offsets = [28, 320], sizes = [14, 128], strides = [1, 1]} : vector<56x512xf32> to vector<14x128xf32>
    %161 = vector.extract_strided_slice %44 {offsets = [256, 0], sizes = [128, 64], strides = [1, 1]} : vector<512x64xf32> to vector<128x64xf32>
    %cst_82 = arith.constant dense<0.000000e+00> : vector<14x64xf32>
    %162 = tpu.matmul %160, %161, %cst_82 {dimension_numbers = #tpu.dot_dimension_numbers<[1], [0], [0], [1], [0, 0, 1, 1], [], []>} : vector<14x128xf32>, vector<128x64xf32>, vector<14x64xf32> -> vector<14x64xf32>
    %163 = arith.addf %159, %162 : vector<14x64xf32>
    %164 = vector.extract_strided_slice %43 {offsets = [42, 320], sizes = [14, 128], strides = [1, 1]} : vector<56x512xf32> to vector<14x128xf32>
    %165 = vector.extract_strided_slice %44 {offsets = [384, 0], sizes = [128, 64], strides = [1, 1]} : vector<512x64xf32> to vector<128x64xf32>
    %cst_83 = arith.constant dense<0.000000e+00> : vector<14x64xf32>
    %166 = tpu.matmul %164, %165, %cst_83 {dimension_numbers = #tpu.dot_dimension_numbers<[1], [0], [0], [1], [0, 0, 1, 1], [], []>} : vector<14x128xf32>, vector<128x64xf32>, vector<14x64xf32> -> vector<14x64xf32>
    %167 = arith.addf %163, %166 : vector<14x64xf32>
    %cst_84 = arith.constant 0.000000e+00 : f32
    %168 = vector.broadcast %cst_84 : f32 to vector<14x64xf32>
    %169 = arith.maximumf %167, %168 : vector<14x64xf32>
    %c1_85 = arith.constant 1 : index
    %c384_86 = arith.constant 384 : index
    %170 = vector.load %arg14[%c1_85, %c384_86] : memref<16x576xf32, #tpu.memory_space<vmem>>, vector<14x64xf32>
    tpu.vector_store %arg14[%c1_85, %c384_86], %169 {strides = array<i32>} : memref<16x576xf32, #tpu.memory_space<vmem>>, vector<14x64xf32>,
    %c0_87 = arith.constant 0 : index
    %c0_88 = arith.constant 0 : index
    %171 = vector.load %arg6[%c0_87, %c0_88] : memref<1x64xf32, #tpu.memory_space<vmem>>, vector<1x64xf32>
    %172 = vector.extract_strided_slice %43 {offsets = [0, 384], sizes = [14, 128], strides = [1, 1]} : vector<56x512xf32> to vector<14x128xf32>
    %173 = vector.extract_strided_slice %44 {offsets = [0, 0], sizes = [128, 64], strides = [1, 1]} : vector<512x64xf32> to vector<128x64xf32>
    %cst_89 = arith.constant dense<0.000000e+00> : vector<14x64xf32>
    %174 = tpu.matmul %172, %173, %cst_89 {dimension_numbers = #tpu.dot_dimension_numbers<[1], [0], [0], [1], [0, 0, 1, 1], [], []>} : vector<14x128xf32>, vector<128x64xf32>, vector<14x64xf32> -> vector<14x64xf32>
    %175 = vector.broadcast %171 : vector<1x64xf32> to vector<14x64xf32>
    %176 = arith.addf %175, %174 : vector<14x64xf32>
    %177 = vector.extract_strided_slice %43 {offsets = [14, 384], sizes = [14, 128], strides = [1, 1]} : vector<56x512xf32> to vector<14x128xf32>
    %178 = vector.extract_strided_slice %44 {offsets = [128, 0], sizes = [128, 64], strides = [1, 1]} : vector<512x64xf32> to vector<128x64xf32>
    %cst_90 = arith.constant dense<0.000000e+00> : vector<14x64xf32>
    %179 = tpu.matmul %177, %178, %cst_90 {dimension_numbers = #tpu.dot_dimension_numbers<[1], [0], [0], [1], [0, 0, 1, 1], [], []>} : vector<14x128xf32>, vector<128x64xf32>, vector<14x64xf32> -> vector<14x64xf32>
    %180 = arith.addf %176, %179 : vector<14x64xf32>
    %181 = vector.extract_strided_slice %43 {offsets = [28, 384], sizes = [14, 128], strides = [1, 1]} : vector<56x512xf32> to vector<14x128xf32>
    %182 = vector.extract_strided_slice %44 {offsets = [256, 0], sizes = [128, 64], strides = [1, 1]} : vector<512x64xf32> to vector<128x64xf32>
    %cst_91 = arith.constant dense<0.000000e+00> : vector<14x64xf32>
    %183 = tpu.matmul %181, %182, %cst_91 {dimension_numbers = #tpu.dot_dimension_numbers<[1], [0], [0], [1], [0, 0, 1, 1], [], []>} : vector<14x128xf32>, vector<128x64xf32>, vector<14x64xf32> -> vector<14x64xf32>
    %184 = arith.addf %180, %183 : vector<14x64xf32>
    %185 = vector.extract_strided_slice %43 {offsets = [42, 384], sizes = [14, 128], strides = [1, 1]} : vector<56x512xf32> to vector<14x128xf32>
    %186 = vector.extract_strided_slice %44 {offsets = [384, 0], sizes = [128, 64], strides = [1, 1]} : vector<512x64xf32> to vector<128x64xf32>
    %cst_92 = arith.constant dense<0.000000e+00> : vector<14x64xf32>
    %187 = tpu.matmul %185, %186, %cst_92 {dimension_numbers = #tpu.dot_dimension_numbers<[1], [0], [0], [1], [0, 0, 1, 1], [], []>} : vector<14x128xf32>, vector<128x64xf32>, vector<14x64xf32> -> vector<14x64xf32>
    %188 = arith.addf %184, %187 : vector<14x64xf32>
    %cst_93 = arith.constant 0.000000e+00 : f32
    %189 = vector.broadcast %cst_93 : f32 to vector<14x64xf32>
    %190 = arith.maximumf %188, %189 : vector<14x64xf32>
    %c1_94 = arith.constant 1 : index
    %c448_95 = arith.constant 448 : index
    %191 = vector.load %arg14[%c1_94, %c448_95] : memref<16x576xf32, #tpu.memory_space<vmem>>, vector<14x64xf32>
    tpu.vector_store %arg14[%c1_94, %c448_95], %190 {strides = array<i32>} : memref<16x576xf32, #tpu.memory_space<vmem>>, vector<14x64xf32>,
    %c0_96 = arith.constant 0 : index
    %c0_97 = arith.constant 0 : index
    %192 = vector.load %arg7[%c0_96, %c0_97] : memref<28x16xf32, #tpu.memory_space<vmem>>, vector<28x16xf32>
    %c0_98 = arith.constant 0 : index
    %c0_99 = arith.constant 0 : index
    %193 = vector.load %arg14[%c0_98, %c0_99] : memref<16x576xf32, #tpu.memory_space<vmem>>, vector<16x576xf32>
    %cst_100 = arith.constant dense<0.000000e+00> : vector<28x576xf32>
    %194 = tpu.matmul %192, %193, %cst_100 {dimension_numbers = #tpu.dot_dimension_numbers<[1], [0], [0], [1], [0, 0, 1, 1], [], []>} : vector<28x16xf32>, vector<16x576xf32>, vector<28x576xf32> -> vector<28x576xf32>
    %c0_101 = arith.constant 0 : index
    %c0_102 = arith.constant 0 : index
    %195 = vector.load %arg8[%c0_101, %c0_102] : memref<1024x128xf32, #tpu.memory_space<vmem>>, vector<1024x128xf32>
    %c0_103 = arith.constant 0 : index
    %c0_104 = arith.constant 0 : index
    %196 = vector.load %arg9[%c0_103, %c0_104] : memref<1x128xf32, #tpu.memory_space<vmem>>, vector<1x128xf32>
    %197 = vector.extract_strided_slice %194 {offsets = [0, 0], sizes = [7, 256], strides = [1, 1]} : vector<28x576xf32> to vector<7x256xf32>
    %198 = vector.extract_strided_slice %195 {offsets = [0, 0], sizes = [256, 128], strides = [1, 1]} : vector<1024x128xf32> to vector<256x128xf32>
    %cst_105 = arith.constant dense<0.000000e+00> : vector<7x128xf32>
    %199 = tpu.matmul %197, %198, %cst_105 {dimension_numbers = #tpu.dot_dimension_numbers<[1], [0], [0], [1], [0, 0, 1, 1], [], []>} : vector<7x256xf32>, vector<256x128xf32>, vector<7x128xf32> -> vector<7x128xf32>
    %200 = vector.broadcast %196 : vector<1x128xf32> to vector<7x128xf32>
    %201 = arith.addf %200, %199 : vector<7x128xf32>
    %202 = vector.extract_strided_slice %194 {offsets = [7, 0], sizes = [7, 256], strides = [1, 1]} : vector<28x576xf32> to vector<7x256xf32>
    %203 = vector.extract_strided_slice %195 {offsets = [256, 0], sizes = [256, 128], strides = [1, 1]} : vector<1024x128xf32> to vector<256x128xf32>
    %cst_106 = arith.constant dense<0.000000e+00> : vector<7x128xf32>
    %204 = tpu.matmul %202, %203, %cst_106 {dimension_numbers = #tpu.dot_dimension_numbers<[1], [0], [0], [1], [0, 0, 1, 1], [], []>} : vector<7x256xf32>, vector<256x128xf32>, vector<7x128xf32> -> vector<7x128xf32>
    %205 = arith.addf %201, %204 : vector<7x128xf32>
    %206 = vector.extract_strided_slice %194 {offsets = [14, 0], sizes = [7, 256], strides = [1, 1]} : vector<28x576xf32> to vector<7x256xf32>
    %207 = vector.extract_strided_slice %195 {offsets = [512, 0], sizes = [256, 128], strides = [1, 1]} : vector<1024x128xf32> to vector<256x128xf32>
    %cst_107 = arith.constant dense<0.000000e+00> : vector<7x128xf32>
    %208 = tpu.matmul %206, %207, %cst_107 {dimension_numbers = #tpu.dot_dimension_numbers<[1], [0], [0], [1], [0, 0, 1, 1], [], []>} : vector<7x256xf32>, vector<256x128xf32>, vector<7x128xf32> -> vector<7x128xf32>
    %209 = arith.addf %205, %208 : vector<7x128xf32>
    %210 = vector.extract_strided_slice %194 {offsets = [21, 0], sizes = [7, 256], strides = [1, 1]} : vector<28x576xf32> to vector<7x256xf32>
    %211 = vector.extract_strided_slice %195 {offsets = [768, 0], sizes = [256, 128], strides = [1, 1]} : vector<1024x128xf32> to vector<256x128xf32>
    %cst_108 = arith.constant dense<0.000000e+00> : vector<7x128xf32>
    %212 = tpu.matmul %210, %211, %cst_108 {dimension_numbers = #tpu.dot_dimension_numbers<[1], [0], [0], [1], [0, 0, 1, 1], [], []>} : vector<7x256xf32>, vector<256x128xf32>, vector<7x128xf32> -> vector<7x128xf32>
    %213 = arith.addf %209, %212 : vector<7x128xf32>
    %cst_109 = arith.constant 0.000000e+00 : f32
    %214 = vector.broadcast %cst_109 : f32 to vector<7x128xf32>
    %215 = arith.maximumf %213, %214 : vector<7x128xf32>
    %216 = vector.extract_strided_slice %215 {offsets = [0, 0], sizes = [1, 128], strides = [1, 1]} : vector<7x128xf32> to vector<1x128xf32>
    %c0_110 = arith.constant 0 : index
    %c0_111 = arith.constant 0 : index
    %217 = vector.load %arg15[%c0_110, %c0_111] : memref<1x2688xf32, #tpu.memory_space<vmem>>, vector<1x128xf32>
    tpu.vector_store %arg15[%c0_110, %c0_111], %216 {strides = array<i32>} : memref<1x2688xf32, #tpu.memory_space<vmem>>, vector<1x128xf32>,
    %218 = vector.extract_strided_slice %215 {offsets = [1, 0], sizes = [1, 128], strides = [1, 1]} : vector<7x128xf32> to vector<1x128xf32>
    %c0_112 = arith.constant 0 : index
    %c128_113 = arith.constant 128 : index
    %219 = vector.load %arg15[%c0_112, %c128_113] : memref<1x2688xf32, #tpu.memory_space<vmem>>, vector<1x128xf32>
    tpu.vector_store %arg15[%c0_112, %c128_113], %218 {strides = array<i32>} : memref<1x2688xf32, #tpu.memory_space<vmem>>, vector<1x128xf32>,
    %220 = vector.extract_strided_slice %215 {offsets = [2, 0], sizes = [1, 128], strides = [1, 1]} : vector<7x128xf32> to vector<1x128xf32>
    %c0_114 = arith.constant 0 : index
    %c256_115 = arith.constant 256 : index
    %221 = vector.load %arg15[%c0_114, %c256_115] : memref<1x2688xf32, #tpu.memory_space<vmem>>, vector<1x128xf32>
    tpu.vector_store %arg15[%c0_114, %c256_115], %220 {strides = array<i32>} : memref<1x2688xf32, #tpu.memory_space<vmem>>, vector<1x128xf32>,
    %222 = vector.extract_strided_slice %215 {offsets = [3, 0], sizes = [1, 128], strides = [1, 1]} : vector<7x128xf32> to vector<1x128xf32>
    %c0_116 = arith.constant 0 : index
    %c384_117 = arith.constant 384 : index
    %223 = vector.load %arg15[%c0_116, %c384_117] : memref<1x2688xf32, #tpu.memory_space<vmem>>, vector<1x128xf32>
    tpu.vector_store %arg15[%c0_116, %c384_117], %222 {strides = array<i32>} : memref<1x2688xf32, #tpu.memory_space<vmem>>, vector<1x128xf32>,
    %224 = vector.extract_strided_slice %215 {offsets = [4, 0], sizes = [1, 128], strides = [1, 1]} : vector<7x128xf32> to vector<1x128xf32>
    %c0_118 = arith.constant 0 : index
    %c512 = arith.constant 512 : index
    %225 = vector.load %arg15[%c0_118, %c512] : memref<1x2688xf32, #tpu.memory_space<vmem>>, vector<1x128xf32>
    tpu.vector_store %arg15[%c0_118, %c512], %224 {strides = array<i32>} : memref<1x2688xf32, #tpu.memory_space<vmem>>, vector<1x128xf32>,
    %226 = vector.extract_strided_slice %215 {offsets = [5, 0], sizes = [1, 128], strides = [1, 1]} : vector<7x128xf32> to vector<1x128xf32>
    %c0_119 = arith.constant 0 : index
    %c640 = arith.constant 640 : index
    %227 = vector.load %arg15[%c0_119, %c640] : memref<1x2688xf32, #tpu.memory_space<vmem>>, vector<1x128xf32>
    tpu.vector_store %arg15[%c0_119, %c640], %226 {strides = array<i32>} : memref<1x2688xf32, #tpu.memory_space<vmem>>, vector<1x128xf32>,
    %228 = vector.extract_strided_slice %215 {offsets = [6, 0], sizes = [1, 128], strides = [1, 1]} : vector<7x128xf32> to vector<1x128xf32>
    %c0_120 = arith.constant 0 : index
    %c768 = arith.constant 768 : index
    %229 = vector.load %arg15[%c0_120, %c768] : memref<1x2688xf32, #tpu.memory_space<vmem>>, vector<1x128xf32>
    tpu.vector_store %arg15[%c0_120, %c768], %228 {strides = array<i32>} : memref<1x2688xf32, #tpu.memory_space<vmem>>, vector<1x128xf32>,
    %c0_121 = arith.constant 0 : index
    %c0_122 = arith.constant 0 : index
    %230 = vector.load %arg9[%c0_121, %c0_122] : memref<1x128xf32, #tpu.memory_space<vmem>>, vector<1x128xf32>
    %231 = vector.extract_strided_slice %194 {offsets = [0, 128], sizes = [7, 256], strides = [1, 1]} : vector<28x576xf32> to vector<7x256xf32>
    %232 = vector.extract_strided_slice %195 {offsets = [0, 0], sizes = [256, 128], strides = [1, 1]} : vector<1024x128xf32> to vector<256x128xf32>
    %cst_123 = arith.constant dense<0.000000e+00> : vector<7x128xf32>
    %233 = tpu.matmul %231, %232, %cst_123 {dimension_numbers = #tpu.dot_dimension_numbers<[1], [0], [0], [1], [0, 0, 1, 1], [], []>} : vector<7x256xf32>, vector<256x128xf32>, vector<7x128xf32> -> vector<7x128xf32>
    %234 = vector.broadcast %230 : vector<1x128xf32> to vector<7x128xf32>
    %235 = arith.addf %234, %233 : vector<7x128xf32>
    %236 = vector.extract_strided_slice %194 {offsets = [7, 128], sizes = [7, 256], strides = [1, 1]} : vector<28x576xf32> to vector<7x256xf32>
    %237 = vector.extract_strided_slice %195 {offsets = [256, 0], sizes = [256, 128], strides = [1, 1]} : vector<1024x128xf32> to vector<256x128xf32>
    %cst_124 = arith.constant dense<0.000000e+00> : vector<7x128xf32>
    %238 = tpu.matmul %236, %237, %cst_124 {dimension_numbers = #tpu.dot_dimension_numbers<[1], [0], [0], [1], [0, 0, 1, 1], [], []>} : vector<7x256xf32>, vector<256x128xf32>, vector<7x128xf32> -> vector<7x128xf32>
    %239 = arith.addf %235, %238 : vector<7x128xf32>
    %240 = vector.extract_strided_slice %194 {offsets = [14, 128], sizes = [7, 256], strides = [1, 1]} : vector<28x576xf32> to vector<7x256xf32>
    %241 = vector.extract_strided_slice %195 {offsets = [512, 0], sizes = [256, 128], strides = [1, 1]} : vector<1024x128xf32> to vector<256x128xf32>
    %cst_125 = arith.constant dense<0.000000e+00> : vector<7x128xf32>
    %242 = tpu.matmul %240, %241, %cst_125 {dimension_numbers = #tpu.dot_dimension_numbers<[1], [0], [0], [1], [0, 0, 1, 1], [], []>} : vector<7x256xf32>, vector<256x128xf32>, vector<7x128xf32> -> vector<7x128xf32>
    %243 = arith.addf %239, %242 : vector<7x128xf32>
    %244 = vector.extract_strided_slice %194 {offsets = [21, 128], sizes = [7, 256], strides = [1, 1]} : vector<28x576xf32> to vector<7x256xf32>
    %245 = vector.extract_strided_slice %195 {offsets = [768, 0], sizes = [256, 128], strides = [1, 1]} : vector<1024x128xf32> to vector<256x128xf32>
    %cst_126 = arith.constant dense<0.000000e+00> : vector<7x128xf32>
    %246 = tpu.matmul %244, %245, %cst_126 {dimension_numbers = #tpu.dot_dimension_numbers<[1], [0], [0], [1], [0, 0, 1, 1], [], []>} : vector<7x256xf32>, vector<256x128xf32>, vector<7x128xf32> -> vector<7x128xf32>
    %247 = arith.addf %243, %246 : vector<7x128xf32>
    %cst_127 = arith.constant 0.000000e+00 : f32
    %248 = vector.broadcast %cst_127 : f32 to vector<7x128xf32>
    %249 = arith.maximumf %247, %248 : vector<7x128xf32>
    %250 = vector.extract_strided_slice %249 {offsets = [0, 0], sizes = [1, 128], strides = [1, 1]} : vector<7x128xf32> to vector<1x128xf32>
    %c0_128 = arith.constant 0 : index
    %c896 = arith.constant 896 : index
    %251 = vector.load %arg15[%c0_128, %c896] : memref<1x2688xf32, #tpu.memory_space<vmem>>, vector<1x128xf32>
    tpu.vector_store %arg15[%c0_128, %c896], %250 {strides = array<i32>} : memref<1x2688xf32, #tpu.memory_space<vmem>>, vector<1x128xf32>,
    %252 = vector.extract_strided_slice %249 {offsets = [1, 0], sizes = [1, 128], strides = [1, 1]} : vector<7x128xf32> to vector<1x128xf32>
    %c0_129 = arith.constant 0 : index
    %c1024 = arith.constant 1024 : index
    %253 = vector.load %arg15[%c0_129, %c1024] : memref<1x2688xf32, #tpu.memory_space<vmem>>, vector<1x128xf32>
    tpu.vector_store %arg15[%c0_129, %c1024], %252 {strides = array<i32>} : memref<1x2688xf32, #tpu.memory_space<vmem>>, vector<1x128xf32>,
    %254 = vector.extract_strided_slice %249 {offsets = [2, 0], sizes = [1, 128], strides = [1, 1]} : vector<7x128xf32> to vector<1x128xf32>
    %c0_130 = arith.constant 0 : index
    %c1152 = arith.constant 1152 : index
    %255 = vector.load %arg15[%c0_130, %c1152] : memref<1x2688xf32, #tpu.memory_space<vmem>>, vector<1x128xf32>
    tpu.vector_store %arg15[%c0_130, %c1152], %254 {strides = array<i32>} : memref<1x2688xf32, #tpu.memory_space<vmem>>, vector<1x128xf32>,
    %256 = vector.extract_strided_slice %249 {offsets = [3, 0], sizes = [1, 128], strides = [1, 1]} : vector<7x128xf32> to vector<1x128xf32>
    %c0_131 = arith.constant 0 : index
    %c1280 = arith.constant 1280 : index
    %257 = vector.load %arg15[%c0_131, %c1280] : memref<1x2688xf32, #tpu.memory_space<vmem>>, vector<1x128xf32>
    tpu.vector_store %arg15[%c0_131, %c1280], %256 {strides = array<i32>} : memref<1x2688xf32, #tpu.memory_space<vmem>>, vector<1x128xf32>,
    %258 = vector.extract_strided_slice %249 {offsets = [4, 0], sizes = [1, 128], strides = [1, 1]} : vector<7x128xf32> to vector<1x128xf32>
    %c0_132 = arith.constant 0 : index
    %c1408 = arith.constant 1408 : index
    %259 = vector.load %arg15[%c0_132, %c1408] : memref<1x2688xf32, #tpu.memory_space<vmem>>, vector<1x128xf32>
    tpu.vector_store %arg15[%c0_132, %c1408], %258 {strides = array<i32>} : memref<1x2688xf32, #tpu.memory_space<vmem>>, vector<1x128xf32>,
    %260 = vector.extract_strided_slice %249 {offsets = [5, 0], sizes = [1, 128], strides = [1, 1]} : vector<7x128xf32> to vector<1x128xf32>
    %c0_133 = arith.constant 0 : index
    %c1536 = arith.constant 1536 : index
    %261 = vector.load %arg15[%c0_133, %c1536] : memref<1x2688xf32, #tpu.memory_space<vmem>>, vector<1x128xf32>
    tpu.vector_store %arg15[%c0_133, %c1536], %260 {strides = array<i32>} : memref<1x2688xf32, #tpu.memory_space<vmem>>, vector<1x128xf32>,
    %262 = vector.extract_strided_slice %249 {offsets = [6, 0], sizes = [1, 128], strides = [1, 1]} : vector<7x128xf32> to vector<1x128xf32>
    %c0_134 = arith.constant 0 : index
    %c1664 = arith.constant 1664 : index
    %263 = vector.load %arg15[%c0_134, %c1664] : memref<1x2688xf32, #tpu.memory_space<vmem>>, vector<1x128xf32>
    tpu.vector_store %arg15[%c0_134, %c1664], %262 {strides = array<i32>} : memref<1x2688xf32, #tpu.memory_space<vmem>>, vector<1x128xf32>,
    %c0_135 = arith.constant 0 : index
    %c0_136 = arith.constant 0 : index
    %264 = vector.load %arg9[%c0_135, %c0_136] : memref<1x128xf32, #tpu.memory_space<vmem>>, vector<1x128xf32>
    %265 = vector.extract_strided_slice %194 {offsets = [0, 256], sizes = [7, 256], strides = [1, 1]} : vector<28x576xf32> to vector<7x256xf32>
    %266 = vector.extract_strided_slice %195 {offsets = [0, 0], sizes = [256, 128], strides = [1, 1]} : vector<1024x128xf32> to vector<256x128xf32>
    %cst_137 = arith.constant dense<0.000000e+00> : vector<7x128xf32>
    %267 = tpu.matmul %265, %266, %cst_137 {dimension_numbers = #tpu.dot_dimension_numbers<[1], [0], [0], [1], [0, 0, 1, 1], [], []>} : vector<7x256xf32>, vector<256x128xf32>, vector<7x128xf32> -> vector<7x128xf32>
    %268 = vector.broadcast %264 : vector<1x128xf32> to vector<7x128xf32>
    %269 = arith.addf %268, %267 : vector<7x128xf32>
    %270 = vector.extract_strided_slice %194 {offsets = [7, 256], sizes = [7, 256], strides = [1, 1]} : vector<28x576xf32> to vector<7x256xf32>
    %271 = vector.extract_strided_slice %195 {offsets = [256, 0], sizes = [256, 128], strides = [1, 1]} : vector<1024x128xf32> to vector<256x128xf32>
    %cst_138 = arith.constant dense<0.000000e+00> : vector<7x128xf32>
    %272 = tpu.matmul %270, %271, %cst_138 {dimension_numbers = #tpu.dot_dimension_numbers<[1], [0], [0], [1], [0, 0, 1, 1], [], []>} : vector<7x256xf32>, vector<256x128xf32>, vector<7x128xf32> -> vector<7x128xf32>
    %273 = arith.addf %269, %272 : vector<7x128xf32>
    %274 = vector.extract_strided_slice %194 {offsets = [14, 256], sizes = [7, 256], strides = [1, 1]} : vector<28x576xf32> to vector<7x256xf32>
    %275 = vector.extract_strided_slice %195 {offsets = [512, 0], sizes = [256, 128], strides = [1, 1]} : vector<1024x128xf32> to vector<256x128xf32>
    %cst_139 = arith.constant dense<0.000000e+00> : vector<7x128xf32>
    %276 = tpu.matmul %274, %275, %cst_139 {dimension_numbers = #tpu.dot_dimension_numbers<[1], [0], [0], [1], [0, 0, 1, 1], [], []>} : vector<7x256xf32>, vector<256x128xf32>, vector<7x128xf32> -> vector<7x128xf32>
    %277 = arith.addf %273, %276 : vector<7x128xf32>
    %278 = vector.extract_strided_slice %194 {offsets = [21, 256], sizes = [7, 256], strides = [1, 1]} : vector<28x576xf32> to vector<7x256xf32>
    %279 = vector.extract_strided_slice %195 {offsets = [768, 0], sizes = [256, 128], strides = [1, 1]} : vector<1024x128xf32> to vector<256x128xf32>
    %cst_140 = arith.constant dense<0.000000e+00> : vector<7x128xf32>
    %280 = tpu.matmul %278, %279, %cst_140 {dimension_numbers = #tpu.dot_dimension_numbers<[1], [0], [0], [1], [0, 0, 1, 1], [], []>} : vector<7x256xf32>, vector<256x128xf32>, vector<7x128xf32> -> vector<7x128xf32>
    %281 = arith.addf %277, %280 : vector<7x128xf32>
    %cst_141 = arith.constant 0.000000e+00 : f32
    %282 = vector.broadcast %cst_141 : f32 to vector<7x128xf32>
    %283 = arith.maximumf %281, %282 : vector<7x128xf32>
    %284 = vector.extract_strided_slice %283 {offsets = [0, 0], sizes = [1, 128], strides = [1, 1]} : vector<7x128xf32> to vector<1x128xf32>
    %c0_142 = arith.constant 0 : index
    %c1792 = arith.constant 1792 : index
    %285 = vector.load %arg15[%c0_142, %c1792] : memref<1x2688xf32, #tpu.memory_space<vmem>>, vector<1x128xf32>
    tpu.vector_store %arg15[%c0_142, %c1792], %284 {strides = array<i32>} : memref<1x2688xf32, #tpu.memory_space<vmem>>, vector<1x128xf32>,
    %286 = vector.extract_strided_slice %283 {offsets = [1, 0], sizes = [1, 128], strides = [1, 1]} : vector<7x128xf32> to vector<1x128xf32>
    %c0_143 = arith.constant 0 : index
    %c1920 = arith.constant 1920 : index
    %287 = vector.load %arg15[%c0_143, %c1920] : memref<1x2688xf32, #tpu.memory_space<vmem>>, vector<1x128xf32>
    tpu.vector_store %arg15[%c0_143, %c1920], %286 {strides = array<i32>} : memref<1x2688xf32, #tpu.memory_space<vmem>>, vector<1x128xf32>,
    %288 = vector.extract_strided_slice %283 {offsets = [2, 0], sizes = [1, 128], strides = [1, 1]} : vector<7x128xf32> to vector<1x128xf32>
    %c0_144 = arith.constant 0 : index
    %c2048 = arith.constant 2048 : index
    %289 = vector.load %arg15[%c0_144, %c2048] : memref<1x2688xf32, #tpu.memory_space<vmem>>, vector<1x128xf32>
    tpu.vector_store %arg15[%c0_144, %c2048], %288 {strides = array<i32>} : memref<1x2688xf32, #tpu.memory_space<vmem>>, vector<1x128xf32>,
    %290 = vector.extract_strided_slice %283 {offsets = [3, 0], sizes = [1, 128], strides = [1, 1]} : vector<7x128xf32> to vector<1x128xf32>
    %c0_145 = arith.constant 0 : index
    %c2176 = arith.constant 2176 : index
    %291 = vector.load %arg15[%c0_145, %c2176] : memref<1x2688xf32, #tpu.memory_space<vmem>>, vector<1x128xf32>
    tpu.vector_store %arg15[%c0_145, %c2176], %290 {strides = array<i32>} : memref<1x2688xf32, #tpu.memory_space<vmem>>, vector<1x128xf32>,
    %292 = vector.extract_strided_slice %283 {offsets = [4, 0], sizes = [1, 128], strides = [1, 1]} : vector<7x128xf32> to vector<1x128xf32>
    %c0_146 = arith.constant 0 : index
    %c2304 = arith.constant 2304 : index
    %293 = vector.load %arg15[%c0_146, %c2304] : memref<1x2688xf32, #tpu.memory_space<vmem>>, vector<1x128xf32>
    tpu.vector_store %arg15[%c0_146, %c2304], %292 {strides = array<i32>} : memref<1x2688xf32, #tpu.memory_space<vmem>>, vector<1x128xf32>,
    %294 = vector.extract_strided_slice %283 {offsets = [5, 0], sizes = [1, 128], strides = [1, 1]} : vector<7x128xf32> to vector<1x128xf32>
    %c0_147 = arith.constant 0 : index
    %c2432 = arith.constant 2432 : index
    %295 = vector.load %arg15[%c0_147, %c2432] : memref<1x2688xf32, #tpu.memory_space<vmem>>, vector<1x128xf32>
    tpu.vector_store %arg15[%c0_147, %c2432], %294 {strides = array<i32>} : memref<1x2688xf32, #tpu.memory_space<vmem>>, vector<1x128xf32>,
    %296 = vector.extract_strided_slice %283 {offsets = [6, 0], sizes = [1, 128], strides = [1, 1]} : vector<7x128xf32> to vector<1x128xf32>
    %c0_148 = arith.constant 0 : index
    %c2560 = arith.constant 2560 : index
    %297 = vector.load %arg15[%c0_148, %c2560] : memref<1x2688xf32, #tpu.memory_space<vmem>>, vector<1x128xf32>
    tpu.vector_store %arg15[%c0_148, %c2560], %296 {strides = array<i32>} : memref<1x2688xf32, #tpu.memory_space<vmem>>, vector<1x128xf32>,
    %c0_149 = arith.constant 0 : index
    %c0_150 = arith.constant 0 : index
    %298 = vector.load %arg15[%c0_149, %c0_150] : memref<1x2688xf32, #tpu.memory_space<vmem>>, vector<1x2688xf32>
    %c0_151 = arith.constant 0 : index
    %c0_152 = arith.constant 0 : index
    %299 = vector.load %arg10[%c0_151, %c0_152] : memref<2688x128xf32, #tpu.memory_space<vmem>>, vector<2688x128xf32>
    %cst_153 = arith.constant dense<0.000000e+00> : vector<1x128xf32>
    %300 = tpu.matmul %298, %299, %cst_153 {dimension_numbers = #tpu.dot_dimension_numbers<[1], [0], [0], [1], [0, 0, 1, 1], [], []>} : vector<1x2688xf32>, vector<2688x128xf32>, vector<1x128xf32> -> vector<1x128xf32>
    %c0_154 = arith.constant 0 : index
    %c0_155 = arith.constant 0 : index
    %301 = vector.load %arg11[%c0_154, %c0_155] : memref<1x128xf32, #tpu.memory_space<vmem>>, vector<1x128xf32>
    %302 = arith.addf %300, %301 : vector<1x128xf32>
    %c0_156 = arith.constant 0 : index
    %c0_157 = arith.constant 0 : index
    %c0_158 = arith.constant 0 : index
    %303 = vector.load %arg12[%c0_156, %c0_157, %c0_158] : memref<1x1x128xf32, #tpu.memory_space<vmem>>, vector<1x1x128xf32>
    %304 = vector.shape_cast %303 : vector<1x1x128xf32> to vector<1x128xf32>
    %305 = vector.shape_cast %302 : vector<1x128xf32> to vector<1x1x128xf32>
    tpu.vector_store %arg12[%c0_156, %c0_157, %c0_158], %305 {strides = array<i32>} : memref<1x1x128xf32, #tpu.memory_space<vmem>>, vector<1x1x128xf32>,
    return
  }
  func.func @transform_0(%arg0: i32) -> (i32, i32, i32) {
    %c0_i32 = arith.constant 0 : i32
    %c0_i32_0 = arith.constant 0 : i32
    %c0_i32_1 = arith.constant 0 : i32
    return %arg0, %c0_i32, %c0_i32_0 : i32, i32, i32
  }
  func.func @transform_1(%arg0: i32) -> (i32, i32) {
    %c0_i32 = arith.constant 0 : i32
    %c0_i32_0 = arith.constant 0 : i32
    %c0_i32_1 = arith.constant 0 : i32
    return %c0_i32, %c0_i32_0 : i32, i32
  }
  func.func @transform_2(%arg0: i32) -> (i32, i32) {
    %c0_i32 = arith.constant 0 : i32
    %c0_i32_0 = arith.constant 0 : i32
    %c0_i32_1 = arith.constant 0 : i32
    return %c0_i32, %c0_i32_0 : i32, i32
  }
  func.func @transform_3(%arg0: i32) -> (i32, i32) {
    %c0_i32 = arith.constant 0 : i32
    %c0_i32_0 = arith.constant 0 : i32
    %c0_i32_1 = arith.constant 0 : i32
    return %c0_i32, %c0_i32_0 : i32, i32
  }
  func.func @transform_4(%arg0: i32) -> (i32, i32) {
    %c0_i32 = arith.constant 0 : i32
    %c0_i32_0 = arith.constant 0 : i32
    %c0_i32_1 = arith.constant 0 : i32
    return %c0_i32, %c0_i32_0 : i32, i32
  }
  func.func @transform_5(%arg0: i32) -> (i32, i32) {
    %c0_i32 = arith.constant 0 : i32
    %c0_i32_0 = arith.constant 0 : i32
    %c0_i32_1 = arith.constant 0 : i32
    return %c0_i32, %c0_i32_0 : i32, i32
  }
  func.func @transform_6(%arg0: i32) -> (i32, i32) {
    %c0_i32 = arith.constant 0 : i32
    %c0_i32_0 = arith.constant 0 : i32
    %c0_i32_1 = arith.constant 0 : i32
    return %c0_i32, %c0_i32_0 : i32, i32
  }
  func.func @transform_7(%arg0: i32) -> (i32, i32) {
    %c0_i32 = arith.constant 0 : i32
    %c0_i32_0 = arith.constant 0 : i32
    %c0_i32_1 = arith.constant 0 : i32
    return %c0_i32, %c0_i32_0 : i32, i32
  }
  func.func @transform_8(%arg0: i32) -> (i32, i32) {
    %c0_i32 = arith.constant 0 : i32
    %c0_i32_0 = arith.constant 0 : i32
    %c0_i32_1 = arith.constant 0 : i32
    return %c0_i32, %c0_i32_0 : i32, i32
  }
  func.func @transform_9(%arg0: i32) -> (i32, i32) {
    %c0_i32 = arith.constant 0 : i32
    %c0_i32_0 = arith.constant 0 : i32
    %c0_i32_1 = arith.constant 0 : i32
    return %c0_i32, %c0_i32_0 : i32, i32
  }
  func.func @transform_10(%arg0: i32) -> (i32, i32) {
    %c0_i32 = arith.constant 0 : i32
    %c0_i32_0 = arith.constant 0 : i32
    %c0_i32_1 = arith.constant 0 : i32
    return %c0_i32, %c0_i32_0 : i32, i32
  }
  func.func @transform_11(%arg0: i32) -> (i32, i32, i32) {
    %c0_i32 = arith.constant 0 : i32
    %c0_i32_0 = arith.constant 0 : i32
    %c0_i32_1 = arith.constant 0 : i32
    return %arg0, %c0_i32, %c0_i32_0 : i32, i32, i32
  }
}

</mosaic_0001>

<llo_original>
// kernel: encoder_forward.1
$region0: #{encoder_forward.1}
  #allocation0 [shape = 'u32[]', space=smem, size = 0x4, offset = 0x4, fixed_abs, tag = 'smem constant byte address 0x4 - core index']
  #allocation1 [shape = 'u32[144,128]{1,0:T(1,128)}', space=vmem, size = 0x12000, scoped, tag = 'internal scratch']
  #allocation2 [shape = 'f32[30,512]{1,0:T(8,128)}', space=vmem, size = 0x10000, scoped, tag = 'scratch operand']
  #allocation3 [shape = 'f32[16,576]{1,0:T(8,128)}', space=vmem, size = 0xa000, scoped, tag = 'scratch operand']
  #allocation4 [shape = 'f32[1,2688]{1,0:T(1,128)}', space=vmem, size = 0x2a00, scoped, tag = 'scratch operand']
  %s0 = inlined_call_operand.vmem [shape: f32[2,392,16], index: 0, kind: input, shape index: {}]
  %s1 = inlined_call_operand.vmem [shape: f32[16,32], index: 1, kind: input, shape index: {}]
  %s2 = inlined_call_operand.vmem [shape: f32[1,32], index: 2, kind: input, shape index: {}]
  %s3 = inlined_call_operand.vmem [shape: f32[56,30], index: 3, kind: input, shape index: {}]
  %s4 = inlined_call_operand.vmem [shape: f32[512,64], index: 4, kind: input, shape index: {}]
  %s5 = inlined_call_operand.vmem [shape: f32[1,64], index: 5, kind: input, shape index: {}]
  %s6 = inlined_call_operand.vmem [shape: f32[28,16], index: 6, kind: input, shape index: {}]
  %s7 = inlined_call_operand.vmem [shape: f32[1024,128], index: 7, kind: input, shape index: {}]
  %s8 = inlined_call_operand.vmem [shape: f32[1,128], index: 8, kind: input, shape index: {}]
  %s9 = inlined_call_operand.vmem [shape: f32[2688,128], index: 9, kind: input, shape index: {}]
  %s10 = inlined_call_operand.vmem [shape: f32[1,128], index: 10, kind: input, shape index: {}]
  %s11 = inlined_call_operand.vmem [shape: f32[2,1,128], index: 11, kind: output, shape index: {}]
  %s12 = sld [smem:[#allocation0]]
  $region77: #{encoder_forward.1} parent=0
    _
  %s14 = ssub.s32 1, %s12
  %s15 = scalar_select 0, %s14, %s12
  loop: start=0, step=1, limit=4
  $region2: #{encoder_forward.1} parent=0 // loop_pre_header
    _
  $region3: #{encoder_forward.1} parent=0 // loop_header
    %s17 = sphi 0, %s21
    %p18 = scmp.ge.s32.totalorder %s17, 4
    %s27 = sphi 0, %s29
    %s30 = sphi 0, %s27
    %s31 = sphi 0, %s30
    %s47 = sphi 0, %s31
    %s51 = sphi 0, %s51
    %s53 = sphi 0, %s51
    %s54 = sphi 0, %s53
    %s68 = sphi 0, %s54
    %s72 = sphi 0, %s72
    %s74 = sphi 0, %s72
    %s75 = sphi 0, %s74
    %s89 = sphi 0, %s75
    %s93 = sphi 0, %s93
    %s95 = sphi 0, %s93
    %s96 = sphi 0, %s95
    %s110 = sphi 0, %s96
    %s114 = sphi 0, %s114
    %s116 = sphi 0, %s114
    %s117 = sphi 0, %s116
    %s131 = sphi 0, %s117
    %s135 = sphi 0, %s135
    %s137 = sphi 0, %s135
    %s138 = sphi 0, %s137
    %s152 = sphi 0, %s138
    %s156 = sphi 0, %s156
    %s158 = sphi 0, %s156
    %s159 = sphi 0, %s158
    %s173 = sphi 0, %s159
    %s177 = sphi 0, %s177
    %s179 = sphi 0, %s177
    %s180 = sphi 0, %s179
    %s194 = sphi 0, %s180
    %s198 = sphi 0, %s198
    %s200 = sphi 0, %s198
    %s201 = sphi 0, %s200
    %s215 = sphi 0, %s201
    %s219 = sphi 0, %s219
    %s221 = sphi 0, %s219
    %s222 = sphi 0, %s221
    %s236 = sphi 0, %s222
    %s240 = sphi 0, %s240
    %s242 = sphi 0, %s240
    %s243 = sphi 0, %s242
    %s257 = sphi 0, %s243
    %s263 = sphi 0, %s265
    %s266 = sphi 0, %s263
    %s267 = sphi 0, %s266
    %s283 = sphi 0, %s267
  $region4: #{encoder_forward.1} parent=0 // loop_header_branch
    %20 = sbr.rel (%p18) target = $region8
  $region5: #{encoder_forward.1} parent=0 // loop_body
    %s22 = ssub.s32 %s17, 1
    %s23 = ssub.s32 %s17, 2
    %s24 = sadd.s32 %s17, 1
    %s25 = ssub.s32 %s17, %s24
    %p26 = scmp.eq.s32.totalorder %s25, 0
    %s28 = sadd.s32 %s27, 1
    %s29 = scalar_select %p26, %s27, %s28
    %p32 = pneg %p26
    %p33 = scmp.eq.s32.totalorder %s17, 1
    %p34 = por %p32, %p33
    %p35 = scmp.ne.s32.totalorder %s27, %s30
    %p36 = scmp.eq.s32.totalorder %s17, 0
    %p37 = por %p35, %p36
    %p38 = scmp.ne.s32.totalorder %s27, %s30
    %p39 = scmp.eq.s32.totalorder %s22, 1
    %p40 = por %p38, %p39
    %p41 = scmp.ne.s32.totalorder %s30, %s31
    %p42 = scmp.eq.s32.totalorder %s22, 0
    %p43 = por %p41, %p42
    %p44 = scmp.ne.s32.totalorder %s30, %s31
    %p45 = scmp.eq.s32.totalorder %s23, 1
    %p46 = por %p44, %p45
    %p48 = scmp.ne.s32.totalorder %s31, %s47
    %p49 = scmp.eq.s32.totalorder %s23, 0
    %p50 = por %p48, %p49
    %s52 = sadd.s32 %s51, 1
    %p55 = scmp.eq.s32.totalorder %s17, 1
    %p56 = scmp.ne.s32.totalorder %s51, %s53
    %p57 = scmp.eq.s32.totalorder %s17, 0
    %p58 = por %p56, %p57
    %p59 = scmp.ne.s32.totalorder %s51, %s53
    %p60 = scmp.eq.s32.totalorder %s22, 1
    %p61 = por %p59, %p60
    %p62 = scmp.ne.s32.totalorder %s53, %s54
    %p63 = scmp.eq.s32.totalorder %s22, 0
    %p64 = por %p62, %p63
    %p65 = scmp.ne.s32.totalorder %s53, %s54
    %p66 = scmp.eq.s32.totalorder %s23, 1
    %p67 = por %p65, %p66
    %p69 = scmp.ne.s32.totalorder %s54, %s68
    %p70 = scmp.eq.s32.totalorder %s23, 0
    %p71 = por %p69, %p70
    %s73 = sadd.s32 %s72, 1
    %p76 = scmp.eq.s32.totalorder %s17, 1
    %p77 = scmp.ne.s32.totalorder %s72, %s74
    %p78 = scmp.eq.s32.totalorder %s17, 0
    %p79 = por %p77, %p78
    %p80 = scmp.ne.s32.totalorder %s72, %s74
    %p81 = scmp.eq.s32.totalorder %s22, 1
    %p82 = por %p80, %p81
    %p83 = scmp.ne.s32.totalorder %s74, %s75
    %p84 = scmp.eq.s32.totalorder %s22, 0
    %p85 = por %p83, %p84
    %p86 = scmp.ne.s32.totalorder %s74, %s75
    %p87 = scmp.eq.s32.totalorder %s23, 1
    %p88 = por %p86, %p87
    %p90 = scmp.ne.s32.totalorder %s75, %s89
    %p91 = scmp.eq.s32.totalorder %s23, 0
    %p92 = por %p90, %p91
    %s94 = sadd.s32 %s93, 1
    %p97 = scmp.eq.s32.totalorder %s17, 1
    %p98 = scmp.ne.s32.totalorder %s93, %s95
    %p99 = scmp.eq.s32.totalorder %s17, 0
    %p100 = por %p98, %p99
    %p101 = scmp.ne.s32.totalorder %s93, %s95
    %p102 = scmp.eq.s32.totalorder %s22, 1
    %p103 = por %p101, %p102
    %p104 = scmp.ne.s32.totalorder %s95, %s96
    %p105 = scmp.eq.s32.totalorder %s22, 0
    %p106 = por %p104, %p105
    %p107 = scmp.ne.s32.totalorder %s95, %s96
    %p108 = scmp.eq.s32.totalorder %s23, 1
    %p109 = por %p107, %p108
    %p111 = scmp.ne.s32.totalorder %s96, %s110
    %p112 = scmp.eq.s32.totalorder %s23, 0
    %p113 = por %p111, %p112
    %s115 = sadd.s32 %s114, 1
    %p118 = scmp.eq.s32.totalorder %s17, 1
    %p119 = scmp.ne.s32.totalorder %s114, %s116
    %p120 = scmp.eq.s32.totalorder %s17, 0
    %p121 = por %p119, %p120
    %p122 = scmp.ne.s32.totalorder %s114, %s116
    %p123 = scmp.eq.s32.totalorder %s22, 1
    %p124 = por %p122, %p123
    %p125 = scmp.ne.s32.totalorder %s116, %s117
    %p126 = scmp.eq.s32.totalorder %s22, 0
    %p127 = por %p125, %p126
    %p128 = scmp.ne.s32.totalorder %s116, %s117
    %p129 = scmp.eq.s32.totalorder %s23, 1
    %p130 = por %p128, %p129
    %p132 = scmp.ne.s32.totalorder %s117, %s131
    %p133 = scmp.eq.s32.totalorder %s23, 0
    %p134 = por %p132, %p133
    %s136 = sadd.s32 %s135, 1
    %p139 = scmp.eq.s32.totalorder %s17, 1
    %p140 = scmp.ne.s32.totalorder %s135, %s137
    %p141 = scmp.eq.s32.totalorder %s17, 0
    %p142 = por %p140, %p141
    %p143 = scmp.ne.s32.totalorder %s135, %s137
    %p144 = scmp.eq.s32.totalorder %s22, 1
    %p145 = por %p143, %p144
    %p146 = scmp.ne.s32.totalorder %s137, %s138
    %p147 = scmp.eq.s32.totalorder %s22, 0
    %p148 = por %p146, %p147
    %p149 = scmp.ne.s32.totalorder %s137, %s138
    %p150 = scmp.eq.s32.totalorder %s23, 1
    %p151 = por %p149, %p150
    %p153 = scmp.ne.s32.totalorder %s138, %s152
    %p154 = scmp.eq.s32.totalorder %s23, 0
    %p155 = por %p153, %p154
    %s157 = sadd.s32 %s156, 1
    %p160 = scmp.eq.s32.totalorder %s17, 1
    %p161 = scmp.ne.s32.totalorder %s156, %s158
    %p162 = scmp.eq.s32.totalorder %s17, 0
    %p163 = por %p161, %p162
    %p164 = scmp.ne.s32.totalorder %s156, %s158
    %p165 = scmp.eq.s32.totalorder %s22, 1
    %p166 = por %p164, %p165
    %p167 = scmp.ne.s32.totalorder %s158, %s159
    %p168 = scmp.eq.s32.totalorder %s22, 0
    %p169 = por %p167, %p168
    %p170 = scmp.ne.s32.totalorder %s158, %s159
    %p171 = scmp.eq.s32.totalorder %s23, 1
    %p172 = por %p170, %p171
    %p174 = scmp.ne.s32.totalorder %s159, %s173
    %p175 = scmp.eq.s32.totalorder %s23, 0
    %p176 = por %p174, %p175
    %s178 = sadd.s32 %s177, 1
    %p181 = scmp.eq.s32.totalorder %s17, 1
    %p182 = scmp.ne.s32.totalorder %s177, %s179
    %p183 = scmp.eq.s32.totalorder %s17, 0
    %p184 = por %p182, %p183
    %p185 = scmp.ne.s32.totalorder %s177, %s179
    %p186 = scmp.eq.s32.totalorder %s22, 1
    %p187 = por %p185, %p186
    %p188 = scmp.ne.s32.totalorder %s179, %s180
    %p189 = scmp.eq.s32.totalorder %s22, 0
    %p190 = por %p188, %p189
    %p191 = scmp.ne.s32.totalorder %s179, %s180
    %p192 = scmp.eq.s32.totalorder %s23, 1
    %p193 = por %p191, %p192
    %p195 = scmp.ne.s32.totalorder %s180, %s194
    %p196 = scmp.eq.s32.totalorder %s23, 0
    %p197 = por %p195, %p196
    %s199 = sadd.s32 %s198, 1
    %p202 = scmp.eq.s32.totalorder %s17, 1
    %p203 = scmp.ne.s32.totalorder %s198, %s200
    %p204 = scmp.eq.s32.totalorder %s17, 0
    %p205 = por %p203, %p204
    %p206 = scmp.ne.s32.totalorder %s198, %s200
    %p207 = scmp.eq.s32.totalorder %s22, 1
    %p208 = por %p206, %p207
    %p209 = scmp.ne.s32.totalorder %s200, %s201
    %p210 = scmp.eq.s32.totalorder %s22, 0
    %p211 = por %p209, %p210
    %p212 = scmp.ne.s32.totalorder %s200, %s201
    %p213 = scmp.eq.s32.totalorder %s23, 1
    %p214 = por %p212, %p213
    %p216 = scmp.ne.s32.totalorder %s201, %s215
    %p217 = scmp.eq.s32.totalorder %s23, 0
    %p218 = por %p216, %p217
    %s220 = sadd.s32 %s219, 1
    %p223 = scmp.eq.s32.totalorder %s17, 1
    %p224 = scmp.ne.s32.totalorder %s219, %s221
    %p225 = scmp.eq.s32.totalorder %s17, 0
    %p226 = por %p224, %p225
    %p227 = scmp.ne.s32.totalorder %s219, %s221
    %p228 = scmp.eq.s32.totalorder %s22, 1
    %p229 = por %p227, %p228
    %p230 = scmp.ne.s32.totalorder %s221, %s222
    %p231 = scmp.eq.s32.totalorder %s22, 0
    %p232 = por %p230, %p231
    %p233 = scmp.ne.s32.totalorder %s221, %s222
    %p234 = scmp.eq.s32.totalorder %s23, 1
    %p235 = por %p233, %p234
    %p237 = scmp.ne.s32.totalorder %s222, %s236
    %p238 = scmp.eq.s32.totalorder %s23, 0
    %p239 = por %p237, %p238
    %s241 = sadd.s32 %s240, 1
    %p244 = scmp.eq.s32.totalorder %s17, 1
    %p245 = scmp.ne.s32.totalorder %s240, %s242
    %p246 = scmp.eq.s32.totalorder %s17, 0
    %p247 = por %p245, %p246
    %p248 = scmp.ne.s32.totalorder %s240, %s242
    %p249 = scmp.eq.s32.totalorder %s22, 1
    %p250 = por %p248, %p249
    %p251 = scmp.ne.s32.totalorder %s242, %s243
    %p252 = scmp.eq.s32.totalorder %s22, 0
    %p253 = por %p251, %p252
    %p254 = scmp.ne.s32.totalorder %s242, %s243
    %p255 = scmp.eq.s32.totalorder %s23, 1
    %p256 = por %p254, %p255
    %p258 = scmp.ne.s32.totalorder %s243, %s257
    %p259 = scmp.eq.s32.totalorder %s23, 0
    %p260 = por %p258, %p259
    %s261 = ssub.s32 %s17, %s24
    %p262 = scmp.eq.s32.totalorder %s261, 0
    %s264 = sadd.s32 %s263, 1
    %s265 = scalar_select %p262, %s263, %s264
    %p268 = pneg %p262
    %p269 = scmp.eq.s32.totalorder %s17, 1
    %p270 = por %p268, %p269
    %p271 = scmp.ne.s32.totalorder %s263, %s266
    %p272 = scmp.eq.s32.totalorder %s17, 0
    %p273 = por %p271, %p272
    %p274 = scmp.ne.s32.totalorder %s263, %s266
    %p275 = scmp.eq.s32.totalorder %s22, 1
    %p276 = por %p274, %p275
    %p277 = scmp.ne.s32.totalorder %s266, %s267
    %p278 = scmp.eq.s32.totalorder %s22, 0
    %p279 = por %p277, %p278
    %p280 = scmp.ne.s32.totalorder %s266, %s267
    %p281 = scmp.eq.s32.totalorder %s23, 1
    %p282 = por %p280, %p281
    %p284 = scmp.ne.s32.totalorder %s267, %s283
    %p285 = scmp.eq.s32.totalorder %s23, 0
    %p286 = por %p284, %p285
    %p287 = scmp.le.s32.totalorder 1, %s17
    %p288 = scmp.lt.s32.totalorder %s17, 3
    %p289 = pnand %p287, %p288
    %p290 = pneg %p289
    // Predicated region
    $region9: #{encoder_forward.1} parent=5 // pred_check
      _
    $region10: #{encoder_forward.1} parent=5 // pred_check_branch
      %292 = sbr.rel (%p289) target = $region12
    $region11: #{encoder_forward.1} parent=5 // pred_region
      %s293 = ssub.s32 %s17, 1
      // Predicated region
      $region13: #{encoder_forward.1} parent=11 // pred_check
        %p294 = pneg %p64
      $region14: #{encoder_forward.1} parent=11 // pred_check_branch
        %296 = sbr.rel (%p294) target = $region16
      $region15: #{encoder_forward.1} parent=11 // pred_region
        _
      $region16: #{encoder_forward.1} parent=11 // pred_fallthru
        _
      // Predicated region
      $region17: #{encoder_forward.1} parent=11 // pred_check
        %p297 = pneg %p85
      $region18: #{encoder_forward.1} parent=11 // pred_check_branch
        %299 = sbr.rel (%p297) target = $region20
      $region19: #{encoder_forward.1} parent=11 // pred_region
        _
      $region20: #{encoder_forward.1} parent=11 // pred_fallthru
        _
      // Predicated region
      $region21: #{encoder_forward.1} parent=11 // pred_check
        %p300 = pneg %p106
      $region22: #{encoder_forward.1} parent=11 // pred_check_branch
        %302 = sbr.rel (%p300) target = $region24
      $region23: #{encoder_forward.1} parent=11 // pred_region
        _
      $region24: #{encoder_forward.1} parent=11 // pred_fallthru
        _
      // Predicated region
      $region25: #{encoder_forward.1} parent=11 // pred_check
        %p303 = pneg %p127
      $region26: #{encoder_forward.1} parent=11 // pred_check_branch
        %305 = sbr.rel (%p303) target = $region28
      $region27: #{encoder_forward.1} parent=11 // pred_region
        _
      $region28: #{encoder_forward.1} parent=11 // pred_fallthru
        _
      // Predicated region
      $region29: #{encoder_forward.1} parent=11 // pred_check
        %p306 = pneg %p148
      $region30: #{encoder_forward.1} parent=11 // pred_check_branch
        %308 = sbr.rel (%p306) target = $region32
      $region31: #{encoder_forward.1} parent=11 // pred_region
        _
      $region32: #{encoder_forward.1} parent=11 // pred_fallthru
        _
      // Predicated region
      $region33: #{encoder_forward.1} parent=11 // pred_check
        %p309 = pneg %p169
      $region34: #{encoder_forward.1} parent=11 // pred_check_branch
        %311 = sbr.rel (%p309) target = $region36
      $region35: #{encoder_forward.1} parent=11 // pred_region
        _
      $region36: #{encoder_forward.1} parent=11 // pred_fallthru
        _
      // Predicated region
      $region37: #{encoder_forward.1} parent=11 // pred_check
        %p312 = pneg %p190
      $region38: #{encoder_forward.1} parent=11 // pred_check_branch
        %314 = sbr.rel (%p312) target = $region40
      $region39: #{encoder_forward.1} parent=11 // pred_region
        _
      $region40: #{encoder_forward.1} parent=11 // pred_fallthru
        _
      // Predicated region
      $region41: #{encoder_forward.1} parent=11 // pred_check
        %p315 = pneg %p211
      $region42: #{encoder_forward.1} parent=11 // pred_check_branch
        %317 = sbr.rel (%p315) target = $region44
      $region43: #{encoder_forward.1} parent=11 // pred_region
        _
      $region44: #{encoder_forward.1} parent=11 // pred_fallthru
        _
      // Predicated region
      $region45: #{encoder_forward.1} parent=11 // pred_check
        %p318 = pneg %p232
      $region46: #{encoder_forward.1} parent=11 // pred_check_branch
        %320 = sbr.rel (%p318) target = $region48
      $region47: #{encoder_forward.1} parent=11 // pred_region
        _
      $region48: #{encoder_forward.1} parent=11 // pred_fallthru
        _
      // Predicated region
      $region49: #{encoder_forward.1} parent=11 // pred_check
        %p321 = pneg %p253
      $region50: #{encoder_forward.1} parent=11 // pred_check_branch
        %323 = sbr.rel (%p321) target = $region52
      $region51: #{encoder_forward.1} parent=11 // pred_region
        _
      $region52: #{encoder_forward.1} parent=11 // pred_fallthru
        _
    $region12: #{encoder_forward.1} parent=5 // pred_fallthru
      _
    %p324 = scmp.lt.s32.totalorder %s17, 2
    // Predicated region
    $region53: #{encoder_forward.1} parent=5 // pred_check
      %p325 = pneg %p324
    $region54: #{encoder_forward.1} parent=5 // pred_check_branch
      %327 = sbr.rel (%p325) target = $region56
    $region55: #{encoder_forward.1} parent=5 // pred_region
      // Predicated region
      $region57: #{encoder_forward.1} parent=55 // pred_check
        %p328 = pneg %p37
      $region58: #{encoder_forward.1} parent=55 // pred_check_branch
        %330 = sbr.rel (%p328) target = $region60
      $region59: #{encoder_forward.1} parent=55 // pred_region
        %p331 = scmp.lt.s32.totalorder %s17, 1
        %s332 = scalar_select %p331, %s17, 1
        %s333 = smul.addr %s332, 49
        %s334 = smul.addr %s333, 8
        %s335 = scalar_lea.vmem %s0, %s334
      $region60: #{encoder_forward.1} parent=55 // pred_fallthru
        _
    $region56: #{encoder_forward.1} parent=5 // pred_fallthru
      _
    %p336 = scmp.le.s32.totalorder 1, %s17
    %p337 = scmp.lt.s32.totalorder %s17, 3
    %p338 = pnand %p336, %p337
    %p339 = pneg %p338
    // Predicated region
    $region61: #{encoder_forward.1} parent=5 // pred_check
      _
    $region62: #{encoder_forward.1} parent=5 // pred_check_branch
      %341 = sbr.rel (%p338) target = $region64
    $region63: #{encoder_forward.1} parent=5 // pred_region
      %s342 = ssub.s32 %s17, 1
      %p343 = scmp.lt.s32.totalorder %s22, 1
      %s344 = scalar_select %p343, %s22, 1
      %s345 = smul.addr %s344, 49
      %s346 = smul.addr %s345, 8
      %s347 = scalar_lea.vmem %s0, %s346
      %p348 = pneg %p43
      %p349 = pneg %p40
      %p350 = pneg %p64
      %p351 = pneg %p61
      %p352 = pneg %p85
      %p353 = pneg %p82
      %p354 = pneg %p106
      %p355 = pneg %p103
      %p356 = pneg %p127
      %p357 = pneg %p124
      %p358 = pneg %p148
      %p359 = pneg %p145
      %p360 = pneg %p169
      %p361 = pneg %p166
      %p362 = pneg %p190
      %p363 = pneg %p187
      %p364 = pneg %p211
      %p365 = pneg %p208
      %p366 = pneg %p232
      %p367 = pneg %p229
      %p368 = pneg %p253
      %p369 = pneg %p250
      %p370 = pneg %p279
      %p371 = pneg %p276
      %p372 = scmp.lt.s32.totalorder %s22, 1
      %s373 = scalar_select %p372, %s22, 1
      %s374 = scalar_lea.vmem %s11, %s373
      %p375 = scmp.lt.s32.totalorder %s22, 1
      %s376 = scalar_select %p375, %s22, 1
      %s377 = smul.addr %s376, 49
      %s378 = smul.addr %s377, 8
      %s379 = scalar_lea.vmem %s0, %s378
      %p380 = scmp.lt.s32.totalorder %s22, 1
      %s381 = scalar_select %p380, %s22, 1
      %s382 = scalar_lea.vmem %s11, %s381
      %383 = vst [vmem:[#allocation2] sm:$0xff] 0.0
      %384 = vst [vmem:[#allocation2 + $0x8] sm:$0xff] 0.0
      %385 = vst [vmem:[#allocation2 + $0x10] sm:$0xff] 0.0
      %386 = vst [vmem:[#allocation2 + $0x18] sm:$0xff] 0.0
      %387 = vst [vmem:[#allocation2 + $0x20] sm:$0xff] 0.0
      %388 = vst [vmem:[#allocation2 + $0x28] sm:$0xff] 0.0
      %389 = vst [vmem:[#allocation2 + $0x30] sm:$0xff] 0.0
      %390 = vst [vmem:[#allocation2 + $0x38] sm:$0xff] 0.0
      %391 = vst [vmem:[#allocation2 + $0x40] sm:$0xff] 0.0
      %392 = vst [vmem:[#allocation2 + $0x48] sm:$0xff] 0.0
      %393 = vst [vmem:[#allocation2 + $0x50] sm:$0xff] 0.0
      %394 = vst [vmem:[#allocation2 + $0x58] sm:$0xff] 0.0
      %395 = vst [vmem:[#allocation2 + $0x60] sm:$0x3f] 0.0
      %396 = vst [vmem:[#allocation2 + $0x68] sm:$0x3f] 0.0
      %397 = vst [vmem:[#allocation2 + $0x70] sm:$0x3f] 0.0
      %398 = vst [vmem:[#allocation2 + $0x78] sm:$0x3f] 0.0
      %399 = vst [vmem:[#allocation3] sm:$0xff] 0.0
      %400 = vst [vmem:[#allocation3 + $0x8] sm:$0xff] 0.0
      %401 = vst [vmem:[#allocation3 + $0x10] sm:$0xff] 0.0
      %402 = vst [vmem:[#allocation3 + $0x18] sm:$0xff] 0.0
      %vm403 = vcmask 523264
      %404 = vst.msk [vmem:[#allocation3 + $0x20] sm:$0xff] %vm403, 0.0
      %405 = vst [vmem:[#allocation3 + $0x28] sm:$0xff] 0.0
      %406 = vst [vmem:[#allocation3 + $0x30] sm:$0xff] 0.0
      %407 = vst [vmem:[#allocation3 + $0x38] sm:$0xff] 0.0
      %408 = vst [vmem:[#allocation3 + $0x40] sm:$0xff] 0.0
      %409 = vst.msk [vmem:[#allocation3 + $0x48] sm:$0xff] %vm403, 0.0
      %v410 = vld [vmem:[%s379] sm:$0xff]
      %v411 = vld [vmem:[%s379 + $0x8] sm:$0xff]
      %v412 = vld [vmem:[%s379 + $0x10] sm:$0xff]
      %v413 = vld [vmem:[%s379 + $0x18] sm:$0xff]
      %v414 = vld [vmem:[%s379 + $0x20] sm:$0xff]
      %v415 = vld [vmem:[%s379 + $0x28] sm:$0xff]
      %v416 = vld [vmem:[%s379 + $0x30] sm:$0xff]
      %v417 = vld [vmem:[%s379 + $0x38] sm:$0xff]
      %v418 = vld [vmem:[%s379 + $0x40] sm:$0xff]
      %v419 = vld [vmem:[%s379 + $0x48] sm:$0xff]
      %v420 = vld [vmem:[%s379 + $0x50] sm:$0xff]
      %v421 = vld [vmem:[%s379 + $0x58] sm:$0xff]
      %v422 = vld [vmem:[%s379 + $0x60] sm:$0xff]
      %v423 = vld [vmem:[%s379 + $0x68] sm:$0xff]
      %v424 = vld [vmem:[%s379 + $0x70] sm:$0xff]
      %v425 = vld [vmem:[%s379 + $0x78] sm:$0xff]
      %v426 = vld [vmem:[%s379 + $0x80] sm:$0xff]
      %v427 = vld [vmem:[%s379 + $0x88] sm:$0xff]
      %v428 = vld [vmem:[%s379 + $0x90] sm:$0xff]
      %v429 = vld [vmem:[%s379 + $0x98] sm:$0xff]
      %v430 = vld [vmem:[%s379 + $0xa0] sm:$0xff]
      %v431 = vld [vmem:[%s379 + $0xa8] sm:$0xff]
      %v432 = vld [vmem:[%s379 + $0xb0] sm:$0xff]
      %v433 = vld [vmem:[%s379 + $0xb8] sm:$0xff]
      %v434 = vld [vmem:[%s379 + $0xc0] sm:$0xff]
      %v435 = vld [vmem:[%s379 + $0xc8] sm:$0xff]
      %v436 = vld [vmem:[%s379 + $0xd0] sm:$0xff]
      %v437 = vld [vmem:[%s379 + $0xd8] sm:$0xff]
      %v438 = vld [vmem:[%s379 + $0xe0] sm:$0xff]
      %v439 = vld [vmem:[%s379 + $0xe8] sm:$0xff]
      %v440 = vld [vmem:[%s379 + $0xf0] sm:$0xff]
      %v441 = vld [vmem:[%s379 + $0xf8] sm:$0xff]
      %v442 = vld [vmem:[%s379 + $0x100] sm:$0xff]
      %v443 = vld [vmem:[%s379 + $0x108] sm:$0xff]
      %v444 = vld [vmem:[%s379 + $0x110] sm:$0xff]
      %v445 = vld [vmem:[%s379 + $0x118] sm:$0xff]
      %v446 = vld [vmem:[%s379 + $0x120] sm:$0xff]
      %v447 = vld [vmem:[%s379 + $0x128] sm:$0xff]
      %v448 = vld [vmem:[%s379 + $0x130] sm:$0xff]
      %v449 = vld [vmem:[%s379 + $0x138] sm:$0xff]
      %v450 = vld [vmem:[%s379 + $0x140] sm:$0xff]
      %v451 = vld [vmem:[%s379 + $0x148] sm:$0xff]
      %v452 = vld [vmem:[%s379 + $0x150] sm:$0xff]
      %v453 = vld [vmem:[%s379 + $0x158] sm:$0xff]
      %v454 = vld [vmem:[%s379 + $0x160] sm:$0xff]
      %v455 = vld [vmem:[%s379 + $0x168] sm:$0xff]
      %v456 = vld [vmem:[%s379 + $0x170] sm:$0xff]
      %v457 = vld [vmem:[%s379 + $0x178] sm:$0xff]
      %v458 = vld [vmem:[%s379 + $0x180] sm:$0xff]
      %v459 = vld [vmem:[%s1] sm:$0xff]
      %v460 = vld [vmem:[%s1 + $0x8] sm:$0xff]
      %v461 = vld [vmem:[%s2] sm:$0x1]
      %v463 = vlaneseq
      %v464 = vshrl.u32 %v463, 7
      %v465 = vsub.s32 0, %v464
      %v466 = vrot.slane %v461, %v465
      %vm468 = vcmask 130048
      %v470 = vsel %vm468, %v410, 0
      %v473 = vsel %vm468, %v411, 0
      %v476 = vsel %vm468, %v412, 0
      %v479 = vsel %vm468, %v413, 0
      %v482 = vsel %vm468, %v414, 0
      %v485 = vsel %vm468, %v415, 0
      %v488 = vsel %vm468, %v416, 0
      %v491 = vsel %vm468, %v417, 0
      %v494 = vsel %vm468, %v418, 0
      %v497 = vsel %vm468, %v419, 0
      %v500 = vsel %vm468, %v420, 0
      %v503 = vsel %vm468, %v421, 0
      %v506 = vsel %vm468, %v422, 0
      %v509 = vsel %vm468, %v423, 0
      %v512 = vsel %vm468, %v424, 0
      %v515 = vsel %vm468, %v425, 0
      %v518 = vsel %vm468, %v426, 0
      %v521 = vsel %vm468, %v427, 0
      %v524 = vsel %vm468, %v428, 0
      %v527 = vsel %vm468, %v429, 0
      %v530 = vsel %vm468, %v430, 0
      %v533 = vsel %vm468, %v431, 0
      %v536 = vsel %vm468, %v432, 0
      %v539 = vsel %vm468, %v433, 0
      %v542 = vsel %vm468, %v434, 0
      %v545 = vsel %vm468, %v435, 0
      %v548 = vsel %vm468, %v436, 0
      %v551 = vsel %vm468, %v437, 0
      %v554 = vsel %vm468, %v438, 0
      %v557 = vsel %vm468, %v439, 0
      %v560 = vsel %vm468, %v440, 0
      %v563 = vsel %vm468, %v441, 0
      %v566 = vsel %vm468, %v442, 0
      %v569 = vsel %vm468, %v443, 0
      %v572 = vsel %vm468, %v444, 0
      %v575 = vsel %vm468, %v445, 0
      %v578 = vsel %vm468, %v446, 0
      %v581 = vsel %vm468, %v447, 0
      %v584 = vsel %vm468, %v448, 0
      %v587 = vsel %vm468, %v449, 0
      %v590 = vsel %vm468, %v450, 0
      %v593 = vsel %vm468, %v451, 0
      %v596 = vsel %vm468, %v452, 0
      %v599 = vsel %vm468, %v453, 0
      %v602 = vsel %vm468, %v454, 0
      %v605 = vsel %vm468, %v455, 0
      %v608 = vsel %vm468, %v456, 0
      %v611 = vsel %vm468, %v457, 0
      %v614 = vsel %vm468, %v458, 0
      %616 = vmatprep.subr.mxu0 0.0
      %617 = vmatpush1.msra.mxu0 %v459
      %618 = vmatprep.subr.mxu0 0.0
      %619 = vmatpush1.msra.mxu0 %v460
      %620 = vmatprep.subr.mxu0 0.0
      %621 = vmatpush1.msra.mxu0 0.0
      %622 = vmatprep.subr.mxu0 0.0
      %623 = vmatpush1.msra.mxu0 0.0
      %624 = vmatprep.subr.mxu0 0.0
      %625 = vmatpush1.msra.mxu0 0.0
      %626 = vmatprep.subr.mxu0 0.0
      %627 = vmatpush1.msra.mxu0 0.0
      %628 = vmatprep.subr.mxu0 0.0
      %629 = vmatpush1.msra.mxu0 0.0
      %630 = vmatprep.subr.mxu0 0.0
      %631 = vmatpush1.msra.mxu0 0.0
      %632 = vmatprep.subr.mxu0 0.0
      %633 = vmatpush1.msra.mxu0 0.0
      %634 = vmatprep.subr.mxu0 0.0
      %635 = vmatpush1.msra.mxu0 0.0
      %636 = vmatprep.subr.mxu0 0.0
      %637 = vmatpush1.msra.mxu0 0.0
      %638 = vmatprep.subr.mxu0 0.0
      %639 = vmatpush1.msra.mxu0 0.0
      %640 = vmatprep.subr.mxu0 0.0
      %641 = vmatpush1.msra.mxu0 0.0
      %642 = vmatprep.subr.mxu0 0.0
      %643 = vmatpush1.msra.mxu0 0.0
      %644 = vmatprep.subr.mxu0 0.0
      %645 = vmatpush1.msra.mxu0 0.0
      %646 = vmatprep.subr.mxu0 0.0
      %647 = vmatpush1.msra.mxu0 0.0
      %648 = vmatprep.subr.mxu0 0.0
      %649 = vmatpush1.msra.mxu0 0.0
      %650 = vmatprep.subr.mxu0 0.0
      %651 = vmatpush1.msra.mxu0 0.0
      %652 = vmatprep.subr.mxu0 0.0
      %653 = vmatpush1.msra.mxu0 0.0
      %654 = vmatprep.subr.mxu0 0.0
      %655 = vmatpush1.msra.mxu0 0.0
      %656 = vmatprep.subr.mxu0 0.0
      %657 = vmatpush1.msra.mxu0 0.0
      %658 = vmatprep.subr.mxu0 0.0
      %659 = vmatpush1.msra.mxu0 0.0
      %660 = vmatprep.subr.mxu0 0.0
      %661 = vmatpush1.msra.mxu0 0.0
      %662 = vmatprep.subr.mxu0 0.0
      %663 = vmatpush1.msra.mxu0 0.0
      %664 = vmatprep.subr.mxu0 0.0
      %665 = vmatpush1.msra.mxu0 0.0
      %666 = vmatprep.subr.mxu0 0.0
      %667 = vmatpush1.msra.mxu0 0.0
      %668 = vmatprep.subr.mxu0 0.0
      %669 = vmatpush1.msra.mxu0 0.0
      %670 = vmatprep.subr.mxu0 0.0
      %671 = vmatpush1.msra.mxu0 0.0
      %672 = vmatprep.subr.mxu0 0.0
      %673 = vmatpush1.msra.mxu0 0.0
      %674 = vmatprep.subr.mxu0 0.0
      %675 = vmatpush1.msra.mxu0 0.0
      %676 = vmatprep.subr.mxu0 0.0
      %677 = vmatpush1.msra.mxu0 0.0
      %678 = vmatprep.subr.mxu0 0.0
      %679 = vmatpush1.msra.mxu0 0.0
      %680 = vmatprep.mubr.f32.mxu0 0.0
      %681 = vmatmul.mubr.f32.gmra.mrb[0].mxu0 %v470
      %v682 = vpop.f32.mrb[0].mxu0
      %v683 = vadd.f32 %v466, %v682
      %v684 = vpop.f32.mrb[0].mxu0
      %685 = vmatprep.mubr.f32.mxu0 0.0
      %686 = vmatmul.mubr.f32.gmra.mrb[0].mxu0 %v473
      %v687 = vpop.f32.mrb[0].mxu0
      %v688 = vadd.f32 %v466, %v687
      %v689 = vpop.f32.mrb[0].mxu0
      %690 = vmatprep.mubr.f32.mxu0 0.0
      %691 = vmatmul.mubr.f32.gmra.mrb[0].mxu0 %v476
      %v692 = vpop.f32.mrb[0].mxu0
      %v693 = vadd.f32 %v466, %v692
      %v694 = vpop.f32.mrb[0].mxu0
      %695 = vmatprep.mubr.f32.mxu0 0.0
      %696 = vmatmul.mubr.f32.gmra.mrb[0].mxu0 %v479
      %v697 = vpop.f32.mrb[0].mxu0
      %v698 = vadd.f32 %v466, %v697
      %v699 = vpop.f32.mrb[0].mxu0
      %700 = vmatprep.mubr.f32.mxu0 0.0
      %701 = vmatmul.mubr.f32.gmra.mrb[0].mxu0 %v482
      %v702 = vpop.f32.mrb[0].mxu0
      %v703 = vadd.f32 %v466, %v702
      %v704 = vpop.f32.mrb[0].mxu0
      %705 = vmatprep.mubr.f32.mxu0 0.0
      %706 = vmatmul.mubr.f32.gmra.mrb[0].mxu0 %v485
      %v707 = vpop.f32.mrb[0].mxu0
      %v708 = vadd.f32 %v466, %v707
      %v709 = vpop.f32.mrb[0].mxu0
      %710 = vmatprep.mubr.f32.mxu0 0.0
      %711 = vmatmul.mubr.f32.gmra.mrb[0].mxu0 %v488
      %v712 = vpop.f32.mrb[0].mxu0
      %v713 = vadd.f32 %v466, %v712
      %v714 = vpop.f32.mrb[0].mxu0
      %715 = vmatprep.mubr.f32.mxu0 0.0
      %716 = vmatmul.mubr.f32.gmra.mrb[0].mxu0 %v491
      %v717 = vpop.f32.mrb[0].mxu0
      %v718 = vadd.f32 %v466, %v717
      %v719 = vpop.f32.mrb[0].mxu0
      %720 = vmatprep.mubr.f32.mxu0 0.0
      %721 = vmatmul.mubr.f32.gmra.mrb[0].mxu0 %v494
      %v722 = vpop.f32.mrb[0].mxu0
      %v723 = vadd.f32 %v466, %v722
      %v724 = vpop.f32.mrb[0].mxu0
      %725 = vmatprep.mubr.f32.mxu0 0.0
      %726 = vmatmul.mubr.f32.gmra.mrb[0].mxu0 %v497
      %v727 = vpop.f32.mrb[0].mxu0
      %v728 = vadd.f32 %v466, %v727
      %v729 = vpop.f32.mrb[0].mxu0
      %730 = vmatprep.mubr.f32.mxu0 0.0
      %731 = vmatmul.mubr.f32.gmra.mrb[0].mxu0 %v500
      %v732 = vpop.f32.mrb[0].mxu0
      %v733 = vadd.f32 %v466, %v732
      %v734 = vpop.f32.mrb[0].mxu0
      %735 = vmatprep.mubr.f32.mxu0 0.0
      %736 = vmatmul.mubr.f32.gmra.mrb[0].mxu0 %v503
      %v737 = vpop.f32.mrb[0].mxu0
      %v738 = vadd.f32 %v466, %v737
      %v739 = vpop.f32.mrb[0].mxu0
      %740 = vmatprep.mubr.f32.mxu0 0.0
      %741 = vmatmul.mubr.f32.gmra.mrb[0].mxu0 %v506
      %v742 = vpop.f32.mrb[0].mxu0
      %v743 = vadd.f32 %v466, %v742
      %v744 = vpop.f32.mrb[0].mxu0
      %745 = vmatprep.mubr.f32.mxu0 0.0
      %746 = vmatmul.mubr.f32.gmra.mrb[0].mxu0 %v509
      %v747 = vpop.f32.mrb[0].mxu0
      %v748 = vadd.f32 %v466, %v747
      %v749 = vpop.f32.mrb[0].mxu0
      %750 = vmatprep.mubr.f32.mxu0 0.0
      %751 = vmatmul.mubr.f32.gmra.mrb[0].mxu0 %v512
      %v752 = vpop.f32.mrb[0].mxu0
      %v753 = vadd.f32 %v466, %v752
      %v754 = vpop.f32.mrb[0].mxu0
      %755 = vmatprep.mubr.f32.mxu0 0.0
      %756 = vmatmul.mubr.f32.gmra.mrb[0].mxu0 %v515
      %v757 = vpop.f32.mrb[0].mxu0
      %v758 = vadd.f32 %v466, %v757
      %v759 = vpop.f32.mrb[0].mxu0
      %760 = vmatprep.mubr.f32.mxu0 0.0
      %761 = vmatmul.mubr.f32.gmra.mrb[0].mxu0 %v518
      %v762 = vpop.f32.mrb[0].mxu0
      %v763 = vadd.f32 %v466, %v762
      %v764 = vpop.f32.mrb[0].mxu0
      %765 = vmatprep.mubr.f32.mxu0 0.0
      %766 = vmatmul.mubr.f32.gmra.mrb[0].mxu0 %v521
      %v767 = vpop.f32.mrb[0].mxu0
      %v768 = vadd.f32 %v466, %v767
      %v769 = vpop.f32.mrb[0].mxu0
      %770 = vmatprep.mubr.f32.mxu0 0.0
      %771 = vmatmul.mubr.f32.gmra.mrb[0].mxu0 %v524
      %v772 = vpop.f32.mrb[0].mxu0
      %v773 = vadd.f32 %v466, %v772
      %v774 = vpop.f32.mrb[0].mxu0
      %775 = vmatprep.mubr.f32.mxu0 0.0
      %776 = vmatmul.mubr.f32.gmra.mrb[0].mxu0 %v527
      %v777 = vpop.f32.mrb[0].mxu0
      %v778 = vadd.f32 %v466, %v777
      %v779 = vpop.f32.mrb[0].mxu0
      %780 = vmatprep.mubr.f32.mxu0 0.0
      %781 = vmatmul.mubr.f32.gmra.mrb[0].mxu0 %v530
      %v782 = vpop.f32.mrb[0].mxu0
      %v783 = vadd.f32 %v466, %v782
      %v784 = vpop.f32.mrb[0].mxu0
      %785 = vmatprep.mubr.f32.mxu0 0.0
      %786 = vmatmul.mubr.f32.gmra.mrb[0].mxu0 %v533
      %v787 = vpop.f32.mrb[0].mxu0
      %v788 = vadd.f32 %v466, %v787
      %v789 = vpop.f32.mrb[0].mxu0
      %790 = vmatprep.mubr.f32.mxu0 0.0
      %791 = vmatmul.mubr.f32.gmra.mrb[0].mxu0 %v536
      %v792 = vpop.f32.mrb[0].mxu0
      %v793 = vadd.f32 %v466, %v792
      %v794 = vpop.f32.mrb[0].mxu0
      %795 = vmatprep.mubr.f32.mxu0 0.0
      %796 = vmatmul.mubr.f32.gmra.mrb[0].mxu0 %v539
      %v797 = vpop.f32.mrb[0].mxu0
      %v798 = vadd.f32 %v466, %v797
      %v799 = vpop.f32.mrb[0].mxu0
      %800 = vmatprep.mubr.f32.mxu0 0.0
      %801 = vmatmul.mubr.f32.gmra.mrb[0].mxu0 %v542
      %v802 = vpop.f32.mrb[0].mxu0
      %v803 = vadd.f32 %v466, %v802
      %v804 = vpop.f32.mrb[0].mxu0
      %805 = vmatprep.mubr.f32.mxu0 0.0
      %806 = vmatmul.mubr.f32.gmra.mrb[0].mxu0 %v545
      %v807 = vpop.f32.mrb[0].mxu0
      %v808 = vadd.f32 %v466, %v807
      %v809 = vpop.f32.mrb[0].mxu0
      %810 = vmatprep.mubr.f32.mxu0 0.0
      %811 = vmatmul.mubr.f32.gmra.mrb[0].mxu0 %v548
      %v812 = vpop.f32.mrb[0].mxu0
      %v813 = vadd.f32 %v466, %v812
      %v814 = vpop.f32.mrb[0].mxu0
      %815 = vmatprep.mubr.f32.mxu0 0.0
      %816 = vmatmul.mubr.f32.gmra.mrb[0].mxu0 %v551
      %v817 = vpop.f32.mrb[0].mxu0
      %v818 = vadd.f32 %v466, %v817
      %v819 = vpop.f32.mrb[0].mxu0
      %820 = vmatprep.mubr.f32.mxu0 0.0
      %821 = vmatmul.mubr.f32.gmra.mrb[0].mxu0 %v554
      %v822 = vpop.f32.mrb[0].mxu0
      %v823 = vadd.f32 %v466, %v822
      %v824 = vpop.f32.mrb[0].mxu0
      %825 = vmatprep.mubr.f32.mxu0 0.0
      %826 = vmatmul.mubr.f32.gmra.mrb[0].mxu0 %v557
      %v827 = vpop.f32.mrb[0].mxu0
      %v828 = vadd.f32 %v466, %v827
      %v829 = vpop.f32.mrb[0].mxu0
      %830 = vmatprep.mubr.f32.mxu0 0.0
      %831 = vmatmul.mubr.f32.gmra.mrb[0].mxu0 %v560
      %v832 = vpop.f32.mrb[0].mxu0
      %v833 = vadd.f32 %v466, %v832
      %v834 = vpop.f32.mrb[0].mxu0
      %835 = vmatprep.mubr.f32.mxu0 0.0
      %836 = vmatmul.mubr.f32.gmra.mrb[0].mxu0 %v563
      %v837 = vpop.f32.mrb[0].mxu0
      %v838 = vadd.f32 %v466, %v837
      %v839 = vpop.f32.mrb[0].mxu0
      %840 = vmatprep.mubr.f32.mxu0 0.0
      %841 = vmatmul.mubr.f32.gmra.mrb[0].mxu0 %v566
      %v842 = vpop.f32.mrb[0].mxu0
      %v843 = vadd.f32 %v466, %v842
      %v844 = vpop.f32.mrb[0].mxu0
      %845 = vmatprep.mubr.f32.mxu0 0.0
      %846 = vmatmul.mubr.f32.gmra.mrb[0].mxu0 %v569
      %v847 = vpop.f32.mrb[0].mxu0
      %v848 = vadd.f32 %v466, %v847
      %v849 = vpop.f32.mrb[0].mxu0
      %850 = vmatprep.mubr.f32.mxu0 0.0
      %851 = vmatmul.mubr.f32.gmra.mrb[0].mxu0 %v572
      %v852 = vpop.f32.mrb[0].mxu0
      %v853 = vadd.f32 %v466, %v852
      %v854 = vpop.f32.mrb[0].mxu0
      %855 = vmatprep.mubr.f32.mxu0 0.0
      %856 = vmatmul.mubr.f32.gmra.mrb[0].mxu0 %v575
      %v857 = vpop.f32.mrb[0].mxu0
      %v858 = vadd.f32 %v466, %v857
      %v859 = vpop.f32.mrb[0].mxu0
      %860 = vmatprep.mubr.f32.mxu0 0.0
      %861 = vmatmul.mubr.f32.gmra.mrb[0].mxu0 %v578
      %v862 = vpop.f32.mrb[0].mxu0
      %v863 = vadd.f32 %v466, %v862
      %v864 = vpop.f32.mrb[0].mxu0
      %865 = vmatprep.mubr.f32.mxu0 0.0
      %866 = vmatmul.mubr.f32.gmra.mrb[0].mxu0 %v581
      %v867 = vpop.f32.mrb[0].mxu0
      %v868 = vadd.f32 %v466, %v867
      %v869 = vpop.f32.mrb[0].mxu0
      %870 = vmatprep.mubr.f32.mxu0 0.0
      %871 = vmatmul.mubr.f32.gmra.mrb[0].mxu0 %v584
      %v872 = vpop.f32.mrb[0].mxu0
      %v873 = vadd.f32 %v466, %v872
      %v874 = vpop.f32.mrb[0].mxu0
      %875 = vmatprep.mubr.f32.mxu0 0.0
      %876 = vmatmul.mubr.f32.gmra.mrb[0].mxu0 %v587
      %v877 = vpop.f32.mrb[0].mxu0
      %v878 = vadd.f32 %v466, %v877
      %v879 = vpop.f32.mrb[0].mxu0
      %880 = vmatprep.mubr.f32.mxu0 0.0
      %881 = vmatmul.mubr.f32.gmra.mrb[0].mxu0 %v590
      %v882 = vpop.f32.mrb[0].mxu0
      %v883 = vadd.f32 %v466, %v882
      %v884 = vpop.f32.mrb[0].mxu0
      %885 = vmatprep.mubr.f32.mxu0 0.0
      %886 = vmatmul.mubr.f32.gmra.mrb[0].mxu0 %v593
      %v887 = vpop.f32.mrb[0].mxu0
      %v888 = vadd.f32 %v466, %v887
      %v889 = vpop.f32.mrb[0].mxu0
      %890 = vmatprep.mubr.f32.mxu0 0.0
      %891 = vmatmul.mubr.f32.gmra.mrb[0].mxu0 %v596
      %v892 = vpop.f32.mrb[0].mxu0
      %v893 = vadd.f32 %v466, %v892
      %v894 = vpop.f32.mrb[0].mxu0
      %895 = vmatprep.mubr.f32.mxu0 0.0
      %896 = vmatmul.mubr.f32.gmra.mrb[0].mxu0 %v599
      %v897 = vpop.f32.mrb[0].mxu0
      %v898 = vadd.f32 %v466, %v897
      %v899 = vpop.f32.mrb[0].mxu0
      %900 = vmatprep.mubr.f32.mxu0 0.0
      %901 = vmatmul.mubr.f32.gmra.mrb[0].mxu0 %v602
      %v902 = vpop.f32.mrb[0].mxu0
      %v903 = vadd.f32 %v466, %v902
      %v904 = vpop.f32.mrb[0].mxu0
      %905 = vmatprep.mubr.f32.mxu0 0.0
      %906 = vmatmul.mubr.f32.gmra.mrb[0].mxu0 %v605
      %v907 = vpop.f32.mrb[0].mxu0
      %v908 = vadd.f32 %v466, %v907
      %v909 = vpop.f32.mrb[0].mxu0
      %910 = vmatprep.mubr.f32.mxu0 0.0
      %911 = vmatmul.mubr.f32.gmra.mrb[0].mxu0 %v608
      %v912 = vpop.f32.mrb[0].mxu0
      %v913 = vadd.f32 %v466, %v912
      %v914 = vpop.f32.mrb[0].mxu0
      %915 = vmatprep.mubr.f32.mxu0 0.0
      %916 = vmatmul.mubr.f32.gmra.mrb[0].mxu0 %v611
      %v917 = vpop.f32.mrb[0].mxu0
      %v918 = vadd.f32 %v466, %v917
      %v919 = vpop.f32.mrb[0].mxu0
      %920 = vmatprep.mubr.f32.mxu0 0.0
      %921 = vmatmul.mubr.f32.gmra.mrb[0].mxu0 %v614
      %v922 = vpop.f32.mrb[0].mxu0
      %v923 = vadd.f32 %v466, %v922
      %v924 = vpop.f32.mrb[0].mxu0
      %925 = vdwg.mxu0
      %v926 = vmax.f32 %v683, 0.0
      %v927 = vmax.f32 %v688, 0.0
      %v928 = vmax.f32 %v693, 0.0
      %v929 = vmax.f32 %v698, 0.0
      %v930 = vmax.f32 %v703, 0.0
      %v931 = vmax.f32 %v708, 0.0
      %v932 = vmax.f32 %v713, 0.0
      %v933 = vmax.f32 %v718, 0.0
      %v934 = vmax.f32 %v723, 0.0
      %v935 = vmax.f32 %v728, 0.0
      %v936 = vmax.f32 %v733, 0.0
      %v937 = vmax.f32 %v738, 0.0
      %v938 = vmax.f32 %v743, 0.0
      %v939 = vmax.f32 %v748, 0.0
      %v940 = vmax.f32 %v753, 0.0
      %v941 = vmax.f32 %v758, 0.0
      %v942 = vmax.f32 %v763, 0.0
      %v943 = vmax.f32 %v768, 0.0
      %v944 = vmax.f32 %v773, 0.0
      %v945 = vmax.f32 %v778, 0.0
      %v946 = vmax.f32 %v783, 0.0
      %v947 = vmax.f32 %v788, 0.0
      %v948 = vmax.f32 %v793, 0.0
      %v949 = vmax.f32 %v798, 0.0
      %v950 = vmax.f32 %v803, 0.0
      %v951 = vmax.f32 %v808, 0.0
      %v952 = vmax.f32 %v813, 0.0
      %v953 = vmax.f32 %v818, 0.0
      %v954 = vmax.f32 %v823, 0.0
      %v955 = vmax.f32 %v828, 0.0
      %v956 = vmax.f32 %v833, 0.0
      %v957 = vmax.f32 %v838, 0.0
      %v958 = vmax.f32 %v843, 0.0
      %v959 = vmax.f32 %v848, 0.0
      %v960 = vmax.f32 %v853, 0.0
      %v961 = vmax.f32 %v858, 0.0
      %v962 = vmax.f32 %v863, 0.0
      %v963 = vmax.f32 %v868, 0.0
      %v964 = vmax.f32 %v873, 0.0
      %v965 = vmax.f32 %v878, 0.0
      %v966 = vmax.f32 %v883, 0.0
      %v967 = vmax.f32 %v888, 0.0
      %v968 = vmax.f32 %v893, 0.0
      %v969 = vmax.f32 %v898, 0.0
      %v970 = vmax.f32 %v903, 0.0
      %v971 = vmax.f32 %v908, 0.0
      %v972 = vmax.f32 %v913, 0.0
      %v973 = vmax.f32 %v918, 0.0
      %v974 = vmax.f32 %v923, 0.0
      %vm979 = vcmask 1040384
      %v980 = vrot.slane %v926, 7
      %v981 = vrot.slane %v927, 7
      %v982 = vsel %vm979, %v980, %v981
      %v983 = vrot.slane %v928, 7
      %v984 = vsel %vm979, %v981, %v983
      %v985 = vrot.slane %v929, 7
      %v986 = vsel %vm979, %v983, %v985
      %987 = vrot.lane.b32.xlu0 %v980, 32
      %v988 = vpop.permute.xlu0 %987
      %989 = vrot.lane.b32.xlu0 %v982, 32
      %v990 = vpop.permute.xlu0 %989
      %991 = vrot.lane.b32.xlu0 %v984, 32
      %v992 = vpop.permute.xlu0 %991
      %993 = vrot.lane.b32.xlu0 %v986, 32
      %v994 = vpop.permute.xlu0 %993
      %vm999 = vcmask 523521
      %1000 = vst.msk [vmem:[#allocation2] sm:$0xfe] %vm999, %v988
      %vm1001 = vcmask 523520
      %1002 = vst.msk [vmem:[#allocation2 + $0x20] sm:$0xff] %vm1001, %v990
      %1003 = vst.msk [vmem:[#allocation2 + $0x40] sm:$0xff] %vm1001, %v992
      %vm1004 = vcmask 520448
      %1005 = vst.msk [vmem:[#allocation2 + $0x60] sm:$0x1f] %vm1004, %v994
      %vm1009 = vcmask 1044480
      %v1010 = vrot.slane %v929, 3
      %v1011 = vrot.slane %v930, 3
      %v1012 = vsel %vm1009, %v1010, %v1011
      %v1013 = vrot.slane %v931, 3
      %v1014 = vsel %vm1009, %v1011, %v1013
      %v1015 = vrot.slane %v932, 3
      %v1016 = vsel %vm1009, %v1013, %v1015
      %1017 = vrot.lane.b32.xlu0 %v1012, 64
      %v1018 = vpop.permute.xlu0 %1017
      %1019 = vrot.lane.b32.xlu0 %v1014, 64
      %v1020 = vpop.permute.xlu0 %1019
      %1021 = vrot.lane.b32.xlu0 %v1016, 64
      %v1022 = vpop.permute.xlu0 %1021
      %1023 = vrot.lane.b32.xlu0 %v1015, 64
      %v1024 = vpop.permute.xlu0 %1023
      %vm1029 = vcmask 785921
      %1030 = vst.msk [vmem:[#allocation2] sm:$0xfe] %vm1029, %v1018
      %vm1031 = vcmask 785920
      %1032 = vst.msk [vmem:[#allocation2 + $0x20] sm:$0xff] %vm1031, %v1020
      %1033 = vst.msk [vmem:[#allocation2 + $0x40] sm:$0xff] %vm1031, %v1022
      %vm1034 = vcmask 782848
      %1035 = vst.msk [vmem:[#allocation2 + $0x60] sm:$0x1f] %vm1034, %v1024
      %v1040 = vrot.slane %v933, 7
      %v1041 = vrot.slane %v934, 7
      %v1042 = vsel %vm979, %v1040, %v1041
      %v1043 = vrot.slane %v935, 7
      %v1044 = vsel %vm979, %v1041, %v1043
      %v1045 = vrot.slane %v936, 7
      %v1046 = vsel %vm979, %v1043, %v1045
      %1047 = vrot.lane.b32.xlu0 %v1040, 96
      %v1048 = vpop.permute.xlu0 %1047
      %1049 = vrot.lane.b32.xlu0 %v1042, 96
      %v1050 = vpop.permute.xlu0 %1049
      %1051 = vrot.lane.b32.xlu0 %v1044, 96
      %v1052 = vpop.permute.xlu0 %1051
      %1053 = vrot.lane.b32.xlu0 %v1046, 96
      %v1054 = vpop.permute.xlu0 %1053
      %vm1059 = vcmask 1048321
      %1060 = vst.msk [vmem:[#allocation2] sm:$0xfe] %vm1059, %v1048
      %vm1061 = vcmask 1048320
      %1062 = vst.msk [vmem:[#allocation2 + $0x20] sm:$0xff] %vm1061, %v1050
      %1063 = vst.msk [vmem:[#allocation2 + $0x40] sm:$0xff] %vm1061, %v1052
      %vm1064 = vcmask 1045248
      %1065 = vst.msk [vmem:[#allocation2 + $0x60] sm:$0x1f] %vm1064, %v1054
      %v1069 = vrot.slane %v936, 3
      %v1070 = vrot.slane %v937, 3
      %v1071 = vsel %vm1009, %v1069, %v1070
      %v1072 = vrot.slane %v938, 3
      %v1073 = vsel %vm1009, %v1070, %v1072
      %v1074 = vrot.slane %v939, 3
      %v1075 = vsel %vm1009, %v1072, %v1074
      %vm1080 = vcmask 261121
      %1081 = vst.msk [vmem:[#allocation2 + $0x8] sm:$0xfe] %vm1080, %v1071
      %vm1082 = vcmask 261120
      %1083 = vst.msk [vmem:[#allocation2 + $0x28] sm:$0xff] %vm1082, %v1073
      %1084 = vst.msk [vmem:[#allocation2 + $0x48] sm:$0xff] %vm1082, %v1075
      %vm1085 = vcmask 258048
      %1086 = vst.msk [vmem:[#allocation2 + $0x68] sm:$0x1f] %vm1085, %v1074
      %v1091 = vrot.slane %v940, 7
      %v1092 = vrot.slane %v941, 7
      %v1093 = vsel %vm979, %v1091, %v1092
      %v1094 = vrot.slane %v942, 7
      %v1095 = vsel %vm979, %v1092, %v1094
      %v1096 = vrot.slane %v943, 7
      %v1097 = vsel %vm979, %v1094, %v1096
      %1098 = vrot.lane.b32.xlu0 %v1091, 32
      %v1099 = vpop.permute.xlu0 %1098
      %1100 = vrot.lane.b32.xlu0 %v1093, 32
      %v1101 = vpop.permute.xlu0 %1100
      %1102 = vrot.lane.b32.xlu0 %v1095, 32
      %v1103 = vpop.permute.xlu0 %1102
      %1104 = vrot.lane.b32.xlu0 %v1097, 32
      %v1105 = vpop.permute.xlu0 %1104
      %1110 = vst.msk [vmem:[#allocation2 + $0x8] sm:$0xfe] %vm999, %v1099
      %1111 = vst.msk [vmem:[#allocation2 + $0x28] sm:$0xff] %vm1001, %v1101
      %1112 = vst.msk [vmem:[#allocation2 + $0x48] sm:$0xff] %vm1001, %v1103
      %1113 = vst.msk [vmem:[#allocation2 + $0x68] sm:$0x1f] %vm1004, %v1105
      %v1117 = vrot.slane %v943, 3
      %v1118 = vrot.slane %v944, 3
      %v1119 = vsel %vm1009, %v1117, %v1118
      %v1120 = vrot.slane %v945, 3
      %v1121 = vsel %vm1009, %v1118, %v1120
      %v1122 = vrot.slane %v946, 3
      %v1123 = vsel %vm1009, %v1120, %v1122
      %1124 = vrot.lane.b32.xlu0 %v1119, 64
      %v1125 = vpop.permute.xlu0 %1124
      %1126 = vrot.lane.b32.xlu0 %v1121, 64
      %v1127 = vpop.permute.xlu0 %1126
      %1128 = vrot.lane.b32.xlu0 %v1123, 64
      %v1129 = vpop.permute.xlu0 %1128
      %1130 = vrot.lane.b32.xlu0 %v1122, 64
      %v1131 = vpop.permute.xlu0 %1130
      %1136 = vst.msk [vmem:[#allocation2 + $0x8] sm:$0xfe] %vm1029, %v1125
      %1137 = vst.msk [vmem:[#allocation2 + $0x28] sm:$0xff] %vm1031, %v1127
      %1138 = vst.msk [vmem:[#allocation2 + $0x48] sm:$0xff] %vm1031, %v1129
      %1139 = vst.msk [vmem:[#allocation2 + $0x68] sm:$0x1f] %vm1034, %v1131
      %v1144 = vrot.slane %v947, 7
      %v1145 = vrot.slane %v948, 7
      %v1146 = vsel %vm979, %v1144, %v1145
      %v1147 = vrot.slane %v949, 7
      %v1148 = vsel %vm979, %v1145, %v1147
      %v1149 = vrot.slane %v950, 7
      %v1150 = vsel %vm979, %v1147, %v1149
      %1151 = vrot.lane.b32.xlu0 %v1144, 96
      %v1152 = vpop.permute.xlu0 %1151
      %1153 = vrot.lane.b32.xlu0 %v1146, 96
      %v1154 = vpop.permute.xlu0 %1153
      %1155 = vrot.lane.b32.xlu0 %v1148, 96
      %v1156 = vpop.permute.xlu0 %1155
      %1157 = vrot.lane.b32.xlu0 %v1150, 96
      %v1158 = vpop.permute.xlu0 %1157
      %1163 = vst.msk [vmem:[#allocation2 + $0x8] sm:$0xfe] %vm1059, %v1152
      %1164 = vst.msk [vmem:[#allocation2 + $0x28] sm:$0xff] %vm1061, %v1154
      %1165 = vst.msk [vmem:[#allocation2 + $0x48] sm:$0xff] %vm1061, %v1156
      %1166 = vst.msk [vmem:[#allocation2 + $0x68] sm:$0x1f] %vm1064, %v1158
      %v1170 = vrot.slane %v950, 3
      %v1171 = vrot.slane %v951, 3
      %v1172 = vsel %vm1009, %v1170, %v1171
      %v1173 = vrot.slane %v952, 3
      %v1174 = vsel %vm1009, %v1171, %v1173
      %v1175 = vrot.slane %v953, 3
      %v1176 = vsel %vm1009, %v1173, %v1175
      %1181 = vst.msk [vmem:[#allocation2 + $0x10] sm:$0xfe] %vm1080, %v1172
      %1182 = vst.msk [vmem:[#allocation2 + $0x30] sm:$0xff] %vm1082, %v1174
      %1183 = vst.msk [vmem:[#allocation2 + $0x50] sm:$0xff] %vm1082, %v1176
      %1184 = vst.msk [vmem:[#allocation2 + $0x70] sm:$0x1f] %vm1085, %v1175
      %v1189 = vrot.slane %v954, 7
      %v1190 = vrot.slane %v955, 7
      %v1191 = vsel %vm979, %v1189, %v1190
      %v1192 = vrot.slane %v956, 7
      %v1193 = vsel %vm979, %v1190, %v1192
      %v1194 = vrot.slane %v957, 7
      %v1195 = vsel %vm979, %v1192, %v1194
      %1196 = vrot.lane.b32.xlu0 %v1189, 32
      %v1197 = vpop.permute.xlu0 %1196
      %1198 = vrot.lane.b32.xlu0 %v1191, 32
      %v1199 = vpop.permute.xlu0 %1198
      %1200 = vrot.lane.b32.xlu0 %v1193, 32
      %v1201 = vpop.permute.xlu0 %1200
      %1202 = vrot.lane.b32.xlu0 %v1195, 32
      %v1203 = vpop.permute.xlu0 %1202
      %1208 = vst.msk [vmem:[#allocation2 + $0x10] sm:$0xfe] %vm999, %v1197
      %1209 = vst.msk [vmem:[#allocation2 + $0x30] sm:$0xff] %vm1001, %v1199
      %1210 = vst.msk [vmem:[#allocation2 + $0x50] sm:$0xff] %vm1001, %v1201
      %1211 = vst.msk [vmem:[#allocation2 + $0x70] sm:$0x1f] %vm1004, %v1203
      %v1215 = vrot.slane %v957, 3
      %v1216 = vrot.slane %v958, 3
      %v1217 = vsel %vm1009, %v1215, %v1216
      %v1218 = vrot.slane %v959, 3
      %v1219 = vsel %vm1009, %v1216, %v1218
      %v1220 = vrot.slane %v960, 3
      %v1221 = vsel %vm1009, %v1218, %v1220
      %1222 = vrot.lane.b32.xlu0 %v1217, 64
      %v1223 = vpop.permute.xlu0 %1222
      %1224 = vrot.lane.b32.xlu0 %v1219, 64
      %v1225 = vpop.permute.xlu0 %1224
      %1226 = vrot.lane.b32.xlu0 %v1221, 64
      %v1227 = vpop.permute.xlu0 %1226
      %1228 = vrot.lane.b32.xlu0 %v1220, 64
      %v1229 = vpop.permute.xlu0 %1228
      %1234 = vst.msk [vmem:[#allocation2 + $0x10] sm:$0xfe] %vm1029, %v1223
      %1235 = vst.msk [vmem:[#allocation2 + $0x30] sm:$0xff] %vm1031, %v1225
      %1236 = vst.msk [vmem:[#allocation2 + $0x50] sm:$0xff] %vm1031, %v1227
      %1237 = vst.msk [vmem:[#allocation2 + $0x70] sm:$0x1f] %vm1034, %v1229
      %v1242 = vrot.slane %v961, 7
      %v1243 = vrot.slane %v962, 7
      %v1244 = vsel %vm979, %v1242, %v1243
      %v1245 = vrot.slane %v963, 7
      %v1246 = vsel %vm979, %v1243, %v1245
      %v1247 = vrot.slane %v964, 7
      %v1248 = vsel %vm979, %v1245, %v1247
      %1249 = vrot.lane.b32.xlu0 %v1242, 96
      %v1250 = vpop.permute.xlu0 %1249
      %1251 = vrot.lane.b32.xlu0 %v1244, 96
      %v1252 = vpop.permute.xlu0 %1251
      %1253 = vrot.lane.b32.xlu0 %v1246, 96
      %v1254 = vpop.permute.xlu0 %1253
      %1255 = vrot.lane.b32.xlu0 %v1248, 96
      %v1256 = vpop.permute.xlu0 %1255
      %1261 = vst.msk [vmem:[#allocation2 + $0x10] sm:$0xfe] %vm1059, %v1250
      %1262 = vst.msk [vmem:[#allocation2 + $0x30] sm:$0xff] %vm1061, %v1252
      %1263 = vst.msk [vmem:[#allocation2 + $0x50] sm:$0xff] %vm1061, %v1254
      %1264 = vst.msk [vmem:[#allocation2 + $0x70] sm:$0x1f] %vm1064, %v1256
      %v1268 = vrot.slane %v964, 3
      %v1269 = vrot.slane %v965, 3
      %v1270 = vsel %vm1009, %v1268, %v1269
      %v1271 = vrot.slane %v966, 3
      %v1272 = vsel %vm1009, %v1269, %v1271
      %v1273 = vrot.slane %v967, 3
      %v1274 = vsel %vm1009, %v1271, %v1273
      %1279 = vst.msk [vmem:[#allocation2 + $0x18] sm:$0xfe] %vm1080, %v1270
      %1280 = vst.msk [vmem:[#allocation2 + $0x38] sm:$0xff] %vm1082, %v1272
      %1281 = vst.msk [vmem:[#allocation2 + $0x58] sm:$0xff] %vm1082, %v1274
      %1282 = vst.msk [vmem:[#allocation2 + $0x78] sm:$0x1f] %vm1085, %v1273
      %v1287 = vrot.slane %v968, 7
      %v1288 = vrot.slane %v969, 7
      %v1289 = vsel %vm979, %v1287, %v1288
      %v1290 = vrot.slane %v970, 7
      %v1291 = vsel %vm979, %v1288, %v1290
      %v1292 = vrot.slane %v971, 7
      %v1293 = vsel %vm979, %v1290, %v1292
      %1294 = vrot.lane.b32.xlu0 %v1287, 32
      %v1295 = vpop.permute.xlu0 %1294
      %1296 = vrot.lane.b32.xlu0 %v1289, 32
      %v1297 = vpop.permute.xlu0 %1296
      %1298 = vrot.lane.b32.xlu0 %v1291, 32
      %v1299 = vpop.permute.xlu0 %1298
      %1300 = vrot.lane.b32.xlu0 %v1293, 32
      %v1301 = vpop.permute.xlu0 %1300
      %1306 = vst.msk [vmem:[#allocation2 + $0x18] sm:$0xfe] %vm999, %v1295
      %1307 = vst.msk [vmem:[#allocation2 + $0x38] sm:$0xff] %vm1001, %v1297
      %1308 = vst.msk [vmem:[#allocation2 + $0x58] sm:$0xff] %vm1001, %v1299
      %1309 = vst.msk [vmem:[#allocation2 + $0x78] sm:$0x1f] %vm1004, %v1301
      %v1313 = vrot.slane %v971, 3
      %v1314 = vrot.slane %v972, 3
      %v1315 = vsel %vm1009, %v1313, %v1314
      %v1316 = vrot.slane %v973, 3
      %v1317 = vsel %vm1009, %v1314, %v1316
      %v1318 = vrot.slane %v974, 3
      %v1319 = vsel %vm1009, %v1316, %v1318
      %1320 = vrot.lane.b32.xlu0 %v1315, 64
      %v1321 = vpop.permute.xlu0 %1320
      %1322 = vrot.lane.b32.xlu0 %v1317, 64
      %v1323 = vpop.permute.xlu0 %1322
      %1324 = vrot.lane.b32.xlu0 %v1319, 64
      %v1325 = vpop.permute.xlu0 %1324
      %1326 = vrot.lane.b32.xlu0 %v1318, 64
      %v1327 = vpop.permute.xlu0 %1326
      %1332 = vst.msk [vmem:[#allocation2 + $0x18] sm:$0xfe] %vm1029, %v1321
      %1333 = vst.msk [vmem:[#allocation2 + $0x38] sm:$0xff] %vm1031, %v1323
      %1334 = vst.msk [vmem:[#allocation2 + $0x58] sm:$0xff] %vm1031, %v1325
      %1335 = vst.msk [vmem:[#allocation2 + $0x78] sm:$0x1f] %vm1034, %v1327
      %v1336 = vld [vmem:[%s3] sm:$0xff]
      %v1337 = vld [vmem:[%s3 + $0x8] sm:$0xff]
      %v1338 = vld [vmem:[%s3 + $0x10] sm:$0xff]
      %v1339 = vld [vmem:[%s3 + $0x18] sm:$0xff]
      %v1340 = vld [vmem:[%s3 + $0x20] sm:$0xff]
      %v1341 = vld [vmem:[%s3 + $0x28] sm:$0xff]
      %v1342 = vld [vmem:[%s3 + $0x30] sm:$0xff]
      %v1343 = vld [vmem:[#allocation2] sm:$0xff]
      %v1344 = vld [vmem:[#allocation2 + $0x8] sm:$0xff]
      %v1345 = vld [vmem:[#allocation2 + $0x10] sm:$0xff]
      %v1346 = vld [vmem:[#allocation2 + $0x18] sm:$0xff]
      %v1347 = vld [vmem:[#allocation2 + $0x20] sm:$0xff]
      %v1348 = vld [vmem:[#allocation2 + $0x28] sm:$0xff]
      %v1349 = vld [vmem:[#allocation2 + $0x30] sm:$0xff]
      %v1350 = vld [vmem:[#allocation2 + $0x38] sm:$0xff]
      %v1351 = vld [vmem:[#allocation2 + $0x40] sm:$0xff]
      %v1352 = vld [vmem:[#allocation2 + $0x48] sm:$0xff]
      %v1353 = vld [vmem:[#allocation2 + $0x50] sm:$0xff]
      %v1354 = vld [vmem:[#allocation2 + $0x58] sm:$0xff]
      %v1355 = vld [vmem:[#allocation2 + $0x60] sm:$0x3f]
      %v1356 = vld [vmem:[#allocation2 + $0x68] sm:$0x3f]
      %v1357 = vld [vmem:[#allocation2 + $0x70] sm:$0x3f]
      %v1358 = vld [vmem:[#allocation2 + $0x78] sm:$0x3f]
      %vm1359 = vcmask 244736
      %v1361 = vsel %vm1359, %v1336, 0
      %v1364 = vsel %vm1359, %v1337, 0
      %v1367 = vsel %vm1359, %v1338, 0
      %v1370 = vsel %vm1359, %v1339, 0
      %v1373 = vsel %vm1359, %v1340, 0
      %v1376 = vsel %vm1359, %v1341, 0
      %v1379 = vsel %vm1359, %v1342, 0
      %vm1381 = vcmask 1045504
      %v1383 = vsel %vm1381, %v1355, 0
      %v1386 = vsel %vm1381, %v1356, 0
      %v1389 = vsel %vm1381, %v1357, 0
      %v1392 = vsel %vm1381, %v1358, 0
      %1394 = vmatprep.subr.mxu0 %v1344
      %1395 = vmatpush1.msra.mxu0 %v1343
      %1396 = vmatprep.subr.mxu0 %v1348
      %1397 = vmatpush1.msra.mxu0 %v1347
      %1398 = vmatprep.subr.mxu0 %v1352
      %1399 = vmatpush1.msra.mxu0 %v1351
      %1400 = vmatprep.subr.mxu0 %v1386
      %1401 = vmatpush1.msra.mxu0 %v1383
      %1402 = vmatprep.subr.mxu0 0.0
      %1403 = vmatpush1.msra.mxu0 0.0
      %1404 = vmatprep.subr.mxu0 0.0
      %1405 = vmatpush1.msra.mxu0 0.0
      %1406 = vmatprep.subr.mxu0 0.0
      %1407 = vmatpush1.msra.mxu0 0.0
      %1408 = vmatprep.subr.mxu0 0.0
      %1409 = vmatpush1.msra.mxu0 0.0
      %1410 = vmatprep.subr.mxu0 0.0
      %1411 = vmatpush1.msra.mxu0 0.0
      %1412 = vmatprep.subr.mxu0 0.0
      %1413 = vmatpush1.msra.mxu0 0.0
      %1414 = vmatprep.subr.mxu0 0.0
      %1415 = vmatpush1.msra.mxu0 0.0
      %1416 = vmatprep.subr.mxu0 0.0
      %1417 = vmatpush1.msra.mxu0 0.0
      %1418 = vmatprep.subr.mxu0 0.0
      %1419 = vmatpush1.msra.mxu0 0.0
      %1420 = vmatprep.subr.mxu0 0.0
      %1421 = vmatpush1.msra.mxu0 0.0
      %1422 = vmatprep.subr.mxu0 0.0
      %1423 = vmatpush1.msra.mxu0 0.0
      %1424 = vmatprep.subr.mxu0 0.0
      %1425 = vmatpush1.msra.mxu0 0.0
      %1426 = vmatprep.subr.mxu0 0.0
      %1427 = vmatpush1.msra.mxu0 0.0
      %1428 = vmatprep.subr.mxu0 0.0
      %1429 = vmatpush1.msra.mxu0 0.0
      %1430 = vmatprep.subr.mxu0 0.0
      %1431 = vmatpush1.msra.mxu0 0.0
      %1432 = vmatprep.subr.mxu0 0.0
      %1433 = vmatpush1.msra.mxu0 0.0
      %1434 = vmatprep.subr.mxu0 0.0
      %1435 = vmatpush1.msra.mxu0 0.0
      %1436 = vmatprep.subr.mxu0 0.0
      %1437 = vmatpush1.msra.mxu0 0.0
      %1438 = vmatprep.subr.mxu0 0.0
      %1439 = vmatpush1.msra.mxu0 0.0
      %1440 = vmatprep.subr.mxu0 0.0
      %1441 = vmatpush1.msra.mxu0 0.0
      %1442 = vmatprep.subr.mxu0 0.0
      %1443 = vmatpush1.msra.mxu0 0.0
      %1444 = vmatprep.subr.mxu0 0.0
      %1445 = vmatpush1.msra.mxu0 0.0
      %1446 = vmatprep.subr.mxu0 0.0
      %1447 = vmatpush1.msra.mxu0 0.0
      %1448 = vmatprep.subr.mxu0 0.0
      %1449 = vmatpush1.msra.mxu0 0.0
      %1450 = vmatprep.subr.mxu0 0.0
      %1451 = vmatpush1.msra.mxu0 0.0
      %1452 = vmatprep.subr.mxu0 0.0
      %1453 = vmatpush1.msra.mxu0 0.0
      %1454 = vmatprep.subr.mxu0 0.0
      %1455 = vmatpush1.msra.mxu0 0.0
      %1456 = vmatprep.subr.mxu0 0.0
      %1457 = vmatpush1.msra.mxu0 0.0
      %1458 = vmatprep.mubr.f32.mxu0 0.0
      %1459 = vmatmul.mubr.f32.gmra.mrb[0].mxu0 %v1361
      %v1460 = vpop.f32.mrb[0].mxu0
      %v1461 = vadd.f32 0.0, %v1460
      %v1462 = vpop.f32.mrb[0].mxu0
      %v1463 = vadd.f32 0.0, %v1462
      %1464 = vmatprep.mubr.f32.mxu0 0.0
      %1465 = vmatmul.mubr.f32.gmra.mrb[0].mxu0 %v1364
      %v1466 = vpop.f32.mrb[0].mxu0
      %v1467 = vadd.f32 0.0, %v1466
      %v1468 = vpop.f32.mrb[0].mxu0
      %v1469 = vadd.f32 0.0, %v1468
      %1470 = vmatprep.mubr.f32.mxu0 0.0
      %1471 = vmatmul.mubr.f32.gmra.mrb[0].mxu0 %v1367
      %v1472 = vpop.f32.mrb[0].mxu0
      %v1473 = vadd.f32 0.0, %v1472
      %v1474 = vpop.f32.mrb[0].mxu0
      %v1475 = vadd.f32 0.0, %v1474
      %1476 = vmatprep.mubr.f32.mxu0 0.0
      %1477 = vmatmul.mubr.f32.gmra.mrb[0].mxu0 %v1370
      %v1478 = vpop.f32.mrb[0].mxu0
      %v1479 = vadd.f32 0.0, %v1478
      %v1480 = vpop.f32.mrb[0].mxu0
      %v1481 = vadd.f32 0.0, %v1480
      %1482 = vmatprep.mubr.f32.mxu0 0.0
      %1483 = vmatmul.mubr.f32.gmra.mrb[0].mxu0 %v1373
      %v1484 = vpop.f32.mrb[0].mxu0
      %v1485 = vadd.f32 0.0, %v1484
      %v1486 = vpop.f32.mrb[0].mxu0
      %v1487 = vadd.f32 0.0, %v1486
      %1488 = vmatprep.mubr.f32.mxu0 0.0
      %1489 = vmatmul.mubr.f32.gmra.mrb[0].mxu0 %v1376
      %v1490 = vpop.f32.mrb[0].mxu0
      %v1491 = vadd.f32 0.0, %v1490
      %v1492 = vpop.f32.mrb[0].mxu0
      %v1493 = vadd.f32 0.0, %v1492
      %1494 = vmatprep.mubr.f32.mxu0 0.0
      %1495 = vmatmul.mubr.f32.gmra.mrb[0].mxu0 %v1379
      %v1496 = vpop.f32.mrb[0].mxu0
      %v1497 = vadd.f32 0.0, %v1496
      %v1498 = vpop.f32.mrb[0].mxu0
      %v1499 = vadd.f32 0.0, %v1498
      %1500 = vdwg.mxu0
      %1501 = vmatprep.subr.mxu0 %v1346
      %1502 = vmatpush1.msra.mxu0 %v1345
      %1503 = vmatprep.subr.mxu0 %v1350
      %1504 = vmatpush1.msra.mxu0 %v1349
      %1505 = vmatprep.subr.mxu0 %v1354
      %1506 = vmatpush1.msra.mxu0 %v1353
      %1507 = vmatprep.subr.mxu0 %v1392
      %1508 = vmatpush1.msra.mxu0 %v1389
      %1509 = vmatprep.subr.mxu0 0.0
      %1510 = vmatpush1.msra.mxu0 0.0
      %1511 = vmatprep.subr.mxu0 0.0
      %1512 = vmatpush1.msra.mxu0 0.0
      %1513 = vmatprep.subr.mxu0 0.0
      %1514 = vmatpush1.msra.mxu0 0.0
      %1515 = vmatprep.subr.mxu0 0.0
      %1516 = vmatpush1.msra.mxu0 0.0
      %1517 = vmatprep.subr.mxu0 0.0
      %1518 = vmatpush1.msra.mxu0 0.0
      %1519 = vmatprep.subr.mxu0 0.0
      %1520 = vmatpush1.msra.mxu0 0.0
      %1521 = vmatprep.subr.mxu0 0.0
      %1522 = vmatpush1.msra.mxu0 0.0
      %1523 = vmatprep.subr.mxu0 0.0
      %1524 = vmatpush1.msra.mxu0 0.0
      %1525 = vmatprep.subr.mxu0 0.0
      %1526 = vmatpush1.msra.mxu0 0.0
      %1527 = vmatprep.subr.mxu0 0.0
      %1528 = vmatpush1.msra.mxu0 0.0
      %1529 = vmatprep.subr.mxu0 0.0
      %1530 = vmatpush1.msra.mxu0 0.0
      %1531 = vmatprep.subr.mxu0 0.0
      %1532 = vmatpush1.msra.mxu0 0.0
      %1533 = vmatprep.subr.mxu0 0.0
      %1534 = vmatpush1.msra.mxu0 0.0
      %1535 = vmatprep.subr.mxu0 0.0
      %1536 = vmatpush1.msra.mxu0 0.0
      %1537 = vmatprep.subr.mxu0 0.0
      %1538 = vmatpush1.msra.mxu0 0.0
      %1539 = vmatprep.subr.mxu0 0.0
      %1540 = vmatpush1.msra.mxu0 0.0
      %1541 = vmatprep.subr.mxu0 0.0
      %1542 = vmatpush1.msra.mxu0 0.0
      %1543 = vmatprep.subr.mxu0 0.0
      %1544 = vmatpush1.msra.mxu0 0.0
      %1545 = vmatprep.subr.mxu0 0.0
      %1546 = vmatpush1.msra.mxu0 0.0
      %1547 = vmatprep.subr.mxu0 0.0
      %1548 = vmatpush1.msra.mxu0 0.0
      %1549 = vmatprep.subr.mxu0 0.0
      %1550 = vmatpush1.msra.mxu0 0.0
      %1551 = vmatprep.subr.mxu0 0.0
      %1552 = vmatpush1.msra.mxu0 0.0
      %1553 = vmatprep.subr.mxu0 0.0
      %1554 = vmatpush1.msra.mxu0 0.0
      %1555 = vmatprep.subr.mxu0 0.0
      %1556 = vmatpush1.msra.mxu0 0.0
      %1557 = vmatprep.subr.mxu0 0.0
      %1558 = vmatpush1.msra.mxu0 0.0
      %1559 = vmatprep.subr.mxu0 0.0
      %1560 = vmatpush1.msra.mxu0 0.0
      %1561 = vmatprep.subr.mxu0 0.0
      %1562 = vmatpush1.msra.mxu0 0.0
      %1563 = vmatprep.subr.mxu0 0.0
      %1564 = vmatpush1.msra.mxu0 0.0
      %1565 = vmatprep.mubr.f32.mxu0 0.0
      %1566 = vmatmul.mubr.f32.gmra.mrb[0].mxu0 %v1361
      %v1567 = vpop.f32.mrb[0].mxu0
      %v1568 = vadd.f32 0.0, %v1567
      %v1569 = vpop.f32.mrb[0].mxu0
      %v1570 = vadd.f32 0.0, %v1569
      %1571 = vmatprep.mubr.f32.mxu0 0.0
      %1572 = vmatmul.mubr.f32.gmra.mrb[0].mxu0 %v1364
      %v1573 = vpop.f32.mrb[0].mxu0
      %v1574 = vadd.f32 0.0, %v1573
      %v1575 = vpop.f32.mrb[0].mxu0
      %v1576 = vadd.f32 0.0, %v1575
      %1577 = vmatprep.mubr.f32.mxu0 0.0
      %1578 = vmatmul.mubr.f32.gmra.mrb[0].mxu0 %v1367
      %v1579 = vpop.f32.mrb[0].mxu0
      %v1580 = vadd.f32 0.0, %v1579
      %v1581 = vpop.f32.mrb[0].mxu0
      %v1582 = vadd.f32 0.0, %v1581
      %1583 = vmatprep.mubr.f32.mxu0 0.0
      %1584 = vmatmul.mubr.f32.gmra.mrb[0].mxu0 %v1370
      %v1585 = vpop.f32.mrb[0].mxu0
      %v1586 = vadd.f32 0.0, %v1585
      %v1587 = vpop.f32.mrb[0].mxu0
      %v1588 = vadd.f32 0.0, %v1587
      %1589 = vmatprep.mubr.f32.mxu0 0.0
      %1590 = vmatmul.mubr.f32.gmra.mrb[0].mxu0 %v1373
      %v1591 = vpop.f32.mrb[0].mxu0
      %v1592 = vadd.f32 0.0, %v1591
      %v1593 = vpop.f32.mrb[0].mxu0
      %v1594 = vadd.f32 0.0, %v1593
      %1595 = vmatprep.mubr.f32.mxu0 0.0
      %1596 = vmatmul.mubr.f32.gmra.mrb[0].mxu0 %v1376
      %v1597 = vpop.f32.mrb[0].mxu0
      %v1598 = vadd.f32 0.0, %v1597
      %v1599 = vpop.f32.mrb[0].mxu0
      %v1600 = vadd.f32 0.0, %v1599
      %1601 = vmatprep.mubr.f32.mxu0 0.0
      %1602 = vmatmul.mubr.f32.gmra.mrb[0].mxu0 %v1379
      %v1603 = vpop.f32.mrb[0].mxu0
      %v1604 = vadd.f32 0.0, %v1603
      %v1605 = vpop.f32.mrb[0].mxu0
      %v1606 = vadd.f32 0.0, %v1605
      %1607 = vdwg.mxu0
      %v1608 = vld [vmem:[%s4] sm:$0xff]
      %v1609 = vld [vmem:[%s4 + $0x8] sm:$0xff]
      %v1610 = vld [vmem:[%s4 + $0x10] sm:$0xff]
      %v1611 = vld [vmem:[%s4 + $0x18] sm:$0xff]
      %v1612 = vld [vmem:[%s4 + $0x20] sm:$0xff]
      %v1613 = vld [vmem:[%s4 + $0x28] sm:$0xff]
      %v1614 = vld [vmem:[%s4 + $0x30] sm:$0xff]
      %v1615 = vld [vmem:[%s4 + $0x38] sm:$0xff]
      %v1616 = vld [vmem:[%s4 + $0x40] sm:$0xff]
      %v1617 = vld [vmem:[%s4 + $0x48] sm:$0xff]
      %v1618 = vld [vmem:[%s4 + $0x50] sm:$0xff]
      %v1619 = vld [vmem:[%s4 + $0x58] sm:$0xff]
      %v1620 = vld [vmem:[%s4 + $0x60] sm:$0xff]
      %v1621 = vld [vmem:[%s4 + $0x68] sm:$0xff]
      %v1622 = vld [vmem:[%s4 + $0x70] sm:$0xff]
      %v1623 = vld [vmem:[%s4 + $0x78] sm:$0xff]
      %v1624 = vld [vmem:[%s4 + $0x80] sm:$0xff]
      %v1625 = vld [vmem:[%s4 + $0x88] sm:$0xff]
      %v1626 = vld [vmem:[%s4 + $0x90] sm:$0xff]
      %v1627 = vld [vmem:[%s4 + $0x98] sm:$0xff]
      %v1628 = vld [vmem:[%s4 + $0xa0] sm:$0xff]
      %v1629 = vld [vmem:[%s4 + $0xa8] sm:$0xff]
      %v1630 = vld [vmem:[%s4 + $0xb0] sm:$0xff]
      %v1631 = vld [vmem:[%s4 + $0xb8] sm:$0xff]
      %v1632 = vld [vmem:[%s4 + $0xc0] sm:$0xff]
      %v1633 = vld [vmem:[%s4 + $0xc8] sm:$0xff]
      %v1634 = vld [vmem:[%s4 + $0xd0] sm:$0xff]
      %v1635 = vld [vmem:[%s4 + $0xd8] sm:$0xff]
      %v1636 = vld [vmem:[%s4 + $0xe0] sm:$0xff]
      %v1637 = vld [vmem:[%s4 + $0xe8] sm:$0xff]
      %v1638 = vld [vmem:[%s4 + $0xf0] sm:$0xff]
      %v1639 = vld [vmem:[%s4 + $0xf8] sm:$0xff]
      %v1640 = vld [vmem:[%s4 + $0x100] sm:$0xff]
      %v1641 = vld [vmem:[%s4 + $0x108] sm:$0xff]
      %v1642 = vld [vmem:[%s4 + $0x110] sm:$0xff]
      %v1643 = vld [vmem:[%s4 + $0x118] sm:$0xff]
      %v1644 = vld [vmem:[%s4 + $0x120] sm:$0xff]
      %v1645 = vld [vmem:[%s4 + $0x128] sm:$0xff]
      %v1646 = vld [vmem:[%s4 + $0x130] sm:$0xff]
      %v1647 = vld [vmem:[%s4 + $0x138] sm:$0xff]
      %v1648 = vld [vmem:[%s4 + $0x140] sm:$0xff]
      %v1649 = vld [vmem:[%s4 + $0x148] sm:$0xff]
      %v1650 = vld [vmem:[%s4 + $0x150] sm:$0xff]
      %v1651 = vld [vmem:[%s4 + $0x158] sm:$0xff]
      %v1652 = vld [vmem:[%s4 + $0x160] sm:$0xff]
      %v1653 = vld [vmem:[%s4 + $0x168] sm:$0xff]
      %v1654 = vld [vmem:[%s4 + $0x170] sm:$0xff]
      %v1655 = vld [vmem:[%s4 + $0x178] sm:$0xff]
      %v1656 = vld [vmem:[%s4 + $0x180] sm:$0xff]
      %v1657 = vld [vmem:[%s4 + $0x188] sm:$0xff]
      %v1658 = vld [vmem:[%s4 + $0x190] sm:$0xff]
      %v1659 = vld [vmem:[%s4 + $0x198] sm:$0xff]
      %v1660 = vld [vmem:[%s4 + $0x1a0] sm:$0xff]
      %v1661 = vld [vmem:[%s4 + $0x1a8] sm:$0xff]
      %v1662 = vld [vmem:[%s4 + $0x1b0] sm:$0xff]
      %v1663 = vld [vmem:[%s4 + $0x1b8] sm:$0xff]
      %v1664 = vld [vmem:[%s4 + $0x1c0] sm:$0xff]
      %v1665 = vld [vmem:[%s4 + $0x1c8] sm:$0xff]
      %v1666 = vld [vmem:[%s4 + $0x1d0] sm:$0xff]
      %v1667 = vld [vmem:[%s4 + $0x1d8] sm:$0xff]
      %v1668 = vld [vmem:[%s4 + $0x1e0] sm:$0xff]
      %v1669 = vld [vmem:[%s4 + $0x1e8] sm:$0xff]
      %v1670 = vld [vmem:[%s4 + $0x1f0] sm:$0xff]
      %v1671 = vld [vmem:[%s4 + $0x1f8] sm:$0xff]
      %v1672 = vld [vmem:[%s5] sm:$0x1]
      %1673 = vmatprep.subr.mxu0 0.0
      %1674 = vmatpush1.msra.mxu0 %v1608
      %1675 = vmatprep.subr.mxu0 0.0
      %1676 = vmatpush1.msra.mxu0 %v1609
      %1677 = vmatprep.subr.mxu0 0.0
      %1678 = vmatpush1.msra.mxu0 %v1610
      %1679 = vmatprep.subr.mxu0 0.0
      %1680 = vmatpush1.msra.mxu0 %v1611
      %1681 = vmatprep.subr.mxu0 0.0
      %1682 = vmatpush1.msra.mxu0 %v1612
      %1683 = vmatprep.subr.mxu0 0.0
      %1684 = vmatpush1.msra.mxu0 %v1613
      %1685 = vmatprep.subr.mxu0 0.0
      %1686 = vmatpush1.msra.mxu0 %v1614
      %1687 = vmatprep.subr.mxu0 0.0
      %1688 = vmatpush1.msra.mxu0 %v1615
      %1689 = vmatprep.subr.mxu0 0.0
      %1690 = vmatpush1.msra.mxu0 %v1616
      %1691 = vmatprep.subr.mxu0 0.0
      %1692 = vmatpush1.msra.mxu0 %v1617
      %1693 = vmatprep.subr.mxu0 0.0
      %1694 = vmatpush1.msra.mxu0 %v1618
      %1695 = vmatprep.subr.mxu0 0.0
      %1696 = vmatpush1.msra.mxu0 %v1619
      %1697 = vmatprep.subr.mxu0 0.0
      %1698 = vmatpush1.msra.mxu0 %v1620
      %1699 = vmatprep.subr.mxu0 0.0
      %1700 = vmatpush1.msra.mxu0 %v1621
      %1701 = vmatprep.subr.mxu0 0.0
      %1702 = vmatpush1.msra.mxu0 %v1622
      %1703 = vmatprep.subr.mxu0 0.0
      %1704 = vmatpush1.msra.mxu0 %v1623
      %1705 = vmatprep.subr.mxu0 0.0
      %1706 = vmatpush1.msra.mxu0 0.0
      %1707 = vmatprep.subr.mxu0 0.0
      %1708 = vmatpush1.msra.mxu0 0.0
      %1709 = vmatprep.subr.mxu0 0.0
      %1710 = vmatpush1.msra.mxu0 0.0
      %1711 = vmatprep.subr.mxu0 0.0
      %1712 = vmatpush1.msra.mxu0 0.0
      %1713 = vmatprep.subr.mxu0 0.0
      %1714 = vmatpush1.msra.mxu0 0.0
      %1715 = vmatprep.subr.mxu0 0.0
      %1716 = vmatpush1.msra.mxu0 0.0
      %1717 = vmatprep.subr.mxu0 0.0
      %1718 = vmatpush1.msra.mxu0 0.0
      %1719 = vmatprep.subr.mxu0 0.0
      %1720 = vmatpush1.msra.mxu0 0.0
      %1721 = vmatprep.subr.mxu0 0.0
      %1722 = vmatpush1.msra.mxu0 0.0
      %1723 = vmatprep.subr.mxu0 0.0
      %1724 = vmatpush1.msra.mxu0 0.0
      %1725 = vmatprep.subr.mxu0 0.0
      %1726 = vmatpush1.msra.mxu0 0.0
      %1727 = vmatprep.subr.mxu0 0.0
      %1728 = vmatpush1.msra.mxu0 0.0
      %1729 = vmatprep.subr.mxu0 0.0
      %1730 = vmatpush1.msra.mxu0 0.0
      %1731 = vmatprep.subr.mxu0 0.0
      %1732 = vmatpush1.msra.mxu0 0.0
      %1733 = vmatprep.subr.mxu0 0.0
      %1734 = vmatpush1.msra.mxu0 0.0
      %1735 = vmatprep.subr.mxu0 0.0
      %1736 = vmatpush1.msra.mxu0 0.0
      %1737 = vmatprep.mubr.f32.mxu0 0.0
      %1738 = vmatmul.mubr.f32.gmra.mrb[0].mxu0 %v1461
      %v1739 = vpop.f32.mrb[0].mxu0
      %v1740 = vadd.f32 0.0, %v1739
      %v1741 = vpop.f32.mrb[0].mxu0
      %1742 = vmatprep.mubr.f32.mxu0 0.0
      %1743 = vmatmul.mubr.f32.gmra.mrb[0].mxu0 %v1467
      %v1744 = vpop.f32.mrb[0].mxu0
      %v1745 = vadd.f32 0.0, %v1744
      %v1746 = vpop.f32.mrb[0].mxu0
      %1747 = vdwg.mxu0
      %v1749 = vlaneseq
      %v1750 = vshrl.u32 %v1749, 7
      %v1751 = vsub.s32 0, %v1750
      %v1752 = vrot.slane %v1672, %v1751
      %v1754 = vadd.f32 %v1752, %v1740
      %v1755 = vadd.f32 %v1752, %v1745
      %vm1759 = vcmask 1041408
      %v1760 = vrot.slane %v1467, 6
      %v1761 = vrot.slane %v1473, 6
      %v1762 = vsel %vm1759, %v1760, %v1761
      %v1763 = vrot.slane %v1479, 6
      %v1764 = vsel %vm1759, %v1761, %v1763
      %1767 = vmatprep.subr.mxu0 0.0
      %1768 = vmatpush1.msra.mxu0 %v1624
      %1769 = vmatprep.subr.mxu0 0.0
      %1770 = vmatpush1.msra.mxu0 %v1625
      %1771 = vmatprep.subr.mxu0 0.0
      %1772 = vmatpush1.msra.mxu0 %v1626
      %1773 = vmatprep.subr.mxu0 0.0
      %1774 = vmatpush1.msra.mxu0 %v1627
      %1775 = vmatprep.subr.mxu0 0.0
      %1776 = vmatpush1.msra.mxu0 %v1628
      %1777 = vmatprep.subr.mxu0 0.0
      %1778 = vmatpush1.msra.mxu0 %v1629
      %1779 = vmatprep.subr.mxu0 0.0
      %1780 = vmatpush1.msra.mxu0 %v1630
      %1781 = vmatprep.subr.mxu0 0.0
      %1782 = vmatpush1.msra.mxu0 %v1631
      %1783 = vmatprep.subr.mxu0 0.0
      %1784 = vmatpush1.msra.mxu0 %v1632
      %1785 = vmatprep.subr.mxu0 0.0
      %1786 = vmatpush1.msra.mxu0 %v1633
      %1787 = vmatprep.subr.mxu0 0.0
      %1788 = vmatpush1.msra.mxu0 %v1634
      %1789 = vmatprep.subr.mxu0 0.0
      %1790 = vmatpush1.msra.mxu0 %v1635
      %1791 = vmatprep.subr.mxu0 0.0
      %1792 = vmatpush1.msra.mxu0 %v1636
      %1793 = vmatprep.subr.mxu0 0.0
      %1794 = vmatpush1.msra.mxu0 %v1637
      %1795 = vmatprep.subr.mxu0 0.0
      %1796 = vmatpush1.msra.mxu0 %v1638
      %1797 = vmatprep.subr.mxu0 0.0
      %1798 = vmatpush1.msra.mxu0 %v1639
      %1799 = vmatprep.subr.mxu0 0.0
      %1800 = vmatpush1.msra.mxu0 0.0
      %1801 = vmatprep.subr.mxu0 0.0
      %1802 = vmatpush1.msra.mxu0 0.0
      %1803 = vmatprep.subr.mxu0 0.0
      %1804 = vmatpush1.msra.mxu0 0.0
      %1805 = vmatprep.subr.mxu0 0.0
      %1806 = vmatpush1.msra.mxu0 0.0
      %1807 = vmatprep.subr.mxu0 0.0
      %1808 = vmatpush1.msra.mxu0 0.0
      %1809 = vmatprep.subr.mxu0 0.0
      %1810 = vmatpush1.msra.mxu0 0.0
      %1811 = vmatprep.subr.mxu0 0.0
      %1812 = vmatpush1.msra.mxu0 0.0
      %1813 = vmatprep.subr.mxu0 0.0
      %1814 = vmatpush1.msra.mxu0 0.0
      %1815 = vmatprep.subr.mxu0 0.0
      %1816 = vmatpush1.msra.mxu0 0.0
      %1817 = vmatprep.subr.mxu0 0.0
      %1818 = vmatpush1.msra.mxu0 0.0
      %1819 = vmatprep.subr.mxu0 0.0
      %1820 = vmatpush1.msra.mxu0 0.0
      %1821 = vmatprep.subr.mxu0 0.0
      %1822 = vmatpush1.msra.mxu0 0.0
      %1823 = vmatprep.subr.mxu0 0.0
      %1824 = vmatpush1.msra.mxu0 0.0
      %1825 = vmatprep.subr.mxu0 0.0
      %1826 = vmatpush1.msra.mxu0 0.0
      %1827 = vmatprep.subr.mxu0 0.0
      %1828 = vmatpush1.msra.mxu0 0.0
      %1829 = vmatprep.subr.mxu0 0.0
      %1830 = vmatpush1.msra.mxu0 0.0
      %1831 = vmatprep.mubr.f32.mxu0 0.0
      %1832 = vmatmul.mubr.f32.gmra.mrb[0].mxu0 %v1762
      %v1833 = vpop.f32.mrb[0].mxu0
      %v1834 = vadd.f32 0.0, %v1833
      %v1835 = vpop.f32.mrb[0].mxu0
      %1836 = vmatprep.mubr.f32.mxu0 0.0
      %1837 = vmatmul.mubr.f32.gmra.mrb[0].mxu0 %v1764
      %v1838 = vpop.f32.mrb[0].mxu0
      %v1839 = vadd.f32 0.0, %v1838
      %v1840 = vpop.f32.mrb[0].mxu0
      %1841 = vdwg.mxu0
      %v1842 = vadd.f32 %v1754, %v1834
      %v1843 = vadd.f32 %v1755, %v1839
      %vm1846 = vcmask 1043456
      %v1847 = vrot.slane %v1479, 4
      %v1848 = vrot.slane %v1485, 4
      %v1849 = vsel %vm1846, %v1847, %v1848
      %v1850 = vrot.slane %v1491, 4
      %v1851 = vsel %vm1846, %v1848, %v1850
      %1854 = vmatprep.subr.mxu0 0.0
      %1855 = vmatpush1.msra.mxu0 %v1640
      %1856 = vmatprep.subr.mxu0 0.0
      %1857 = vmatpush1.msra.mxu0 %v1641
      %1858 = vmatprep.subr.mxu0 0.0
      %1859 = vmatpush1.msra.mxu0 %v1642
      %1860 = vmatprep.subr.mxu0 0.0
      %1861 = vmatpush1.msra.mxu0 %v1643
      %1862 = vmatprep.subr.mxu0 0.0
      %1863 = vmatpush1.msra.mxu0 %v1644
      %1864 = vmatprep.subr.mxu0 0.0
      %1865 = vmatpush1.msra.mxu0 %v1645
      %1866 = vmatprep.subr.mxu0 0.0
      %1867 = vmatpush1.msra.mxu0 %v1646
      %1868 = vmatprep.subr.mxu0 0.0
      %1869 = vmatpush1.msra.mxu0 %v1647
      %1870 = vmatprep.subr.mxu0 0.0
      %1871 = vmatpush1.msra.mxu0 %v1648
      %1872 = vmatprep.subr.mxu0 0.0
      %1873 = vmatpush1.msra.mxu0 %v1649
      %1874 = vmatprep.subr.mxu0 0.0
      %1875 = vmatpush1.msra.mxu0 %v1650
      %1876 = vmatprep.subr.mxu0 0.0
      %1877 = vmatpush1.msra.mxu0 %v1651
      %1878 = vmatprep.subr.mxu0 0.0
      %1879 = vmatpush1.msra.mxu0 %v1652
      %1880 = vmatprep.subr.mxu0 0.0
      %1881 = vmatpush1.msra.mxu0 %v1653
      %1882 = vmatprep.subr.mxu0 0.0
      %1883 = vmatpush1.msra.mxu0 %v1654
      %1884 = vmatprep.subr.mxu0 0.0
      %1885 = vmatpush1.msra.mxu0 %v1655
      %1886 = vmatprep.subr.mxu0 0.0
      %1887 = vmatpush1.msra.mxu0 0.0
      %1888 = vmatprep.subr.mxu0 0.0
      %1889 = vmatpush1.msra.mxu0 0.0
      %1890 = vmatprep.subr.mxu0 0.0
      %1891 = vmatpush1.msra.mxu0 0.0
      %1892 = vmatprep.subr.mxu0 0.0
      %1893 = vmatpush1.msra.mxu0 0.0
      %1894 = vmatprep.subr.mxu0 0.0
      %1895 = vmatpush1.msra.mxu0 0.0
      %1896 = vmatprep.subr.mxu0 0.0
      %1897 = vmatpush1.msra.mxu0 0.0
      %1898 = vmatprep.subr.mxu0 0.0
      %1899 = vmatpush1.msra.mxu0 0.0
      %1900 = vmatprep.subr.mxu0 0.0
      %1901 = vmatpush1.msra.mxu0 0.0
      %1902 = vmatprep.subr.mxu0 0.0
      %1903 = vmatpush1.msra.mxu0 0.0
      %1904 = vmatprep.subr.mxu0 0.0
      %1905 = vmatpush1.msra.mxu0 0.0
      %1906 = vmatprep.subr.mxu0 0.0
      %1907 = vmatpush1.msra.mxu0 0.0
      %1908 = vmatprep.subr.mxu0 0.0
      %1909 = vmatpush1.msra.mxu0 0.0
      %1910 = vmatprep.subr.mxu0 0.0
      %1911 = vmatpush1.msra.mxu0 0.0
      %1912 = vmatprep.subr.mxu0 0.0
      %1913 = vmatpush1.msra.mxu0 0.0
      %1914 = vmatprep.subr.mxu0 0.0
      %1915 = vmatpush1.msra.mxu0 0.0
      %1916 = vmatprep.subr.mxu0 0.0
      %1917 = vmatpush1.msra.mxu0 0.0
      %1918 = vmatprep.mubr.f32.mxu0 0.0
      %1919 = vmatmul.mubr.f32.gmra.mrb[0].mxu0 %v1849
      %v1920 = vpop.f32.mrb[0].mxu0
      %v1921 = vadd.f32 0.0, %v1920
      %v1922 = vpop.f32.mrb[0].mxu0
      %1923 = vmatprep.mubr.f32.mxu0 0.0
      %1924 = vmatmul.mubr.f32.gmra.mrb[0].mxu0 %v1851
      %v1925 = vpop.f32.mrb[0].mxu0
      %v1926 = vadd.f32 0.0, %v1925
      %v1927 = vpop.f32.mrb[0].mxu0
      %1928 = vdwg.mxu0
      %v1929 = vadd.f32 %v1842, %v1921
      %v1930 = vadd.f32 %v1843, %v1926
      %v1932 = vrot.slane %v1491, 2
      %v1933 = vrot.slane %v1497, 2
      %v1934 = vsel %vm1381, %v1932, %v1933
      %1937 = vmatprep.subr.mxu0 0.0
      %1938 = vmatpush1.msra.mxu0 %v1656
      %1939 = vmatprep.subr.mxu0 0.0
      %1940 = vmatpush1.msra.mxu0 %v1657
      %1941 = vmatprep.subr.mxu0 0.0
      %1942 = vmatpush1.msra.mxu0 %v1658
      %1943 = vmatprep.subr.mxu0 0.0
      %1944 = vmatpush1.msra.mxu0 %v1659
      %1945 = vmatprep.subr.mxu0 0.0
      %1946 = vmatpush1.msra.mxu0 %v1660
      %1947 = vmatprep.subr.mxu0 0.0
      %1948 = vmatpush1.msra.mxu0 %v1661
      %1949 = vmatprep.subr.mxu0 0.0
      %1950 = vmatpush1.msra.mxu0 %v1662
      %1951 = vmatprep.subr.mxu0 0.0
      %1952 = vmatpush1.msra.mxu0 %v1663
      %1953 = vmatprep.subr.mxu0 0.0
      %1954 = vmatpush1.msra.mxu0 %v1664
      %1955 = vmatprep.subr.mxu0 0.0
      %1956 = vmatpush1.msra.mxu0 %v1665
      %1957 = vmatprep.subr.mxu0 0.0
      %1958 = vmatpush1.msra.mxu0 %v1666
      %1959 = vmatprep.subr.mxu0 0.0
      %1960 = vmatpush1.msra.mxu0 %v1667
      %1961 = vmatprep.subr.mxu0 0.0
      %1962 = vmatpush1.msra.mxu0 %v1668
      %1963 = vmatprep.subr.mxu0 0.0
      %1964 = vmatpush1.msra.mxu0 %v1669
      %1965 = vmatprep.subr.mxu0 0.0
      %1966 = vmatpush1.msra.mxu0 %v1670
      %1967 = vmatprep.subr.mxu0 0.0
      %1968 = vmatpush1.msra.mxu0 %v1671
      %1969 = vmatprep.subr.mxu0 0.0
      %1970 = vmatpush1.msra.mxu0 0.0
      %1971 = vmatprep.subr.mxu0 0.0
      %1972 = vmatpush1.msra.mxu0 0.0
      %1973 = vmatprep.subr.mxu0 0.0
      %1974 = vmatpush1.msra.mxu0 0.0
      %1975 = vmatprep.subr.mxu0 0.0
      %1976 = vmatpush1.msra.mxu0 0.0
      %1977 = vmatprep.subr.mxu0 0.0
      %1978 = vmatpush1.msra.mxu0 0.0
      %1979 = vmatprep.subr.mxu0 0.0
      %1980 = vmatpush1.msra.mxu0 0.0
      %1981 = vmatprep.subr.mxu0 0.0
      %1982 = vmatpush1.msra.mxu0 0.0
      %1983 = vmatprep.subr.mxu0 0.0
      %1984 = vmatpush1.msra.mxu0 0.0
      %1985 = vmatprep.subr.mxu0 0.0
      %1986 = vmatpush1.msra.mxu0 0.0
      %1987 = vmatprep.subr.mxu0 0.0
      %1988 = vmatpush1.msra.mxu0 0.0
      %1989 = vmatprep.subr.mxu0 0.0
      %1990 = vmatpush1.msra.mxu0 0.0
      %1991 = vmatprep.subr.mxu0 0.0
      %1992 = vmatpush1.msra.mxu0 0.0
      %1993 = vmatprep.subr.mxu0 0.0
      %1994 = vmatpush1.msra.mxu0 0.0
      %1995 = vmatprep.subr.mxu0 0.0
      %1996 = vmatpush1.msra.mxu0 0.0
      %1997 = vmatprep.subr.mxu0 0.0
      %1998 = vmatpush1.msra.mxu0 0.0
      %1999 = vmatprep.subr.mxu0 0.0
      %2000 = vmatpush1.msra.mxu0 0.0
      %2001 = vmatprep.mubr.f32.mxu0 0.0
      %2002 = vmatmul.mubr.f32.gmra.mrb[0].mxu0 %v1934
      %v2003 = vpop.f32.mrb[0].mxu0
      %v2004 = vadd.f32 0.0, %v2003
      %v2005 = vpop.f32.mrb[0].mxu0
      %2006 = vmatprep.mubr.f32.mxu0 0.0
      %2007 = vmatmul.mubr.f32.gmra.mrb[0].mxu0 %v1933
      %v2008 = vpop.f32.mrb[0].mxu0
      %v2009 = vadd.f32 0.0, %v2008
      %v2010 = vpop.f32.mrb[0].mxu0
      %2011 = vdwg.mxu0
      %v2012 = vadd.f32 %v1929, %v2004
      %v2013 = vadd.f32 %v1930, %v2009
      %v2014 = vmax.f32 %v2012, 0.0
      %v2015 = vmax.f32 %v2013, 0.0
      %v2018 = vrot.slane %v2014, 7
      %v2019 = vrot.slane %v2015, 7
      %v2020 = vsel %vm979, %v2018, %v2019
      %2021 = vrot.lane.b32.xlu0 %v2018, 64
      %v2022 = vpop.permute.xlu0 %2021
      %2023 = vrot.lane.b32.xlu0 %v2020, 64
      %v2024 = vpop.permute.xlu0 %2023
      %vm2027 = vcmask 1048065
      %2028 = vst.msk [vmem:[#allocation3] sm:$0xfe] %vm2027, %v2022
      %vm2029 = vcmask 1047040
      %2030 = vst.msk [vmem:[#allocation3 + $0x28] sm:$0x7f] %vm2029, %v2024
      %v2031 = vld [vmem:[%s5] sm:$0x1]
      %2035 = vrot.lane.b32.xlu0 %v1461, 64
      %v2036 = vpop.permute.xlu0 %2035
      %2037 = vrot.lane.b32.xlu0 %v1463, 64
      %v2038 = vpop.permute.xlu0 %2037
      %2039 = vrot.lane.b32.xlu0 %v1467, 64
      %v2040 = vpop.permute.xlu0 %2039
      %2041 = vrot.lane.b32.xlu0 %v1469, 64
      %v2042 = vpop.permute.xlu0 %2041
      %v2043 = vsel %vm403, %v2036, %v2038
      %v2044 = vsel %vm403, %v2040, %v2042
      %2047 = vmatprep.subr.mxu0 0.0
      %2048 = vmatpush1.msra.mxu0 %v1608
      %2049 = vmatprep.subr.mxu0 0.0
      %2050 = vmatpush1.msra.mxu0 %v1609
      %2051 = vmatprep.subr.mxu0 0.0
      %2052 = vmatpush1.msra.mxu0 %v1610
      %2053 = vmatprep.subr.mxu0 0.0
      %2054 = vmatpush1.msra.mxu0 %v1611
      %2055 = vmatprep.subr.mxu0 0.0
      %2056 = vmatpush1.msra.mxu0 %v1612
      %2057 = vmatprep.subr.mxu0 0.0
      %2058 = vmatpush1.msra.mxu0 %v1613
      %2059 = vmatprep.subr.mxu0 0.0
      %2060 = vmatpush1.msra.mxu0 %v1614
      %2061 = vmatprep.subr.mxu0 0.0
      %2062 = vmatpush1.msra.mxu0 %v1615
      %2063 = vmatprep.subr.mxu0 0.0
      %2064 = vmatpush1.msra.mxu0 %v1616
      %2065 = vmatprep.subr.mxu0 0.0
      %2066 = vmatpush1.msra.mxu0 %v1617
      %2067 = vmatprep.subr.mxu0 0.0
      %2068 = vmatpush1.msra.mxu0 %v1618
      %2069 = vmatprep.subr.mxu0 0.0
      %2070 = vmatpush1.msra.mxu0 %v1619
      %2071 = vmatprep.subr.mxu0 0.0
      %2072 = vmatpush1.msra.mxu0 %v1620
      %2073 = vmatprep.subr.mxu0 0.0
      %2074 = vmatpush1.msra.mxu0 %v1621
      %2075 = vmatprep.subr.mxu0 0.0
      %2076 = vmatpush1.msra.mxu0 %v1622
      %2077 = vmatprep.subr.mxu0 0.0
      %2078 = vmatpush1.msra.mxu0 %v1623
      %2079 = vmatprep.subr.mxu0 0.0
      %2080 = vmatpush1.msra.mxu0 0.0
      %2081 = vmatprep.subr.mxu0 0.0
      %2082 = vmatpush1.msra.mxu0 0.0
      %2083 = vmatprep.subr.mxu0 0.0
      %2084 = vmatpush1.msra.mxu0 0.0
      %2085 = vmatprep.subr.mxu0 0.0
      %2086 = vmatpush1.msra.mxu0 0.0
      %2087 = vmatprep.subr.mxu0 0.0
      %2088 = vmatpush1.msra.mxu0 0.0
      %2089 = vmatprep.subr.mxu0 0.0
      %2090 = vmatpush1.msra.mxu0 0.0
      %2091 = vmatprep.subr.mxu0 0.0
      %2092 = vmatpush1.msra.mxu0 0.0
      %2093 = vmatprep.subr.mxu0 0.0
      %2094 = vmatpush1.msra.mxu0 0.0
      %2095 = vmatprep.subr.mxu0 0.0
      %2096 = vmatpush1.msra.mxu0 0.0
      %2097 = vmatprep.subr.mxu0 0.0
      %2098 = vmatpush1.msra.mxu0 0.0
      %2099 = vmatprep.subr.mxu0 0.0
      %2100 = vmatpush1.msra.mxu0 0.0
      %2101 = vmatprep.subr.mxu0 0.0
      %2102 = vmatpush1.msra.mxu0 0.0
      %2103 = vmatprep.subr.mxu0 0.0
      %2104 = vmatpush1.msra.mxu0 0.0
      %2105 = vmatprep.subr.mxu0 0.0
      %2106 = vmatpush1.msra.mxu0 0.0
      %2107 = vmatprep.subr.mxu0 0.0
      %2108 = vmatpush1.msra.mxu0 0.0
      %2109 = vmatprep.subr.mxu0 0.0
      %2110 = vmatpush1.msra.mxu0 0.0
      %2111 = vmatprep.mubr.f32.mxu0 0.0
      %2112 = vmatmul.mubr.f32.gmra.mrb[0].mxu0 %v2043
      %v2113 = vpop.f32.mrb[0].mxu0
      %v2114 = vadd.f32 0.0, %v2113
      %v2115 = vpop.f32.mrb[0].mxu0
      %2116 = vmatprep.mubr.f32.mxu0 0.0
      %2117 = vmatmul.mubr.f32.gmra.mrb[0].mxu0 %v2044
      %v2118 = vpop.f32.mrb[0].mxu0
      %v2119 = vadd.f32 0.0, %v2118
      %v2120 = vpop.f32.mrb[0].mxu0
      %2121 = vdwg.mxu0
      %v2123 = vlaneseq
      %v2124 = vshrl.u32 %v2123, 7
      %v2125 = vsub.s32 0, %v2124
      %v2126 = vrot.slane %v2031, %v2125
      %v2128 = vadd.f32 %v2126, %v2114
      %v2129 = vadd.f32 %v2126, %v2119
      %v2132 = vrot.slane %v1469, 6
      %v2133 = vrot.slane %v1475, 6
      %v2134 = vsel %vm1759, %v2132, %v2133
      %v2135 = vrot.slane %v1481, 6
      %v2136 = vsel %vm1759, %v2133, %v2135
      %2137 = vrot.lane.b32.xlu0 %v1762, 64
      %v2138 = vpop.permute.xlu0 %2137
      %2139 = vrot.lane.b32.xlu0 %v2134, 64
      %v2140 = vpop.permute.xlu0 %2139
      %2141 = vrot.lane.b32.xlu0 %v1764, 64
      %v2142 = vpop.permute.xlu0 %2141
      %2143 = vrot.lane.b32.xlu0 %v2136, 64
      %v2144 = vpop.permute.xlu0 %2143
      %v2145 = vsel %vm403, %v2138, %v2140
      %v2146 = vsel %vm403, %v2142, %v2144
      %2149 = vmatprep.subr.mxu0 0.0
      %2150 = vmatpush1.msra.mxu0 %v1624
      %2151 = vmatprep.subr.mxu0 0.0
      %2152 = vmatpush1.msra.mxu0 %v1625
      %2153 = vmatprep.subr.mxu0 0.0
      %2154 = vmatpush1.msra.mxu0 %v1626
      %2155 = vmatprep.subr.mxu0 0.0
      %2156 = vmatpush1.msra.mxu0 %v1627
      %2157 = vmatprep.subr.mxu0 0.0
      %2158 = vmatpush1.msra.mxu0 %v1628
      %2159 = vmatprep.subr.mxu0 0.0
      %2160 = vmatpush1.msra.mxu0 %v1629
      %2161 = vmatprep.subr.mxu0 0.0
      %2162 = vmatpush1.msra.mxu0 %v1630
      %2163 = vmatprep.subr.mxu0 0.0
      %2164 = vmatpush1.msra.mxu0 %v1631
      %2165 = vmatprep.subr.mxu0 0.0
      %2166 = vmatpush1.msra.mxu0 %v1632
      %2167 = vmatprep.subr.mxu0 0.0
      %2168 = vmatpush1.msra.mxu0 %v1633
      %2169 = vmatprep.subr.mxu0 0.0
      %2170 = vmatpush1.msra.mxu0 %v1634
      %2171 = vmatprep.subr.mxu0 0.0
      %2172 = vmatpush1.msra.mxu0 %v1635
      %2173 = vmatprep.subr.mxu0 0.0
      %2174 = vmatpush1.msra.mxu0 %v1636
      %2175 = vmatprep.subr.mxu0 0.0
      %2176 = vmatpush1.msra.mxu0 %v1637
      %2177 = vmatprep.subr.mxu0 0.0
      %2178 = vmatpush1.msra.mxu0 %v1638
      %2179 = vmatprep.subr.mxu0 0.0
      %2180 = vmatpush1.msra.mxu0 %v1639
      %2181 = vmatprep.subr.mxu0 0.0
      %2182 = vmatpush1.msra.mxu0 0.0
      %2183 = vmatprep.subr.mxu0 0.0
      %2184 = vmatpush1.msra.mxu0 0.0
      %2185 = vmatprep.subr.mxu0 0.0
      %2186 = vmatpush1.msra.mxu0 0.0
      %2187 = vmatprep.subr.mxu0 0.0
      %2188 = vmatpush1.msra.mxu0 0.0
      %2189 = vmatprep.subr.mxu0 0.0
      %2190 = vmatpush1.msra.mxu0 0.0
      %2191 = vmatprep.subr.mxu0 0.0
      %2192 = vmatpush1.msra.mxu0 0.0
      %2193 = vmatprep.subr.mxu0 0.0
      %2194 = vmatpush1.msra.mxu0 0.0
      %2195 = vmatprep.subr.mxu0 0.0
      %2196 = vmatpush1.msra.mxu0 0.0
      %2197 = vmatprep.subr.mxu0 0.0
      %2198 = vmatpush1.msra.mxu0 0.0
      %2199 = vmatprep.subr.mxu0 0.0
      %2200 = vmatpush1.msra.mxu0 0.0
      %2201 = vmatprep.subr.mxu0 0.0
      %2202 = vmatpush1.msra.mxu0 0.0
      %2203 = vmatprep.subr.mxu0 0.0
      %2204 = vmatpush1.msra.mxu0 0.0
      %2205 = vmatprep.subr.mxu0 0.0
      %2206 = vmatpush1.msra.mxu0 0.0
      %2207 = vmatprep.subr.mxu0 0.0
      %2208 = vmatpush1.msra.mxu0 0.0
      %2209 = vmatprep.subr.mxu0 0.0
      %2210 = vmatpush1.msra.mxu0 0.0
      %2211 = vmatprep.subr.mxu0 0.0
      %2212 = vmatpush1.msra.mxu0 0.0
      %2213 = vmatprep.mubr.f32.mxu0 0.0
      %2214 = vmatmul.mubr.f32.gmra.mrb[0].mxu0 %v2145
      %v2215 = vpop.f32.mrb[0].mxu0
      %v2216 = vadd.f32 0.0, %v2215
      %v2217 = vpop.f32.mrb[0].mxu0
      %2218 = vmatprep.mubr.f32.mxu0 0.0
      %2219 = vmatmul.mubr.f32.gmra.mrb[0].mxu0 %v2146
      %v2220 = vpop.f32.mrb[0].mxu0
      %v2221 = vadd.f32 0.0, %v2220
      %v2222 = vpop.f32.mrb[0].mxu0
      %2223 = vdwg.mxu0
      %v2224 = vadd.f32 %v2128, %v2216
      %v2225 = vadd.f32 %v2129, %v2221
      %v2228 = vrot.slane %v1481, 4
      %v2229 = vrot.slane %v1487, 4
      %v2230 = vsel %vm1846, %v2228, %v2229
      %v2231 = vrot.slane %v1493, 4
      %v2232 = vsel %vm1846, %v2229, %v2231
      %2233 = vrot.lane.b32.xlu0 %v1849, 64
      %v2234 = vpop.permute.xlu0 %2233
      %2235 = vrot.lane.b32.xlu0 %v2230, 64
      %v2236 = vpop.permute.xlu0 %2235
      %2237 = vrot.lane.b32.xlu0 %v1851, 64
      %v2238 = vpop.permute.xlu0 %2237
      %2239 = vrot.lane.b32.xlu0 %v2232, 64
      %v2240 = vpop.permute.xlu0 %2239
      %v2241 = vsel %vm403, %v2234, %v2236
      %v2242 = vsel %vm403, %v2238, %v2240
      %2245 = vmatprep.subr.mxu0 0.0
      %2246 = vmatpush1.msra.mxu0 %v1640
      %2247 = vmatprep.subr.mxu0 0.0
      %2248 = vmatpush1.msra.mxu0 %v1641
      %2249 = vmatprep.subr.mxu0 0.0
      %2250 = vmatpush1.msra.mxu0 %v1642
      %2251 = vmatprep.subr.mxu0 0.0
      %2252 = vmatpush1.msra.mxu0 %v1643
      %2253 = vmatprep.subr.mxu0 0.0
      %2254 = vmatpush1.msra.mxu0 %v1644
      %2255 = vmatprep.subr.mxu0 0.0
      %2256 = vmatpush1.msra.mxu0 %v1645
      %2257 = vmatprep.subr.mxu0 0.0
      %2258 = vmatpush1.msra.mxu0 %v1646
      %2259 = vmatprep.subr.mxu0 0.0
      %2260 = vmatpush1.msra.mxu0 %v1647
      %2261 = vmatprep.subr.mxu0 0.0
      %2262 = vmatpush1.msra.mxu0 %v1648
      %2263 = vmatprep.subr.mxu0 0.0
      %2264 = vmatpush1.msra.mxu0 %v1649
      %2265 = vmatprep.subr.mxu0 0.0
      %2266 = vmatpush1.msra.mxu0 %v1650
      %2267 = vmatprep.subr.mxu0 0.0
      %2268 = vmatpush1.msra.mxu0 %v1651
      %2269 = vmatprep.subr.mxu0 0.0
      %2270 = vmatpush1.msra.mxu0 %v1652
      %2271 = vmatprep.subr.mxu0 0.0
      %2272 = vmatpush1.msra.mxu0 %v1653
      %2273 = vmatprep.subr.mxu0 0.0
      %2274 = vmatpush1.msra.mxu0 %v1654
      %2275 = vmatprep.subr.mxu0 0.0
      %2276 = vmatpush1.msra.mxu0 %v1655
      %2277 = vmatprep.subr.mxu0 0.0
      %2278 = vmatpush1.msra.mxu0 0.0
      %2279 = vmatprep.subr.mxu0 0.0
      %2280 = vmatpush1.msra.mxu0 0.0
      %2281 = vmatprep.subr.mxu0 0.0
      %2282 = vmatpush1.msra.mxu0 0.0
      %2283 = vmatprep.subr.mxu0 0.0
      %2284 = vmatpush1.msra.mxu0 0.0
      %2285 = vmatprep.subr.mxu0 0.0
      %2286 = vmatpush1.msra.mxu0 0.0
      %2287 = vmatprep.subr.mxu0 0.0
      %2288 = vmatpush1.msra.mxu0 0.0
      %2289 = vmatprep.subr.mxu0 0.0
      %2290 = vmatpush1.msra.mxu0 0.0
      %2291 = vmatprep.subr.mxu0 0.0
      %2292 = vmatpush1.msra.mxu0 0.0
      %2293 = vmatprep.subr.mxu0 0.0
      %2294 = vmatpush1.msra.mxu0 0.0
      %2295 = vmatprep.subr.mxu0 0.0
      %2296 = vmatpush1.msra.mxu0 0.0
      %2297 = vmatprep.subr.mxu0 0.0
      %2298 = vmatpush1.msra.mxu0 0.0
      %2299 = vmatprep.subr.mxu0 0.0
      %2300 = vmatpush1.msra.mxu0 0.0
      %2301 = vmatprep.subr.mxu0 0.0
      %2302 = vmatpush1.msra.mxu0 0.0
      %2303 = vmatprep.subr.mxu0 0.0
      %2304 = vmatpush1.msra.mxu0 0.0
      %2305 = vmatprep.subr.mxu0 0.0
      %2306 = vmatpush1.msra.mxu0 0.0
      %2307 = vmatprep.subr.mxu0 0.0
      %2308 = vmatpush1.msra.mxu0 0.0
      %2309 = vmatprep.mubr.f32.mxu0 0.0
      %2310 = vmatmul.mubr.f32.gmra.mrb[0].mxu0 %v2241
      %v2311 = vpop.f32.mrb[0].mxu0
      %v2312 = vadd.f32 0.0, %v2311
      %v2313 = vpop.f32.mrb[0].mxu0
      %2314 = vmatprep.mubr.f32.mxu0 0.0
      %2315 = vmatmul.mubr.f32.gmra.mrb[0].mxu0 %v2242
      %v2316 = vpop.f32.mrb[0].mxu0
      %v2317 = vadd.f32 0.0, %v2316
      %v2318 = vpop.f32.mrb[0].mxu0
      %2319 = vdwg.mxu0
      %v2320 = vadd.f32 %v2224, %v2312
      %v2321 = vadd.f32 %v2225, %v2317
      %v2323 = vrot.slane %v1493, 2
      %v2324 = vrot.slane %v1499, 2
      %v2325 = vsel %vm1381, %v2323, %v2324
      %2326 = vrot.lane.b32.xlu0 %v1934, 64
      %v2327 = vpop.permute.xlu0 %2326
      %2328 = vrot.lane.b32.xlu0 %v2325, 64
      %v2329 = vpop.permute.xlu0 %2328
      %2330 = vrot.lane.b32.xlu0 %v1933, 64
      %v2331 = vpop.permute.xlu0 %2330
      %2332 = vrot.lane.b32.xlu0 %v2324, 64
      %v2333 = vpop.permute.xlu0 %2332
      %v2334 = vsel %vm403, %v2327, %v2329
      %v2335 = vsel %vm403, %v2331, %v2333
      %2338 = vmatprep.subr.mxu0 0.0
      %2339 = vmatpush1.msra.mxu0 %v1656
      %2340 = vmatprep.subr.mxu0 0.0
      %2341 = vmatpush1.msra.mxu0 %v1657
      %2342 = vmatprep.subr.mxu0 0.0
      %2343 = vmatpush1.msra.mxu0 %v1658
      %2344 = vmatprep.subr.mxu0 0.0
      %2345 = vmatpush1.msra.mxu0 %v1659
      %2346 = vmatprep.subr.mxu0 0.0
      %2347 = vmatpush1.msra.mxu0 %v1660
      %2348 = vmatprep.subr.mxu0 0.0
      %2349 = vmatpush1.msra.mxu0 %v1661
      %2350 = vmatprep.subr.mxu0 0.0
      %2351 = vmatpush1.msra.mxu0 %v1662
      %2352 = vmatprep.subr.mxu0 0.0
      %2353 = vmatpush1.msra.mxu0 %v1663
      %2354 = vmatprep.subr.mxu0 0.0
      %2355 = vmatpush1.msra.mxu0 %v1664
      %2356 = vmatprep.subr.mxu0 0.0
      %2357 = vmatpush1.msra.mxu0 %v1665
      %2358 = vmatprep.subr.mxu0 0.0
      %2359 = vmatpush1.msra.mxu0 %v1666
      %2360 = vmatprep.subr.mxu0 0.0
      %2361 = vmatpush1.msra.mxu0 %v1667
      %2362 = vmatprep.subr.mxu0 0.0
      %2363 = vmatpush1.msra.mxu0 %v1668
      %2364 = vmatprep.subr.mxu0 0.0
      %2365 = vmatpush1.msra.mxu0 %v1669
      %2366 = vmatprep.subr.mxu0 0.0
      %2367 = vmatpush1.msra.mxu0 %v1670
      %2368 = vmatprep.subr.mxu0 0.0
      %2369 = vmatpush1.msra.mxu0 %v1671
      %2370 = vmatprep.subr.mxu0 0.0
      %2371 = vmatpush1.msra.mxu0 0.0
      %2372 = vmatprep.subr.mxu0 0.0
      %2373 = vmatpush1.msra.mxu0 0.0
      %2374 = vmatprep.subr.mxu0 0.0
      %2375 = vmatpush1.msra.mxu0 0.0
      %2376 = vmatprep.subr.mxu0 0.0
      %2377 = vmatpush1.msra.mxu0 0.0
      %2378 = vmatprep.subr.mxu0 0.0
      %2379 = vmatpush1.msra.mxu0 0.0
      %2380 = vmatprep.subr.mxu0 0.0
      %2381 = vmatpush1.msra.mxu0 0.0
      %2382 = vmatprep.subr.mxu0 0.0
      %2383 = vmatpush1.msra.mxu0 0.0
      %2384 = vmatprep.subr.mxu0 0.0
      %2385 = vmatpush1.msra.mxu0 0.0
      %2386 = vmatprep.subr.mxu0 0.0
      %2387 = vmatpush1.msra.mxu0 0.0
      %2388 = vmatprep.subr.mxu0 0.0
      %2389 = vmatpush1.msra.mxu0 0.0
      %2390 = vmatprep.subr.mxu0 0.0
      %2391 = vmatpush1.msra.mxu0 0.0
      %2392 = vmatprep.subr.mxu0 0.0
      %2393 = vmatpush1.msra.mxu0 0.0
      %2394 = vmatprep.subr.mxu0 0.0
      %2395 = vmatpush1.msra.mxu0 0.0
      %2396 = vmatprep.subr.mxu0 0.0
      %2397 = vmatpush1.msra.mxu0 0.0
      %2398 = vmatprep.subr.mxu0 0.0
      %2399 = vmatpush1.msra.mxu0 0.0
      %2400 = vmatprep.subr.mxu0 0.0
      %2401 = vmatpush1.msra.mxu0 0.0
      %2402 = vmatprep.mubr.f32.mxu0 0.0
      %2403 = vmatmul.mubr.f32.gmra.mrb[0].mxu0 %v2334
      %v2404 = vpop.f32.mrb[0].mxu0
      %v2405 = vadd.f32 0.0, %v2404
      %v2406 = vpop.f32.mrb[0].mxu0
      %2407 = vmatprep.mubr.f32.mxu0 0.0
      %2408 = vmatmul.mubr.f32.gmra.mrb[0].mxu0 %v2335
      %v2409 = vpop.f32.mrb[0].mxu0
      %v2410 = vadd.f32 0.0, %v2409
      %v2411 = vpop.f32.mrb[0].mxu0
      %2412 = vdwg.mxu0
      %v2413 = vadd.f32 %v2320, %v2405
      %v2414 = vadd.f32 %v2321, %v2410
      %v2415 = vmax.f32 %v2413, 0.0
      %v2416 = vmax.f32 %v2414, 0.0
      %v2419 = vrot.slane %v2415, 7
      %v2420 = vrot.slane %v2416, 7
      %v2421 = vsel %vm979, %v2419, %v2420
      %vm2424 = vcmask 523265
      %2425 = vst.msk [vmem:[#allocation3 + $0x8] sm:$0xfe] %vm2424, %v2419
      %vm2426 = vcmask 522240
      %2427 = vst.msk [vmem:[#allocation3 + $0x30] sm:$0x7f] %vm2426, %v2421
      %v2428 = vld [vmem:[%s5] sm:$0x1]
      %2429 = vmatprep.subr.mxu0 0.0
      %2430 = vmatpush1.msra.mxu0 %v1608
      %2431 = vmatprep.subr.mxu0 0.0
      %2432 = vmatpush1.msra.mxu0 %v1609
      %2433 = vmatprep.subr.mxu0 0.0
      %2434 = vmatpush1.msra.mxu0 %v1610
      %2435 = vmatprep.subr.mxu0 0.0
      %2436 = vmatpush1.msra.mxu0 %v1611
      %2437 = vmatprep.subr.mxu0 0.0
      %2438 = vmatpush1.msra.mxu0 %v1612
      %2439 = vmatprep.subr.mxu0 0.0
      %2440 = vmatpush1.msra.mxu0 %v1613
      %2441 = vmatprep.subr.mxu0 0.0
      %2442 = vmatpush1.msra.mxu0 %v1614
      %2443 = vmatprep.subr.mxu0 0.0
      %2444 = vmatpush1.msra.mxu0 %v1615
      %2445 = vmatprep.subr.mxu0 0.0
      %2446 = vmatpush1.msra.mxu0 %v1616
      %2447 = vmatprep.subr.mxu0 0.0
      %2448 = vmatpush1.msra.mxu0 %v1617
      %2449 = vmatprep.subr.mxu0 0.0
      %2450 = vmatpush1.msra.mxu0 %v1618
      %2451 = vmatprep.subr.mxu0 0.0
      %2452 = vmatpush1.msra.mxu0 %v1619
      %2453 = vmatprep.subr.mxu0 0.0
      %2454 = vmatpush1.msra.mxu0 %v1620
      %2455 = vmatprep.subr.mxu0 0.0
      %2456 = vmatpush1.msra.mxu0 %v1621
      %2457 = vmatprep.subr.mxu0 0.0
      %2458 = vmatpush1.msra.mxu0 %v1622
      %2459 = vmatprep.subr.mxu0 0.0
      %2460 = vmatpush1.msra.mxu0 %v1623
      %2461 = vmatprep.subr.mxu0 0.0
      %2462 = vmatpush1.msra.mxu0 0.0
      %2463 = vmatprep.subr.mxu0 0.0
      %2464 = vmatpush1.msra.mxu0 0.0
      %2465 = vmatprep.subr.mxu0 0.0
      %2466 = vmatpush1.msra.mxu0 0.0
      %2467 = vmatprep.subr.mxu0 0.0
      %2468 = vmatpush1.msra.mxu0 0.0
      %2469 = vmatprep.subr.mxu0 0.0
      %2470 = vmatpush1.msra.mxu0 0.0
      %2471 = vmatprep.subr.mxu0 0.0
      %2472 = vmatpush1.msra.mxu0 0.0
      %2473 = vmatprep.subr.mxu0 0.0
      %2474 = vmatpush1.msra.mxu0 0.0
      %2475 = vmatprep.subr.mxu0 0.0
      %2476 = vmatpush1.msra.mxu0 0.0
      %2477 = vmatprep.subr.mxu0 0.0
      %2478 = vmatpush1.msra.mxu0 0.0
      %2479 = vmatprep.subr.mxu0 0.0
      %2480 = vmatpush1.msra.mxu0 0.0
      %2481 = vmatprep.subr.mxu0 0.0
      %2482 = vmatpush1.msra.mxu0 0.0
      %2483 = vmatprep.subr.mxu0 0.0
      %2484 = vmatpush1.msra.mxu0 0.0
      %2485 = vmatprep.subr.mxu0 0.0
      %2486 = vmatpush1.msra.mxu0 0.0
      %2487 = vmatprep.subr.mxu0 0.0
      %2488 = vmatpush1.msra.mxu0 0.0
      %2489 = vmatprep.subr.mxu0 0.0
      %2490 = vmatpush1.msra.mxu0 0.0
      %2491 = vmatprep.subr.mxu0 0.0
      %2492 = vmatpush1.msra.mxu0 0.0
      %2493 = vmatprep.mubr.f32.mxu0 0.0
      %2494 = vmatmul.mubr.f32.gmra.mrb[0].mxu0 %v1463
      %v2495 = vpop.f32.mrb[0].mxu0
      %v2496 = vadd.f32 0.0, %v2495
      %v2497 = vpop.f32.mrb[0].mxu0
      %2498 = vmatprep.mubr.f32.mxu0 0.0
      %2499 = vmatmul.mubr.f32.gmra.mrb[0].mxu0 %v1469
      %v2500 = vpop.f32.mrb[0].mxu0
      %v2501 = vadd.f32 0.0, %v2500
      %v2502 = vpop.f32.mrb[0].mxu0
      %2503 = vdwg.mxu0
      %v2505 = vlaneseq
      %v2506 = vshrl.u32 %v2505, 7
      %v2507 = vsub.s32 0, %v2506
      %v2508 = vrot.slane %v2428, %v2507
      %v2510 = vadd.f32 %v2508, %v2496
      %v2511 = vadd.f32 %v2508, %v2501
      %2514 = vmatprep.subr.mxu0 0.0
      %2515 = vmatpush1.msra.mxu0 %v1624
      %2516 = vmatprep.subr.mxu0 0.0
      %2517 = vmatpush1.msra.mxu0 %v1625
      %2518 = vmatprep.subr.mxu0 0.0
      %2519 = vmatpush1.msra.mxu0 %v1626
      %2520 = vmatprep.subr.mxu0 0.0
      %2521 = vmatpush1.msra.mxu0 %v1627
      %2522 = vmatprep.subr.mxu0 0.0
      %2523 = vmatpush1.msra.mxu0 %v1628
      %2524 = vmatprep.subr.mxu0 0.0
      %2525 = vmatpush1.msra.mxu0 %v1629
      %2526 = vmatprep.subr.mxu0 0.0
      %2527 = vmatpush1.msra.mxu0 %v1630
      %2528 = vmatprep.subr.mxu0 0.0
      %2529 = vmatpush1.msra.mxu0 %v1631
      %2530 = vmatprep.subr.mxu0 0.0
      %2531 = vmatpush1.msra.mxu0 %v1632
      %2532 = vmatprep.subr.mxu0 0.0
      %2533 = vmatpush1.msra.mxu0 %v1633
      %2534 = vmatprep.subr.mxu0 0.0
      %2535 = vmatpush1.msra.mxu0 %v1634
      %2536 = vmatprep.subr.mxu0 0.0
      %2537 = vmatpush1.msra.mxu0 %v1635
      %2538 = vmatprep.subr.mxu0 0.0
      %2539 = vmatpush1.msra.mxu0 %v1636
      %2540 = vmatprep.subr.mxu0 0.0
      %2541 = vmatpush1.msra.mxu0 %v1637
      %2542 = vmatprep.subr.mxu0 0.0
      %2543 = vmatpush1.msra.mxu0 %v1638
      %2544 = vmatprep.subr.mxu0 0.0
      %2545 = vmatpush1.msra.mxu0 %v1639
      %2546 = vmatprep.subr.mxu0 0.0
      %2547 = vmatpush1.msra.mxu0 0.0
      %2548 = vmatprep.subr.mxu0 0.0
      %2549 = vmatpush1.msra.mxu0 0.0
      %2550 = vmatprep.subr.mxu0 0.0
      %2551 = vmatpush1.msra.mxu0 0.0
      %2552 = vmatprep.subr.mxu0 0.0
      %2553 = vmatpush1.msra.mxu0 0.0
      %2554 = vmatprep.subr.mxu0 0.0
      %2555 = vmatpush1.msra.mxu0 0.0
      %2556 = vmatprep.subr.mxu0 0.0
      %2557 = vmatpush1.msra.mxu0 0.0
      %2558 = vmatprep.subr.mxu0 0.0
      %2559 = vmatpush1.msra.mxu0 0.0
      %2560 = vmatprep.subr.mxu0 0.0
      %2561 = vmatpush1.msra.mxu0 0.0
      %2562 = vmatprep.subr.mxu0 0.0
      %2563 = vmatpush1.msra.mxu0 0.0
      %2564 = vmatprep.subr.mxu0 0.0
      %2565 = vmatpush1.msra.mxu0 0.0
      %2566 = vmatprep.subr.mxu0 0.0
      %2567 = vmatpush1.msra.mxu0 0.0
      %2568 = vmatprep.subr.mxu0 0.0
      %2569 = vmatpush1.msra.mxu0 0.0
      %2570 = vmatprep.subr.mxu0 0.0
      %2571 = vmatpush1.msra.mxu0 0.0
      %2572 = vmatprep.subr.mxu0 0.0
      %2573 = vmatpush1.msra.mxu0 0.0
      %2574 = vmatprep.subr.mxu0 0.0
      %2575 = vmatpush1.msra.mxu0 0.0
      %2576 = vmatprep.subr.mxu0 0.0
      %2577 = vmatpush1.msra.mxu0 0.0
      %2578 = vmatprep.mubr.f32.mxu0 0.0
      %2579 = vmatmul.mubr.f32.gmra.mrb[0].mxu0 %v2134
      %v2580 = vpop.f32.mrb[0].mxu0
      %v2581 = vadd.f32 0.0, %v2580
      %v2582 = vpop.f32.mrb[0].mxu0
      %2583 = vmatprep.mubr.f32.mxu0 0.0
      %2584 = vmatmul.mubr.f32.gmra.mrb[0].mxu0 %v2136
      %v2585 = vpop.f32.mrb[0].mxu0
      %v2586 = vadd.f32 0.0, %v2585
      %v2587 = vpop.f32.mrb[0].mxu0
      %2588 = vdwg.mxu0
      %v2589 = vadd.f32 %v2510, %v2581
      %v2590 = vadd.f32 %v2511, %v2586
      %2593 = vmatprep.subr.mxu0 0.0
      %2594 = vmatpush1.msra.mxu0 %v1640
      %2595 = vmatprep.subr.mxu0 0.0
      %2596 = vmatpush1.msra.mxu0 %v1641
      %2597 = vmatprep.subr.mxu0 0.0
      %2598 = vmatpush1.msra.mxu0 %v1642
      %2599 = vmatprep.subr.mxu0 0.0
      %2600 = vmatpush1.msra.mxu0 %v1643
      %2601 = vmatprep.subr.mxu0 0.0
      %2602 = vmatpush1.msra.mxu0 %v1644
      %2603 = vmatprep.subr.mxu0 0.0
      %2604 = vmatpush1.msra.mxu0 %v1645
      %2605 = vmatprep.subr.mxu0 0.0
      %2606 = vmatpush1.msra.mxu0 %v1646
      %2607 = vmatprep.subr.mxu0 0.0
      %2608 = vmatpush1.msra.mxu0 %v1647
      %2609 = vmatprep.subr.mxu0 0.0
      %2610 = vmatpush1.msra.mxu0 %v1648
      %2611 = vmatprep.subr.mxu0 0.0
      %2612 = vmatpush1.msra.mxu0 %v1649
      %2613 = vmatprep.subr.mxu0 0.0
      %2614 = vmatpush1.msra.mxu0 %v1650
      %2615 = vmatprep.subr.mxu0 0.0
      %2616 = vmatpush1.msra.mxu0 %v1651
      %2617 = vmatprep.subr.mxu0 0.0
      %2618 = vmatpush1.msra.mxu0 %v1652
      %2619 = vmatprep.subr.mxu0 0.0
      %2620 = vmatpush1.msra.mxu0 %v1653
      %2621 = vmatprep.subr.mxu0 0.0
      %2622 = vmatpush1.msra.mxu0 %v1654
      %2623 = vmatprep.subr.mxu0 0.0
      %2624 = vmatpush1.msra.mxu0 %v1655
      %2625 = vmatprep.subr.mxu0 0.0
      %2626 = vmatpush1.msra.mxu0 0.0
      %2627 = vmatprep.subr.mxu0 0.0
      %2628 = vmatpush1.msra.mxu0 0.0
      %2629 = vmatprep.subr.mxu0 0.0
      %2630 = vmatpush1.msra.mxu0 0.0
      %2631 = vmatprep.subr.mxu0 0.0
      %2632 = vmatpush1.msra.mxu0 0.0
      %2633 = vmatprep.subr.mxu0 0.0
      %2634 = vmatpush1.msra.mxu0 0.0
      %2635 = vmatprep.subr.mxu0 0.0
      %2636 = vmatpush1.msra.mxu0 0.0
      %2637 = vmatprep.subr.mxu0 0.0
      %2638 = vmatpush1.msra.mxu0 0.0
      %2639 = vmatprep.subr.mxu0 0.0
      %2640 = vmatpush1.msra.mxu0 0.0
      %2641 = vmatprep.subr.mxu0 0.0
      %2642 = vmatpush1.msra.mxu0 0.0
      %2643 = vmatprep.subr.mxu0 0.0
      %2644 = vmatpush1.msra.mxu0 0.0
      %2645 = vmatprep.subr.mxu0 0.0
      %2646 = vmatpush1.msra.mxu0 0.0
      %2647 = vmatprep.subr.mxu0 0.0
      %2648 = vmatpush1.msra.mxu0 0.0
      %2649 = vmatprep.subr.mxu0 0.0
      %2650 = vmatpush1.msra.mxu0 0.0
      %2651 = vmatprep.subr.mxu0 0.0
      %2652 = vmatpush1.msra.mxu0 0.0
      %2653 = vmatprep.subr.mxu0 0.0
      %2654 = vmatpush1.msra.mxu0 0.0
      %2655 = vmatprep.subr.mxu0 0.0
      %2656 = vmatpush1.msra.mxu0 0.0
      %2657 = vmatprep.mubr.f32.mxu0 0.0
      %2658 = vmatmul.mubr.f32.gmra.mrb[0].mxu0 %v2230
      %v2659 = vpop.f32.mrb[0].mxu0
      %v2660 = vadd.f32 0.0, %v2659
      %v2661 = vpop.f32.mrb[0].mxu0
      %2662 = vmatprep.mubr.f32.mxu0 0.0
      %2663 = vmatmul.mubr.f32.gmra.mrb[0].mxu0 %v2232
      %v2664 = vpop.f32.mrb[0].mxu0
      %v2665 = vadd.f32 0.0, %v2664
      %v2666 = vpop.f32.mrb[0].mxu0
      %2667 = vdwg.mxu0
      %v2668 = vadd.f32 %v2589, %v2660
      %v2669 = vadd.f32 %v2590, %v2665
      %2672 = vmatprep.subr.mxu0 0.0
      %2673 = vmatpush1.msra.mxu0 %v1656
      %2674 = vmatprep.subr.mxu0 0.0
      %2675 = vmatpush1.msra.mxu0 %v1657
      %2676 = vmatprep.subr.mxu0 0.0
      %2677 = vmatpush1.msra.mxu0 %v1658
      %2678 = vmatprep.subr.mxu0 0.0
      %2679 = vmatpush1.msra.mxu0 %v1659
      %2680 = vmatprep.subr.mxu0 0.0
      %2681 = vmatpush1.msra.mxu0 %v1660
      %2682 = vmatprep.subr.mxu0 0.0
      %2683 = vmatpush1.msra.mxu0 %v1661
      %2684 = vmatprep.subr.mxu0 0.0
      %2685 = vmatpush1.msra.mxu0 %v1662
      %2686 = vmatprep.subr.mxu0 0.0
      %2687 = vmatpush1.msra.mxu0 %v1663
      %2688 = vmatprep.subr.mxu0 0.0
      %2689 = vmatpush1.msra.mxu0 %v1664
      %2690 = vmatprep.subr.mxu0 0.0
      %2691 = vmatpush1.msra.mxu0 %v1665
      %2692 = vmatprep.subr.mxu0 0.0
      %2693 = vmatpush1.msra.mxu0 %v1666
      %2694 = vmatprep.subr.mxu0 0.0
      %2695 = vmatpush1.msra.mxu0 %v1667
      %2696 = vmatprep.subr.mxu0 0.0
      %2697 = vmatpush1.msra.mxu0 %v1668
      %2698 = vmatprep.subr.mxu0 0.0
      %2699 = vmatpush1.msra.mxu0 %v1669
      %2700 = vmatprep.subr.mxu0 0.0
      %2701 = vmatpush1.msra.mxu0 %v1670
      %2702 = vmatprep.subr.mxu0 0.0
      %2703 = vmatpush1.msra.mxu0 %v1671
      %2704 = vmatprep.subr.mxu0 0.0
      %2705 = vmatpush1.msra.mxu0 0.0
      %2706 = vmatprep.subr.mxu0 0.0
      %2707 = vmatpush1.msra.mxu0 0.0
      %2708 = vmatprep.subr.mxu0 0.0
      %2709 = vmatpush1.msra.mxu0 0.0
      %2710 = vmatprep.subr.mxu0 0.0
      %2711 = vmatpush1.msra.mxu0 0.0
      %2712 = vmatprep.subr.mxu0 0.0
      %2713 = vmatpush1.msra.mxu0 0.0
      %2714 = vmatprep.subr.mxu0 0.0
      %2715 = vmatpush1.msra.mxu0 0.0
      %2716 = vmatprep.subr.mxu0 0.0
      %2717 = vmatpush1.msra.mxu0 0.0
      %2718 = vmatprep.subr.mxu0 0.0
      %2719 = vmatpush1.msra.mxu0 0.0
      %2720 = vmatprep.subr.mxu0 0.0
      %2721 = vmatpush1.msra.mxu0 0.0
      %2722 = vmatprep.subr.mxu0 0.0
      %2723 = vmatpush1.msra.mxu0 0.0
      %2724 = vmatprep.subr.mxu0 0.0
      %2725 = vmatpush1.msra.mxu0 0.0
      %2726 = vmatprep.subr.mxu0 0.0
      %2727 = vmatpush1.msra.mxu0 0.0
      %2728 = vmatprep.subr.mxu0 0.0
      %2729 = vmatpush1.msra.mxu0 0.0
      %2730 = vmatprep.subr.mxu0 0.0
      %2731 = vmatpush1.msra.mxu0 0.0
      %2732 = vmatprep.subr.mxu0 0.0
      %2733 = vmatpush1.msra.mxu0 0.0
      %2734 = vmatprep.subr.mxu0 0.0
      %2735 = vmatpush1.msra.mxu0 0.0
      %2736 = vmatprep.mubr.f32.mxu0 0.0
      %2737 = vmatmul.mubr.f32.gmra.mrb[0].mxu0 %v2325
      %v2738 = vpop.f32.mrb[0].mxu0
      %v2739 = vadd.f32 0.0, %v2738
      %v2740 = vpop.f32.mrb[0].mxu0
      %2741 = vmatprep.mubr.f32.mxu0 0.0
      %2742 = vmatmul.mubr.f32.gmra.mrb[0].mxu0 %v2324
      %v2743 = vpop.f32.mrb[0].mxu0
      %v2744 = vadd.f32 0.0, %v2743
      %v2745 = vpop.f32.mrb[0].mxu0
      %2746 = vdwg.mxu0
      %v2747 = vadd.f32 %v2668, %v2739
      %v2748 = vadd.f32 %v2669, %v2744
      %v2749 = vmax.f32 %v2747, 0.0
      %v2750 = vmax.f32 %v2748, 0.0
      %v2753 = vrot.slane %v2749, 7
      %v2754 = vrot.slane %v2750, 7
      %v2755 = vsel %vm979, %v2753, %v2754
      %2756 = vrot.lane.b32.xlu0 %v2753, 64
      %v2757 = vpop.permute.xlu0 %2756
      %2758 = vrot.lane.b32.xlu0 %v2755, 64
      %v2759 = vpop.permute.xlu0 %2758
      %2762 = vst.msk [vmem:[#allocation3 + $0x8] sm:$0xfe] %vm2027, %v2757
      %2763 = vst.msk [vmem:[#allocation3 + $0x30] sm:$0x7f] %vm2029, %v2759
      %v2764 = vld [vmem:[%s5] sm:$0x1]
      %2767 = vrot.lane.b32.xlu0 %v1568, 64
      %v2768 = vpop.permute.xlu0 %2767
      %2769 = vrot.lane.b32.xlu0 %v1574, 64
      %v2770 = vpop.permute.xlu0 %2769
      %v2771 = vsel %vm403, %v2038, %v2768
      %v2772 = vsel %vm403, %v2042, %v2770
      %2775 = vmatprep.subr.mxu0 0.0
      %2776 = vmatpush1.msra.mxu0 %v1608
      %2777 = vmatprep.subr.mxu0 0.0
      %2778 = vmatpush1.msra.mxu0 %v1609
      %2779 = vmatprep.subr.mxu0 0.0
      %2780 = vmatpush1.msra.mxu0 %v1610
      %2781 = vmatprep.subr.mxu0 0.0
      %2782 = vmatpush1.msra.mxu0 %v1611
      %2783 = vmatprep.subr.mxu0 0.0
      %2784 = vmatpush1.msra.mxu0 %v1612
      %2785 = vmatprep.subr.mxu0 0.0
      %2786 = vmatpush1.msra.mxu0 %v1613
      %2787 = vmatprep.subr.mxu0 0.0
      %2788 = vmatpush1.msra.mxu0 %v1614
      %2789 = vmatprep.subr.mxu0 0.0
      %2790 = vmatpush1.msra.mxu0 %v1615
      %2791 = vmatprep.subr.mxu0 0.0
      %2792 = vmatpush1.msra.mxu0 %v1616
      %2793 = vmatprep.subr.mxu0 0.0
      %2794 = vmatpush1.msra.mxu0 %v1617
      %2795 = vmatprep.subr.mxu0 0.0
      %2796 = vmatpush1.msra.mxu0 %v1618
      %2797 = vmatprep.subr.mxu0 0.0
      %2798 = vmatpush1.msra.mxu0 %v1619
      %2799 = vmatprep.subr.mxu0 0.0
      %2800 = vmatpush1.msra.mxu0 %v1620
      %2801 = vmatprep.subr.mxu0 0.0
      %2802 = vmatpush1.msra.mxu0 %v1621
      %2803 = vmatprep.subr.mxu0 0.0
      %2804 = vmatpush1.msra.mxu0 %v1622
      %2805 = vmatprep.subr.mxu0 0.0
      %2806 = vmatpush1.msra.mxu0 %v1623
      %2807 = vmatprep.subr.mxu0 0.0
      %2808 = vmatpush1.msra.mxu0 0.0
      %2809 = vmatprep.subr.mxu0 0.0
      %2810 = vmatpush1.msra.mxu0 0.0
      %2811 = vmatprep.subr.mxu0 0.0
      %2812 = vmatpush1.msra.mxu0 0.0
      %2813 = vmatprep.subr.mxu0 0.0
      %2814 = vmatpush1.msra.mxu0 0.0
      %2815 = vmatprep.subr.mxu0 0.0
      %2816 = vmatpush1.msra.mxu0 0.0
      %2817 = vmatprep.subr.mxu0 0.0
      %2818 = vmatpush1.msra.mxu0 0.0
      %2819 = vmatprep.subr.mxu0 0.0
      %2820 = vmatpush1.msra.mxu0 0.0
      %2821 = vmatprep.subr.mxu0 0.0
      %2822 = vmatpush1.msra.mxu0 0.0
      %2823 = vmatprep.subr.mxu0 0.0
      %2824 = vmatpush1.msra.mxu0 0.0
      %2825 = vmatprep.subr.mxu0 0.0
      %2826 = vmatpush1.msra.mxu0 0.0
      %2827 = vmatprep.subr.mxu0 0.0
      %2828 = vmatpush1.msra.mxu0 0.0
      %2829 = vmatprep.subr.mxu0 0.0
      %2830 = vmatpush1.msra.mxu0 0.0
      %2831 = vmatprep.subr.mxu0 0.0
      %2832 = vmatpush1.msra.mxu0 0.0
      %2833 = vmatprep.subr.mxu0 0.0
      %2834 = vmatpush1.msra.mxu0 0.0
      %2835 = vmatprep.subr.mxu0 0.0
      %2836 = vmatpush1.msra.mxu0 0.0
      %2837 = vmatprep.subr.mxu0 0.0
      %2838 = vmatpush1.msra.mxu0 0.0
      %2839 = vmatprep.mubr.f32.mxu0 0.0
      %2840 = vmatmul.mubr.f32.gmra.mrb[0].mxu0 %v2771
      %v2841 = vpop.f32.mrb[0].mxu0
      %v2842 = vadd.f32 0.0, %v2841
      %v2843 = vpop.f32.mrb[0].mxu0
      %2844 = vmatprep.mubr.f32.mxu0 0.0
      %2845 = vmatmul.mubr.f32.gmra.mrb[0].mxu0 %v2772
      %v2846 = vpop.f32.mrb[0].mxu0
      %v2847 = vadd.f32 0.0, %v2846
      %v2848 = vpop.f32.mrb[0].mxu0
      %2849 = vdwg.mxu0
      %v2851 = vlaneseq
      %v2852 = vshrl.u32 %v2851, 7
      %v2853 = vsub.s32 0, %v2852
      %v2854 = vrot.slane %v2764, %v2853
      %v2856 = vadd.f32 %v2854, %v2842
      %v2857 = vadd.f32 %v2854, %v2847
      %v2860 = vrot.slane %v1574, 6
      %v2861 = vrot.slane %v1580, 6
      %v2862 = vsel %vm1759, %v2860, %v2861
      %v2863 = vrot.slane %v1586, 6
      %v2864 = vsel %vm1759, %v2861, %v2863
      %2865 = vrot.lane.b32.xlu0 %v2862, 64
      %v2866 = vpop.permute.xlu0 %2865
      %2867 = vrot.lane.b32.xlu0 %v2864, 64
      %v2868 = vpop.permute.xlu0 %2867
      %v2869 = vsel %vm403, %v2140, %v2866
      %v2870 = vsel %vm403, %v2144, %v2868
      %2873 = vmatprep.subr.mxu0 0.0
      %2874 = vmatpush1.msra.mxu0 %v1624
      %2875 = vmatprep.subr.mxu0 0.0
      %2876 = vmatpush1.msra.mxu0 %v1625
      %2877 = vmatprep.subr.mxu0 0.0
      %2878 = vmatpush1.msra.mxu0 %v1626
      %2879 = vmatprep.subr.mxu0 0.0
      %2880 = vmatpush1.msra.mxu0 %v1627
      %2881 = vmatprep.subr.mxu0 0.0
      %2882 = vmatpush1.msra.mxu0 %v1628
      %2883 = vmatprep.subr.mxu0 0.0
      %2884 = vmatpush1.msra.mxu0 %v1629
      %2885 = vmatprep.subr.mxu0 0.0
      %2886 = vmatpush1.msra.mxu0 %v1630
      %2887 = vmatprep.subr.mxu0 0.0
      %2888 = vmatpush1.msra.mxu0 %v1631
      %2889 = vmatprep.subr.mxu0 0.0
      %2890 = vmatpush1.msra.mxu0 %v1632
      %2891 = vmatprep.subr.mxu0 0.0
      %2892 = vmatpush1.msra.mxu0 %v1633
      %2893 = vmatprep.subr.mxu0 0.0
      %2894 = vmatpush1.msra.mxu0 %v1634
      %2895 = vmatprep.subr.mxu0 0.0
      %2896 = vmatpush1.msra.mxu0 %v1635
      %2897 = vmatprep.subr.mxu0 0.0
      %2898 = vmatpush1.msra.mxu0 %v1636
      %2899 = vmatprep.subr.mxu0 0.0
      %2900 = vmatpush1.msra.mxu0 %v1637
      %2901 = vmatprep.subr.mxu0 0.0
      %2902 = vmatpush1.msra.mxu0 %v1638
      %2903 = vmatprep.subr.mxu0 0.0
      %2904 = vmatpush1.msra.mxu0 %v1639
      %2905 = vmatprep.subr.mxu0 0.0
      %2906 = vmatpush1.msra.mxu0 0.0
      %2907 = vmatprep.subr.mxu0 0.0
      %2908 = vmatpush1.msra.mxu0 0.0
      %2909 = vmatprep.subr.mxu0 0.0
      %2910 = vmatpush1.msra.mxu0 0.0
      %2911 = vmatprep.subr.mxu0 0.0
      %2912 = vmatpush1.msra.mxu0 0.0
      %2913 = vmatprep.subr.mxu0 0.0
      %2914 = vmatpush1.msra.mxu0 0.0
      %2915 = vmatprep.subr.mxu0 0.0
      %2916 = vmatpush1.msra.mxu0 0.0
      %2917 = vmatprep.subr.mxu0 0.0
      %2918 = vmatpush1.msra.mxu0 0.0
      %2919 = vmatprep.subr.mxu0 0.0
      %2920 = vmatpush1.msra.mxu0 0.0
      %2921 = vmatprep.subr.mxu0 0.0
      %2922 = vmatpush1.msra.mxu0 0.0
      %2923 = vmatprep.subr.mxu0 0.0
      %2924 = vmatpush1.msra.mxu0 0.0
      %2925 = vmatprep.subr.mxu0 0.0
      %2926 = vmatpush1.msra.mxu0 0.0
      %2927 = vmatprep.subr.mxu0 0.0
      %2928 = vmatpush1.msra.mxu0 0.0
      %2929 = vmatprep.subr.mxu0 0.0
      %2930 = vmatpush1.msra.mxu0 0.0
      %2931 = vmatprep.subr.mxu0 0.0
      %2932 = vmatpush1.msra.mxu0 0.0
      %2933 = vmatprep.subr.mxu0 0.0
      %2934 = vmatpush1.msra.mxu0 0.0
      %2935 = vmatprep.subr.mxu0 0.0
      %2936 = vmatpush1.msra.mxu0 0.0
      %2937 = vmatprep.mubr.f32.mxu0 0.0
      %2938 = vmatmul.mubr.f32.gmra.mrb[0].mxu0 %v2869
      %v2939 = vpop.f32.mrb[0].mxu0
      %v2940 = vadd.f32 0.0, %v2939
      %v2941 = vpop.f32.mrb[0].mxu0
      %2942 = vmatprep.mubr.f32.mxu0 0.0
      %2943 = vmatmul.mubr.f32.gmra.mrb[0].mxu0 %v2870
      %v2944 = vpop.f32.mrb[0].mxu0
      %v2945 = vadd.f32 0.0, %v2944
      %v2946 = vpop.f32.mrb[0].mxu0
      %2947 = vdwg.mxu0
      %v2948 = vadd.f32 %v2856, %v2940
      %v2949 = vadd.f32 %v2857, %v2945
      %v2952 = vrot.slane %v1586, 4
      %v2953 = vrot.slane %v1592, 4
      %v2954 = vsel %vm1846, %v2952, %v2953
      %v2955 = vrot.slane %v1598, 4
      %v2956 = vsel %vm1846, %v2953, %v2955
      %2957 = vrot.lane.b32.xlu0 %v2954, 64
      %v2958 = vpop.permute.xlu0 %2957
      %2959 = vrot.lane.b32.xlu0 %v2956, 64
      %v2960 = vpop.permute.xlu0 %2959
      %v2961 = vsel %vm403, %v2236, %v2958
      %v2962 = vsel %vm403, %v2240, %v2960
      %2965 = vmatprep.subr.mxu0 0.0
      %2966 = vmatpush1.msra.mxu0 %v1640
      %2967 = vmatprep.subr.mxu0 0.0
      %2968 = vmatpush1.msra.mxu0 %v1641
      %2969 = vmatprep.subr.mxu0 0.0
      %2970 = vmatpush1.msra.mxu0 %v1642
      %2971 = vmatprep.subr.mxu0 0.0
      %2972 = vmatpush1.msra.mxu0 %v1643
      %2973 = vmatprep.subr.mxu0 0.0
      %2974 = vmatpush1.msra.mxu0 %v1644
      %2975 = vmatprep.subr.mxu0 0.0
      %2976 = vmatpush1.msra.mxu0 %v1645
      %2977 = vmatprep.subr.mxu0 0.0
      %2978 = vmatpush1.msra.mxu0 %v1646
      %2979 = vmatprep.subr.mxu0 0.0
      %2980 = vmatpush1.msra.mxu0 %v1647
      %2981 = vmatprep.subr.mxu0 0.0
      %2982 = vmatpush1.msra.mxu0 %v1648
      %2983 = vmatprep.subr.mxu0 0.0
      %2984 = vmatpush1.msra.mxu0 %v1649
      %2985 = vmatprep.subr.mxu0 0.0
      %2986 = vmatpush1.msra.mxu0 %v1650
      %2987 = vmatprep.subr.mxu0 0.0
      %2988 = vmatpush1.msra.mxu0 %v1651
      %2989 = vmatprep.subr.mxu0 0.0
      %2990 = vmatpush1.msra.mxu0 %v1652
      %2991 = vmatprep.subr.mxu0 0.0
      %2992 = vmatpush1.msra.mxu0 %v1653
      %2993 = vmatprep.subr.mxu0 0.0
      %2994 = vmatpush1.msra.mxu0 %v1654
      %2995 = vmatprep.subr.mxu0 0.0
      %2996 = vmatpush1.msra.mxu0 %v1655
      %2997 = vmatprep.subr.mxu0 0.0
      %2998 = vmatpush1.msra.mxu0 0.0
      %2999 = vmatprep.subr.mxu0 0.0
      %3000 = vmatpush1.msra.mxu0 0.0
      %3001 = vmatprep.subr.mxu0 0.0
      %3002 = vmatpush1.msra.mxu0 0.0
      %3003 = vmatprep.subr.mxu0 0.0
      %3004 = vmatpush1.msra.mxu0 0.0
      %3005 = vmatprep.subr.mxu0 0.0
      %3006 = vmatpush1.msra.mxu0 0.0
      %3007 = vmatprep.subr.mxu0 0.0
      %3008 = vmatpush1.msra.mxu0 0.0
      %3009 = vmatprep.subr.mxu0 0.0
      %3010 = vmatpush1.msra.mxu0 0.0
      %3011 = vmatprep.subr.mxu0 0.0
      %3012 = vmatpush1.msra.mxu0 0.0
      %3013 = vmatprep.subr.mxu0 0.0
      %3014 = vmatpush1.msra.mxu0 0.0
      %3015 = vmatprep.subr.mxu0 0.0
      %3016 = vmatpush1.msra.mxu0 0.0
      %3017 = vmatprep.subr.mxu0 0.0
      %3018 = vmatpush1.msra.mxu0 0.0
      %3019 = vmatprep.subr.mxu0 0.0
      %3020 = vmatpush1.msra.mxu0 0.0
      %3021 = vmatprep.subr.mxu0 0.0
      %3022 = vmatpush1.msra.mxu0 0.0
      %3023 = vmatprep.subr.mxu0 0.0
      %3024 = vmatpush1.msra.mxu0 0.0
      %3025 = vmatprep.subr.mxu0 0.0
      %3026 = vmatpush1.msra.mxu0 0.0
      %3027 = vmatprep.subr.mxu0 0.0
      %3028 = vmatpush1.msra.mxu0 0.0
      %3029 = vmatprep.mubr.f32.mxu0 0.0
      %3030 = vmatmul.mubr.f32.gmra.mrb[0].mxu0 %v2961
      %v3031 = vpop.f32.mrb[0].mxu0
      %v3032 = vadd.f32 0.0, %v3031
      %v3033 = vpop.f32.mrb[0].mxu0
      %3034 = vmatprep.mubr.f32.mxu0 0.0
      %3035 = vmatmul.mubr.f32.gmra.mrb[0].mxu0 %v2962
      %v3036 = vpop.f32.mrb[0].mxu0
      %v3037 = vadd.f32 0.0, %v3036
      %v3038 = vpop.f32.mrb[0].mxu0
      %3039 = vdwg.mxu0
      %v3040 = vadd.f32 %v2948, %v3032
      %v3041 = vadd.f32 %v2949, %v3037
      %v3043 = vrot.slane %v1598, 2
      %v3044 = vrot.slane %v1604, 2
      %v3045 = vsel %vm1381, %v3043, %v3044
      %3046 = vrot.lane.b32.xlu0 %v3045, 64
      %v3047 = vpop.permute.xlu0 %3046
      %3048 = vrot.lane.b32.xlu0 %v3044, 64
      %v3049 = vpop.permute.xlu0 %3048
      %v3050 = vsel %vm403, %v2329, %v3047
      %v3051 = vsel %vm403, %v2333, %v3049
      %3054 = vmatprep.subr.mxu0 0.0
      %3055 = vmatpush1.msra.mxu0 %v1656
      %3056 = vmatprep.subr.mxu0 0.0
      %3057 = vmatpush1.msra.mxu0 %v1657
      %3058 = vmatprep.subr.mxu0 0.0
      %3059 = vmatpush1.msra.mxu0 %v1658
      %3060 = vmatprep.subr.mxu0 0.0
      %3061 = vmatpush1.msra.mxu0 %v1659
      %3062 = vmatprep.subr.mxu0 0.0
      %3063 = vmatpush1.msra.mxu0 %v1660
      %3064 = vmatprep.subr.mxu0 0.0
      %3065 = vmatpush1.msra.mxu0 %v1661
      %3066 = vmatprep.subr.mxu0 0.0
      %3067 = vmatpush1.msra.mxu0 %v1662
      %3068 = vmatprep.subr.mxu0 0.0
      %3069 = vmatpush1.msra.mxu0 %v1663
      %3070 = vmatprep.subr.mxu0 0.0
      %3071 = vmatpush1.msra.mxu0 %v1664
      %3072 = vmatprep.subr.mxu0 0.0
      %3073 = vmatpush1.msra.mxu0 %v1665
      %3074 = vmatprep.subr.mxu0 0.0
      %3075 = vmatpush1.msra.mxu0 %v1666
      %3076 = vmatprep.subr.mxu0 0.0
      %3077 = vmatpush1.msra.mxu0 %v1667
      %3078 = vmatprep.subr.mxu0 0.0
      %3079 = vmatpush1.msra.mxu0 %v1668
      %3080 = vmatprep.subr.mxu0 0.0
      %3081 = vmatpush1.msra.mxu0 %v1669
      %3082 = vmatprep.subr.mxu0 0.0
      %3083 = vmatpush1.msra.mxu0 %v1670
      %3084 = vmatprep.subr.mxu0 0.0
      %3085 = vmatpush1.msra.mxu0 %v1671
      %3086 = vmatprep.subr.mxu0 0.0
      %3087 = vmatpush1.msra.mxu0 0.0
      %3088 = vmatprep.subr.mxu0 0.0
      %3089 = vmatpush1.msra.mxu0 0.0
      %3090 = vmatprep.subr.mxu0 0.0
      %3091 = vmatpush1.msra.mxu0 0.0
      %3092 = vmatprep.subr.mxu0 0.0
      %3093 = vmatpush1.msra.mxu0 0.0
      %3094 = vmatprep.subr.mxu0 0.0
      %3095 = vmatpush1.msra.mxu0 0.0
      %3096 = vmatprep.subr.mxu0 0.0
      %3097 = vmatpush1.msra.mxu0 0.0
      %3098 = vmatprep.subr.mxu0 0.0
      %3099 = vmatpush1.msra.mxu0 0.0
      %3100 = vmatprep.subr.mxu0 0.0
      %3101 = vmatpush1.msra.mxu0 0.0
      %3102 = vmatprep.subr.mxu0 0.0
      %3103 = vmatpush1.msra.mxu0 0.0
      %3104 = vmatprep.subr.mxu0 0.0
      %3105 = vmatpush1.msra.mxu0 0.0
      %3106 = vmatprep.subr.mxu0 0.0
      %3107 = vmatpush1.msra.mxu0 0.0
      %3108 = vmatprep.subr.mxu0 0.0
      %3109 = vmatpush1.msra.mxu0 0.0
      %3110 = vmatprep.subr.mxu0 0.0
      %3111 = vmatpush1.msra.mxu0 0.0
      %3112 = vmatprep.subr.mxu0 0.0
      %3113 = vmatpush1.msra.mxu0 0.0
      %3114 = vmatprep.subr.mxu0 0.0
      %3115 = vmatpush1.msra.mxu0 0.0
      %3116 = vmatprep.subr.mxu0 0.0
      %3117 = vmatpush1.msra.mxu0 0.0
      %3118 = vmatprep.mubr.f32.mxu0 0.0
      %3119 = vmatmul.mubr.f32.gmra.mrb[0].mxu0 %v3050
      %v3120 = vpop.f32.mrb[0].mxu0
      %v3121 = vadd.f32 0.0, %v3120
      %v3122 = vpop.f32.mrb[0].mxu0
      %3123 = vmatprep.mubr.f32.mxu0 0.0
      %3124 = vmatmul.mubr.f32.gmra.mrb[0].mxu0 %v3051
      %v3125 = vpop.f32.mrb[0].mxu0
      %v3126 = vadd.f32 0.0, %v3125
      %v3127 = vpop.f32.mrb[0].mxu0
      %3128 = vdwg.mxu0
      %v3129 = vadd.f32 %v3040, %v3121
      %v3130 = vadd.f32 %v3041, %v3126
      %v3131 = vmax.f32 %v3129, 0.0
      %v3132 = vmax.f32 %v3130, 0.0
      %v3135 = vrot.slane %v3131, 7
      %v3136 = vrot.slane %v3132, 7
      %v3137 = vsel %vm979, %v3135, %v3136
      %3140 = vst.msk [vmem:[#allocation3 + $0x10] sm:$0xfe] %vm2424, %v3135
      %3141 = vst.msk [vmem:[#allocation3 + $0x38] sm:$0x7f] %vm2426, %v3137
      %v3142 = vld [vmem:[%s5] sm:$0x1]
      %3143 = vmatprep.subr.mxu0 0.0
      %3144 = vmatpush1.msra.mxu0 %v1608
      %3145 = vmatprep.subr.mxu0 0.0
      %3146 = vmatpush1.msra.mxu0 %v1609
      %3147 = vmatprep.subr.mxu0 0.0
      %3148 = vmatpush1.msra.mxu0 %v1610
      %3149 = vmatprep.subr.mxu0 0.0
      %3150 = vmatpush1.msra.mxu0 %v1611
      %3151 = vmatprep.subr.mxu0 0.0
      %3152 = vmatpush1.msra.mxu0 %v1612
      %3153 = vmatprep.subr.mxu0 0.0
      %3154 = vmatpush1.msra.mxu0 %v1613
      %3155 = vmatprep.subr.mxu0 0.0
      %3156 = vmatpush1.msra.mxu0 %v1614
      %3157 = vmatprep.subr.mxu0 0.0
      %3158 = vmatpush1.msra.mxu0 %v1615
      %3159 = vmatprep.subr.mxu0 0.0
      %3160 = vmatpush1.msra.mxu0 %v1616
      %3161 = vmatprep.subr.mxu0 0.0
      %3162 = vmatpush1.msra.mxu0 %v1617
      %3163 = vmatprep.subr.mxu0 0.0
      %3164 = vmatpush1.msra.mxu0 %v1618
      %3165 = vmatprep.subr.mxu0 0.0
      %3166 = vmatpush1.msra.mxu0 %v1619
      %3167 = vmatprep.subr.mxu0 0.0
      %3168 = vmatpush1.msra.mxu0 %v1620
      %3169 = vmatprep.subr.mxu0 0.0
      %3170 = vmatpush1.msra.mxu0 %v1621
      %3171 = vmatprep.subr.mxu0 0.0
      %3172 = vmatpush1.msra.mxu0 %v1622
      %3173 = vmatprep.subr.mxu0 0.0
      %3174 = vmatpush1.msra.mxu0 %v1623
      %3175 = vmatprep.subr.mxu0 0.0
      %3176 = vmatpush1.msra.mxu0 0.0
      %3177 = vmatprep.subr.mxu0 0.0
      %3178 = vmatpush1.msra.mxu0 0.0
      %3179 = vmatprep.subr.mxu0 0.0
      %3180 = vmatpush1.msra.mxu0 0.0
      %3181 = vmatprep.subr.mxu0 0.0
      %3182 = vmatpush1.msra.mxu0 0.0
      %3183 = vmatprep.subr.mxu0 0.0
      %3184 = vmatpush1.msra.mxu0 0.0
      %3185 = vmatprep.subr.mxu0 0.0
      %3186 = vmatpush1.msra.mxu0 0.0
      %3187 = vmatprep.subr.mxu0 0.0
      %3188 = vmatpush1.msra.mxu0 0.0
      %3189 = vmatprep.subr.mxu0 0.0
      %3190 = vmatpush1.msra.mxu0 0.0
      %3191 = vmatprep.subr.mxu0 0.0
      %3192 = vmatpush1.msra.mxu0 0.0
      %3193 = vmatprep.subr.mxu0 0.0
      %3194 = vmatpush1.msra.mxu0 0.0
      %3195 = vmatprep.subr.mxu0 0.0
      %3196 = vmatpush1.msra.mxu0 0.0
      %3197 = vmatprep.subr.mxu0 0.0
      %3198 = vmatpush1.msra.mxu0 0.0
      %3199 = vmatprep.subr.mxu0 0.0
      %3200 = vmatpush1.msra.mxu0 0.0
      %3201 = vmatprep.subr.mxu0 0.0
      %3202 = vmatpush1.msra.mxu0 0.0
      %3203 = vmatprep.subr.mxu0 0.0
      %3204 = vmatpush1.msra.mxu0 0.0
      %3205 = vmatprep.subr.mxu0 0.0
      %3206 = vmatpush1.msra.mxu0 0.0
      %3207 = vmatprep.mubr.f32.mxu0 0.0
      %3208 = vmatmul.mubr.f32.gmra.mrb[0].mxu0 %v1568
      %v3209 = vpop.f32.mrb[0].mxu0
      %v3210 = vadd.f32 0.0, %v3209
      %v3211 = vpop.f32.mrb[0].mxu0
      %3212 = vmatprep.mubr.f32.mxu0 0.0
      %3213 = vmatmul.mubr.f32.gmra.mrb[0].mxu0 %v1574
      %v3214 = vpop.f32.mrb[0].mxu0
      %v3215 = vadd.f32 0.0, %v3214
      %v3216 = vpop.f32.mrb[0].mxu0
      %3217 = vdwg.mxu0
      %v3219 = vlaneseq
      %v3220 = vshrl.u32 %v3219, 7
      %v3221 = vsub.s32 0, %v3220
      %v3222 = vrot.slane %v3142, %v3221
      %v3224 = vadd.f32 %v3222, %v3210
      %v3225 = vadd.f32 %v3222, %v3215
      %3228 = vmatprep.subr.mxu0 0.0
      %3229 = vmatpush1.msra.mxu0 %v1624
      %3230 = vmatprep.subr.mxu0 0.0
      %3231 = vmatpush1.msra.mxu0 %v1625
      %3232 = vmatprep.subr.mxu0 0.0
      %3233 = vmatpush1.msra.mxu0 %v1626
      %3234 = vmatprep.subr.mxu0 0.0
      %3235 = vmatpush1.msra.mxu0 %v1627
      %3236 = vmatprep.subr.mxu0 0.0
      %3237 = vmatpush1.msra.mxu0 %v1628
      %3238 = vmatprep.subr.mxu0 0.0
      %3239 = vmatpush1.msra.mxu0 %v1629
      %3240 = vmatprep.subr.mxu0 0.0
      %3241 = vmatpush1.msra.mxu0 %v1630
      %3242 = vmatprep.subr.mxu0 0.0
      %3243 = vmatpush1.msra.mxu0 %v1631
      %3244 = vmatprep.subr.mxu0 0.0
      %3245 = vmatpush1.msra.mxu0 %v1632
      %3246 = vmatprep.subr.mxu0 0.0
      %3247 = vmatpush1.msra.mxu0 %v1633
      %3248 = vmatprep.subr.mxu0 0.0
      %3249 = vmatpush1.msra.mxu0 %v1634
      %3250 = vmatprep.subr.mxu0 0.0
      %3251 = vmatpush1.msra.mxu0 %v1635
      %3252 = vmatprep.subr.mxu0 0.0
      %3253 = vmatpush1.msra.mxu0 %v1636
      %3254 = vmatprep.subr.mxu0 0.0
      %3255 = vmatpush1.msra.mxu0 %v1637
      %3256 = vmatprep.subr.mxu0 0.0
      %3257 = vmatpush1.msra.mxu0 %v1638
      %3258 = vmatprep.subr.mxu0 0.0
      %3259 = vmatpush1.msra.mxu0 %v1639
      %3260 = vmatprep.subr.mxu0 0.0
      %3261 = vmatpush1.msra.mxu0 0.0
      %3262 = vmatprep.subr.mxu0 0.0
      %3263 = vmatpush1.msra.mxu0 0.0
      %3264 = vmatprep.subr.mxu0 0.0
      %3265 = vmatpush1.msra.mxu0 0.0
      %3266 = vmatprep.subr.mxu0 0.0
      %3267 = vmatpush1.msra.mxu0 0.0
      %3268 = vmatprep.subr.mxu0 0.0
      %3269 = vmatpush1.msra.mxu0 0.0
      %3270 = vmatprep.subr.mxu0 0.0
      %3271 = vmatpush1.msra.mxu0 0.0
      %3272 = vmatprep.subr.mxu0 0.0
      %3273 = vmatpush1.msra.mxu0 0.0
      %3274 = vmatprep.subr.mxu0 0.0
      %3275 = vmatpush1.msra.mxu0 0.0
      %3276 = vmatprep.subr.mxu0 0.0
      %3277 = vmatpush1.msra.mxu0 0.0
      %3278 = vmatprep.subr.mxu0 0.0
      %3279 = vmatpush1.msra.mxu0 0.0
      %3280 = vmatprep.subr.mxu0 0.0
      %3281 = vmatpush1.msra.mxu0 0.0
      %3282 = vmatprep.subr.mxu0 0.0
      %3283 = vmatpush1.msra.mxu0 0.0
      %3284 = vmatprep.subr.mxu0 0.0
      %3285 = vmatpush1.msra.mxu0 0.0
      %3286 = vmatprep.subr.mxu0 0.0
      %3287 = vmatpush1.msra.mxu0 0.0
      %3288 = vmatprep.subr.mxu0 0.0
      %3289 = vmatpush1.msra.mxu0 0.0
      %3290 = vmatprep.subr.mxu0 0.0
      %3291 = vmatpush1.msra.mxu0 0.0
      %3292 = vmatprep.mubr.f32.mxu0 0.0
      %3293 = vmatmul.mubr.f32.gmra.mrb[0].mxu0 %v2862
      %v3294 = vpop.f32.mrb[0].mxu0
      %v3295 = vadd.f32 0.0, %v3294
      %v3296 = vpop.f32.mrb[0].mxu0
      %3297 = vmatprep.mubr.f32.mxu0 0.0
      %3298 = vmatmul.mubr.f32.gmra.mrb[0].mxu0 %v2864
      %v3299 = vpop.f32.mrb[0].mxu0
      %v3300 = vadd.f32 0.0, %v3299
      %v3301 = vpop.f32.mrb[0].mxu0
      %3302 = vdwg.mxu0
      %v3303 = vadd.f32 %v3224, %v3295
      %v3304 = vadd.f32 %v3225, %v3300
      %3307 = vmatprep.subr.mxu0 0.0
      %3308 = vmatpush1.msra.mxu0 %v1640
      %3309 = vmatprep.subr.mxu0 0.0
      %3310 = vmatpush1.msra.mxu0 %v1641
      %3311 = vmatprep.subr.mxu0 0.0
      %3312 = vmatpush1.msra.mxu0 %v1642
      %3313 = vmatprep.subr.mxu0 0.0
      %3314 = vmatpush1.msra.mxu0 %v1643
      %3315 = vmatprep.subr.mxu0 0.0
      %3316 = vmatpush1.msra.mxu0 %v1644
      %3317 = vmatprep.subr.mxu0 0.0
      %3318 = vmatpush1.msra.mxu0 %v1645
      %3319 = vmatprep.subr.mxu0 0.0
      %3320 = vmatpush1.msra.mxu0 %v1646
      %3321 = vmatprep.subr.mxu0 0.0
      %3322 = vmatpush1.msra.mxu0 %v1647
      %3323 = vmatprep.subr.mxu0 0.0
      %3324 = vmatpush1.msra.mxu0 %v1648
      %3325 = vmatprep.subr.mxu0 0.0
      %3326 = vmatpush1.msra.mxu0 %v1649
      %3327 = vmatprep.subr.mxu0 0.0
      %3328 = vmatpush1.msra.mxu0 %v1650
      %3329 = vmatprep.subr.mxu0 0.0
      %3330 = vmatpush1.msra.mxu0 %v1651
      %3331 = vmatprep.subr.mxu0 0.0
      %3332 = vmatpush1.msra.mxu0 %v1652
      %3333 = vmatprep.subr.mxu0 0.0
      %3334 = vmatpush1.msra.mxu0 %v1653
      %3335 = vmatprep.subr.mxu0 0.0
      %3336 = vmatpush1.msra.mxu0 %v1654
      %3337 = vmatprep.subr.mxu0 0.0
      %3338 = vmatpush1.msra.mxu0 %v1655
      %3339 = vmatprep.subr.mxu0 0.0
      %3340 = vmatpush1.msra.mxu0 0.0
      %3341 = vmatprep.subr.mxu0 0.0
      %3342 = vmatpush1.msra.mxu0 0.0
      %3343 = vmatprep.subr.mxu0 0.0
      %3344 = vmatpush1.msra.mxu0 0.0
      %3345 = vmatprep.subr.mxu0 0.0
      %3346 = vmatpush1.msra.mxu0 0.0
      %3347 = vmatprep.subr.mxu0 0.0
      %3348 = vmatpush1.msra.mxu0 0.0
      %3349 = vmatprep.subr.mxu0 0.0
      %3350 = vmatpush1.msra.mxu0 0.0
      %3351 = vmatprep.subr.mxu0 0.0
      %3352 = vmatpush1.msra.mxu0 0.0
      %3353 = vmatprep.subr.mxu0 0.0
      %3354 = vmatpush1.msra.mxu0 0.0
      %3355 = vmatprep.subr.mxu0 0.0
      %3356 = vmatpush1.msra.mxu0 0.0
      %3357 = vmatprep.subr.mxu0 0.0
      %3358 = vmatpush1.msra.mxu0 0.0
      %3359 = vmatprep.subr.mxu0 0.0
      %3360 = vmatpush1.msra.mxu0 0.0
      %3361 = vmatprep.subr.mxu0 0.0
      %3362 = vmatpush1.msra.mxu0 0.0
      %3363 = vmatprep.subr.mxu0 0.0
      %3364 = vmatpush1.msra.mxu0 0.0
      %3365 = vmatprep.subr.mxu0 0.0
      %3366 = vmatpush1.msra.mxu0 0.0
      %3367 = vmatprep.subr.mxu0 0.0
      %3368 = vmatpush1.msra.mxu0 0.0
      %3369 = vmatprep.subr.mxu0 0.0
      %3370 = vmatpush1.msra.mxu0 0.0
      %3371 = vmatprep.mubr.f32.mxu0 0.0
      %3372 = vmatmul.mubr.f32.gmra.mrb[0].mxu0 %v2954
      %v3373 = vpop.f32.mrb[0].mxu0
      %v3374 = vadd.f32 0.0, %v3373
      %v3375 = vpop.f32.mrb[0].mxu0
      %3376 = vmatprep.mubr.f32.mxu0 0.0
      %3377 = vmatmul.mubr.f32.gmra.mrb[0].mxu0 %v2956
      %v3378 = vpop.f32.mrb[0].mxu0
      %v3379 = vadd.f32 0.0, %v3378
      %v3380 = vpop.f32.mrb[0].mxu0
      %3381 = vdwg.mxu0
      %v3382 = vadd.f32 %v3303, %v3374
      %v3383 = vadd.f32 %v3304, %v3379
      %3386 = vmatprep.subr.mxu0 0.0
      %3387 = vmatpush1.msra.mxu0 %v1656
      %3388 = vmatprep.subr.mxu0 0.0
      %3389 = vmatpush1.msra.mxu0 %v1657
      %3390 = vmatprep.subr.mxu0 0.0
      %3391 = vmatpush1.msra.mxu0 %v1658
      %3392 = vmatprep.subr.mxu0 0.0
      %3393 = vmatpush1.msra.mxu0 %v1659
      %3394 = vmatprep.subr.mxu0 0.0
      %3395 = vmatpush1.msra.mxu0 %v1660
      %3396 = vmatprep.subr.mxu0 0.0
      %3397 = vmatpush1.msra.mxu0 %v1661
      %3398 = vmatprep.subr.mxu0 0.0
      %3399 = vmatpush1.msra.mxu0 %v1662
      %3400 = vmatprep.subr.mxu0 0.0
      %3401 = vmatpush1.msra.mxu0 %v1663
      %3402 = vmatprep.subr.mxu0 0.0
      %3403 = vmatpush1.msra.mxu0 %v1664
      %3404 = vmatprep.subr.mxu0 0.0
      %3405 = vmatpush1.msra.mxu0 %v1665
      %3406 = vmatprep.subr.mxu0 0.0
      %3407 = vmatpush1.msra.mxu0 %v1666
      %3408 = vmatprep.subr.mxu0 0.0
      %3409 = vmatpush1.msra.mxu0 %v1667
      %3410 = vmatprep.subr.mxu0 0.0
      %3411 = vmatpush1.msra.mxu0 %v1668
      %3412 = vmatprep.subr.mxu0 0.0
      %3413 = vmatpush1.msra.mxu0 %v1669
      %3414 = vmatprep.subr.mxu0 0.0
      %3415 = vmatpush1.msra.mxu0 %v1670
      %3416 = vmatprep.subr.mxu0 0.0
      %3417 = vmatpush1.msra.mxu0 %v1671
      %3418 = vmatprep.subr.mxu0 0.0
      %3419 = vmatpush1.msra.mxu0 0.0
      %3420 = vmatprep.subr.mxu0 0.0
      %3421 = vmatpush1.msra.mxu0 0.0
      %3422 = vmatprep.subr.mxu0 0.0
      %3423 = vmatpush1.msra.mxu0 0.0
      %3424 = vmatprep.subr.mxu0 0.0
      %3425 = vmatpush1.msra.mxu0 0.0
      %3426 = vmatprep.subr.mxu0 0.0
      %3427 = vmatpush1.msra.mxu0 0.0
      %3428 = vmatprep.subr.mxu0 0.0
      %3429 = vmatpush1.msra.mxu0 0.0
      %3430 = vmatprep.subr.mxu0 0.0
      %3431 = vmatpush1.msra.mxu0 0.0
      %3432 = vmatprep.subr.mxu0 0.0
      %3433 = vmatpush1.msra.mxu0 0.0
      %3434 = vmatprep.subr.mxu0 0.0
      %3435 = vmatpush1.msra.mxu0 0.0
      %3436 = vmatprep.subr.mxu0 0.0
      %3437 = vmatpush1.msra.mxu0 0.0
      %3438 = vmatprep.subr.mxu0 0.0
      %3439 = vmatpush1.msra.mxu0 0.0
      %3440 = vmatprep.subr.mxu0 0.0
      %3441 = vmatpush1.msra.mxu0 0.0
      %3442 = vmatprep.subr.mxu0 0.0
      %3443 = vmatpush1.msra.mxu0 0.0
      %3444 = vmatprep.subr.mxu0 0.0
      %3445 = vmatpush1.msra.mxu0 0.0
      %3446 = vmatprep.subr.mxu0 0.0
      %3447 = vmatpush1.msra.mxu0 0.0
      %3448 = vmatprep.subr.mxu0 0.0
      %3449 = vmatpush1.msra.mxu0 0.0
      %3450 = vmatprep.mubr.f32.mxu0 0.0
      %3451 = vmatmul.mubr.f32.gmra.mrb[0].mxu0 %v3045
      %v3452 = vpop.f32.mrb[0].mxu0
      %v3453 = vadd.f32 0.0, %v3452
      %v3454 = vpop.f32.mrb[0].mxu0
      %3455 = vmatprep.mubr.f32.mxu0 0.0
      %3456 = vmatmul.mubr.f32.gmra.mrb[0].mxu0 %v3044
      %v3457 = vpop.f32.mrb[0].mxu0
      %v3458 = vadd.f32 0.0, %v3457
      %v3459 = vpop.f32.mrb[0].mxu0
      %3460 = vdwg.mxu0
      %v3461 = vadd.f32 %v3382, %v3453
      %v3462 = vadd.f32 %v3383, %v3458
      %v3463 = vmax.f32 %v3461, 0.0
      %v3464 = vmax.f32 %v3462, 0.0
      %v3467 = vrot.slane %v3463, 7
      %v3468 = vrot.slane %v3464, 7
      %v3469 = vsel %vm979, %v3467, %v3468
      %3470 = vrot.lane.b32.xlu0 %v3467, 64
      %v3471 = vpop.permute.xlu0 %3470
      %3472 = vrot.lane.b32.xlu0 %v3469, 64
      %v3473 = vpop.permute.xlu0 %3472
      %3476 = vst.msk [vmem:[#allocation3 + $0x10] sm:$0xfe] %vm2027, %v3471
      %3477 = vst.msk [vmem:[#allocation3 + $0x38] sm:$0x7f] %vm2029, %v3473
      %v3478 = vld [vmem:[%s5] sm:$0x1]
      %3481 = vrot.lane.b32.xlu0 %v1570, 64
      %v3482 = vpop.permute.xlu0 %3481
      %3483 = vrot.lane.b32.xlu0 %v1576, 64
      %v3484 = vpop.permute.xlu0 %3483
      %v3485 = vsel %vm403, %v2768, %v3482
      %v3486 = vsel %vm403, %v2770, %v3484
      %3489 = vmatprep.subr.mxu0 0.0
      %3490 = vmatpush1.msra.mxu0 %v1608
      %3491 = vmatprep.subr.mxu0 0.0
      %3492 = vmatpush1.msra.mxu0 %v1609
      %3493 = vmatprep.subr.mxu0 0.0
      %3494 = vmatpush1.msra.mxu0 %v1610
      %3495 = vmatprep.subr.mxu0 0.0
      %3496 = vmatpush1.msra.mxu0 %v1611
      %3497 = vmatprep.subr.mxu0 0.0
      %3498 = vmatpush1.msra.mxu0 %v1612
      %3499 = vmatprep.subr.mxu0 0.0
      %3500 = vmatpush1.msra.mxu0 %v1613
      %3501 = vmatprep.subr.mxu0 0.0
      %3502 = vmatpush1.msra.mxu0 %v1614
      %3503 = vmatprep.subr.mxu0 0.0
      %3504 = vmatpush1.msra.mxu0 %v1615
      %3505 = vmatprep.subr.mxu0 0.0
      %3506 = vmatpush1.msra.mxu0 %v1616
      %3507 = vmatprep.subr.mxu0 0.0
      %3508 = vmatpush1.msra.mxu0 %v1617
      %3509 = vmatprep.subr.mxu0 0.0
      %3510 = vmatpush1.msra.mxu0 %v1618
      %3511 = vmatprep.subr.mxu0 0.0
      %3512 = vmatpush1.msra.mxu0 %v1619
      %3513 = vmatprep.subr.mxu0 0.0
      %3514 = vmatpush1.msra.mxu0 %v1620
      %3515 = vmatprep.subr.mxu0 0.0
      %3516 = vmatpush1.msra.mxu0 %v1621
      %3517 = vmatprep.subr.mxu0 0.0
      %3518 = vmatpush1.msra.mxu0 %v1622
      %3519 = vmatprep.subr.mxu0 0.0
      %3520 = vmatpush1.msra.mxu0 %v1623
      %3521 = vmatprep.subr.mxu0 0.0
      %3522 = vmatpush1.msra.mxu0 0.0
      %3523 = vmatprep.subr.mxu0 0.0
      %3524 = vmatpush1.msra.mxu0 0.0
      %3525 = vmatprep.subr.mxu0 0.0
      %3526 = vmatpush1.msra.mxu0 0.0
      %3527 = vmatprep.subr.mxu0 0.0
      %3528 = vmatpush1.msra.mxu0 0.0
      %3529 = vmatprep.subr.mxu0 0.0
      %3530 = vmatpush1.msra.mxu0 0.0
      %3531 = vmatprep.subr.mxu0 0.0
      %3532 = vmatpush1.msra.mxu0 0.0
      %3533 = vmatprep.subr.mxu0 0.0
      %3534 = vmatpush1.msra.mxu0 0.0
      %3535 = vmatprep.subr.mxu0 0.0
      %3536 = vmatpush1.msra.mxu0 0.0
      %3537 = vmatprep.subr.mxu0 0.0
      %3538 = vmatpush1.msra.mxu0 0.0
      %3539 = vmatprep.subr.mxu0 0.0
      %3540 = vmatpush1.msra.mxu0 0.0
      %3541 = vmatprep.subr.mxu0 0.0
      %3542 = vmatpush1.msra.mxu0 0.0
      %3543 = vmatprep.subr.mxu0 0.0
      %3544 = vmatpush1.msra.mxu0 0.0
      %3545 = vmatprep.subr.mxu0 0.0
      %3546 = vmatpush1.msra.mxu0 0.0
      %3547 = vmatprep.subr.mxu0 0.0
      %3548 = vmatpush1.msra.mxu0 0.0
      %3549 = vmatprep.subr.mxu0 0.0
      %3550 = vmatpush1.msra.mxu0 0.0
      %3551 = vmatprep.subr.mxu0 0.0
      %3552 = vmatpush1.msra.mxu0 0.0
      %3553 = vmatprep.mubr.f32.mxu0 0.0
      %3554 = vmatmul.mubr.f32.gmra.mrb[0].mxu0 %v3485
      %v3555 = vpop.f32.mrb[0].mxu0
      %v3556 = vadd.f32 0.0, %v3555
      %v3557 = vpop.f32.mrb[0].mxu0
      %3558 = vmatprep.mubr.f32.mxu0 0.0
      %3559 = vmatmul.mubr.f32.gmra.mrb[0].mxu0 %v3486
      %v3560 = vpop.f32.mrb[0].mxu0
      %v3561 = vadd.f32 0.0, %v3560
      %v3562 = vpop.f32.mrb[0].mxu0
      %3563 = vdwg.mxu0
      %v3565 = vlaneseq
      %v3566 = vshrl.u32 %v3565, 7
      %v3567 = vsub.s32 0, %v3566
      %v3568 = vrot.slane %v3478, %v3567
      %v3570 = vadd.f32 %v3568, %v3556
      %v3571 = vadd.f32 %v3568, %v3561
      %v3574 = vrot.slane %v1576, 6
      %v3575 = vrot.slane %v1582, 6
      %v3576 = vsel %vm1759, %v3574, %v3575
      %v3577 = vrot.slane %v1588, 6
      %v3578 = vsel %vm1759, %v3575, %v3577
      %3579 = vrot.lane.b32.xlu0 %v3576, 64
      %v3580 = vpop.permute.xlu0 %3579
      %3581 = vrot.lane.b32.xlu0 %v3578, 64
      %v3582 = vpop.permute.xlu0 %3581
      %v3583 = vsel %vm403, %v2866, %v3580
      %v3584 = vsel %vm403, %v2868, %v3582
      %3587 = vmatprep.subr.mxu0 0.0
      %3588 = vmatpush1.msra.mxu0 %v1624
      %3589 = vmatprep.subr.mxu0 0.0
      %3590 = vmatpush1.msra.mxu0 %v1625
      %3591 = vmatprep.subr.mxu0 0.0
      %3592 = vmatpush1.msra.mxu0 %v1626
      %3593 = vmatprep.subr.mxu0 0.0
      %3594 = vmatpush1.msra.mxu0 %v1627
      %3595 = vmatprep.subr.mxu0 0.0
      %3596 = vmatpush1.msra.mxu0 %v1628
      %3597 = vmatprep.subr.mxu0 0.0
      %3598 = vmatpush1.msra.mxu0 %v1629
      %3599 = vmatprep.subr.mxu0 0.0
      %3600 = vmatpush1.msra.mxu0 %v1630
      %3601 = vmatprep.subr.mxu0 0.0
      %3602 = vmatpush1.msra.mxu0 %v1631
      %3603 = vmatprep.subr.mxu0 0.0
      %3604 = vmatpush1.msra.mxu0 %v1632
      %3605 = vmatprep.subr.mxu0 0.0
      %3606 = vmatpush1.msra.mxu0 %v1633
      %3607 = vmatprep.subr.mxu0 0.0
      %3608 = vmatpush1.msra.mxu0 %v1634
      %3609 = vmatprep.subr.mxu0 0.0
      %3610 = vmatpush1.msra.mxu0 %v1635
      %3611 = vmatprep.subr.mxu0 0.0
      %3612 = vmatpush1.msra.mxu0 %v1636
      %3613 = vmatprep.subr.mxu0 0.0
      %3614 = vmatpush1.msra.mxu0 %v1637
      %3615 = vmatprep.subr.mxu0 0.0
      %3616 = vmatpush1.msra.mxu0 %v1638
      %3617 = vmatprep.subr.mxu0 0.0
      %3618 = vmatpush1.msra.mxu0 %v1639
      %3619 = vmatprep.subr.mxu0 0.0
      %3620 = vmatpush1.msra.mxu0 0.0
      %3621 = vmatprep.subr.mxu0 0.0
      %3622 = vmatpush1.msra.mxu0 0.0
      %3623 = vmatprep.subr.mxu0 0.0
      %3624 = vmatpush1.msra.mxu0 0.0
      %3625 = vmatprep.subr.mxu0 0.0
      %3626 = vmatpush1.msra.mxu0 0.0
      %3627 = vmatprep.subr.mxu0 0.0
      %3628 = vmatpush1.msra.mxu0 0.0
      %3629 = vmatprep.subr.mxu0 0.0
      %3630 = vmatpush1.msra.mxu0 0.0
      %3631 = vmatprep.subr.mxu0 0.0
      %3632 = vmatpush1.msra.mxu0 0.0
      %3633 = vmatprep.subr.mxu0 0.0
      %3634 = vmatpush1.msra.mxu0 0.0
      %3635 = vmatprep.subr.mxu0 0.0
      %3636 = vmatpush1.msra.mxu0 0.0
      %3637 = vmatprep.subr.mxu0 0.0
      %3638 = vmatpush1.msra.mxu0 0.0
      %3639 = vmatprep.subr.mxu0 0.0
      %3640 = vmatpush1.msra.mxu0 0.0
      %3641 = vmatprep.subr.mxu0 0.0
      %3642 = vmatpush1.msra.mxu0 0.0
      %3643 = vmatprep.subr.mxu0 0.0
      %3644 = vmatpush1.msra.mxu0 0.0
      %3645 = vmatprep.subr.mxu0 0.0
      %3646 = vmatpush1.msra.mxu0 0.0
      %3647 = vmatprep.subr.mxu0 0.0
      %3648 = vmatpush1.msra.mxu0 0.0
      %3649 = vmatprep.subr.mxu0 0.0
      %3650 = vmatpush1.msra.mxu0 0.0
      %3651 = vmatprep.mubr.f32.mxu0 0.0
      %3652 = vmatmul.mubr.f32.gmra.mrb[0].mxu0 %v3583
      %v3653 = vpop.f32.mrb[0].mxu0
      %v3654 = vadd.f32 0.0, %v3653
      %v3655 = vpop.f32.mrb[0].mxu0
      %3656 = vmatprep.mubr.f32.mxu0 0.0
      %3657 = vmatmul.mubr.f32.gmra.mrb[0].mxu0 %v3584
      %v3658 = vpop.f32.mrb[0].mxu0
      %v3659 = vadd.f32 0.0, %v3658
      %v3660 = vpop.f32.mrb[0].mxu0
      %3661 = vdwg.mxu0
      %v3662 = vadd.f32 %v3570, %v3654
      %v3663 = vadd.f32 %v3571, %v3659
      %v3666 = vrot.slane %v1588, 4
      %v3667 = vrot.slane %v1594, 4
      %v3668 = vsel %vm1846, %v3666, %v3667
      %v3669 = vrot.slane %v1600, 4
      %v3670 = vsel %vm1846, %v3667, %v3669
      %3671 = vrot.lane.b32.xlu0 %v3668, 64
      %v3672 = vpop.permute.xlu0 %3671
      %3673 = vrot.lane.b32.xlu0 %v3670, 64
      %v3674 = vpop.permute.xlu0 %3673
      %v3675 = vsel %vm403, %v2958, %v3672
      %v3676 = vsel %vm403, %v2960, %v3674
      %3679 = vmatprep.subr.mxu0 0.0
      %3680 = vmatpush1.msra.mxu0 %v1640
      %3681 = vmatprep.subr.mxu0 0.0
      %3682 = vmatpush1.msra.mxu0 %v1641
      %3683 = vmatprep.subr.mxu0 0.0
      %3684 = vmatpush1.msra.mxu0 %v1642
      %3685 = vmatprep.subr.mxu0 0.0
      %3686 = vmatpush1.msra.mxu0 %v1643
      %3687 = vmatprep.subr.mxu0 0.0
      %3688 = vmatpush1.msra.mxu0 %v1644
      %3689 = vmatprep.subr.mxu0 0.0
      %3690 = vmatpush1.msra.mxu0 %v1645
      %3691 = vmatprep.subr.mxu0 0.0
      %3692 = vmatpush1.msra.mxu0 %v1646
      %3693 = vmatprep.subr.mxu0 0.0
      %3694 = vmatpush1.msra.mxu0 %v1647
      %3695 = vmatprep.subr.mxu0 0.0
      %3696 = vmatpush1.msra.mxu0 %v1648
      %3697 = vmatprep.subr.mxu0 0.0
      %3698 = vmatpush1.msra.mxu0 %v1649
      %3699 = vmatprep.subr.mxu0 0.0
      %3700 = vmatpush1.msra.mxu0 %v1650
      %3701 = vmatprep.subr.mxu0 0.0
      %3702 = vmatpush1.msra.mxu0 %v1651
      %3703 = vmatprep.subr.mxu0 0.0
      %3704 = vmatpush1.msra.mxu0 %v1652
      %3705 = vmatprep.subr.mxu0 0.0
      %3706 = vmatpush1.msra.mxu0 %v1653
      %3707 = vmatprep.subr.mxu0 0.0
      %3708 = vmatpush1.msra.mxu0 %v1654
      %3709 = vmatprep.subr.mxu0 0.0
      %3710 = vmatpush1.msra.mxu0 %v1655
      %3711 = vmatprep.subr.mxu0 0.0
      %3712 = vmatpush1.msra.mxu0 0.0
      %3713 = vmatprep.subr.mxu0 0.0
      %3714 = vmatpush1.msra.mxu0 0.0
      %3715 = vmatprep.subr.mxu0 0.0
      %3716 = vmatpush1.msra.mxu0 0.0
      %3717 = vmatprep.subr.mxu0 0.0
      %3718 = vmatpush1.msra.mxu0 0.0
      %3719 = vmatprep.subr.mxu0 0.0
      %3720 = vmatpush1.msra.mxu0 0.0
      %3721 = vmatprep.subr.mxu0 0.0
      %3722 = vmatpush1.msra.mxu0 0.0
      %3723 = vmatprep.subr.mxu0 0.0
      %3724 = vmatpush1.msra.mxu0 0.0
      %3725 = vmatprep.subr.mxu0 0.0
      %3726 = vmatpush1.msra.mxu0 0.0
      %3727 = vmatprep.subr.mxu0 0.0
      %3728 = vmatpush1.msra.mxu0 0.0
      %3729 = vmatprep.subr.mxu0 0.0
      %3730 = vmatpush1.msra.mxu0 0.0
      %3731 = vmatprep.subr.mxu0 0.0
      %3732 = vmatpush1.msra.mxu0 0.0
      %3733 = vmatprep.subr.mxu0 0.0
      %3734 = vmatpush1.msra.mxu0 0.0
      %3735 = vmatprep.subr.mxu0 0.0
      %3736 = vmatpush1.msra.mxu0 0.0
      %3737 = vmatprep.subr.mxu0 0.0
      %3738 = vmatpush1.msra.mxu0 0.0
      %3739 = vmatprep.subr.mxu0 0.0
      %3740 = vmatpush1.msra.mxu0 0.0
      %3741 = vmatprep.subr.mxu0 0.0
      %3742 = vmatpush1.msra.mxu0 0.0
      %3743 = vmatprep.mubr.f32.mxu0 0.0
      %3744 = vmatmul.mubr.f32.gmra.mrb[0].mxu0 %v3675
      %v3745 = vpop.f32.mrb[0].mxu0
      %v3746 = vadd.f32 0.0, %v3745
      %v3747 = vpop.f32.mrb[0].mxu0
      %3748 = vmatprep.mubr.f32.mxu0 0.0
      %3749 = vmatmul.mubr.f32.gmra.mrb[0].mxu0 %v3676
      %v3750 = vpop.f32.mrb[0].mxu0
      %v3751 = vadd.f32 0.0, %v3750
      %v3752 = vpop.f32.mrb[0].mxu0
      %3753 = vdwg.mxu0
      %v3754 = vadd.f32 %v3662, %v3746
      %v3755 = vadd.f32 %v3663, %v3751
      %v3757 = vrot.slane %v1600, 2
      %v3758 = vrot.slane %v1606, 2
      %v3759 = vsel %vm1381, %v3757, %v3758
      %3760 = vrot.lane.b32.xlu0 %v3759, 64
      %v3761 = vpop.permute.xlu0 %3760
      %3762 = vrot.lane.b32.xlu0 %v3758, 64
      %v3763 = vpop.permute.xlu0 %3762
      %v3764 = vsel %vm403, %v3047, %v3761
      %v3765 = vsel %vm403, %v3049, %v3763
      %3768 = vmatprep.subr.mxu0 0.0
      %3769 = vmatpush1.msra.mxu0 %v1656
      %3770 = vmatprep.subr.mxu0 0.0
      %3771 = vmatpush1.msra.mxu0 %v1657
      %3772 = vmatprep.subr.mxu0 0.0
      %3773 = vmatpush1.msra.mxu0 %v1658
      %3774 = vmatprep.subr.mxu0 0.0
      %3775 = vmatpush1.msra.mxu0 %v1659
      %3776 = vmatprep.subr.mxu0 0.0
      %3777 = vmatpush1.msra.mxu0 %v1660
      %3778 = vmatprep.subr.mxu0 0.0
      %3779 = vmatpush1.msra.mxu0 %v1661
      %3780 = vmatprep.subr.mxu0 0.0
      %3781 = vmatpush1.msra.mxu0 %v1662
      %3782 = vmatprep.subr.mxu0 0.0
      %3783 = vmatpush1.msra.mxu0 %v1663
      %3784 = vmatprep.subr.mxu0 0.0
      %3785 = vmatpush1.msra.mxu0 %v1664
      %3786 = vmatprep.subr.mxu0 0.0
      %3787 = vmatpush1.msra.mxu0 %v1665
      %3788 = vmatprep.subr.mxu0 0.0
      %3789 = vmatpush1.msra.mxu0 %v1666
      %3790 = vmatprep.subr.mxu0 0.0
      %3791 = vmatpush1.msra.mxu0 %v1667
      %3792 = vmatprep.subr.mxu0 0.0
      %3793 = vmatpush1.msra.mxu0 %v1668
      %3794 = vmatprep.subr.mxu0 0.0
      %3795 = vmatpush1.msra.mxu0 %v1669
      %3796 = vmatprep.subr.mxu0 0.0
      %3797 = vmatpush1.msra.mxu0 %v1670
      %3798 = vmatprep.subr.mxu0 0.0
      %3799 = vmatpush1.msra.mxu0 %v1671
      %3800 = vmatprep.subr.mxu0 0.0
      %3801 = vmatpush1.msra.mxu0 0.0
      %3802 = vmatprep.subr.mxu0 0.0
      %3803 = vmatpush1.msra.mxu0 0.0
      %3804 = vmatprep.subr.mxu0 0.0
      %3805 = vmatpush1.msra.mxu0 0.0
      %3806 = vmatprep.subr.mxu0 0.0
      %3807 = vmatpush1.msra.mxu0 0.0
      %3808 = vmatprep.subr.mxu0 0.0
      %3809 = vmatpush1.msra.mxu0 0.0
      %3810 = vmatprep.subr.mxu0 0.0
      %3811 = vmatpush1.msra.mxu0 0.0
      %3812 = vmatprep.subr.mxu0 0.0
      %3813 = vmatpush1.msra.mxu0 0.0
      %3814 = vmatprep.subr.mxu0 0.0
      %3815 = vmatpush1.msra.mxu0 0.0
      %3816 = vmatprep.subr.mxu0 0.0
      %3817 = vmatpush1.msra.mxu0 0.0
      %3818 = vmatprep.subr.mxu0 0.0
      %3819 = vmatpush1.msra.mxu0 0.0
      %3820 = vmatprep.subr.mxu0 0.0
      %3821 = vmatpush1.msra.mxu0 0.0
      %3822 = vmatprep.subr.mxu0 0.0
      %3823 = vmatpush1.msra.mxu0 0.0
      %3824 = vmatprep.subr.mxu0 0.0
      %3825 = vmatpush1.msra.mxu0 0.0
      %3826 = vmatprep.subr.mxu0 0.0
      %3827 = vmatpush1.msra.mxu0 0.0
      %3828 = vmatprep.subr.mxu0 0.0
      %3829 = vmatpush1.msra.mxu0 0.0
      %3830 = vmatprep.subr.mxu0 0.0
      %3831 = vmatpush1.msra.mxu0 0.0
      %3832 = vmatprep.mubr.f32.mxu0 0.0
      %3833 = vmatmul.mubr.f32.gmra.mrb[0].mxu0 %v3764
      %v3834 = vpop.f32.mrb[0].mxu0
      %v3835 = vadd.f32 0.0, %v3834
      %v3836 = vpop.f32.mrb[0].mxu0
      %3837 = vmatprep.mubr.f32.mxu0 0.0
      %3838 = vmatmul.mubr.f32.gmra.mrb[0].mxu0 %v3765
      %v3839 = vpop.f32.mrb[0].mxu0
      %v3840 = vadd.f32 0.0, %v3839
      %v3841 = vpop.f32.mrb[0].mxu0
      %3842 = vdwg.mxu0
      %v3843 = vadd.f32 %v3754, %v3835
      %v3844 = vadd.f32 %v3755, %v3840
      %v3845 = vmax.f32 %v3843, 0.0
      %v3846 = vmax.f32 %v3844, 0.0
      %v3849 = vrot.slane %v3845, 7
      %v3850 = vrot.slane %v3846, 7
      %v3851 = vsel %vm979, %v3849, %v3850
      %3854 = vst.msk [vmem:[#allocation3 + $0x18] sm:$0xfe] %vm2424, %v3849
      %3855 = vst.msk [vmem:[#allocation3 + $0x40] sm:$0x7f] %vm2426, %v3851
      %v3856 = vld [vmem:[%s5] sm:$0x1]
      %3857 = vmatprep.subr.mxu0 0.0
      %3858 = vmatpush1.msra.mxu0 %v1608
      %3859 = vmatprep.subr.mxu0 0.0
      %3860 = vmatpush1.msra.mxu0 %v1609
      %3861 = vmatprep.subr.mxu0 0.0
      %3862 = vmatpush1.msra.mxu0 %v1610
      %3863 = vmatprep.subr.mxu0 0.0
      %3864 = vmatpush1.msra.mxu0 %v1611
      %3865 = vmatprep.subr.mxu0 0.0
      %3866 = vmatpush1.msra.mxu0 %v1612
      %3867 = vmatprep.subr.mxu0 0.0
      %3868 = vmatpush1.msra.mxu0 %v1613
      %3869 = vmatprep.subr.mxu0 0.0
      %3870 = vmatpush1.msra.mxu0 %v1614
      %3871 = vmatprep.subr.mxu0 0.0
      %3872 = vmatpush1.msra.mxu0 %v1615
      %3873 = vmatprep.subr.mxu0 0.0
      %3874 = vmatpush1.msra.mxu0 %v1616
      %3875 = vmatprep.subr.mxu0 0.0
      %3876 = vmatpush1.msra.mxu0 %v1617
      %3877 = vmatprep.subr.mxu0 0.0
      %3878 = vmatpush1.msra.mxu0 %v1618
      %3879 = vmatprep.subr.mxu0 0.0
      %3880 = vmatpush1.msra.mxu0 %v1619
      %3881 = vmatprep.subr.mxu0 0.0
      %3882 = vmatpush1.msra.mxu0 %v1620
      %3883 = vmatprep.subr.mxu0 0.0
      %3884 = vmatpush1.msra.mxu0 %v1621
      %3885 = vmatprep.subr.mxu0 0.0
      %3886 = vmatpush1.msra.mxu0 %v1622
      %3887 = vmatprep.subr.mxu0 0.0
      %3888 = vmatpush1.msra.mxu0 %v1623
      %3889 = vmatprep.subr.mxu0 0.0
      %3890 = vmatpush1.msra.mxu0 0.0
      %3891 = vmatprep.subr.mxu0 0.0
      %3892 = vmatpush1.msra.mxu0 0.0
      %3893 = vmatprep.subr.mxu0 0.0
      %3894 = vmatpush1.msra.mxu0 0.0
      %3895 = vmatprep.subr.mxu0 0.0
      %3896 = vmatpush1.msra.mxu0 0.0
      %3897 = vmatprep.subr.mxu0 0.0
      %3898 = vmatpush1.msra.mxu0 0.0
      %3899 = vmatprep.subr.mxu0 0.0
      %3900 = vmatpush1.msra.mxu0 0.0
      %3901 = vmatprep.subr.mxu0 0.0
      %3902 = vmatpush1.msra.mxu0 0.0
      %3903 = vmatprep.subr.mxu0 0.0
      %3904 = vmatpush1.msra.mxu0 0.0
      %3905 = vmatprep.subr.mxu0 0.0
      %3906 = vmatpush1.msra.mxu0 0.0
      %3907 = vmatprep.subr.mxu0 0.0
      %3908 = vmatpush1.msra.mxu0 0.0
      %3909 = vmatprep.subr.mxu0 0.0
      %3910 = vmatpush1.msra.mxu0 0.0
      %3911 = vmatprep.subr.mxu0 0.0
      %3912 = vmatpush1.msra.mxu0 0.0
      %3913 = vmatprep.subr.mxu0 0.0
      %3914 = vmatpush1.msra.mxu0 0.0
      %3915 = vmatprep.subr.mxu0 0.0
      %3916 = vmatpush1.msra.mxu0 0.0
      %3917 = vmatprep.subr.mxu0 0.0
      %3918 = vmatpush1.msra.mxu0 0.0
      %3919 = vmatprep.subr.mxu0 0.0
      %3920 = vmatpush1.msra.mxu0 0.0
      %3921 = vmatprep.mubr.f32.mxu0 0.0
      %3922 = vmatmul.mubr.f32.gmra.mrb[0].mxu0 %v1570
      %v3923 = vpop.f32.mrb[0].mxu0
      %v3924 = vadd.f32 0.0, %v3923
      %v3925 = vpop.f32.mrb[0].mxu0
      %3926 = vmatprep.mubr.f32.mxu0 0.0
      %3927 = vmatmul.mubr.f32.gmra.mrb[0].mxu0 %v1576
      %v3928 = vpop.f32.mrb[0].mxu0
      %v3929 = vadd.f32 0.0, %v3928
      %v3930 = vpop.f32.mrb[0].mxu0
      %3931 = vdwg.mxu0
      %v3933 = vlaneseq
      %v3934 = vshrl.u32 %v3933, 7
      %v3935 = vsub.s32 0, %v3934
      %v3936 = vrot.slane %v3856, %v3935
      %v3938 = vadd.f32 %v3936, %v3924
      %v3939 = vadd.f32 %v3936, %v3929
      %3942 = vmatprep.subr.mxu0 0.0
      %3943 = vmatpush1.msra.mxu0 %v1624
      %3944 = vmatprep.subr.mxu0 0.0
      %3945 = vmatpush1.msra.mxu0 %v1625
      %3946 = vmatprep.subr.mxu0 0.0
      %3947 = vmatpush1.msra.mxu0 %v1626
      %3948 = vmatprep.subr.mxu0 0.0
      %3949 = vmatpush1.msra.mxu0 %v1627
      %3950 = vmatprep.subr.mxu0 0.0
      %3951 = vmatpush1.msra.mxu0 %v1628
      %3952 = vmatprep.subr.mxu0 0.0
      %3953 = vmatpush1.msra.mxu0 %v1629
      %3954 = vmatprep.subr.mxu0 0.0
      %3955 = vmatpush1.msra.mxu0 %v1630
      %3956 = vmatprep.subr.mxu0 0.0
      %3957 = vmatpush1.msra.mxu0 %v1631
      %3958 = vmatprep.subr.mxu0 0.0
      %3959 = vmatpush1.msra.mxu0 %v1632
      %3960 = vmatprep.subr.mxu0 0.0
      %3961 = vmatpush1.msra.mxu0 %v1633
      %3962 = vmatprep.subr.mxu0 0.0
      %3963 = vmatpush1.msra.mxu0 %v1634
      %3964 = vmatprep.subr.mxu0 0.0
      %3965 = vmatpush1.msra.mxu0 %v1635
      %3966 = vmatprep.subr.mxu0 0.0
      %3967 = vmatpush1.msra.mxu0 %v1636
      %3968 = vmatprep.subr.mxu0 0.0
      %3969 = vmatpush1.msra.mxu0 %v1637
      %3970 = vmatprep.subr.mxu0 0.0
      %3971 = vmatpush1.msra.mxu0 %v1638
      %3972 = vmatprep.subr.mxu0 0.0
      %3973 = vmatpush1.msra.mxu0 %v1639
      %3974 = vmatprep.subr.mxu0 0.0
      %3975 = vmatpush1.msra.mxu0 0.0
      %3976 = vmatprep.subr.mxu0 0.0
      %3977 = vmatpush1.msra.mxu0 0.0
      %3978 = vmatprep.subr.mxu0 0.0
      %3979 = vmatpush1.msra.mxu0 0.0
      %3980 = vmatprep.subr.mxu0 0.0
      %3981 = vmatpush1.msra.mxu0 0.0
      %3982 = vmatprep.subr.mxu0 0.0
      %3983 = vmatpush1.msra.mxu0 0.0
      %3984 = vmatprep.subr.mxu0 0.0
      %3985 = vmatpush1.msra.mxu0 0.0
      %3986 = vmatprep.subr.mxu0 0.0
      %3987 = vmatpush1.msra.mxu0 0.0
      %3988 = vmatprep.subr.mxu0 0.0
      %3989 = vmatpush1.msra.mxu0 0.0
      %3990 = vmatprep.subr.mxu0 0.0
      %3991 = vmatpush1.msra.mxu0 0.0
      %3992 = vmatprep.subr.mxu0 0.0
      %3993 = vmatpush1.msra.mxu0 0.0
      %3994 = vmatprep.subr.mxu0 0.0
      %3995 = vmatpush1.msra.mxu0 0.0
      %3996 = vmatprep.subr.mxu0 0.0
      %3997 = vmatpush1.msra.mxu0 0.0
      %3998 = vmatprep.subr.mxu0 0.0
      %3999 = vmatpush1.msra.mxu0 0.0
      %4000 = vmatprep.subr.mxu0 0.0
      %4001 = vmatpush1.msra.mxu0 0.0
      %4002 = vmatprep.subr.mxu0 0.0
      %4003 = vmatpush1.msra.mxu0 0.0
      %4004 = vmatprep.subr.mxu0 0.0
      %4005 = vmatpush1.msra.mxu0 0.0
      %4006 = vmatprep.mubr.f32.mxu0 0.0
      %4007 = vmatmul.mubr.f32.gmra.mrb[0].mxu0 %v3576
      %v4008 = vpop.f32.mrb[0].mxu0
      %v4009 = vadd.f32 0.0, %v4008
      %v4010 = vpop.f32.mrb[0].mxu0
      %4011 = vmatprep.mubr.f32.mxu0 0.0
      %4012 = vmatmul.mubr.f32.gmra.mrb[0].mxu0 %v3578
      %v4013 = vpop.f32.mrb[0].mxu0
      %v4014 = vadd.f32 0.0, %v4013
      %v4015 = vpop.f32.mrb[0].mxu0
      %4016 = vdwg.mxu0
      %v4017 = vadd.f32 %v3938, %v4009
      %v4018 = vadd.f32 %v3939, %v4014
      %4021 = vmatprep.subr.mxu0 0.0
      %4022 = vmatpush1.msra.mxu0 %v1640
      %4023 = vmatprep.subr.mxu0 0.0
      %4024 = vmatpush1.msra.mxu0 %v1641
      %4025 = vmatprep.subr.mxu0 0.0
      %4026 = vmatpush1.msra.mxu0 %v1642
      %4027 = vmatprep.subr.mxu0 0.0
      %4028 = vmatpush1.msra.mxu0 %v1643
      %4029 = vmatprep.subr.mxu0 0.0
      %4030 = vmatpush1.msra.mxu0 %v1644
      %4031 = vmatprep.subr.mxu0 0.0
      %4032 = vmatpush1.msra.mxu0 %v1645
      %4033 = vmatprep.subr.mxu0 0.0
      %4034 = vmatpush1.msra.mxu0 %v1646
      %4035 = vmatprep.subr.mxu0 0.0
      %4036 = vmatpush1.msra.mxu0 %v1647
      %4037 = vmatprep.subr.mxu0 0.0
      %4038 = vmatpush1.msra.mxu0 %v1648
      %4039 = vmatprep.subr.mxu0 0.0
      %4040 = vmatpush1.msra.mxu0 %v1649
      %4041 = vmatprep.subr.mxu0 0.0
      %4042 = vmatpush1.msra.mxu0 %v1650
      %4043 = vmatprep.subr.mxu0 0.0
      %4044 = vmatpush1.msra.mxu0 %v1651
      %4045 = vmatprep.subr.mxu0 0.0
      %4046 = vmatpush1.msra.mxu0 %v1652
      %4047 = vmatprep.subr.mxu0 0.0
      %4048 = vmatpush1.msra.mxu0 %v1653
      %4049 = vmatprep.subr.mxu0 0.0
      %4050 = vmatpush1.msra.mxu0 %v1654
      %4051 = vmatprep.subr.mxu0 0.0
      %4052 = vmatpush1.msra.mxu0 %v1655
      %4053 = vmatprep.subr.mxu0 0.0
      %4054 = vmatpush1.msra.mxu0 0.0
      %4055 = vmatprep.subr.mxu0 0.0
      %4056 = vmatpush1.msra.mxu0 0.0
      %4057 = vmatprep.subr.mxu0 0.0
      %4058 = vmatpush1.msra.mxu0 0.0
      %4059 = vmatprep.subr.mxu0 0.0
      %4060 = vmatpush1.msra.mxu0 0.0
      %4061 = vmatprep.subr.mxu0 0.0
      %4062 = vmatpush1.msra.mxu0 0.0
      %4063 = vmatprep.subr.mxu0 0.0
      %4064 = vmatpush1.msra.mxu0 0.0
      %4065 = vmatprep.subr.mxu0 0.0
      %4066 = vmatpush1.msra.mxu0 0.0
      %4067 = vmatprep.subr.mxu0 0.0
      %4068 = vmatpush1.msra.mxu0 0.0
      %4069 = vmatprep.subr.mxu0 0.0
      %4070 = vmatpush1.msra.mxu0 0.0
      %4071 = vmatprep.subr.mxu0 0.0
      %4072 = vmatpush1.msra.mxu0 0.0
      %4073 = vmatprep.subr.mxu0 0.0
      %4074 = vmatpush1.msra.mxu0 0.0
      %4075 = vmatprep.subr.mxu0 0.0
      %4076 = vmatpush1.msra.mxu0 0.0
      %4077 = vmatprep.subr.mxu0 0.0
      %4078 = vmatpush1.msra.mxu0 0.0
      %4079 = vmatprep.subr.mxu0 0.0
      %4080 = vmatpush1.msra.mxu0 0.0
      %4081 = vmatprep.subr.mxu0 0.0
      %4082 = vmatpush1.msra.mxu0 0.0
      %4083 = vmatprep.subr.mxu0 0.0
      %4084 = vmatpush1.msra.mxu0 0.0
      %4085 = vmatprep.mubr.f32.mxu0 0.0
      %4086 = vmatmul.mubr.f32.gmra.mrb[0].mxu0 %v3668
      %v4087 = vpop.f32.mrb[0].mxu0
      %v4088 = vadd.f32 0.0, %v4087
      %v4089 = vpop.f32.mrb[0].mxu0
      %4090 = vmatprep.mubr.f32.mxu0 0.0
      %4091 = vmatmul.mubr.f32.gmra.mrb[0].mxu0 %v3670
      %v4092 = vpop.f32.mrb[0].mxu0
      %v4093 = vadd.f32 0.0, %v4092
      %v4094 = vpop.f32.mrb[0].mxu0
      %4095 = vdwg.mxu0
      %v4096 = vadd.f32 %v4017, %v4088
      %v4097 = vadd.f32 %v4018, %v4093
      %4100 = vmatprep.subr.mxu0 0.0
      %4101 = vmatpush1.msra.mxu0 %v1656
      %4102 = vmatprep.subr.mxu0 0.0
      %4103 = vmatpush1.msra.mxu0 %v1657
      %4104 = vmatprep.subr.mxu0 0.0
      %4105 = vmatpush1.msra.mxu0 %v1658
      %4106 = vmatprep.subr.mxu0 0.0
      %4107 = vmatpush1.msra.mxu0 %v1659
      %4108 = vmatprep.subr.mxu0 0.0
      %4109 = vmatpush1.msra.mxu0 %v1660
      %4110 = vmatprep.subr.mxu0 0.0
      %4111 = vmatpush1.msra.mxu0 %v1661
      %4112 = vmatprep.subr.mxu0 0.0
      %4113 = vmatpush1.msra.mxu0 %v1662
      %4114 = vmatprep.subr.mxu0 0.0
      %4115 = vmatpush1.msra.mxu0 %v1663
      %4116 = vmatprep.subr.mxu0 0.0
      %4117 = vmatpush1.msra.mxu0 %v1664
      %4118 = vmatprep.subr.mxu0 0.0
      %4119 = vmatpush1.msra.mxu0 %v1665
      %4120 = vmatprep.subr.mxu0 0.0
      %4121 = vmatpush1.msra.mxu0 %v1666
      %4122 = vmatprep.subr.mxu0 0.0
      %4123 = vmatpush1.msra.mxu0 %v1667
      %4124 = vmatprep.subr.mxu0 0.0
      %4125 = vmatpush1.msra.mxu0 %v1668
      %4126 = vmatprep.subr.mxu0 0.0
      %4127 = vmatpush1.msra.mxu0 %v1669
      %4128 = vmatprep.subr.mxu0 0.0
      %4129 = vmatpush1.msra.mxu0 %v1670
      %4130 = vmatprep.subr.mxu0 0.0
      %4131 = vmatpush1.msra.mxu0 %v1671
      %4132 = vmatprep.subr.mxu0 0.0
      %4133 = vmatpush1.msra.mxu0 0.0
      %4134 = vmatprep.subr.mxu0 0.0
      %4135 = vmatpush1.msra.mxu0 0.0
      %4136 = vmatprep.subr.mxu0 0.0
      %4137 = vmatpush1.msra.mxu0 0.0
      %4138 = vmatprep.subr.mxu0 0.0
      %4139 = vmatpush1.msra.mxu0 0.0
      %4140 = vmatprep.subr.mxu0 0.0
      %4141 = vmatpush1.msra.mxu0 0.0
      %4142 = vmatprep.subr.mxu0 0.0
      %4143 = vmatpush1.msra.mxu0 0.0
      %4144 = vmatprep.subr.mxu0 0.0
      %4145 = vmatpush1.msra.mxu0 0.0
      %4146 = vmatprep.subr.mxu0 0.0
      %4147 = vmatpush1.msra.mxu0 0.0
      %4148 = vmatprep.subr.mxu0 0.0
      %4149 = vmatpush1.msra.mxu0 0.0
      %4150 = vmatprep.subr.mxu0 0.0
      %4151 = vmatpush1.msra.mxu0 0.0
      %4152 = vmatprep.subr.mxu0 0.0
      %4153 = vmatpush1.msra.mxu0 0.0
      %4154 = vmatprep.subr.mxu0 0.0
      %4155 = vmatpush1.msra.mxu0 0.0
      %4156 = vmatprep.subr.mxu0 0.0
      %4157 = vmatpush1.msra.mxu0 0.0
      %4158 = vmatprep.subr.mxu0 0.0
      %4159 = vmatpush1.msra.mxu0 0.0
      %4160 = vmatprep.subr.mxu0 0.0
      %4161 = vmatpush1.msra.mxu0 0.0
      %4162 = vmatprep.subr.mxu0 0.0
      %4163 = vmatpush1.msra.mxu0 0.0
      %4164 = vmatprep.mubr.f32.mxu0 0.0
      %4165 = vmatmul.mubr.f32.gmra.mrb[0].mxu0 %v3759
      %v4166 = vpop.f32.mrb[0].mxu0
      %v4167 = vadd.f32 0.0, %v4166
      %v4168 = vpop.f32.mrb[0].mxu0
      %4169 = vmatprep.mubr.f32.mxu0 0.0
      %4170 = vmatmul.mubr.f32.gmra.mrb[0].mxu0 %v3758
      %v4171 = vpop.f32.mrb[0].mxu0
      %v4172 = vadd.f32 0.0, %v4171
      %v4173 = vpop.f32.mrb[0].mxu0
      %4174 = vdwg.mxu0
      %v4175 = vadd.f32 %v4096, %v4167
      %v4176 = vadd.f32 %v4097, %v4172
      %v4177 = vmax.f32 %v4175, 0.0
      %v4178 = vmax.f32 %v4176, 0.0
      %v4181 = vrot.slane %v4177, 7
      %v4182 = vrot.slane %v4178, 7
      %v4183 = vsel %vm979, %v4181, %v4182
      %4184 = vrot.lane.b32.xlu0 %v4181, 64
      %v4185 = vpop.permute.xlu0 %4184
      %4186 = vrot.lane.b32.xlu0 %v4183, 64
      %v4187 = vpop.permute.xlu0 %4186
      %4190 = vst.msk [vmem:[#allocation3 + $0x18] sm:$0xfe] %vm2027, %v4185
      %4191 = vst.msk [vmem:[#allocation3 + $0x40] sm:$0x7f] %vm2029, %v4187
      %v4192 = vld [vmem:[%s6] sm:$0xff]
      %v4193 = vld [vmem:[%s6 + $0x8] sm:$0xff]
      %v4194 = vld [vmem:[%s6 + $0x10] sm:$0xff]
      %v4195 = vld [vmem:[%s6 + $0x18] sm:$0xf]
      %v4196 = vld [vmem:[#allocation3] sm:$0xff]
      %v4197 = vld [vmem:[#allocation3 + $0x8] sm:$0xff]
      %v4198 = vld [vmem:[#allocation3 + $0x10] sm:$0xff]
      %v4199 = vld [vmem:[#allocation3 + $0x18] sm:$0xff]
      %v4200 = vld [vmem:[#allocation3 + $0x28] sm:$0xff]
      %v4201 = vld [vmem:[#allocation3 + $0x30] sm:$0xff]
      %v4202 = vld [vmem:[#allocation3 + $0x38] sm:$0xff]
      %v4203 = vld [vmem:[#allocation3 + $0x40] sm:$0xff]
      %v4205 = vsel %vm468, %v4192, 0
      %v4208 = vsel %vm468, %v4193, 0
      %v4211 = vsel %vm468, %v4194, 0
      %v4214 = vsel %vm468, %v4195, 0
      %4216 = vmatprep.subr.mxu0 %v4197
      %4217 = vmatpush1.msra.mxu0 %v4196
      %4218 = vmatprep.subr.mxu0 %v4201
      %4219 = vmatpush1.msra.mxu0 %v4200
      %4220 = vmatprep.subr.mxu0 0.0
      %4221 = vmatpush1.msra.mxu0 0.0
      %4222 = vmatprep.subr.mxu0 0.0
      %4223 = vmatpush1.msra.mxu0 0.0
      %4224 = vmatprep.subr.mxu0 0.0
      %4225 = vmatpush1.msra.mxu0 0.0
      %4226 = vmatprep.subr.mxu0 0.0
      %4227 = vmatpush1.msra.mxu0 0.0
      %4228 = vmatprep.subr.mxu0 0.0
      %4229 = vmatpush1.msra.mxu0 0.0
      %4230 = vmatprep.subr.mxu0 0.0
      %4231 = vmatpush1.msra.mxu0 0.0
      %4232 = vmatprep.subr.mxu0 0.0
      %4233 = vmatpush1.msra.mxu0 0.0
      %4234 = vmatprep.subr.mxu0 0.0
      %4235 = vmatpush1.msra.mxu0 0.0
      %4236 = vmatprep.subr.mxu0 0.0
      %4237 = vmatpush1.msra.mxu0 0.0
      %4238 = vmatprep.subr.mxu0 0.0
      %4239 = vmatpush1.msra.mxu0 0.0
      %4240 = vmatprep.subr.mxu0 0.0
      %4241 = vmatpush1.msra.mxu0 0.0
      %4242 = vmatprep.subr.mxu0 0.0
      %4243 = vmatpush1.msra.mxu0 0.0
      %4244 = vmatprep.subr.mxu0 0.0
      %4245 = vmatpush1.msra.mxu0 0.0
      %4246 = vmatprep.subr.mxu0 0.0
      %4247 = vmatpush1.msra.mxu0 0.0
      %4248 = vmatprep.subr.mxu0 0.0
      %4249 = vmatpush1.msra.mxu0 0.0
      %4250 = vmatprep.subr.mxu0 0.0
      %4251 = vmatpush1.msra.mxu0 0.0
      %4252 = vmatprep.subr.mxu0 0.0
      %4253 = vmatpush1.msra.mxu0 0.0
      %4254 = vmatprep.subr.mxu0 0.0
      %4255 = vmatpush1.msra.mxu0 0.0
      %4256 = vmatprep.subr.mxu0 0.0
      %4257 = vmatpush1.msra.mxu0 0.0
      %4258 = vmatprep.subr.mxu0 0.0
      %4259 = vmatpush1.msra.mxu0 0.0
      %4260 = vmatprep.subr.mxu0 0.0
      %4261 = vmatpush1.msra.mxu0 0.0
      %4262 = vmatprep.subr.mxu0 0.0
      %4263 = vmatpush1.msra.mxu0 0.0
      %4264 = vmatprep.subr.mxu0 0.0
      %4265 = vmatpush1.msra.mxu0 0.0
      %4266 = vmatprep.subr.mxu0 0.0
      %4267 = vmatpush1.msra.mxu0 0.0
      %4268 = vmatprep.subr.mxu0 0.0
      %4269 = vmatpush1.msra.mxu0 0.0
      %4270 = vmatprep.subr.mxu0 0.0
      %4271 = vmatpush1.msra.mxu0 0.0
      %4272 = vmatprep.subr.mxu0 0.0
      %4273 = vmatpush1.msra.mxu0 0.0
      %4274 = vmatprep.subr.mxu0 0.0
      %4275 = vmatpush1.msra.mxu0 0.0
      %4276 = vmatprep.subr.mxu0 0.0
      %4277 = vmatpush1.msra.mxu0 0.0
      %4278 = vmatprep.subr.mxu0 0.0
      %4279 = vmatpush1.msra.mxu0 0.0
      %4280 = vmatprep.mubr.f32.mxu0 0.0
      %4281 = vmatmul.mubr.f32.gmra.mrb[0].mxu0 %v4205
      %v4282 = vpop.f32.mrb[0].mxu0
      %v4283 = vadd.f32 0.0, %v4282
      %v4284 = vpop.f32.mrb[0].mxu0
      %v4285 = vadd.f32 0.0, %v4284
      %4286 = vmatprep.mubr.f32.mxu0 0.0
      %4287 = vmatmul.mubr.f32.gmra.mrb[0].mxu0 %v4208
      %v4288 = vpop.f32.mrb[0].mxu0
      %v4289 = vadd.f32 0.0, %v4288
      %v4290 = vpop.f32.mrb[0].mxu0
      %v4291 = vadd.f32 0.0, %v4290
      %4292 = vmatprep.mubr.f32.mxu0 0.0
      %4293 = vmatmul.mubr.f32.gmra.mrb[0].mxu0 %v4211
      %v4294 = vpop.f32.mrb[0].mxu0
      %v4295 = vadd.f32 0.0, %v4294
      %v4296 = vpop.f32.mrb[0].mxu0
      %v4297 = vadd.f32 0.0, %v4296
      %4298 = vmatprep.mubr.f32.mxu0 0.0
      %4299 = vmatmul.mubr.f32.gmra.mrb[0].mxu0 %v4214
      %v4300 = vpop.f32.mrb[0].mxu0
      %v4301 = vadd.f32 0.0, %v4300
      %v4302 = vpop.f32.mrb[0].mxu0
      %v4303 = vadd.f32 0.0, %v4302
      %4304 = vdwg.mxu0
      %4305 = vmatprep.subr.mxu0 %v4199
      %4306 = vmatpush1.msra.mxu0 %v4198
      %4307 = vmatprep.subr.mxu0 %v4203
      %4308 = vmatpush1.msra.mxu0 %v4202
      %4309 = vmatprep.subr.mxu0 0.0
      %4310 = vmatpush1.msra.mxu0 0.0
      %4311 = vmatprep.subr.mxu0 0.0
      %4312 = vmatpush1.msra.mxu0 0.0
      %4313 = vmatprep.subr.mxu0 0.0
      %4314 = vmatpush1.msra.mxu0 0.0
      %4315 = vmatprep.subr.mxu0 0.0
      %4316 = vmatpush1.msra.mxu0 0.0
      %4317 = vmatprep.subr.mxu0 0.0
      %4318 = vmatpush1.msra.mxu0 0.0
      %4319 = vmatprep.subr.mxu0 0.0
      %4320 = vmatpush1.msra.mxu0 0.0
      %4321 = vmatprep.subr.mxu0 0.0
      %4322 = vmatpush1.msra.mxu0 0.0
      %4323 = vmatprep.subr.mxu0 0.0
      %4324 = vmatpush1.msra.mxu0 0.0
      %4325 = vmatprep.subr.mxu0 0.0
      %4326 = vmatpush1.msra.mxu0 0.0
      %4327 = vmatprep.subr.mxu0 0.0
      %4328 = vmatpush1.msra.mxu0 0.0
      %4329 = vmatprep.subr.mxu0 0.0
      %4330 = vmatpush1.msra.mxu0 0.0
      %4331 = vmatprep.subr.mxu0 0.0
      %4332 = vmatpush1.msra.mxu0 0.0
      %4333 = vmatprep.subr.mxu0 0.0
      %4334 = vmatpush1.msra.mxu0 0.0
      %4335 = vmatprep.subr.mxu0 0.0
      %4336 = vmatpush1.msra.mxu0 0.0
      %4337 = vmatprep.subr.mxu0 0.0
      %4338 = vmatpush1.msra.mxu0 0.0
      %4339 = vmatprep.subr.mxu0 0.0
      %4340 = vmatpush1.msra.mxu0 0.0
      %4341 = vmatprep.subr.mxu0 0.0
      %4342 = vmatpush1.msra.mxu0 0.0
      %4343 = vmatprep.subr.mxu0 0.0
      %4344 = vmatpush1.msra.mxu0 0.0
      %4345 = vmatprep.subr.mxu0 0.0
      %4346 = vmatpush1.msra.mxu0 0.0
      %4347 = vmatprep.subr.mxu0 0.0
      %4348 = vmatpush1.msra.mxu0 0.0
      %4349 = vmatprep.subr.mxu0 0.0
      %4350 = vmatpush1.msra.mxu0 0.0
      %4351 = vmatprep.subr.mxu0 0.0
      %4352 = vmatpush1.msra.mxu0 0.0
      %4353 = vmatprep.subr.mxu0 0.0
      %4354 = vmatpush1.msra.mxu0 0.0
      %4355 = vmatprep.subr.mxu0 0.0
      %4356 = vmatpush1.msra.mxu0 0.0
      %4357 = vmatprep.subr.mxu0 0.0
      %4358 = vmatpush1.msra.mxu0 0.0
      %4359 = vmatprep.subr.mxu0 0.0
      %4360 = vmatpush1.msra.mxu0 0.0
      %4361 = vmatprep.subr.mxu0 0.0
      %4362 = vmatpush1.msra.mxu0 0.0
      %4363 = vmatprep.subr.mxu0 0.0
      %4364 = vmatpush1.msra.mxu0 0.0
      %4365 = vmatprep.subr.mxu0 0.0
      %4366 = vmatpush1.msra.mxu0 0.0
      %4367 = vmatprep.subr.mxu0 0.0
      %4368 = vmatpush1.msra.mxu0 0.0
      %4369 = vmatprep.mubr.f32.mxu0 0.0
      %4370 = vmatmul.mubr.f32.gmra.mrb[0].mxu0 %v4205
      %v4371 = vpop.f32.mrb[0].mxu0
      %v4372 = vadd.f32 0.0, %v4371
      %v4373 = vpop.f32.mrb[0].mxu0
      %v4374 = vadd.f32 0.0, %v4373
      %4375 = vmatprep.mubr.f32.mxu0 0.0
      %4376 = vmatmul.mubr.f32.gmra.mrb[0].mxu0 %v4208
      %v4377 = vpop.f32.mrb[0].mxu0
      %v4378 = vadd.f32 0.0, %v4377
      %v4379 = vpop.f32.mrb[0].mxu0
      %v4380 = vadd.f32 0.0, %v4379
      %4381 = vmatprep.mubr.f32.mxu0 0.0
      %4382 = vmatmul.mubr.f32.gmra.mrb[0].mxu0 %v4211
      %v4383 = vpop.f32.mrb[0].mxu0
      %v4384 = vadd.f32 0.0, %v4383
      %v4385 = vpop.f32.mrb[0].mxu0
      %v4386 = vadd.f32 0.0, %v4385
      %4387 = vmatprep.mubr.f32.mxu0 0.0
      %4388 = vmatmul.mubr.f32.gmra.mrb[0].mxu0 %v4214
      %v4389 = vpop.f32.mrb[0].mxu0
      %v4390 = vadd.f32 0.0, %v4389
      %v4391 = vpop.f32.mrb[0].mxu0
      %v4392 = vadd.f32 0.0, %v4391
      %4393 = vdwg.mxu0
      %v4394 = vld [vmem:[%s7] sm:$0xff]
      %v4395 = vld [vmem:[%s7 + $0x8] sm:$0xff]
      %v4396 = vld [vmem:[%s7 + $0x10] sm:$0xff]
      %v4397 = vld [vmem:[%s7 + $0x18] sm:$0xff]
      %v4398 = vld [vmem:[%s7 + $0x20] sm:$0xff]
      %v4399 = vld [vmem:[%s7 + $0x28] sm:$0xff]
      %v4400 = vld [vmem:[%s7 + $0x30] sm:$0xff]
      %v4401 = vld [vmem:[%s7 + $0x38] sm:$0xff]
      %v4402 = vld [vmem:[%s7 + $0x40] sm:$0xff]
      %v4403 = vld [vmem:[%s7 + $0x48] sm:$0xff]
      %v4404 = vld [vmem:[%s7 + $0x50] sm:$0xff]
      %v4405 = vld [vmem:[%s7 + $0x58] sm:$0xff]
      %v4406 = vld [vmem:[%s7 + $0x60] sm:$0xff]
      %v4407 = vld [vmem:[%s7 + $0x68] sm:$0xff]
      %v4408 = vld [vmem:[%s7 + $0x70] sm:$0xff]
      %v4409 = vld [vmem:[%s7 + $0x78] sm:$0xff]
      %v4410 = vld [vmem:[%s7 + $0x80] sm:$0xff]
      %v4411 = vld [vmem:[%s7 + $0x88] sm:$0xff]
      %v4412 = vld [vmem:[%s7 + $0x90] sm:$0xff]
      %v4413 = vld [vmem:[%s7 + $0x98] sm:$0xff]
      %v4414 = vld [vmem:[%s7 + $0xa0] sm:$0xff]
      %v4415 = vld [vmem:[%s7 + $0xa8] sm:$0xff]
      %v4416 = vld [vmem:[%s7 + $0xb0] sm:$0xff]
      %v4417 = vld [vmem:[%s7 + $0xb8] sm:$0xff]
      %v4418 = vld [vmem:[%s7 + $0xc0] sm:$0xff]
      %v4419 = vld [vmem:[%s7 + $0xc8] sm:$0xff]
      %v4420 = vld [vmem:[%s7 + $0xd0] sm:$0xff]
      %v4421 = vld [vmem:[%s7 + $0xd8] sm:$0xff]
      %v4422 = vld [vmem:[%s7 + $0xe0] sm:$0xff]
      %v4423 = vld [vmem:[%s7 + $0xe8] sm:$0xff]
      %v4424 = vld [vmem:[%s7 + $0xf0] sm:$0xff]
      %v4425 = vld [vmem:[%s7 + $0xf8] sm:$0xff]
      %v4426 = vld [vmem:[%s7 + $0x100] sm:$0xff]
      %v4427 = vld [vmem:[%s7 + $0x108] sm:$0xff]
      %v4428 = vld [vmem:[%s7 + $0x110] sm:$0xff]
      %v4429 = vld [vmem:[%s7 + $0x118] sm:$0xff]
      %v4430 = vld [vmem:[%s7 + $0x120] sm:$0xff]
      %v4431 = vld [vmem:[%s7 + $0x128] sm:$0xff]
      %v4432 = vld [vmem:[%s7 + $0x130] sm:$0xff]
      %v4433 = vld [vmem:[%s7 + $0x138] sm:$0xff]
      %v4434 = vld [vmem:[%s7 + $0x140] sm:$0xff]
      %v4435 = vld [vmem:[%s7 + $0x148] sm:$0xff]
      %v4436 = vld [vmem:[%s7 + $0x150] sm:$0xff]
      %v4437 = vld [vmem:[%s7 + $0x158] sm:$0xff]
      %v4438 = vld [vmem:[%s7 + $0x160] sm:$0xff]
      %v4439 = vld [vmem:[%s7 + $0x168] sm:$0xff]
      %v4440 = vld [vmem:[%s7 + $0x170] sm:$0xff]
      %v4441 = vld [vmem:[%s7 + $0x178] sm:$0xff]
      %v4442 = vld [vmem:[%s7 + $0x180] sm:$0xff]
      %v4443 = vld [vmem:[%s7 + $0x188] sm:$0xff]
      %v4444 = vld [vmem:[%s7 + $0x190] sm:$0xff]
      %v4445 = vld [vmem:[%s7 + $0x198] sm:$0xff]
      %v4446 = vld [vmem:[%s7 + $0x1a0] sm:$0xff]
      %v4447 = vld [vmem:[%s7 + $0x1a8] sm:$0xff]
      %v4448 = vld [vmem:[%s7 + $0x1b0] sm:$0xff]
      %v4449 = vld [vmem:[%s7 + $0x1b8] sm:$0xff]
      %v4450 = vld [vmem:[%s7 + $0x1c0] sm:$0xff]
      %v4451 = vld [vmem:[%s7 + $0x1c8] sm:$0xff]
      %v4452 = vld [vmem:[%s7 + $0x1d0] sm:$0xff]
      %v4453 = vld [vmem:[%s7 + $0x1d8] sm:$0xff]
      %v4454 = vld [vmem:[%s7 + $0x1e0] sm:$0xff]
      %v4455 = vld [vmem:[%s7 + $0x1e8] sm:$0xff]
      %v4456 = vld [vmem:[%s7 + $0x1f0] sm:$0xff]
      %v4457 = vld [vmem:[%s7 + $0x1f8] sm:$0xff]
      %v4458 = vld [vmem:[%s7 + $0x200] sm:$0xff]
      %v4459 = vld [vmem:[%s7 + $0x208] sm:$0xff]
      %v4460 = vld [vmem:[%s7 + $0x210] sm:$0xff]
      %v4461 = vld [vmem:[%s7 + $0x218] sm:$0xff]
      %v4462 = vld [vmem:[%s7 + $0x220] sm:$0xff]
      %v4463 = vld [vmem:[%s7 + $0x228] sm:$0xff]
      %v4464 = vld [vmem:[%s7 + $0x230] sm:$0xff]
      %v4465 = vld [vmem:[%s7 + $0x238] sm:$0xff]
      %v4466 = vld [vmem:[%s7 + $0x240] sm:$0xff]
      %v4467 = vld [vmem:[%s7 + $0x248] sm:$0xff]
      %v4468 = vld [vmem:[%s7 + $0x250] sm:$0xff]
      %v4469 = vld [vmem:[%s7 + $0x258] sm:$0xff]
      %v4470 = vld [vmem:[%s7 + $0x260] sm:$0xff]
      %v4471 = vld [vmem:[%s7 + $0x268] sm:$0xff]
      %v4472 = vld [vmem:[%s7 + $0x270] sm:$0xff]
      %v4473 = vld [vmem:[%s7 + $0x278] sm:$0xff]
      %v4474 = vld [vmem:[%s7 + $0x280] sm:$0xff]
      %v4475 = vld [vmem:[%s7 + $0x288] sm:$0xff]
      %v4476 = vld [vmem:[%s7 + $0x290] sm:$0xff]
      %v4477 = vld [vmem:[%s7 + $0x298] sm:$0xff]
      %v4478 = vld [vmem:[%s7 + $0x2a0] sm:$0xff]
      %v4479 = vld [vmem:[%s7 + $0x2a8] sm:$0xff]
      %v4480 = vld [vmem:[%s7 + $0x2b0] sm:$0xff]
      %v4481 = vld [vmem:[%s7 + $0x2b8] sm:$0xff]
      %v4482 = vld [vmem:[%s7 + $0x2c0] sm:$0xff]
      %v4483 = vld [vmem:[%s7 + $0x2c8] sm:$0xff]
      %v4484 = vld [vmem:[%s7 + $0x2d0] sm:$0xff]
      %v4485 = vld [vmem:[%s7 + $0x2d8] sm:$0xff]
      %v4486 = vld [vmem:[%s7 + $0x2e0] sm:$0xff]
      %v4487 = vld [vmem:[%s7 + $0x2e8] sm:$0xff]
      %v4488 = vld [vmem:[%s7 + $0x2f0] sm:$0xff]
      %v4489 = vld [vmem:[%s7 + $0x2f8] sm:$0xff]
      %v4490 = vld [vmem:[%s7 + $0x300] sm:$0xff]
      %v4491 = vld [vmem:[%s7 + $0x308] sm:$0xff]
      %v4492 = vld [vmem:[%s7 + $0x310] sm:$0xff]
      %v4493 = vld [vmem:[%s7 + $0x318] sm:$0xff]
      %v4494 = vld [vmem:[%s7 + $0x320] sm:$0xff]
      %v4495 = vld [vmem:[%s7 + $0x328] sm:$0xff]
      %v4496 = vld [vmem:[%s7 + $0x330] sm:$0xff]
      %v4497 = vld [vmem:[%s7 + $0x338] sm:$0xff]
      %v4498 = vld [vmem:[%s7 + $0x340] sm:$0xff]
      %v4499 = vld [vmem:[%s7 + $0x348] sm:$0xff]
      %v4500 = vld [vmem:[%s7 + $0x350] sm:$0xff]
      %v4501 = vld [vmem:[%s7 + $0x358] sm:$0xff]
      %v4502 = vld [vmem:[%s7 + $0x360] sm:$0xff]
      %v4503 = vld [vmem:[%s7 + $0x368] sm:$0xff]
      %v4504 = vld [vmem:[%s7 + $0x370] sm:$0xff]
      %v4505 = vld [vmem:[%s7 + $0x378] sm:$0xff]
      %v4506 = vld [vmem:[%s7 + $0x380] sm:$0xff]
      %v4507 = vld [vmem:[%s7 + $0x388] sm:$0xff]
      %v4508 = vld [vmem:[%s7 + $0x390] sm:$0xff]
      %v4509 = vld [vmem:[%s7 + $0x398] sm:$0xff]
      %v4510 = vld [vmem:[%s7 + $0x3a0] sm:$0xff]
      %v4511 = vld [vmem:[%s7 + $0x3a8] sm:$0xff]
      %v4512 = vld [vmem:[%s7 + $0x3b0] sm:$0xff]
      %v4513 = vld [vmem:[%s7 + $0x3b8] sm:$0xff]
      %v4514 = vld [vmem:[%s7 + $0x3c0] sm:$0xff]
      %v4515 = vld [vmem:[%s7 + $0x3c8] sm:$0xff]
      %v4516 = vld [vmem:[%s7 + $0x3d0] sm:$0xff]
      %v4517 = vld [vmem:[%s7 + $0x3d8] sm:$0xff]
      %v4518 = vld [vmem:[%s7 + $0x3e0] sm:$0xff]
      %v4519 = vld [vmem:[%s7 + $0x3e8] sm:$0xff]
      %v4520 = vld [vmem:[%s7 + $0x3f0] sm:$0xff]
      %v4521 = vld [vmem:[%s7 + $0x3f8] sm:$0xff]
      %v4522 = vld [vmem:[%s8] sm:$0x1]
      %4523 = vmatprep.subr.mxu0 0.0
      %4524 = vmatpush1.msra.mxu0 %v4394
      %4525 = vmatprep.subr.mxu0 0.0
      %4526 = vmatpush1.msra.mxu0 %v4395
      %4527 = vmatprep.subr.mxu0 0.0
      %4528 = vmatpush1.msra.mxu0 %v4396
      %4529 = vmatprep.subr.mxu0 0.0
      %4530 = vmatpush1.msra.mxu0 %v4397
      %4531 = vmatprep.subr.mxu0 0.0
      %4532 = vmatpush1.msra.mxu0 %v4398
      %4533 = vmatprep.subr.mxu0 0.0
      %4534 = vmatpush1.msra.mxu0 %v4399
      %4535 = vmatprep.subr.mxu0 0.0
      %4536 = vmatpush1.msra.mxu0 %v4400
      %4537 = vmatprep.subr.mxu0 0.0
      %4538 = vmatpush1.msra.mxu0 %v4401
      %4539 = vmatprep.subr.mxu0 0.0
      %4540 = vmatpush1.msra.mxu0 %v4402
      %4541 = vmatprep.subr.mxu0 0.0
      %4542 = vmatpush1.msra.mxu0 %v4403
      %4543 = vmatprep.subr.mxu0 0.0
      %4544 = vmatpush1.msra.mxu0 %v4404
      %4545 = vmatprep.subr.mxu0 0.0
      %4546 = vmatpush1.msra.mxu0 %v4405
      %4547 = vmatprep.subr.mxu0 0.0
      %4548 = vmatpush1.msra.mxu0 %v4406
      %4549 = vmatprep.subr.mxu0 0.0
      %4550 = vmatpush1.msra.mxu0 %v4407
      %4551 = vmatprep.subr.mxu0 0.0
      %4552 = vmatpush1.msra.mxu0 %v4408
      %4553 = vmatprep.subr.mxu0 0.0
      %4554 = vmatpush1.msra.mxu0 %v4409
      %4555 = vmatprep.subr.mxu0 0.0
      %4556 = vmatpush1.msra.mxu0 %v4410
      %4557 = vmatprep.subr.mxu0 0.0
      %4558 = vmatpush1.msra.mxu0 %v4411
      %4559 = vmatprep.subr.mxu0 0.0
      %4560 = vmatpush1.msra.mxu0 %v4412
      %4561 = vmatprep.subr.mxu0 0.0
      %4562 = vmatpush1.msra.mxu0 %v4413
      %4563 = vmatprep.subr.mxu0 0.0
      %4564 = vmatpush1.msra.mxu0 %v4414
      %4565 = vmatprep.subr.mxu0 0.0
      %4566 = vmatpush1.msra.mxu0 %v4415
      %4567 = vmatprep.subr.mxu0 0.0
      %4568 = vmatpush1.msra.mxu0 %v4416
      %4569 = vmatprep.subr.mxu0 0.0
      %4570 = vmatpush1.msra.mxu0 %v4417
      %4571 = vmatprep.subr.mxu0 0.0
      %4572 = vmatpush1.msra.mxu0 %v4418
      %4573 = vmatprep.subr.mxu0 0.0
      %4574 = vmatpush1.msra.mxu0 %v4419
      %4575 = vmatprep.subr.mxu0 0.0
      %4576 = vmatpush1.msra.mxu0 %v4420
      %4577 = vmatprep.subr.mxu0 0.0
      %4578 = vmatpush1.msra.mxu0 %v4421
      %4579 = vmatprep.subr.mxu0 0.0
      %4580 = vmatpush1.msra.mxu0 %v4422
      %4581 = vmatprep.subr.mxu0 0.0
      %4582 = vmatpush1.msra.mxu0 %v4423
      %4583 = vmatprep.subr.mxu0 0.0
      %4584 = vmatpush1.msra.mxu0 %v4424
      %4585 = vmatprep.subr.mxu0 0.0
      %4586 = vmatpush1.msra.mxu0 %v4425
      %4587 = vmatprep.mubr.f32.mxu0 %v4285
      %4588 = vmatmul.mubr.f32.gmra.mrb[0].mxu0 %v4283
      %v4589 = vpop.f32.mrb[0].mxu0
      %v4590 = vadd.f32 0.0, %v4589
      %v4591 = vpop.f32.mrb[0].mxu0
      %4592 = vdwg.mxu0
      %v4594 = vlaneseq
      %v4595 = vshrl.u32 %v4594, 7
      %v4596 = vsub.s32 0, %v4595
      %v4597 = vrot.slane %v4522, %v4596
      %v4599 = vadd.f32 %v4597, %v4590
      %v4604 = vrot.slane %v4283, 7
      %v4605 = vrot.slane %v4289, 7
      %v4606 = vsel %vm979, %v4604, %v4605
      %v4607 = vrot.slane %v4285, 7
      %v4608 = vrot.slane %v4291, 7
      %v4609 = vsel %vm979, %v4607, %v4608
      %4612 = vmatprep.subr.mxu0 0.0
      %4613 = vmatpush1.msra.mxu0 %v4426
      %4614 = vmatprep.subr.mxu0 0.0
      %4615 = vmatpush1.msra.mxu0 %v4427
      %4616 = vmatprep.subr.mxu0 0.0
      %4617 = vmatpush1.msra.mxu0 %v4428
      %4618 = vmatprep.subr.mxu0 0.0
      %4619 = vmatpush1.msra.mxu0 %v4429
      %4620 = vmatprep.subr.mxu0 0.0
      %4621 = vmatpush1.msra.mxu0 %v4430
      %4622 = vmatprep.subr.mxu0 0.0
      %4623 = vmatpush1.msra.mxu0 %v4431
      %4624 = vmatprep.subr.mxu0 0.0
      %4625 = vmatpush1.msra.mxu0 %v4432
      %4626 = vmatprep.subr.mxu0 0.0
      %4627 = vmatpush1.msra.mxu0 %v4433
      %4628 = vmatprep.subr.mxu0 0.0
      %4629 = vmatpush1.msra.mxu0 %v4434
      %4630 = vmatprep.subr.mxu0 0.0
      %4631 = vmatpush1.msra.mxu0 %v4435
      %4632 = vmatprep.subr.mxu0 0.0
      %4633 = vmatpush1.msra.mxu0 %v4436
      %4634 = vmatprep.subr.mxu0 0.0
      %4635 = vmatpush1.msra.mxu0 %v4437
      %4636 = vmatprep.subr.mxu0 0.0
      %4637 = vmatpush1.msra.mxu0 %v4438
      %4638 = vmatprep.subr.mxu0 0.0
      %4639 = vmatpush1.msra.mxu0 %v4439
      %4640 = vmatprep.subr.mxu0 0.0
      %4641 = vmatpush1.msra.mxu0 %v4440
      %4642 = vmatprep.subr.mxu0 0.0
      %4643 = vmatpush1.msra.mxu0 %v4441
      %4644 = vmatprep.subr.mxu0 0.0
      %4645 = vmatpush1.msra.mxu0 %v4442
      %4646 = vmatprep.subr.mxu0 0.0
      %4647 = vmatpush1.msra.mxu0 %v4443
      %4648 = vmatprep.subr.mxu0 0.0
      %4649 = vmatpush1.msra.mxu0 %v4444
      %4650 = vmatprep.subr.mxu0 0.0
      %4651 = vmatpush1.msra.mxu0 %v4445
      %4652 = vmatprep.subr.mxu0 0.0
      %4653 = vmatpush1.msra.mxu0 %v4446
      %4654 = vmatprep.subr.mxu0 0.0
      %4655 = vmatpush1.msra.mxu0 %v4447
      %4656 = vmatprep.subr.mxu0 0.0
      %4657 = vmatpush1.msra.mxu0 %v4448
      %4658 = vmatprep.subr.mxu0 0.0
      %4659 = vmatpush1.msra.mxu0 %v4449
      %4660 = vmatprep.subr.mxu0 0.0
      %4661 = vmatpush1.msra.mxu0 %v4450
      %4662 = vmatprep.subr.mxu0 0.0
      %4663 = vmatpush1.msra.mxu0 %v4451
      %4664 = vmatprep.subr.mxu0 0.0
      %4665 = vmatpush1.msra.mxu0 %v4452
      %4666 = vmatprep.subr.mxu0 0.0
      %4667 = vmatpush1.msra.mxu0 %v4453
      %4668 = vmatprep.subr.mxu0 0.0
      %4669 = vmatpush1.msra.mxu0 %v4454
      %4670 = vmatprep.subr.mxu0 0.0
      %4671 = vmatpush1.msra.mxu0 %v4455
      %4672 = vmatprep.subr.mxu0 0.0
      %4673 = vmatpush1.msra.mxu0 %v4456
      %4674 = vmatprep.subr.mxu0 0.0
      %4675 = vmatpush1.msra.mxu0 %v4457
      %4676 = vmatprep.mubr.f32.mxu0 %v4609
      %4677 = vmatmul.mubr.f32.gmra.mrb[0].mxu0 %v4606
      %v4678 = vpop.f32.mrb[0].mxu0
      %v4679 = vadd.f32 0.0, %v4678
      %v4680 = vpop.f32.mrb[0].mxu0
      %4681 = vdwg.mxu0
      %v4682 = vadd.f32 %v4599, %v4679
      %v4685 = vrot.slane %v4289, 6
      %v4686 = vrot.slane %v4295, 6
      %v4687 = vsel %vm1759, %v4685, %v4686
      %v4688 = vrot.slane %v4291, 6
      %v4689 = vrot.slane %v4297, 6
      %v4690 = vsel %vm1759, %v4688, %v4689
      %4693 = vmatprep.subr.mxu0 0.0
      %4694 = vmatpush1.msra.mxu0 %v4458
      %4695 = vmatprep.subr.mxu0 0.0
      %4696 = vmatpush1.msra.mxu0 %v4459
      %4697 = vmatprep.subr.mxu0 0.0
      %4698 = vmatpush1.msra.mxu0 %v4460
      %4699 = vmatprep.subr.mxu0 0.0
      %4700 = vmatpush1.msra.mxu0 %v4461
      %4701 = vmatprep.subr.mxu0 0.0
      %4702 = vmatpush1.msra.mxu0 %v4462
      %4703 = vmatprep.subr.mxu0 0.0
      %4704 = vmatpush1.msra.mxu0 %v4463
      %4705 = vmatprep.subr.mxu0 0.0
      %4706 = vmatpush1.msra.mxu0 %v4464
      %4707 = vmatprep.subr.mxu0 0.0
      %4708 = vmatpush1.msra.mxu0 %v4465
      %4709 = vmatprep.subr.mxu0 0.0
      %4710 = vmatpush1.msra.mxu0 %v4466
      %4711 = vmatprep.subr.mxu0 0.0
      %4712 = vmatpush1.msra.mxu0 %v4467
      %4713 = vmatprep.subr.mxu0 0.0
      %4714 = vmatpush1.msra.mxu0 %v4468
      %4715 = vmatprep.subr.mxu0 0.0
      %4716 = vmatpush1.msra.mxu0 %v4469
      %4717 = vmatprep.subr.mxu0 0.0
      %4718 = vmatpush1.msra.mxu0 %v4470
      %4719 = vmatprep.subr.mxu0 0.0
      %4720 = vmatpush1.msra.mxu0 %v4471
      %4721 = vmatprep.subr.mxu0 0.0
      %4722 = vmatpush1.msra.mxu0 %v4472
      %4723 = vmatprep.subr.mxu0 0.0
      %4724 = vmatpush1.msra.mxu0 %v4473
      %4725 = vmatprep.subr.mxu0 0.0
      %4726 = vmatpush1.msra.mxu0 %v4474
      %4727 = vmatprep.subr.mxu0 0.0
      %4728 = vmatpush1.msra.mxu0 %v4475
      %4729 = vmatprep.subr.mxu0 0.0
      %4730 = vmatpush1.msra.mxu0 %v4476
      %4731 = vmatprep.subr.mxu0 0.0
      %4732 = vmatpush1.msra.mxu0 %v4477
      %4733 = vmatprep.subr.mxu0 0.0
      %4734 = vmatpush1.msra.mxu0 %v4478
      %4735 = vmatprep.subr.mxu0 0.0
      %4736 = vmatpush1.msra.mxu0 %v4479
      %4737 = vmatprep.subr.mxu0 0.0
      %4738 = vmatpush1.msra.mxu0 %v4480
      %4739 = vmatprep.subr.mxu0 0.0
      %4740 = vmatpush1.msra.mxu0 %v4481
      %4741 = vmatprep.subr.mxu0 0.0
      %4742 = vmatpush1.msra.mxu0 %v4482
      %4743 = vmatprep.subr.mxu0 0.0
      %4744 = vmatpush1.msra.mxu0 %v4483
      %4745 = vmatprep.subr.mxu0 0.0
      %4746 = vmatpush1.msra.mxu0 %v4484
      %4747 = vmatprep.subr.mxu0 0.0
      %4748 = vmatpush1.msra.mxu0 %v4485
      %4749 = vmatprep.subr.mxu0 0.0
      %4750 = vmatpush1.msra.mxu0 %v4486
      %4751 = vmatprep.subr.mxu0 0.0
      %4752 = vmatpush1.msra.mxu0 %v4487
      %4753 = vmatprep.subr.mxu0 0.0
      %4754 = vmatpush1.msra.mxu0 %v4488
      %4755 = vmatprep.subr.mxu0 0.0
      %4756 = vmatpush1.msra.mxu0 %v4489
      %4757 = vmatprep.mubr.f32.mxu0 %v4690
      %4758 = vmatmul.mubr.f32.gmra.mrb[0].mxu0 %v4687
      %v4759 = vpop.f32.mrb[0].mxu0
      %v4760 = vadd.f32 0.0, %v4759
      %v4761 = vpop.f32.mrb[0].mxu0
      %4762 = vdwg.mxu0
      %v4763 = vadd.f32 %v4682, %v4760
      %vm4766 = vcmask 1042432
      %v4767 = vrot.slane %v4295, 5
      %v4768 = vrot.slane %v4301, 5
      %v4769 = vsel %vm4766, %v4767, %v4768
      %v4770 = vrot.slane %v4297, 5
      %v4771 = vrot.slane %v4303, 5
      %v4772 = vsel %vm4766, %v4770, %v4771
      %4775 = vmatprep.subr.mxu0 0.0
      %4776 = vmatpush1.msra.mxu0 %v4490
      %4777 = vmatprep.subr.mxu0 0.0
      %4778 = vmatpush1.msra.mxu0 %v4491
      %4779 = vmatprep.subr.mxu0 0.0
      %4780 = vmatpush1.msra.mxu0 %v4492
      %4781 = vmatprep.subr.mxu0 0.0
      %4782 = vmatpush1.msra.mxu0 %v4493
      %4783 = vmatprep.subr.mxu0 0.0
      %4784 = vmatpush1.msra.mxu0 %v4494
      %4785 = vmatprep.subr.mxu0 0.0
      %4786 = vmatpush1.msra.mxu0 %v4495
      %4787 = vmatprep.subr.mxu0 0.0
      %4788 = vmatpush1.msra.mxu0 %v4496
      %4789 = vmatprep.subr.mxu0 0.0
      %4790 = vmatpush1.msra.mxu0 %v4497
      %4791 = vmatprep.subr.mxu0 0.0
      %4792 = vmatpush1.msra.mxu0 %v4498
      %4793 = vmatprep.subr.mxu0 0.0
      %4794 = vmatpush1.msra.mxu0 %v4499
      %4795 = vmatprep.subr.mxu0 0.0
      %4796 = vmatpush1.msra.mxu0 %v4500
      %4797 = vmatprep.subr.mxu0 0.0
      %4798 = vmatpush1.msra.mxu0 %v4501
      %4799 = vmatprep.subr.mxu0 0.0
      %4800 = vmatpush1.msra.mxu0 %v4502
      %4801 = vmatprep.subr.mxu0 0.0
      %4802 = vmatpush1.msra.mxu0 %v4503
      %4803 = vmatprep.subr.mxu0 0.0
      %4804 = vmatpush1.msra.mxu0 %v4504
      %4805 = vmatprep.subr.mxu0 0.0
      %4806 = vmatpush1.msra.mxu0 %v4505
      %4807 = vmatprep.subr.mxu0 0.0
      %4808 = vmatpush1.msra.mxu0 %v4506
      %4809 = vmatprep.subr.mxu0 0.0
      %4810 = vmatpush1.msra.mxu0 %v4507
      %4811 = vmatprep.subr.mxu0 0.0
      %4812 = vmatpush1.msra.mxu0 %v4508
      %4813 = vmatprep.subr.mxu0 0.0
      %4814 = vmatpush1.msra.mxu0 %v4509
      %4815 = vmatprep.subr.mxu0 0.0
      %4816 = vmatpush1.msra.mxu0 %v4510
      %4817 = vmatprep.subr.mxu0 0.0
      %4818 = vmatpush1.msra.mxu0 %v4511
      %4819 = vmatprep.subr.mxu0 0.0
      %4820 = vmatpush1.msra.mxu0 %v4512
      %4821 = vmatprep.subr.mxu0 0.0
      %4822 = vmatpush1.msra.mxu0 %v4513
      %4823 = vmatprep.subr.mxu0 0.0
      %4824 = vmatpush1.msra.mxu0 %v4514
      %4825 = vmatprep.subr.mxu0 0.0
      %4826 = vmatpush1.msra.mxu0 %v4515
      %4827 = vmatprep.subr.mxu0 0.0
      %4828 = vmatpush1.msra.mxu0 %v4516
      %4829 = vmatprep.subr.mxu0 0.0
      %4830 = vmatpush1.msra.mxu0 %v4517
      %4831 = vmatprep.subr.mxu0 0.0
      %4832 = vmatpush1.msra.mxu0 %v4518
      %4833 = vmatprep.subr.mxu0 0.0
      %4834 = vmatpush1.msra.mxu0 %v4519
      %4835 = vmatprep.subr.mxu0 0.0
      %4836 = vmatpush1.msra.mxu0 %v4520
      %4837 = vmatprep.subr.mxu0 0.0
      %4838 = vmatpush1.msra.mxu0 %v4521
      %4839 = vmatprep.mubr.f32.mxu0 %v4772
      %4840 = vmatmul.mubr.f32.gmra.mrb[0].mxu0 %v4769
      %v4841 = vpop.f32.mrb[0].mxu0
      %v4842 = vadd.f32 0.0, %v4841
      %v4843 = vpop.f32.mrb[0].mxu0
      %4844 = vdwg.mxu0
      %v4845 = vadd.f32 %v4763, %v4842
      %v4846 = vmax.f32 %v4845, 0.0
      %v4847 = vlaneseq
      %vm4848 = vcmp.ge.s32.totalorder %v4847, 0
      %vm4849 = vcmp.lt.s32.totalorder %v4847, 128
      %vm4850 = vmand %vm4848, %vm4849
      %4851 = vst.msk [vmem:[#allocation4] sm:$0x1] %vm4850, %v4846
      %v4854 = vunpack.c.l.s4 1966171168
      %v4855 = vunpack.c.0.s8 %v4854
      %v4856 = vlaneseq
      %v4857 = vshrl.u32 %v4856, 7
      %v4858 = vsub.s32 %v4855, %v4857
      %v4859 = vrot.slane %v4846, %v4858
      %v4860 = vcombine.high %v4859, %v4859
      %v4862 = vunpack.c.l.s4 1966171168
      %v4863 = vunpack.c.0.s8 %v4862
      %v4864 = vlaneseq
      %v4865 = vshrl.u32 %v4864, 7
      %v4866 = vsub.s32 %v4863, %v4865
      %v4867 = vrot.slane %v4859, %v4866
      %v4869 = vunpack.c.l.s4 1966171168
      %v4870 = vunpack.c.0.s8 %v4869
      %v4871 = vlaneseq
      %v4872 = vshrl.u32 %v4871, 7
      %v4873 = vsub.s32 %v4870, %v4872
      %v4874 = vrot.slane %v4860, %v4873
      %4876 = vst.msk [vmem:[#allocation4 + $0x1] sm:$0x1] %vm4850, %v4874
      %v4877 = vcombine.high %v4867, %v4867
      %4879 = vst.msk [vmem:[#allocation4 + $0x2] sm:$0x1] %vm4850, %v4877
      %v4880 = vcombine.high %v4874, %v4874
      %4882 = vst.msk [vmem:[#allocation4 + $0x3] sm:$0x1] %vm4850, %v4880
      %v4883 = vcombine.high %v4846, %v4846
      %v4885 = vunpack.c.l.s4 1966171168
      %v4886 = vunpack.c.0.s8 %v4885
      %v4887 = vlaneseq
      %v4888 = vshrl.u32 %v4887, 7
      %v4889 = vsub.s32 %v4886, %v4888
      %v4890 = vrot.slane %v4883, %v4889
      %v4892 = vunpack.c.l.s4 1966171168
      %v4893 = vunpack.c.0.s8 %v4892
      %v4894 = vlaneseq
      %v4895 = vshrl.u32 %v4894, 7
      %v4896 = vsub.s32 %v4893, %v4895
      %v4897 = vrot.slane %v4890, %v4896
      %4899 = vst.msk [vmem:[#allocation4 + $0x4] sm:$0x1] %vm4850, %v4897
      %v4900 = vcombine.high %v4890, %v4890
      %v4902 = vunpack.c.l.s4 1966171168
      %v4903 = vunpack.c.0.s8 %v4902
      %v4904 = vlaneseq
      %v4905 = vshrl.u32 %v4904, 7
      %v4906 = vsub.s32 %v4903, %v4905
      %v4907 = vrot.slane %v4900, %v4906
      %4909 = vst.msk [vmem:[#allocation4 + $0x5] sm:$0x1] %vm4850, %v4907
      %v4910 = vcombine.high %v4897, %v4897
      %4912 = vst.msk [vmem:[#allocation4 + $0x6] sm:$0x1] %vm4850, %v4910
      %v4913 = vld [vmem:[%s8] sm:$0x1]
      %4914 = vmatprep.subr.mxu0 0.0
      %4915 = vmatpush1.msra.mxu0 %v4394
      %4916 = vmatprep.subr.mxu0 0.0
      %4917 = vmatpush1.msra.mxu0 %v4395
      %4918 = vmatprep.subr.mxu0 0.0
      %4919 = vmatpush1.msra.mxu0 %v4396
      %4920 = vmatprep.subr.mxu0 0.0
      %4921 = vmatpush1.msra.mxu0 %v4397
      %4922 = vmatprep.subr.mxu0 0.0
      %4923 = vmatpush1.msra.mxu0 %v4398
      %4924 = vmatprep.subr.mxu0 0.0
      %4925 = vmatpush1.msra.mxu0 %v4399
      %4926 = vmatprep.subr.mxu0 0.0
      %4927 = vmatpush1.msra.mxu0 %v4400
      %4928 = vmatprep.subr.mxu0 0.0
      %4929 = vmatpush1.msra.mxu0 %v4401
      %4930 = vmatprep.subr.mxu0 0.0
      %4931 = vmatpush1.msra.mxu0 %v4402
      %4932 = vmatprep.subr.mxu0 0.0
      %4933 = vmatpush1.msra.mxu0 %v4403
      %4934 = vmatprep.subr.mxu0 0.0
      %4935 = vmatpush1.msra.mxu0 %v4404
      %4936 = vmatprep.subr.mxu0 0.0
      %4937 = vmatpush1.msra.mxu0 %v4405
      %4938 = vmatprep.subr.mxu0 0.0
      %4939 = vmatpush1.msra.mxu0 %v4406
      %4940 = vmatprep.subr.mxu0 0.0
      %4941 = vmatpush1.msra.mxu0 %v4407
      %4942 = vmatprep.subr.mxu0 0.0
      %4943 = vmatpush1.msra.mxu0 %v4408
      %4944 = vmatprep.subr.mxu0 0.0
      %4945 = vmatpush1.msra.mxu0 %v4409
      %4946 = vmatprep.subr.mxu0 0.0
      %4947 = vmatpush1.msra.mxu0 %v4410
      %4948 = vmatprep.subr.mxu0 0.0
      %4949 = vmatpush1.msra.mxu0 %v4411
      %4950 = vmatprep.subr.mxu0 0.0
      %4951 = vmatpush1.msra.mxu0 %v4412
      %4952 = vmatprep.subr.mxu0 0.0
      %4953 = vmatpush1.msra.mxu0 %v4413
      %4954 = vmatprep.subr.mxu0 0.0
      %4955 = vmatpush1.msra.mxu0 %v4414
      %4956 = vmatprep.subr.mxu0 0.0
      %4957 = vmatpush1.msra.mxu0 %v4415
      %4958 = vmatprep.subr.mxu0 0.0
      %4959 = vmatpush1.msra.mxu0 %v4416
      %4960 = vmatprep.subr.mxu0 0.0
      %4961 = vmatpush1.msra.mxu0 %v4417
      %4962 = vmatprep.subr.mxu0 0.0
      %4963 = vmatpush1.msra.mxu0 %v4418
      %4964 = vmatprep.subr.mxu0 0.0
      %4965 = vmatpush1.msra.mxu0 %v4419
      %4966 = vmatprep.subr.mxu0 0.0
      %4967 = vmatpush1.msra.mxu0 %v4420
      %4968 = vmatprep.subr.mxu0 0.0
      %4969 = vmatpush1.msra.mxu0 %v4421
      %4970 = vmatprep.subr.mxu0 0.0
      %4971 = vmatpush1.msra.mxu0 %v4422
      %4972 = vmatprep.subr.mxu0 0.0
      %4973 = vmatpush1.msra.mxu0 %v4423
      %4974 = vmatprep.subr.mxu0 0.0
      %4975 = vmatpush1.msra.mxu0 %v4424
      %4976 = vmatprep.subr.mxu0 0.0
      %4977 = vmatpush1.msra.mxu0 %v4425
      %4978 = vmatprep.mubr.f32.mxu0 %v4372
      %4979 = vmatmul.mubr.f32.gmra.mrb[0].mxu0 %v4285
      %v4980 = vpop.f32.mrb[0].mxu0
      %v4981 = vadd.f32 0.0, %v4980
      %v4982 = vpop.f32.mrb[0].mxu0
      %4983 = vdwg.mxu0
      %v4985 = vlaneseq
      %v4986 = vshrl.u32 %v4985, 7
      %v4987 = vsub.s32 0, %v4986
      %v4988 = vrot.slane %v4913, %v4987
      %v4990 = vadd.f32 %v4988, %v4981
      %v4993 = vrot.slane %v4372, 7
      %v4994 = vrot.slane %v4378, 7
      %v4995 = vsel %vm979, %v4993, %v4994
      %4997 = vmatprep.subr.mxu0 0.0
      %4998 = vmatpush1.msra.mxu0 %v4426
      %4999 = vmatprep.subr.mxu0 0.0
      %5000 = vmatpush1.msra.mxu0 %v4427
      %5001 = vmatprep.subr.mxu0 0.0
      %5002 = vmatpush1.msra.mxu0 %v4428
      %5003 = vmatprep.subr.mxu0 0.0
      %5004 = vmatpush1.msra.mxu0 %v4429
      %5005 = vmatprep.subr.mxu0 0.0
      %5006 = vmatpush1.msra.mxu0 %v4430
      %5007 = vmatprep.subr.mxu0 0.0
      %5008 = vmatpush1.msra.mxu0 %v4431
      %5009 = vmatprep.subr.mxu0 0.0
      %5010 = vmatpush1.msra.mxu0 %v4432
      %5011 = vmatprep.subr.mxu0 0.0
      %5012 = vmatpush1.msra.mxu0 %v4433
      %5013 = vmatprep.subr.mxu0 0.0
      %5014 = vmatpush1.msra.mxu0 %v4434
      %5015 = vmatprep.subr.mxu0 0.0
      %5016 = vmatpush1.msra.mxu0 %v4435
      %5017 = vmatprep.subr.mxu0 0.0
      %5018 = vmatpush1.msra.mxu0 %v4436
      %5019 = vmatprep.subr.mxu0 0.0
      %5020 = vmatpush1.msra.mxu0 %v4437
      %5021 = vmatprep.subr.mxu0 0.0
      %5022 = vmatpush1.msra.mxu0 %v4438
      %5023 = vmatprep.subr.mxu0 0.0
      %5024 = vmatpush1.msra.mxu0 %v4439
      %5025 = vmatprep.subr.mxu0 0.0
      %5026 = vmatpush1.msra.mxu0 %v4440
      %5027 = vmatprep.subr.mxu0 0.0
      %5028 = vmatpush1.msra.mxu0 %v4441
      %5029 = vmatprep.subr.mxu0 0.0
      %5030 = vmatpush1.msra.mxu0 %v4442
      %5031 = vmatprep.subr.mxu0 0.0
      %5032 = vmatpush1.msra.mxu0 %v4443
      %5033 = vmatprep.subr.mxu0 0.0
      %5034 = vmatpush1.msra.mxu0 %v4444
      %5035 = vmatprep.subr.mxu0 0.0
      %5036 = vmatpush1.msra.mxu0 %v4445
      %5037 = vmatprep.subr.mxu0 0.0
      %5038 = vmatpush1.msra.mxu0 %v4446
      %5039 = vmatprep.subr.mxu0 0.0
      %5040 = vmatpush1.msra.mxu0 %v4447
      %5041 = vmatprep.subr.mxu0 0.0
      %5042 = vmatpush1.msra.mxu0 %v4448
      %5043 = vmatprep.subr.mxu0 0.0
      %5044 = vmatpush1.msra.mxu0 %v4449
      %5045 = vmatprep.subr.mxu0 0.0
      %5046 = vmatpush1.msra.mxu0 %v4450
      %5047 = vmatprep.subr.mxu0 0.0
      %5048 = vmatpush1.msra.mxu0 %v4451
      %5049 = vmatprep.subr.mxu0 0.0
      %5050 = vmatpush1.msra.mxu0 %v4452
      %5051 = vmatprep.subr.mxu0 0.0
      %5052 = vmatpush1.msra.mxu0 %v4453
      %5053 = vmatprep.subr.mxu0 0.0
      %5054 = vmatpush1.msra.mxu0 %v4454
      %5055 = vmatprep.subr.mxu0 0.0
      %5056 = vmatpush1.msra.mxu0 %v4455
      %5057 = vmatprep.subr.mxu0 0.0
      %5058 = vmatpush1.msra.mxu0 %v4456
      %5059 = vmatprep.subr.mxu0 0.0
      %5060 = vmatpush1.msra.mxu0 %v4457
      %5061 = vmatprep.mubr.f32.mxu0 %v4995
      %5062 = vmatmul.mubr.f32.gmra.mrb[0].mxu0 %v4609
      %v5063 = vpop.f32.mrb[0].mxu0
      %v5064 = vadd.f32 0.0, %v5063
      %v5065 = vpop.f32.mrb[0].mxu0
      %5066 = vdwg.mxu0
      %v5067 = vadd.f32 %v4990, %v5064
      %v5069 = vrot.slane %v4378, 6
      %v5070 = vrot.slane %v4384, 6
      %v5071 = vsel %vm1759, %v5069, %v5070
      %5073 = vmatprep.subr.mxu0 0.0
      %5074 = vmatpush1.msra.mxu0 %v4458
      %5075 = vmatprep.subr.mxu0 0.0
      %5076 = vmatpush1.msra.mxu0 %v4459
      %5077 = vmatprep.subr.mxu0 0.0
      %5078 = vmatpush1.msra.mxu0 %v4460
      %5079 = vmatprep.subr.mxu0 0.0
      %5080 = vmatpush1.msra.mxu0 %v4461
      %5081 = vmatprep.subr.mxu0 0.0
      %5082 = vmatpush1.msra.mxu0 %v4462
      %5083 = vmatprep.subr.mxu0 0.0
      %5084 = vmatpush1.msra.mxu0 %v4463
      %5085 = vmatprep.subr.mxu0 0.0
      %5086 = vmatpush1.msra.mxu0 %v4464
      %5087 = vmatprep.subr.mxu0 0.0
      %5088 = vmatpush1.msra.mxu0 %v4465
      %5089 = vmatprep.subr.mxu0 0.0
      %5090 = vmatpush1.msra.mxu0 %v4466
      %5091 = vmatprep.subr.mxu0 0.0
      %5092 = vmatpush1.msra.mxu0 %v4467
      %5093 = vmatprep.subr.mxu0 0.0
      %5094 = vmatpush1.msra.mxu0 %v4468
      %5095 = vmatprep.subr.mxu0 0.0
      %5096 = vmatpush1.msra.mxu0 %v4469
      %5097 = vmatprep.subr.mxu0 0.0
      %5098 = vmatpush1.msra.mxu0 %v4470
      %5099 = vmatprep.subr.mxu0 0.0
      %5100 = vmatpush1.msra.mxu0 %v4471
      %5101 = vmatprep.subr.mxu0 0.0
      %5102 = vmatpush1.msra.mxu0 %v4472
      %5103 = vmatprep.subr.mxu0 0.0
      %5104 = vmatpush1.msra.mxu0 %v4473
      %5105 = vmatprep.subr.mxu0 0.0
      %5106 = vmatpush1.msra.mxu0 %v4474
      %5107 = vmatprep.subr.mxu0 0.0
      %5108 = vmatpush1.msra.mxu0 %v4475
      %5109 = vmatprep.subr.mxu0 0.0
      %5110 = vmatpush1.msra.mxu0 %v4476
      %5111 = vmatprep.subr.mxu0 0.0
      %5112 = vmatpush1.msra.mxu0 %v4477
      %5113 = vmatprep.subr.mxu0 0.0
      %5114 = vmatpush1.msra.mxu0 %v4478
      %5115 = vmatprep.subr.mxu0 0.0
      %5116 = vmatpush1.msra.mxu0 %v4479
      %5117 = vmatprep.subr.mxu0 0.0
      %5118 = vmatpush1.msra.mxu0 %v4480
      %5119 = vmatprep.subr.mxu0 0.0
      %5120 = vmatpush1.msra.mxu0 %v4481
      %5121 = vmatprep.subr.mxu0 0.0
      %5122 = vmatpush1.msra.mxu0 %v4482
      %5123 = vmatprep.subr.mxu0 0.0
      %5124 = vmatpush1.msra.mxu0 %v4483
      %5125 = vmatprep.subr.mxu0 0.0
      %5126 = vmatpush1.msra.mxu0 %v4484
      %5127 = vmatprep.subr.mxu0 0.0
      %5128 = vmatpush1.msra.mxu0 %v4485
      %5129 = vmatprep.subr.mxu0 0.0
      %5130 = vmatpush1.msra.mxu0 %v4486
      %5131 = vmatprep.subr.mxu0 0.0
      %5132 = vmatpush1.msra.mxu0 %v4487
      %5133 = vmatprep.subr.mxu0 0.0
      %5134 = vmatpush1.msra.mxu0 %v4488
      %5135 = vmatprep.subr.mxu0 0.0
      %5136 = vmatpush1.msra.mxu0 %v4489
      %5137 = vmatprep.mubr.f32.mxu0 %v5071
      %5138 = vmatmul.mubr.f32.gmra.mrb[0].mxu0 %v4690
      %v5139 = vpop.f32.mrb[0].mxu0
      %v5140 = vadd.f32 0.0, %v5139
      %v5141 = vpop.f32.mrb[0].mxu0
      %5142 = vdwg.mxu0
      %v5143 = vadd.f32 %v5067, %v5140
      %v5145 = vrot.slane %v4384, 5
      %v5146 = vrot.slane %v4390, 5
      %v5147 = vsel %vm4766, %v5145, %v5146
      %5149 = vmatprep.subr.mxu0 0.0
      %5150 = vmatpush1.msra.mxu0 %v4490
      %5151 = vmatprep.subr.mxu0 0.0
      %5152 = vmatpush1.msra.mxu0 %v4491
      %5153 = vmatprep.subr.mxu0 0.0
      %5154 = vmatpush1.msra.mxu0 %v4492
      %5155 = vmatprep.subr.mxu0 0.0
      %5156 = vmatpush1.msra.mxu0 %v4493
      %5157 = vmatprep.subr.mxu0 0.0
      %5158 = vmatpush1.msra.mxu0 %v4494
      %5159 = vmatprep.subr.mxu0 0.0
      %5160 = vmatpush1.msra.mxu0 %v4495
      %5161 = vmatprep.subr.mxu0 0.0
      %5162 = vmatpush1.msra.mxu0 %v4496
      %5163 = vmatprep.subr.mxu0 0.0
      %5164 = vmatpush1.msra.mxu0 %v4497
      %5165 = vmatprep.subr.mxu0 0.0
      %5166 = vmatpush1.msra.mxu0 %v4498
      %5167 = vmatprep.subr.mxu0 0.0
      %5168 = vmatpush1.msra.mxu0 %v4499
      %5169 = vmatprep.subr.mxu0 0.0
      %5170 = vmatpush1.msra.mxu0 %v4500
      %5171 = vmatprep.subr.mxu0 0.0
      %5172 = vmatpush1.msra.mxu0 %v4501
      %5173 = vmatprep.subr.mxu0 0.0
      %5174 = vmatpush1.msra.mxu0 %v4502
      %5175 = vmatprep.subr.mxu0 0.0
      %5176 = vmatpush1.msra.mxu0 %v4503
      %5177 = vmatprep.subr.mxu0 0.0
      %5178 = vmatpush1.msra.mxu0 %v4504
      %5179 = vmatprep.subr.mxu0 0.0
      %5180 = vmatpush1.msra.mxu0 %v4505
      %5181 = vmatprep.subr.mxu0 0.0
      %5182 = vmatpush1.msra.mxu0 %v4506
      %5183 = vmatprep.subr.mxu0 0.0
      %5184 = vmatpush1.msra.mxu0 %v4507
      %5185 = vmatprep.subr.mxu0 0.0
      %5186 = vmatpush1.msra.mxu0 %v4508
      %5187 = vmatprep.subr.mxu0 0.0
      %5188 = vmatpush1.msra.mxu0 %v4509
      %5189 = vmatprep.subr.mxu0 0.0
      %5190 = vmatpush1.msra.mxu0 %v4510
      %5191 = vmatprep.subr.mxu0 0.0
      %5192 = vmatpush1.msra.mxu0 %v4511
      %5193 = vmatprep.subr.mxu0 0.0
      %5194 = vmatpush1.msra.mxu0 %v4512
      %5195 = vmatprep.subr.mxu0 0.0
      %5196 = vmatpush1.msra.mxu0 %v4513
      %5197 = vmatprep.subr.mxu0 0.0
      %5198 = vmatpush1.msra.mxu0 %v4514
      %5199 = vmatprep.subr.mxu0 0.0
      %5200 = vmatpush1.msra.mxu0 %v4515
      %5201 = vmatprep.subr.mxu0 0.0
      %5202 = vmatpush1.msra.mxu0 %v4516
      %5203 = vmatprep.subr.mxu0 0.0
      %5204 = vmatpush1.msra.mxu0 %v4517
      %5205 = vmatprep.subr.mxu0 0.0
      %5206 = vmatpush1.msra.mxu0 %v4518
      %5207 = vmatprep.subr.mxu0 0.0
      %5208 = vmatpush1.msra.mxu0 %v4519
      %5209 = vmatprep.subr.mxu0 0.0
      %5210 = vmatpush1.msra.mxu0 %v4520
      %5211 = vmatprep.subr.mxu0 0.0
      %5212 = vmatpush1.msra.mxu0 %v4521
      %5213 = vmatprep.mubr.f32.mxu0 %v5147
      %5214 = vmatmul.mubr.f32.gmra.mrb[0].mxu0 %v4772
      %v5215 = vpop.f32.mrb[0].mxu0
      %v5216 = vadd.f32 0.0, %v5215
      %v5217 = vpop.f32.mrb[0].mxu0
      %5218 = vdwg.mxu0
      %v5219 = vadd.f32 %v5143, %v5216
      %v5220 = vmax.f32 %v5219, 0.0
      %5221 = vst.msk [vmem:[#allocation4 + $0x7] sm:$0x1] %vm4850, %v5220
      %v5224 = vunpack.c.l.s4 1966171168
      %v5225 = vunpack.c.0.s8 %v5224
      %v5226 = vlaneseq
      %v5227 = vshrl.u32 %v5226, 7
      %v5228 = vsub.s32 %v5225, %v5227
      %v5229 = vrot.slane %v5220, %v5228
      %v5230 = vcombine.high %v5229, %v5229
      %v5232 = vunpack.c.l.s4 1966171168
      %v5233 = vunpack.c.0.s8 %v5232
      %v5234 = vlaneseq
      %v5235 = vshrl.u32 %v5234, 7
      %v5236 = vsub.s32 %v5233, %v5235
      %v5237 = vrot.slane %v5229, %v5236
      %v5239 = vunpack.c.l.s4 1966171168
      %v5240 = vunpack.c.0.s8 %v5239
      %v5241 = vlaneseq
      %v5242 = vshrl.u32 %v5241, 7
      %v5243 = vsub.s32 %v5240, %v5242
      %v5244 = vrot.slane %v5230, %v5243
      %5246 = vst.msk [vmem:[#allocation4 + $0x8] sm:$0x1] %vm4850, %v5244
      %v5247 = vcombine.high %v5237, %v5237
      %5249 = vst.msk [vmem:[#allocation4 + $0x9] sm:$0x1] %vm4850, %v5247
      %v5250 = vcombine.high %v5244, %v5244
      %5252 = vst.msk [vmem:[#allocation4 + $0xa] sm:$0x1] %vm4850, %v5250
      %v5253 = vcombine.high %v5220, %v5220
      %v5255 = vunpack.c.l.s4 1966171168
      %v5256 = vunpack.c.0.s8 %v5255
      %v5257 = vlaneseq
      %v5258 = vshrl.u32 %v5257, 7
      %v5259 = vsub.s32 %v5256, %v5258
      %v5260 = vrot.slane %v5253, %v5259
      %v5262 = vunpack.c.l.s4 1966171168
      %v5263 = vunpack.c.0.s8 %v5262
      %v5264 = vlaneseq
      %v5265 = vshrl.u32 %v5264, 7
      %v5266 = vsub.s32 %v5263, %v5265
      %v5267 = vrot.slane %v5260, %v5266
      %5269 = vst.msk [vmem:[#allocation4 + $0xb] sm:$0x1] %vm4850, %v5267
      %v5270 = vcombine.high %v5260, %v5260
      %v5272 = vunpack.c.l.s4 1966171168
      %v5273 = vunpack.c.0.s8 %v5272
      %v5274 = vlaneseq
      %v5275 = vshrl.u32 %v5274, 7
      %v5276 = vsub.s32 %v5273, %v5275
      %v5277 = vrot.slane %v5270, %v5276
      %5279 = vst.msk [vmem:[#allocation4 + $0xc] sm:$0x1] %vm4850, %v5277
      %v5280 = vcombine.high %v5267, %v5267
      %5282 = vst.msk [vmem:[#allocation4 + $0xd] sm:$0x1] %vm4850, %v5280
      %v5283 = vld [vmem:[%s8] sm:$0x1]
      %5284 = vmatprep.subr.mxu0 0.0
      %5285 = vmatpush1.msra.mxu0 %v4394
      %5286 = vmatprep.subr.mxu0 0.0
      %5287 = vmatpush1.msra.mxu0 %v4395
      %5288 = vmatprep.subr.mxu0 0.0
      %5289 = vmatpush1.msra.mxu0 %v4396
      %5290 = vmatprep.subr.mxu0 0.0
      %5291 = vmatpush1.msra.mxu0 %v4397
      %5292 = vmatprep.subr.mxu0 0.0
      %5293 = vmatpush1.msra.mxu0 %v4398
      %5294 = vmatprep.subr.mxu0 0.0
      %5295 = vmatpush1.msra.mxu0 %v4399
      %5296 = vmatprep.subr.mxu0 0.0
      %5297 = vmatpush1.msra.mxu0 %v4400
      %5298 = vmatprep.subr.mxu0 0.0
      %5299 = vmatpush1.msra.mxu0 %v4401
      %5300 = vmatprep.subr.mxu0 0.0
      %5301 = vmatpush1.msra.mxu0 %v4402
      %5302 = vmatprep.subr.mxu0 0.0
      %5303 = vmatpush1.msra.mxu0 %v4403
      %5304 = vmatprep.subr.mxu0 0.0
      %5305 = vmatpush1.msra.mxu0 %v4404
      %5306 = vmatprep.subr.mxu0 0.0
      %5307 = vmatpush1.msra.mxu0 %v4405
      %5308 = vmatprep.subr.mxu0 0.0
      %5309 = vmatpush1.msra.mxu0 %v4406
      %5310 = vmatprep.subr.mxu0 0.0
      %5311 = vmatpush1.msra.mxu0 %v4407
      %5312 = vmatprep.subr.mxu0 0.0
      %5313 = vmatpush1.msra.mxu0 %v4408
      %5314 = vmatprep.subr.mxu0 0.0
      %5315 = vmatpush1.msra.mxu0 %v4409
      %5316 = vmatprep.subr.mxu0 0.0
      %5317 = vmatpush1.msra.mxu0 %v4410
      %5318 = vmatprep.subr.mxu0 0.0
      %5319 = vmatpush1.msra.mxu0 %v4411
      %5320 = vmatprep.subr.mxu0 0.0
      %5321 = vmatpush1.msra.mxu0 %v4412
      %5322 = vmatprep.subr.mxu0 0.0
      %5323 = vmatpush1.msra.mxu0 %v4413
      %5324 = vmatprep.subr.mxu0 0.0
      %5325 = vmatpush1.msra.mxu0 %v4414
      %5326 = vmatprep.subr.mxu0 0.0
      %5327 = vmatpush1.msra.mxu0 %v4415
      %5328 = vmatprep.subr.mxu0 0.0
      %5329 = vmatpush1.msra.mxu0 %v4416
      %5330 = vmatprep.subr.mxu0 0.0
      %5331 = vmatpush1.msra.mxu0 %v4417
      %5332 = vmatprep.subr.mxu0 0.0
      %5333 = vmatpush1.msra.mxu0 %v4418
      %5334 = vmatprep.subr.mxu0 0.0
      %5335 = vmatpush1.msra.mxu0 %v4419
      %5336 = vmatprep.subr.mxu0 0.0
      %5337 = vmatpush1.msra.mxu0 %v4420
      %5338 = vmatprep.subr.mxu0 0.0
      %5339 = vmatpush1.msra.mxu0 %v4421
      %5340 = vmatprep.subr.mxu0 0.0
      %5341 = vmatpush1.msra.mxu0 %v4422
      %5342 = vmatprep.subr.mxu0 0.0
      %5343 = vmatpush1.msra.mxu0 %v4423
      %5344 = vmatprep.subr.mxu0 0.0
      %5345 = vmatpush1.msra.mxu0 %v4424
      %5346 = vmatprep.subr.mxu0 0.0
      %5347 = vmatpush1.msra.mxu0 %v4425
      %5348 = vmatprep.mubr.f32.mxu0 %v4374
      %5349 = vmatmul.mubr.f32.gmra.mrb[0].mxu0 %v4372
      %v5350 = vpop.f32.mrb[0].mxu0
      %v5351 = vadd.f32 0.0, %v5350
      %v5352 = vpop.f32.mrb[0].mxu0
      %5353 = vdwg.mxu0
      %v5355 = vlaneseq
      %v5356 = vshrl.u32 %v5355, 7
      %v5357 = vsub.s32 0, %v5356
      %v5358 = vrot.slane %v5283, %v5357
      %v5360 = vadd.f32 %v5358, %v5351
      %v5363 = vrot.slane %v4374, 7
      %v5364 = vrot.slane %v4380, 7
      %v5365 = vsel %vm979, %v5363, %v5364
      %5367 = vmatprep.subr.mxu0 0.0
      %5368 = vmatpush1.msra.mxu0 %v4426
      %5369 = vmatprep.subr.mxu0 0.0
      %5370 = vmatpush1.msra.mxu0 %v4427
      %5371 = vmatprep.subr.mxu0 0.0
      %5372 = vmatpush1.msra.mxu0 %v4428
      %5373 = vmatprep.subr.mxu0 0.0
      %5374 = vmatpush1.msra.mxu0 %v4429
      %5375 = vmatprep.subr.mxu0 0.0
      %5376 = vmatpush1.msra.mxu0 %v4430
      %5377 = vmatprep.subr.mxu0 0.0
      %5378 = vmatpush1.msra.mxu0 %v4431
      %5379 = vmatprep.subr.mxu0 0.0
      %5380 = vmatpush1.msra.mxu0 %v4432
      %5381 = vmatprep.subr.mxu0 0.0
      %5382 = vmatpush1.msra.mxu0 %v4433
      %5383 = vmatprep.subr.mxu0 0.0
      %5384 = vmatpush1.msra.mxu0 %v4434
      %5385 = vmatprep.subr.mxu0 0.0
      %5386 = vmatpush1.msra.mxu0 %v4435
      %5387 = vmatprep.subr.mxu0 0.0
      %5388 = vmatpush1.msra.mxu0 %v4436
      %5389 = vmatprep.subr.mxu0 0.0
      %5390 = vmatpush1.msra.mxu0 %v4437
      %5391 = vmatprep.subr.mxu0 0.0
      %5392 = vmatpush1.msra.mxu0 %v4438
      %5393 = vmatprep.subr.mxu0 0.0
      %5394 = vmatpush1.msra.mxu0 %v4439
      %5395 = vmatprep.subr.mxu0 0.0
      %5396 = vmatpush1.msra.mxu0 %v4440
      %5397 = vmatprep.subr.mxu0 0.0
      %5398 = vmatpush1.msra.mxu0 %v4441
      %5399 = vmatprep.subr.mxu0 0.0
      %5400 = vmatpush1.msra.mxu0 %v4442
      %5401 = vmatprep.subr.mxu0 0.0
      %5402 = vmatpush1.msra.mxu0 %v4443
      %5403 = vmatprep.subr.mxu0 0.0
      %5404 = vmatpush1.msra.mxu0 %v4444
      %5405 = vmatprep.subr.mxu0 0.0
      %5406 = vmatpush1.msra.mxu0 %v4445
      %5407 = vmatprep.subr.mxu0 0.0
      %5408 = vmatpush1.msra.mxu0 %v4446
      %5409 = vmatprep.subr.mxu0 0.0
      %5410 = vmatpush1.msra.mxu0 %v4447
      %5411 = vmatprep.subr.mxu0 0.0
      %5412 = vmatpush1.msra.mxu0 %v4448
      %5413 = vmatprep.subr.mxu0 0.0
      %5414 = vmatpush1.msra.mxu0 %v4449
      %5415 = vmatprep.subr.mxu0 0.0
      %5416 = vmatpush1.msra.mxu0 %v4450
      %5417 = vmatprep.subr.mxu0 0.0
      %5418 = vmatpush1.msra.mxu0 %v4451
      %5419 = vmatprep.subr.mxu0 0.0
      %5420 = vmatpush1.msra.mxu0 %v4452
      %5421 = vmatprep.subr.mxu0 0.0
      %5422 = vmatpush1.msra.mxu0 %v4453
      %5423 = vmatprep.subr.mxu0 0.0
      %5424 = vmatpush1.msra.mxu0 %v4454
      %5425 = vmatprep.subr.mxu0 0.0
      %5426 = vmatpush1.msra.mxu0 %v4455
      %5427 = vmatprep.subr.mxu0 0.0
      %5428 = vmatpush1.msra.mxu0 %v4456
      %5429 = vmatprep.subr.mxu0 0.0
      %5430 = vmatpush1.msra.mxu0 %v4457
      %5431 = vmatprep.mubr.f32.mxu0 %v5365
      %5432 = vmatmul.mubr.f32.gmra.mrb[0].mxu0 %v4995
      %v5433 = vpop.f32.mrb[0].mxu0
      %v5434 = vadd.f32 0.0, %v5433
      %v5435 = vpop.f32.mrb[0].mxu0
      %5436 = vdwg.mxu0
      %v5437 = vadd.f32 %v5360, %v5434
      %v5439 = vrot.slane %v4380, 6
      %v5440 = vrot.slane %v4386, 6
      %v5441 = vsel %vm1759, %v5439, %v5440
      %5443 = vmatprep.subr.mxu0 0.0
      %5444 = vmatpush1.msra.mxu0 %v4458
      %5445 = vmatprep.subr.mxu0 0.0
      %5446 = vmatpush1.msra.mxu0 %v4459
      %5447 = vmatprep.subr.mxu0 0.0
      %5448 = vmatpush1.msra.mxu0 %v4460
      %5449 = vmatprep.subr.mxu0 0.0
      %5450 = vmatpush1.msra.mxu0 %v4461
      %5451 = vmatprep.subr.mxu0 0.0
      %5452 = vmatpush1.msra.mxu0 %v4462
      %5453 = vmatprep.subr.mxu0 0.0
      %5454 = vmatpush1.msra.mxu0 %v4463
      %5455 = vmatprep.subr.mxu0 0.0
      %5456 = vmatpush1.msra.mxu0 %v4464
      %5457 = vmatprep.subr.mxu0 0.0
      %5458 = vmatpush1.msra.mxu0 %v4465
      %5459 = vmatprep.subr.mxu0 0.0
      %5460 = vmatpush1.msra.mxu0 %v4466
      %5461 = vmatprep.subr.mxu0 0.0
      %5462 = vmatpush1.msra.mxu0 %v4467
      %5463 = vmatprep.subr.mxu0 0.0
      %5464 = vmatpush1.msra.mxu0 %v4468
      %5465 = vmatprep.subr.mxu0 0.0
      %5466 = vmatpush1.msra.mxu0 %v4469
      %5467 = vmatprep.subr.mxu0 0.0
      %5468 = vmatpush1.msra.mxu0 %v4470
      %5469 = vmatprep.subr.mxu0 0.0
      %5470 = vmatpush1.msra.mxu0 %v4471
      %5471 = vmatprep.subr.mxu0 0.0
      %5472 = vmatpush1.msra.mxu0 %v4472
      %5473 = vmatprep.subr.mxu0 0.0
      %5474 = vmatpush1.msra.mxu0 %v4473
      %5475 = vmatprep.subr.mxu0 0.0
      %5476 = vmatpush1.msra.mxu0 %v4474
      %5477 = vmatprep.subr.mxu0 0.0
      %5478 = vmatpush1.msra.mxu0 %v4475
      %5479 = vmatprep.subr.mxu0 0.0
      %5480 = vmatpush1.msra.mxu0 %v4476
      %5481 = vmatprep.subr.mxu0 0.0
      %5482 = vmatpush1.msra.mxu0 %v4477
      %5483 = vmatprep.subr.mxu0 0.0
      %5484 = vmatpush1.msra.mxu0 %v4478
      %5485 = vmatprep.subr.mxu0 0.0
      %5486 = vmatpush1.msra.mxu0 %v4479
      %5487 = vmatprep.subr.mxu0 0.0
      %5488 = vmatpush1.msra.mxu0 %v4480
      %5489 = vmatprep.subr.mxu0 0.0
      %5490 = vmatpush1.msra.mxu0 %v4481
      %5491 = vmatprep.subr.mxu0 0.0
      %5492 = vmatpush1.msra.mxu0 %v4482
      %5493 = vmatprep.subr.mxu0 0.0
      %5494 = vmatpush1.msra.mxu0 %v4483
      %5495 = vmatprep.subr.mxu0 0.0
      %5496 = vmatpush1.msra.mxu0 %v4484
      %5497 = vmatprep.subr.mxu0 0.0
      %5498 = vmatpush1.msra.mxu0 %v4485
      %5499 = vmatprep.subr.mxu0 0.0
      %5500 = vmatpush1.msra.mxu0 %v4486
      %5501 = vmatprep.subr.mxu0 0.0
      %5502 = vmatpush1.msra.mxu0 %v4487
      %5503 = vmatprep.subr.mxu0 0.0
      %5504 = vmatpush1.msra.mxu0 %v4488
      %5505 = vmatprep.subr.mxu0 0.0
      %5506 = vmatpush1.msra.mxu0 %v4489
      %5507 = vmatprep.mubr.f32.mxu0 %v5441
      %5508 = vmatmul.mubr.f32.gmra.mrb[0].mxu0 %v5071
      %v5509 = vpop.f32.mrb[0].mxu0
      %v5510 = vadd.f32 0.0, %v5509
      %v5511 = vpop.f32.mrb[0].mxu0
      %5512 = vdwg.mxu0
      %v5513 = vadd.f32 %v5437, %v5510
      %v5515 = vrot.slane %v4386, 5
      %v5516 = vrot.slane %v4392, 5
      %v5517 = vsel %vm4766, %v5515, %v5516
      %5519 = vmatprep.subr.mxu0 0.0
      %5520 = vmatpush1.msra.mxu0 %v4490
      %5521 = vmatprep.subr.mxu0 0.0
      %5522 = vmatpush1.msra.mxu0 %v4491
      %5523 = vmatprep.subr.mxu0 0.0
      %5524 = vmatpush1.msra.mxu0 %v4492
      %5525 = vmatprep.subr.mxu0 0.0
      %5526 = vmatpush1.msra.mxu0 %v4493
      %5527 = vmatprep.subr.mxu0 0.0
      %5528 = vmatpush1.msra.mxu0 %v4494
      %5529 = vmatprep.subr.mxu0 0.0
      %5530 = vmatpush1.msra.mxu0 %v4495
      %5531 = vmatprep.subr.mxu0 0.0
      %5532 = vmatpush1.msra.mxu0 %v4496
      %5533 = vmatprep.subr.mxu0 0.0
      %5534 = vmatpush1.msra.mxu0 %v4497
      %5535 = vmatprep.subr.mxu0 0.0
      %5536 = vmatpush1.msra.mxu0 %v4498
      %5537 = vmatprep.subr.mxu0 0.0
      %5538 = vmatpush1.msra.mxu0 %v4499
      %5539 = vmatprep.subr.mxu0 0.0
      %5540 = vmatpush1.msra.mxu0 %v4500
      %5541 = vmatprep.subr.mxu0 0.0
      %5542 = vmatpush1.msra.mxu0 %v4501
      %5543 = vmatprep.subr.mxu0 0.0
      %5544 = vmatpush1.msra.mxu0 %v4502
      %5545 = vmatprep.subr.mxu0 0.0
      %5546 = vmatpush1.msra.mxu0 %v4503
      %5547 = vmatprep.subr.mxu0 0.0
      %5548 = vmatpush1.msra.mxu0 %v4504
      %5549 = vmatprep.subr.mxu0 0.0
      %5550 = vmatpush1.msra.mxu0 %v4505
      %5551 = vmatprep.subr.mxu0 0.0
      %5552 = vmatpush1.msra.mxu0 %v4506
      %5553 = vmatprep.subr.mxu0 0.0
      %5554 = vmatpush1.msra.mxu0 %v4507
      %5555 = vmatprep.subr.mxu0 0.0
      %5556 = vmatpush1.msra.mxu0 %v4508
      %5557 = vmatprep.subr.mxu0 0.0
      %5558 = vmatpush1.msra.mxu0 %v4509
      %5559 = vmatprep.subr.mxu0 0.0
      %5560 = vmatpush1.msra.mxu0 %v4510
      %5561 = vmatprep.subr.mxu0 0.0
      %5562 = vmatpush1.msra.mxu0 %v4511
      %5563 = vmatprep.subr.mxu0 0.0
      %5564 = vmatpush1.msra.mxu0 %v4512
      %5565 = vmatprep.subr.mxu0 0.0
      %5566 = vmatpush1.msra.mxu0 %v4513
      %5567 = vmatprep.subr.mxu0 0.0
      %5568 = vmatpush1.msra.mxu0 %v4514
      %5569 = vmatprep.subr.mxu0 0.0
      %5570 = vmatpush1.msra.mxu0 %v4515
      %5571 = vmatprep.subr.mxu0 0.0
      %5572 = vmatpush1.msra.mxu0 %v4516
      %5573 = vmatprep.subr.mxu0 0.0
      %5574 = vmatpush1.msra.mxu0 %v4517
      %5575 = vmatprep.subr.mxu0 0.0
      %5576 = vmatpush1.msra.mxu0 %v4518
      %5577 = vmatprep.subr.mxu0 0.0
      %5578 = vmatpush1.msra.mxu0 %v4519
      %5579 = vmatprep.subr.mxu0 0.0
      %5580 = vmatpush1.msra.mxu0 %v4520
      %5581 = vmatprep.subr.mxu0 0.0
      %5582 = vmatpush1.msra.mxu0 %v4521
      %5583 = vmatprep.mubr.f32.mxu0 %v5517
      %5584 = vmatmul.mubr.f32.gmra.mrb[0].mxu0 %v5147
      %v5585 = vpop.f32.mrb[0].mxu0
      %v5586 = vadd.f32 0.0, %v5585
      %v5587 = vpop.f32.mrb[0].mxu0
      %5588 = vdwg.mxu0
      %v5589 = vadd.f32 %v5513, %v5586
      %v5590 = vmax.f32 %v5589, 0.0
      %5591 = vst.msk [vmem:[#allocation4 + $0xe] sm:$0x1] %vm4850, %v5590
      %v5594 = vunpack.c.l.s4 1966171168
      %v5595 = vunpack.c.0.s8 %v5594
      %v5596 = vlaneseq
      %v5597 = vshrl.u32 %v5596, 7
      %v5598 = vsub.s32 %v5595, %v5597
      %v5599 = vrot.slane %v5590, %v5598
      %v5600 = vcombine.high %v5599, %v5599
      %v5602 = vunpack.c.l.s4 1966171168
      %v5603 = vunpack.c.0.s8 %v5602
      %v5604 = vlaneseq
      %v5605 = vshrl.u32 %v5604, 7
      %v5606 = vsub.s32 %v5603, %v5605
      %v5607 = vrot.slane %v5599, %v5606
      %v5609 = vunpack.c.l.s4 1966171168
      %v5610 = vunpack.c.0.s8 %v5609
      %v5611 = vlaneseq
      %v5612 = vshrl.u32 %v5611, 7
      %v5613 = vsub.s32 %v5610, %v5612
      %v5614 = vrot.slane %v5600, %v5613
      %5616 = vst.msk [vmem:[#allocation4 + $0xf] sm:$0x1] %vm4850, %v5614
      %v5617 = vcombine.high %v5607, %v5607
      %5619 = vst.msk [vmem:[#allocation4 + $0x10] sm:$0x1] %vm4850, %v5617
      %v5620 = vcombine.high %v5614, %v5614
      %5622 = vst.msk [vmem:[#allocation4 + $0x11] sm:$0x1] %vm4850, %v5620
      %v5623 = vcombine.high %v5590, %v5590
      %v5625 = vunpack.c.l.s4 1966171168
      %v5626 = vunpack.c.0.s8 %v5625
      %v5627 = vlaneseq
      %v5628 = vshrl.u32 %v5627, 7
      %v5629 = vsub.s32 %v5626, %v5628
      %v5630 = vrot.slane %v5623, %v5629
      %v5632 = vunpack.c.l.s4 1966171168
      %v5633 = vunpack.c.0.s8 %v5632
      %v5634 = vlaneseq
      %v5635 = vshrl.u32 %v5634, 7
      %v5636 = vsub.s32 %v5633, %v5635
      %v5637 = vrot.slane %v5630, %v5636
      %5639 = vst.msk [vmem:[#allocation4 + $0x12] sm:$0x1] %vm4850, %v5637
      %v5640 = vcombine.high %v5630, %v5630
      %v5642 = vunpack.c.l.s4 1966171168
      %v5643 = vunpack.c.0.s8 %v5642
      %v5644 = vlaneseq
      %v5645 = vshrl.u32 %v5644, 7
      %v5646 = vsub.s32 %v5643, %v5645
      %v5647 = vrot.slane %v5640, %v5646
      %5649 = vst.msk [vmem:[#allocation4 + $0x13] sm:$0x1] %vm4850, %v5647
      %v5650 = vcombine.high %v5637, %v5637
      %5652 = vst.msk [vmem:[#allocation4 + $0x14] sm:$0x1] %vm4850, %v5650
      %v5653 = vld [vmem:[#allocation4] sm:$0xff]
      %v5654 = vld [vmem:[#allocation4 + $0x8] sm:$0xff]
      %v5655 = vld [vmem:[#allocation4 + $0x10] sm:$0x1f]
      %v5656 = vld [vmem:[%s9] sm:$0xff]
      %v5657 = vld [vmem:[%s9 + $0x8] sm:$0xff]
      %v5658 = vld [vmem:[%s9 + $0x10] sm:$0xff]
      %v5659 = vld [vmem:[%s9 + $0x18] sm:$0xff]
      %v5660 = vld [vmem:[%s9 + $0x20] sm:$0xff]
      %v5661 = vld [vmem:[%s9 + $0x28] sm:$0xff]
      %v5662 = vld [vmem:[%s9 + $0x30] sm:$0xff]
      %v5663 = vld [vmem:[%s9 + $0x38] sm:$0xff]
      %v5664 = vld [vmem:[%s9 + $0x40] sm:$0xff]
      %v5665 = vld [vmem:[%s9 + $0x48] sm:$0xff]
      %v5666 = vld [vmem:[%s9 + $0x50] sm:$0xff]
      %v5667 = vld [vmem:[%s9 + $0x58] sm:$0xff]
      %v5668 = vld [vmem:[%s9 + $0x60] sm:$0xff]
      %v5669 = vld [vmem:[%s9 + $0x68] sm:$0xff]
      %v5670 = vld [vmem:[%s9 + $0x70] sm:$0xff]
      %v5671 = vld [vmem:[%s9 + $0x78] sm:$0xff]
      %v5672 = vld [vmem:[%s9 + $0x80] sm:$0xff]
      %v5673 = vld [vmem:[%s9 + $0x88] sm:$0xff]
      %v5674 = vld [vmem:[%s9 + $0x90] sm:$0xff]
      %v5675 = vld [vmem:[%s9 + $0x98] sm:$0xff]
      %v5676 = vld [vmem:[%s9 + $0xa0] sm:$0xff]
      %v5677 = vld [vmem:[%s9 + $0xa8] sm:$0xff]
      %v5678 = vld [vmem:[%s9 + $0xb0] sm:$0xff]
      %v5679 = vld [vmem:[%s9 + $0xb8] sm:$0xff]
      %v5680 = vld [vmem:[%s9 + $0xc0] sm:$0xff]
      %v5681 = vld [vmem:[%s9 + $0xc8] sm:$0xff]
      %v5682 = vld [vmem:[%s9 + $0xd0] sm:$0xff]
      %v5683 = vld [vmem:[%s9 + $0xd8] sm:$0xff]
      %v5684 = vld [vmem:[%s9 + $0xe0] sm:$0xff]
      %v5685 = vld [vmem:[%s9 + $0xe8] sm:$0xff]
      %v5686 = vld [vmem:[%s9 + $0xf0] sm:$0xff]
      %v5687 = vld [vmem:[%s9 + $0xf8] sm:$0xff]
      %v5688 = vld [vmem:[%s9 + $0x100] sm:$0xff]
      %v5689 = vld [vmem:[%s9 + $0x108] sm:$0xff]
      %v5690 = vld [vmem:[%s9 + $0x110] sm:$0xff]
      %v5691 = vld [vmem:[%s9 + $0x118] sm:$0xff]
      %v5692 = vld [vmem:[%s9 + $0x120] sm:$0xff]
      %v5693 = vld [vmem:[%s9 + $0x128] sm:$0xff]
      %v5694 = vld [vmem:[%s9 + $0x130] sm:$0xff]
      %v5695 = vld [vmem:[%s9 + $0x138] sm:$0xff]
      %v5696 = vld [vmem:[%s9 + $0x140] sm:$0xff]
      %v5697 = vld [vmem:[%s9 + $0x148] sm:$0xff]
      %v5698 = vld [vmem:[%s9 + $0x150] sm:$0xff]
      %v5699 = vld [vmem:[%s9 + $0x158] sm:$0xff]
      %v5700 = vld [vmem:[%s9 + $0x160] sm:$0xff]
      %v5701 = vld [vmem:[%s9 + $0x168] sm:$0xff]
      %v5702 = vld [vmem:[%s9 + $0x170] sm:$0xff]
      %v5703 = vld [vmem:[%s9 + $0x178] sm:$0xff]
      %v5704 = vld [vmem:[%s9 + $0x180] sm:$0xff]
      %v5705 = vld [vmem:[%s9 + $0x188] sm:$0xff]
      %v5706 = vld [vmem:[%s9 + $0x190] sm:$0xff]
      %v5707 = vld [vmem:[%s9 + $0x198] sm:$0xff]
      %v5708 = vld [vmem:[%s9 + $0x1a0] sm:$0xff]
      %v5709 = vld [vmem:[%s9 + $0x1a8] sm:$0xff]
      %v5710 = vld [vmem:[%s9 + $0x1b0] sm:$0xff]
      %v5711 = vld [vmem:[%s9 + $0x1b8] sm:$0xff]
      %v5712 = vld [vmem:[%s9 + $0x1c0] sm:$0xff]
      %v5713 = vld [vmem:[%s9 + $0x1c8] sm:$0xff]
      %v5714 = vld [vmem:[%s9 + $0x1d0] sm:$0xff]
      %v5715 = vld [vmem:[%s9 + $0x1d8] sm:$0xff]
      %v5716 = vld [vmem:[%s9 + $0x1e0] sm:$0xff]
      %v5717 = vld [vmem:[%s9 + $0x1e8] sm:$0xff]
      %v5718 = vld [vmem:[%s9 + $0x1f0] sm:$0xff]
      %v5719 = vld [vmem:[%s9 + $0x1f8] sm:$0xff]
      %v5720 = vld [vmem:[%s9 + $0x200] sm:$0xff]
      %v5721 = vld [vmem:[%s9 + $0x208] sm:$0xff]
      %v5722 = vld [vmem:[%s9 + $0x210] sm:$0xff]
      %v5723 = vld [vmem:[%s9 + $0x218] sm:$0xff]
      %v5724 = vld [vmem:[%s9 + $0x220] sm:$0xff]
      %v5725 = vld [vmem:[%s9 + $0x228] sm:$0xff]
      %v5726 = vld [vmem:[%s9 + $0x230] sm:$0xff]
      %v5727 = vld [vmem:[%s9 + $0x238] sm:$0xff]
      %v5728 = vld [vmem:[%s9 + $0x240] sm:$0xff]
      %v5729 = vld [vmem:[%s9 + $0x248] sm:$0xff]
      %v5730 = vld [vmem:[%s9 + $0x250] sm:$0xff]
      %v5731 = vld [vmem:[%s9 + $0x258] sm:$0xff]
      %v5732 = vld [vmem:[%s9 + $0x260] sm:$0xff]
      %v5733 = vld [vmem:[%s9 + $0x268] sm:$0xff]
      %v5734 = vld [vmem:[%s9 + $0x270] sm:$0xff]
      %v5735 = vld [vmem:[%s9 + $0x278] sm:$0xff]
      %v5736 = vld [vmem:[%s9 + $0x280] sm:$0xff]
      %v5737 = vld [vmem:[%s9 + $0x288] sm:$0xff]
      %v5738 = vld [vmem:[%s9 + $0x290] sm:$0xff]
      %v5739 = vld [vmem:[%s9 + $0x298] sm:$0xff]
      %v5740 = vld [vmem:[%s9 + $0x2a0] sm:$0xff]
      %v5741 = vld [vmem:[%s9 + $0x2a8] sm:$0xff]
      %v5742 = vld [vmem:[%s9 + $0x2b0] sm:$0xff]
      %v5743 = vld [vmem:[%s9 + $0x2b8] sm:$0xff]
      %v5744 = vld [vmem:[%s9 + $0x2c0] sm:$0xff]
      %v5745 = vld [vmem:[%s9 + $0x2c8] sm:$0xff]
      %v5746 = vld [vmem:[%s9 + $0x2d0] sm:$0xff]
      %v5747 = vld [vmem:[%s9 + $0x2d8] sm:$0xff]
      %v5748 = vld [vmem:[%s9 + $0x2e0] sm:$0xff]
      %v5749 = vld [vmem:[%s9 + $0x2e8] sm:$0xff]
      %v5750 = vld [vmem:[%s9 + $0x2f0] sm:$0xff]
      %v5751 = vld [vmem:[%s9 + $0x2f8] sm:$0xff]
      %v5752 = vld [vmem:[%s9 + $0x300] sm:$0xff]
      %v5753 = vld [vmem:[%s9 + $0x308] sm:$0xff]
      %v5754 = vld [vmem:[%s9 + $0x310] sm:$0xff]
      %v5755 = vld [vmem:[%s9 + $0x318] sm:$0xff]
      %v5756 = vld [vmem:[%s9 + $0x320] sm:$0xff]
      %v5757 = vld [vmem:[%s9 + $0x328] sm:$0xff]
      %v5758 = vld [vmem:[%s9 + $0x330] sm:$0xff]
      %v5759 = vld [vmem:[%s9 + $0x338] sm:$0xff]
      %v5760 = vld [vmem:[%s9 + $0x340] sm:$0xff]
      %v5761 = vld [vmem:[%s9 + $0x348] sm:$0xff]
      %v5762 = vld [vmem:[%s9 + $0x350] sm:$0xff]
      %v5763 = vld [vmem:[%s9 + $0x358] sm:$0xff]
      %v5764 = vld [vmem:[%s9 + $0x360] sm:$0xff]
      %v5765 = vld [vmem:[%s9 + $0x368] sm:$0xff]
      %v5766 = vld [vmem:[%s9 + $0x370] sm:$0xff]
      %v5767 = vld [vmem:[%s9 + $0x378] sm:$0xff]
      %v5768 = vld [vmem:[%s9 + $0x380] sm:$0xff]
      %v5769 = vld [vmem:[%s9 + $0x388] sm:$0xff]
      %v5770 = vld [vmem:[%s9 + $0x390] sm:$0xff]
      %v5771 = vld [vmem:[%s9 + $0x398] sm:$0xff]
      %v5772 = vld [vmem:[%s9 + $0x3a0] sm:$0xff]
      %v5773 = vld [vmem:[%s9 + $0x3a8] sm:$0xff]
      %v5774 = vld [vmem:[%s9 + $0x3b0] sm:$0xff]
      %v5775 = vld [vmem:[%s9 + $0x3b8] sm:$0xff]
      %v5776 = vld [vmem:[%s9 + $0x3c0] sm:$0xff]
      %v5777 = vld [vmem:[%s9 + $0x3c8] sm:$0xff]
      %v5778 = vld [vmem:[%s9 + $0x3d0] sm:$0xff]
      %v5779 = vld [vmem:[%s9 + $0x3d8] sm:$0xff]
      %v5780 = vld [vmem:[%s9 + $0x3e0] sm:$0xff]
      %v5781 = vld [vmem:[%s9 + $0x3e8] sm:$0xff]
      %v5782 = vld [vmem:[%s9 + $0x3f0] sm:$0xff]
      %v5783 = vld [vmem:[%s9 + $0x3f8] sm:$0xff]
      %v5784 = vld [vmem:[%s9 + $0x400] sm:$0xff]
      %v5785 = vld [vmem:[%s9 + $0x408] sm:$0xff]
      %v5786 = vld [vmem:[%s9 + $0x410] sm:$0xff]
      %v5787 = vld [vmem:[%s9 + $0x418] sm:$0xff]
      %v5788 = vld [vmem:[%s9 + $0x420] sm:$0xff]
      %v5789 = vld [vmem:[%s9 + $0x428] sm:$0xff]
      %v5790 = vld [vmem:[%s9 + $0x430] sm:$0xff]
      %v5791 = vld [vmem:[%s9 + $0x438] sm:$0xff]
      %v5792 = vld [vmem:[%s9 + $0x440] sm:$0xff]
      %v5793 = vld [vmem:[%s9 + $0x448] sm:$0xff]
      %v5794 = vld [vmem:[%s9 + $0x450] sm:$0xff]
      %v5795 = vld [vmem:[%s9 + $0x458] sm:$0xff]
      %v5796 = vld [vmem:[%s9 + $0x460] sm:$0xff]
      %v5797 = vld [vmem:[%s9 + $0x468] sm:$0xff]
      %v5798 = vld [vmem:[%s9 + $0x470] sm:$0xff]
      %v5799 = vld [vmem:[%s9 + $0x478] sm:$0xff]
      %v5800 = vld [vmem:[%s9 + $0x480] sm:$0xff]
      %v5801 = vld [vmem:[%s9 + $0x488] sm:$0xff]
      %v5802 = vld [vmem:[%s9 + $0x490] sm:$0xff]
      %v5803 = vld [vmem:[%s9 + $0x498] sm:$0xff]
      %v5804 = vld [vmem:[%s9 + $0x4a0] sm:$0xff]
      %v5805 = vld [vmem:[%s9 + $0x4a8] sm:$0xff]
      %v5806 = vld [vmem:[%s9 + $0x4b0] sm:$0xff]
      %v5807 = vld [vmem:[%s9 + $0x4b8] sm:$0xff]
      %v5808 = vld [vmem:[%s9 + $0x4c0] sm:$0xff]
      %v5809 = vld [vmem:[%s9 + $0x4c8] sm:$0xff]
      %v5810 = vld [vmem:[%s9 + $0x4d0] sm:$0xff]
      %v5811 = vld [vmem:[%s9 + $0x4d8] sm:$0xff]
      %v5812 = vld [vmem:[%s9 + $0x4e0] sm:$0xff]
      %v5813 = vld [vmem:[%s9 + $0x4e8] sm:$0xff]
      %v5814 = vld [vmem:[%s9 + $0x4f0] sm:$0xff]
      %v5815 = vld [vmem:[%s9 + $0x4f8] sm:$0xff]
      %v5816 = vld [vmem:[%s9 + $0x500] sm:$0xff]
      %v5817 = vld [vmem:[%s9 + $0x508] sm:$0xff]
      %v5818 = vld [vmem:[%s9 + $0x510] sm:$0xff]
      %v5819 = vld [vmem:[%s9 + $0x518] sm:$0xff]
      %v5820 = vld [vmem:[%s9 + $0x520] sm:$0xff]
      %v5821 = vld [vmem:[%s9 + $0x528] sm:$0xff]
      %v5822 = vld [vmem:[%s9 + $0x530] sm:$0xff]
      %v5823 = vld [vmem:[%s9 + $0x538] sm:$0xff]
      %v5824 = vld [vmem:[%s9 + $0x540] sm:$0xff]
      %v5825 = vld [vmem:[%s9 + $0x548] sm:$0xff]
      %v5826 = vld [vmem:[%s9 + $0x550] sm:$0xff]
      %v5827 = vld [vmem:[%s9 + $0x558] sm:$0xff]
      %v5828 = vld [vmem:[%s9 + $0x560] sm:$0xff]
      %v5829 = vld [vmem:[%s9 + $0x568] sm:$0xff]
      %v5830 = vld [vmem:[%s9 + $0x570] sm:$0xff]
      %v5831 = vld [vmem:[%s9 + $0x578] sm:$0xff]
      %v5832 = vld [vmem:[%s9 + $0x580] sm:$0xff]
      %v5833 = vld [vmem:[%s9 + $0x588] sm:$0xff]
      %v5834 = vld [vmem:[%s9 + $0x590] sm:$0xff]
      %v5835 = vld [vmem:[%s9 + $0x598] sm:$0xff]
      %v5836 = vld [vmem:[%s9 + $0x5a0] sm:$0xff]
      %v5837 = vld [vmem:[%s9 + $0x5a8] sm:$0xff]
      %v5838 = vld [vmem:[%s9 + $0x5b0] sm:$0xff]
      %v5839 = vld [vmem:[%s9 + $0x5b8] sm:$0xff]
      %v5840 = vld [vmem:[%s9 + $0x5c0] sm:$0xff]
      %v5841 = vld [vmem:[%s9 + $0x5c8] sm:$0xff]
      %v5842 = vld [vmem:[%s9 + $0x5d0] sm:$0xff]
      %v5843 = vld [vmem:[%s9 + $0x5d8] sm:$0xff]
      %v5844 = vld [vmem:[%s9 + $0x5e0] sm:$0xff]
      %v5845 = vld [vmem:[%s9 + $0x5e8] sm:$0xff]
      %v5846 = vld [vmem:[%s9 + $0x5f0] sm:$0xff]
      %v5847 = vld [vmem:[%s9 + $0x5f8] sm:$0xff]
      %v5848 = vld [vmem:[%s9 + $0x600] sm:$0xff]
      %v5849 = vld [vmem:[%s9 + $0x608] sm:$0xff]
      %v5850 = vld [vmem:[%s9 + $0x610] sm:$0xff]
      %v5851 = vld [vmem:[%s9 + $0x618] sm:$0xff]
      %v5852 = vld [vmem:[%s9 + $0x620] sm:$0xff]
      %v5853 = vld [vmem:[%s9 + $0x628] sm:$0xff]
      %v5854 = vld [vmem:[%s9 + $0x630] sm:$0xff]
      %v5855 = vld [vmem:[%s9 + $0x638] sm:$0xff]
      %v5856 = vld [vmem:[%s9 + $0x640] sm:$0xff]
      %v5857 = vld [vmem:[%s9 + $0x648] sm:$0xff]
      %v5858 = vld [vmem:[%s9 + $0x650] sm:$0xff]
      %v5859 = vld [vmem:[%s9 + $0x658] sm:$0xff]
      %v5860 = vld [vmem:[%s9 + $0x660] sm:$0xff]
      %v5861 = vld [vmem:[%s9 + $0x668] sm:$0xff]
      %v5862 = vld [vmem:[%s9 + $0x670] sm:$0xff]
      %v5863 = vld [vmem:[%s9 + $0x678] sm:$0xff]
      %v5864 = vld [vmem:[%s9 + $0x680] sm:$0xff]
      %v5865 = vld [vmem:[%s9 + $0x688] sm:$0xff]
      %v5866 = vld [vmem:[%s9 + $0x690] sm:$0xff]
      %v5867 = vld [vmem:[%s9 + $0x698] sm:$0xff]
      %v5868 = vld [vmem:[%s9 + $0x6a0] sm:$0xff]
      %v5869 = vld [vmem:[%s9 + $0x6a8] sm:$0xff]
      %v5870 = vld [vmem:[%s9 + $0x6b0] sm:$0xff]
      %v5871 = vld [vmem:[%s9 + $0x6b8] sm:$0xff]
      %v5872 = vld [vmem:[%s9 + $0x6c0] sm:$0xff]
      %v5873 = vld [vmem:[%s9 + $0x6c8] sm:$0xff]
      %v5874 = vld [vmem:[%s9 + $0x6d0] sm:$0xff]
      %v5875 = vld [vmem:[%s9 + $0x6d8] sm:$0xff]
      %v5876 = vld [vmem:[%s9 + $0x6e0] sm:$0xff]
      %v5877 = vld [vmem:[%s9 + $0x6e8] sm:$0xff]
      %v5878 = vld [vmem:[%s9 + $0x6f0] sm:$0xff]
      %v5879 = vld [vmem:[%s9 + $0x6f8] sm:$0xff]
      %v5880 = vld [vmem:[%s9 + $0x700] sm:$0xff]
      %v5881 = vld [vmem:[%s9 + $0x708] sm:$0xff]
      %v5882 = vld [vmem:[%s9 + $0x710] sm:$0xff]
      %v5883 = vld [vmem:[%s9 + $0x718] sm:$0xff]
      %v5884 = vld [vmem:[%s9 + $0x720] sm:$0xff]
      %v5885 = vld [vmem:[%s9 + $0x728] sm:$0xff]
      %v5886 = vld [vmem:[%s9 + $0x730] sm:$0xff]
      %v5887 = vld [vmem:[%s9 + $0x738] sm:$0xff]
      %v5888 = vld [vmem:[%s9 + $0x740] sm:$0xff]
      %v5889 = vld [vmem:[%s9 + $0x748] sm:$0xff]
      %v5890 = vld [vmem:[%s9 + $0x750] sm:$0xff]
      %v5891 = vld [vmem:[%s9 + $0x758] sm:$0xff]
      %v5892 = vld [vmem:[%s9 + $0x760] sm:$0xff]
      %v5893 = vld [vmem:[%s9 + $0x768] sm:$0xff]
      %v5894 = vld [vmem:[%s9 + $0x770] sm:$0xff]
      %v5895 = vld [vmem:[%s9 + $0x778] sm:$0xff]
      %v5896 = vld [vmem:[%s9 + $0x780] sm:$0xff]
      %v5897 = vld [vmem:[%s9 + $0x788] sm:$0xff]
      %v5898 = vld [vmem:[%s9 + $0x790] sm:$0xff]
      %v5899 = vld [vmem:[%s9 + $0x798] sm:$0xff]
      %v5900 = vld [vmem:[%s9 + $0x7a0] sm:$0xff]
      %v5901 = vld [vmem:[%s9 + $0x7a8] sm:$0xff]
      %v5902 = vld [vmem:[%s9 + $0x7b0] sm:$0xff]
      %v5903 = vld [vmem:[%s9 + $0x7b8] sm:$0xff]
      %v5904 = vld [vmem:[%s9 + $0x7c0] sm:$0xff]
      %v5905 = vld [vmem:[%s9 + $0x7c8] sm:$0xff]
      %v5906 = vld [vmem:[%s9 + $0x7d0] sm:$0xff]
      %v5907 = vld [vmem:[%s9 + $0x7d8] sm:$0xff]
      %v5908 = vld [vmem:[%s9 + $0x7e0] sm:$0xff]
      %v5909 = vld [vmem:[%s9 + $0x7e8] sm:$0xff]
      %v5910 = vld [vmem:[%s9 + $0x7f0] sm:$0xff]
      %v5911 = vld [vmem:[%s9 + $0x7f8] sm:$0xff]
      %v5912 = vld [vmem:[%s9 + $0x800] sm:$0xff]
      %v5913 = vld [vmem:[%s9 + $0x808] sm:$0xff]
      %v5914 = vld [vmem:[%s9 + $0x810] sm:$0xff]
      %v5915 = vld [vmem:[%s9 + $0x818] sm:$0xff]
      %v5916 = vld [vmem:[%s9 + $0x820] sm:$0xff]
      %v5917 = vld [vmem:[%s9 + $0x828] sm:$0xff]
      %v5918 = vld [vmem:[%s9 + $0x830] sm:$0xff]
      %v5919 = vld [vmem:[%s9 + $0x838] sm:$0xff]
      %v5920 = vld [vmem:[%s9 + $0x840] sm:$0xff]
      %v5921 = vld [vmem:[%s9 + $0x848] sm:$0xff]
      %v5922 = vld [vmem:[%s9 + $0x850] sm:$0xff]
      %v5923 = vld [vmem:[%s9 + $0x858] sm:$0xff]
      %v5924 = vld [vmem:[%s9 + $0x860] sm:$0xff]
      %v5925 = vld [vmem:[%s9 + $0x868] sm:$0xff]
      %v5926 = vld [vmem:[%s9 + $0x870] sm:$0xff]
      %v5927 = vld [vmem:[%s9 + $0x878] sm:$0xff]
      %v5928 = vld [vmem:[%s9 + $0x880] sm:$0xff]
      %v5929 = vld [vmem:[%s9 + $0x888] sm:$0xff]
      %v5930 = vld [vmem:[%s9 + $0x890] sm:$0xff]
      %v5931 = vld [vmem:[%s9 + $0x898] sm:$0xff]
      %v5932 = vld [vmem:[%s9 + $0x8a0] sm:$0xff]
      %v5933 = vld [vmem:[%s9 + $0x8a8] sm:$0xff]
      %v5934 = vld [vmem:[%s9 + $0x8b0] sm:$0xff]
      %v5935 = vld [vmem:[%s9 + $0x8b8] sm:$0xff]
      %v5936 = vld [vmem:[%s9 + $0x8c0] sm:$0xff]
      %v5937 = vld [vmem:[%s9 + $0x8c8] sm:$0xff]
      %v5938 = vld [vmem:[%s9 + $0x8d0] sm:$0xff]
      %v5939 = vld [vmem:[%s9 + $0x8d8] sm:$0xff]
      %v5940 = vld [vmem:[%s9 + $0x8e0] sm:$0xff]
      %v5941 = vld [vmem:[%s9 + $0x8e8] sm:$0xff]
      %v5942 = vld [vmem:[%s9 + $0x8f0] sm:$0xff]
      %v5943 = vld [vmem:[%s9 + $0x8f8] sm:$0xff]
      %v5944 = vld [vmem:[%s9 + $0x900] sm:$0xff]
      %v5945 = vld [vmem:[%s9 + $0x908] sm:$0xff]
      %v5946 = vld [vmem:[%s9 + $0x910] sm:$0xff]
      %v5947 = vld [vmem:[%s9 + $0x918] sm:$0xff]
      %v5948 = vld [vmem:[%s9 + $0x920] sm:$0xff]
      %v5949 = vld [vmem:[%s9 + $0x928] sm:$0xff]
      %v5950 = vld [vmem:[%s9 + $0x930] sm:$0xff]
      %v5951 = vld [vmem:[%s9 + $0x938] sm:$0xff]
      %v5952 = vld [vmem:[%s9 + $0x940] sm:$0xff]
      %v5953 = vld [vmem:[%s9 + $0x948] sm:$0xff]
      %v5954 = vld [vmem:[%s9 + $0x950] sm:$0xff]
      %v5955 = vld [vmem:[%s9 + $0x958] sm:$0xff]
      %v5956 = vld [vmem:[%s9 + $0x960] sm:$0xff]
      %v5957 = vld [vmem:[%s9 + $0x968] sm:$0xff]
      %v5958 = vld [vmem:[%s9 + $0x970] sm:$0xff]
      %v5959 = vld [vmem:[%s9 + $0x978] sm:$0xff]
      %v5960 = vld [vmem:[%s9 + $0x980] sm:$0xff]
      %v5961 = vld [vmem:[%s9 + $0x988] sm:$0xff]
      %v5962 = vld [vmem:[%s9 + $0x990] sm:$0xff]
      %v5963 = vld [vmem:[%s9 + $0x998] sm:$0xff]
      %v5964 = vld [vmem:[%s9 + $0x9a0] sm:$0xff]
      %v5965 = vld [vmem:[%s9 + $0x9a8] sm:$0xff]
      %v5966 = vld [vmem:[%s9 + $0x9b0] sm:$0xff]
      %v5967 = vld [vmem:[%s9 + $0x9b8] sm:$0xff]
      %v5968 = vld [vmem:[%s9 + $0x9c0] sm:$0xff]
      %v5969 = vld [vmem:[%s9 + $0x9c8] sm:$0xff]
      %v5970 = vld [vmem:[%s9 + $0x9d0] sm:$0xff]
      %v5971 = vld [vmem:[%s9 + $0x9d8] sm:$0xff]
      %v5972 = vld [vmem:[%s9 + $0x9e0] sm:$0xff]
      %v5973 = vld [vmem:[%s9 + $0x9e8] sm:$0xff]
      %v5974 = vld [vmem:[%s9 + $0x9f0] sm:$0xff]
      %v5975 = vld [vmem:[%s9 + $0x9f8] sm:$0xff]
      %v5976 = vld [vmem:[%s9 + $0xa00] sm:$0xff]
      %v5977 = vld [vmem:[%s9 + $0xa08] sm:$0xff]
      %v5978 = vld [vmem:[%s9 + $0xa10] sm:$0xff]
      %v5979 = vld [vmem:[%s9 + $0xa18] sm:$0xff]
      %v5980 = vld [vmem:[%s9 + $0xa20] sm:$0xff]
      %v5981 = vld [vmem:[%s9 + $0xa28] sm:$0xff]
      %v5982 = vld [vmem:[%s9 + $0xa30] sm:$0xff]
      %v5983 = vld [vmem:[%s9 + $0xa38] sm:$0xff]
      %v5984 = vld [vmem:[%s9 + $0xa40] sm:$0xff]
      %v5985 = vld [vmem:[%s9 + $0xa48] sm:$0xff]
      %v5986 = vld [vmem:[%s9 + $0xa50] sm:$0xff]
      %v5987 = vld [vmem:[%s9 + $0xa58] sm:$0xff]
      %v5988 = vld [vmem:[%s9 + $0xa60] sm:$0xff]
      %v5989 = vld [vmem:[%s9 + $0xa68] sm:$0xff]
      %v5990 = vld [vmem:[%s9 + $0xa70] sm:$0xff]
      %v5991 = vld [vmem:[%s9 + $0xa78] sm:$0xff]
      %v5992 = vld [vmem:[%s10] sm:$0x1]
      %v5996 = vlaneseq
      %v5997 = vshrl.u32 %v5996, 7
      %v5998 = vsub.s32 0, %v5997
      %v5999 = vrot.slane %v5653, %v5998
      %v6000 = vlaneseq
      %v6001 = vshrl.u32 %v6000, 7
      %v6002 = vsub.s32 1, %v6001
      %v6003 = vrot.slane %v5653, %v6002
      %v6004 = vlaneseq
      %v6005 = vshrl.u32 %v6004, 7
      %v6006 = vsub.s32 2, %v6005
      %v6007 = vrot.slane %v5653, %v6006
      %v6008 = vlaneseq
      %v6009 = vshrl.u32 %v6008, 7
      %v6010 = vsub.s32 3, %v6009
      %v6011 = vrot.slane %v5653, %v6010
      %v6012 = vlaneseq
      %v6013 = vshrl.u32 %v6012, 7
      %v6014 = vsub.s32 4, %v6013
      %v6015 = vrot.slane %v5653, %v6014
      %v6016 = vlaneseq
      %v6017 = vshrl.u32 %v6016, 7
      %v6018 = vsub.s32 5, %v6017
      %v6019 = vrot.slane %v5653, %v6018
      %v6020 = vlaneseq
      %v6021 = vshrl.u32 %v6020, 7
      %v6022 = vsub.s32 6, %v6021
      %v6023 = vrot.slane %v5653, %v6022
      %v6024 = vlaneseq
      %v6025 = vshrl.u32 %v6024, 7
      %v6026 = vsub.s32 7, %v6025
      %v6027 = vrot.slane %v5653, %v6026
      %v6028 = vlaneseq
      %v6029 = vshrl.u32 %v6028, 7
      %v6030 = vsub.s32 0, %v6029
      %v6031 = vrot.slane %v5654, %v6030
      %v6032 = vlaneseq
      %v6033 = vshrl.u32 %v6032, 7
      %v6034 = vsub.s32 1, %v6033
      %v6035 = vrot.slane %v5654, %v6034
      %v6036 = vlaneseq
      %v6037 = vshrl.u32 %v6036, 7
      %v6038 = vsub.s32 2, %v6037
      %v6039 = vrot.slane %v5654, %v6038
      %v6040 = vlaneseq
      %v6041 = vshrl.u32 %v6040, 7
      %v6042 = vsub.s32 3, %v6041
      %v6043 = vrot.slane %v5654, %v6042
      %v6044 = vlaneseq
      %v6045 = vshrl.u32 %v6044, 7
      %v6046 = vsub.s32 4, %v6045
      %v6047 = vrot.slane %v5654, %v6046
      %v6048 = vlaneseq
      %v6049 = vshrl.u32 %v6048, 7
      %v6050 = vsub.s32 5, %v6049
      %v6051 = vrot.slane %v5654, %v6050
      %v6052 = vlaneseq
      %v6053 = vshrl.u32 %v6052, 7
      %v6054 = vsub.s32 6, %v6053
      %v6055 = vrot.slane %v5654, %v6054
      %v6056 = vlaneseq
      %v6057 = vshrl.u32 %v6056, 7
      %v6058 = vsub.s32 7, %v6057
      %v6059 = vrot.slane %v5654, %v6058
      %v6060 = vlaneseq
      %v6061 = vshrl.u32 %v6060, 7
      %v6062 = vsub.s32 0, %v6061
      %v6063 = vrot.slane %v5655, %v6062
      %v6064 = vlaneseq
      %v6065 = vshrl.u32 %v6064, 7
      %v6066 = vsub.s32 1, %v6065
      %v6067 = vrot.slane %v5655, %v6066
      %v6068 = vlaneseq
      %v6069 = vshrl.u32 %v6068, 7
      %v6070 = vsub.s32 2, %v6069
      %v6071 = vrot.slane %v5655, %v6070
      %v6072 = vlaneseq
      %v6073 = vshrl.u32 %v6072, 7
      %v6074 = vsub.s32 3, %v6073
      %v6075 = vrot.slane %v5655, %v6074
      %v6076 = vlaneseq
      %v6077 = vshrl.u32 %v6076, 7
      %v6078 = vsub.s32 4, %v6077
      %v6079 = vrot.slane %v5655, %v6078
      %6101 = vmatprep.subr.mxu0 0.0
      %6102 = vmatpush1.msra.mxu0 %v5656
      %6103 = vmatprep.subr.mxu0 0.0
      %6104 = vmatpush1.msra.mxu0 %v5657
      %6105 = vmatprep.subr.mxu0 0.0
      %6106 = vmatpush1.msra.mxu0 %v5658
      %6107 = vmatprep.subr.mxu0 0.0
      %6108 = vmatpush1.msra.mxu0 %v5659
      %6109 = vmatprep.subr.mxu0 0.0
      %6110 = vmatpush1.msra.mxu0 %v5660
      %6111 = vmatprep.subr.mxu0 0.0
      %6112 = vmatpush1.msra.mxu0 %v5661
      %6113 = vmatprep.subr.mxu0 0.0
      %6114 = vmatpush1.msra.mxu0 %v5662
      %6115 = vmatprep.subr.mxu0 0.0
      %6116 = vmatpush1.msra.mxu0 %v5663
      %6117 = vmatprep.subr.mxu0 0.0
      %6118 = vmatpush1.msra.mxu0 %v5664
      %6119 = vmatprep.subr.mxu0 0.0
      %6120 = vmatpush1.msra.mxu0 %v5665
      %6121 = vmatprep.subr.mxu0 0.0
      %6122 = vmatpush1.msra.mxu0 %v5666
      %6123 = vmatprep.subr.mxu0 0.0
      %6124 = vmatpush1.msra.mxu0 %v5667
      %6125 = vmatprep.subr.mxu0 0.0
      %6126 = vmatpush1.msra.mxu0 %v5668
      %6127 = vmatprep.subr.mxu0 0.0
      %6128 = vmatpush1.msra.mxu0 %v5669
      %6129 = vmatprep.subr.mxu0 0.0
      %6130 = vmatpush1.msra.mxu0 %v5670
      %6131 = vmatprep.subr.mxu0 0.0
      %6132 = vmatpush1.msra.mxu0 %v5671
      %6133 = vmatprep.subr.mxu0 0.0
      %6134 = vmatpush1.msra.mxu0 %v5672
      %6135 = vmatprep.subr.mxu0 0.0
      %6136 = vmatpush1.msra.mxu0 %v5673
      %6137 = vmatprep.subr.mxu0 0.0
      %6138 = vmatpush1.msra.mxu0 %v5674
      %6139 = vmatprep.subr.mxu0 0.0
      %6140 = vmatpush1.msra.mxu0 %v5675
      %6141 = vmatprep.subr.mxu0 0.0
      %6142 = vmatpush1.msra.mxu0 %v5676
      %6143 = vmatprep.subr.mxu0 0.0
      %6144 = vmatpush1.msra.mxu0 %v5677
      %6145 = vmatprep.subr.mxu0 0.0
      %6146 = vmatpush1.msra.mxu0 %v5678
      %6147 = vmatprep.subr.mxu0 0.0
      %6148 = vmatpush1.msra.mxu0 %v5679
      %6149 = vmatprep.subr.mxu0 0.0
      %6150 = vmatpush1.msra.mxu0 %v5680
      %6151 = vmatprep.subr.mxu0 0.0
      %6152 = vmatpush1.msra.mxu0 %v5681
      %6153 = vmatprep.subr.mxu0 0.0
      %6154 = vmatpush1.msra.mxu0 %v5682
      %6155 = vmatprep.subr.mxu0 0.0
      %6156 = vmatpush1.msra.mxu0 %v5683
      %6157 = vmatprep.subr.mxu0 0.0
      %6158 = vmatpush1.msra.mxu0 %v5684
      %6159 = vmatprep.subr.mxu0 0.0
      %6160 = vmatpush1.msra.mxu0 %v5685
      %6161 = vmatprep.subr.mxu0 0.0
      %6162 = vmatpush1.msra.mxu0 %v5686
      %6163 = vmatprep.subr.mxu0 0.0
      %6164 = vmatpush1.msra.mxu0 %v5687
      %6165 = vmatprep.mubr.f32.mxu0 %v6003
      %6166 = vmatmul.mubr.f32.gmra.mrb[0].mxu0 %v5999
      %v6167 = vpop.f32.mrb[0].mxu0
      %v6168 = vadd.f32 %v5992, %v6167
      %v6169 = vpop.f32.mrb[0].mxu0
      %6170 = vdwg.mxu0
      %6171 = vmatprep.subr.mxu0 0.0
      %6172 = vmatpush1.msra.mxu0 %v5688
      %6173 = vmatprep.subr.mxu0 0.0
      %6174 = vmatpush1.msra.mxu0 %v5689
      %6175 = vmatprep.subr.mxu0 0.0
      %6176 = vmatpush1.msra.mxu0 %v5690
      %6177 = vmatprep.subr.mxu0 0.0
      %6178 = vmatpush1.msra.mxu0 %v5691
      %6179 = vmatprep.subr.mxu0 0.0
      %6180 = vmatpush1.msra.mxu0 %v5692
      %6181 = vmatprep.subr.mxu0 0.0
      %6182 = vmatpush1.msra.mxu0 %v5693
      %6183 = vmatprep.subr.mxu0 0.0
      %6184 = vmatpush1.msra.mxu0 %v5694
      %6185 = vmatprep.subr.mxu0 0.0
      %6186 = vmatpush1.msra.mxu0 %v5695
      %6187 = vmatprep.subr.mxu0 0.0
      %6188 = vmatpush1.msra.mxu0 %v5696
      %6189 = vmatprep.subr.mxu0 0.0
      %6190 = vmatpush1.msra.mxu0 %v5697
      %6191 = vmatprep.subr.mxu0 0.0
      %6192 = vmatpush1.msra.mxu0 %v5698
      %6193 = vmatprep.subr.mxu0 0.0
      %6194 = vmatpush1.msra.mxu0 %v5699
      %6195 = vmatprep.subr.mxu0 0.0
      %6196 = vmatpush1.msra.mxu0 %v5700
      %6197 = vmatprep.subr.mxu0 0.0
      %6198 = vmatpush1.msra.mxu0 %v5701
      %6199 = vmatprep.subr.mxu0 0.0
      %6200 = vmatpush1.msra.mxu0 %v5702
      %6201 = vmatprep.subr.mxu0 0.0
      %6202 = vmatpush1.msra.mxu0 %v5703
      %6203 = vmatprep.subr.mxu0 0.0
      %6204 = vmatpush1.msra.mxu0 %v5704
      %6205 = vmatprep.subr.mxu0 0.0
      %6206 = vmatpush1.msra.mxu0 %v5705
      %6207 = vmatprep.subr.mxu0 0.0
      %6208 = vmatpush1.msra.mxu0 %v5706
      %6209 = vmatprep.subr.mxu0 0.0
      %6210 = vmatpush1.msra.mxu0 %v5707
      %6211 = vmatprep.subr.mxu0 0.0
      %6212 = vmatpush1.msra.mxu0 %v5708
      %6213 = vmatprep.subr.mxu0 0.0
      %6214 = vmatpush1.msra.mxu0 %v5709
      %6215 = vmatprep.subr.mxu0 0.0
      %6216 = vmatpush1.msra.mxu0 %v5710
      %6217 = vmatprep.subr.mxu0 0.0
      %6218 = vmatpush1.msra.mxu0 %v5711
      %6219 = vmatprep.subr.mxu0 0.0
      %6220 = vmatpush1.msra.mxu0 %v5712
      %6221 = vmatprep.subr.mxu0 0.0
      %6222 = vmatpush1.msra.mxu0 %v5713
      %6223 = vmatprep.subr.mxu0 0.0
      %6224 = vmatpush1.msra.mxu0 %v5714
      %6225 = vmatprep.subr.mxu0 0.0
      %6226 = vmatpush1.msra.mxu0 %v5715
      %6227 = vmatprep.subr.mxu0 0.0
      %6228 = vmatpush1.msra.mxu0 %v5716
      %6229 = vmatprep.subr.mxu0 0.0
      %6230 = vmatpush1.msra.mxu0 %v5717
      %6231 = vmatprep.subr.mxu0 0.0
      %6232 = vmatpush1.msra.mxu0 %v5718
      %6233 = vmatprep.subr.mxu0 0.0
      %6234 = vmatpush1.msra.mxu0 %v5719
      %6235 = vmatprep.mubr.f32.mxu0 %v6011
      %6236 = vmatmul.mubr.f32.gmra.mrb[0].mxu0 %v6007
      %v6237 = vpop.f32.mrb[0].mxu0
      %v6238 = vadd.f32 %v6168, %v6237
      %v6239 = vpop.f32.mrb[0].mxu0
      %6240 = vdwg.mxu0
      %6241 = vmatprep.subr.mxu0 0.0
      %6242 = vmatpush1.msra.mxu0 %v5720
      %6243 = vmatprep.subr.mxu0 0.0
      %6244 = vmatpush1.msra.mxu0 %v5721
      %6245 = vmatprep.subr.mxu0 0.0
      %6246 = vmatpush1.msra.mxu0 %v5722
      %6247 = vmatprep.subr.mxu0 0.0
      %6248 = vmatpush1.msra.mxu0 %v5723
      %6249 = vmatprep.subr.mxu0 0.0
      %6250 = vmatpush1.msra.mxu0 %v5724
      %6251 = vmatprep.subr.mxu0 0.0
      %6252 = vmatpush1.msra.mxu0 %v5725
      %6253 = vmatprep.subr.mxu0 0.0
      %6254 = vmatpush1.msra.mxu0 %v5726
      %6255 = vmatprep.subr.mxu0 0.0
      %6256 = vmatpush1.msra.mxu0 %v5727
      %6257 = vmatprep.subr.mxu0 0.0
      %6258 = vmatpush1.msra.mxu0 %v5728
      %6259 = vmatprep.subr.mxu0 0.0
      %6260 = vmatpush1.msra.mxu0 %v5729
      %6261 = vmatprep.subr.mxu0 0.0
      %6262 = vmatpush1.msra.mxu0 %v5730
      %6263 = vmatprep.subr.mxu0 0.0
      %6264 = vmatpush1.msra.mxu0 %v5731
      %6265 = vmatprep.subr.mxu0 0.0
      %6266 = vmatpush1.msra.mxu0 %v5732
      %6267 = vmatprep.subr.mxu0 0.0
      %6268 = vmatpush1.msra.mxu0 %v5733
      %6269 = vmatprep.subr.mxu0 0.0
      %6270 = vmatpush1.msra.mxu0 %v5734
      %6271 = vmatprep.subr.mxu0 0.0
      %6272 = vmatpush1.msra.mxu0 %v5735
      %6273 = vmatprep.subr.mxu0 0.0
      %6274 = vmatpush1.msra.mxu0 %v5736
      %6275 = vmatprep.subr.mxu0 0.0
      %6276 = vmatpush1.msra.mxu0 %v5737
      %6277 = vmatprep.subr.mxu0 0.0
      %6278 = vmatpush1.msra.mxu0 %v5738
      %6279 = vmatprep.subr.mxu0 0.0
      %6280 = vmatpush1.msra.mxu0 %v5739
      %6281 = vmatprep.subr.mxu0 0.0
      %6282 = vmatpush1.msra.mxu0 %v5740
      %6283 = vmatprep.subr.mxu0 0.0
      %6284 = vmatpush1.msra.mxu0 %v5741
      %6285 = vmatprep.subr.mxu0 0.0
      %6286 = vmatpush1.msra.mxu0 %v5742
      %6287 = vmatprep.subr.mxu0 0.0
      %6288 = vmatpush1.msra.mxu0 %v5743
      %6289 = vmatprep.subr.mxu0 0.0
      %6290 = vmatpush1.msra.mxu0 %v5744
      %6291 = vmatprep.subr.mxu0 0.0
      %6292 = vmatpush1.msra.mxu0 %v5745
      %6293 = vmatprep.subr.mxu0 0.0
      %6294 = vmatpush1.msra.mxu0 %v5746
      %6295 = vmatprep.subr.mxu0 0.0
      %6296 = vmatpush1.msra.mxu0 %v5747
      %6297 = vmatprep.subr.mxu0 0.0
      %6298 = vmatpush1.msra.mxu0 %v5748
      %6299 = vmatprep.subr.mxu0 0.0
      %6300 = vmatpush1.msra.mxu0 %v5749
      %6301 = vmatprep.subr.mxu0 0.0
      %6302 = vmatpush1.msra.mxu0 %v5750
      %6303 = vmatprep.subr.mxu0 0.0
      %6304 = vmatpush1.msra.mxu0 %v5751
      %6305 = vmatprep.mubr.f32.mxu0 %v6019
      %6306 = vmatmul.mubr.f32.gmra.mrb[0].mxu0 %v6015
      %v6307 = vpop.f32.mrb[0].mxu0
      %v6308 = vadd.f32 %v6238, %v6307
      %v6309 = vpop.f32.mrb[0].mxu0
      %6310 = vdwg.mxu0
      %6311 = vmatprep.subr.mxu0 0.0
      %6312 = vmatpush1.msra.mxu0 %v5752
      %6313 = vmatprep.subr.mxu0 0.0
      %6314 = vmatpush1.msra.mxu0 %v5753
      %6315 = vmatprep.subr.mxu0 0.0
      %6316 = vmatpush1.msra.mxu0 %v5754
      %6317 = vmatprep.subr.mxu0 0.0
      %6318 = vmatpush1.msra.mxu0 %v5755
      %6319 = vmatprep.subr.mxu0 0.0
      %6320 = vmatpush1.msra.mxu0 %v5756
      %6321 = vmatprep.subr.mxu0 0.0
      %6322 = vmatpush1.msra.mxu0 %v5757
      %6323 = vmatprep.subr.mxu0 0.0
      %6324 = vmatpush1.msra.mxu0 %v5758
      %6325 = vmatprep.subr.mxu0 0.0
      %6326 = vmatpush1.msra.mxu0 %v5759
      %6327 = vmatprep.subr.mxu0 0.0
      %6328 = vmatpush1.msra.mxu0 %v5760
      %6329 = vmatprep.subr.mxu0 0.0
      %6330 = vmatpush1.msra.mxu0 %v5761
      %6331 = vmatprep.subr.mxu0 0.0
      %6332 = vmatpush1.msra.mxu0 %v5762
      %6333 = vmatprep.subr.mxu0 0.0
      %6334 = vmatpush1.msra.mxu0 %v5763
      %6335 = vmatprep.subr.mxu0 0.0
      %6336 = vmatpush1.msra.mxu0 %v5764
      %6337 = vmatprep.subr.mxu0 0.0
      %6338 = vmatpush1.msra.mxu0 %v5765
      %6339 = vmatprep.subr.mxu0 0.0
      %6340 = vmatpush1.msra.mxu0 %v5766
      %6341 = vmatprep.subr.mxu0 0.0
      %6342 = vmatpush1.msra.mxu0 %v5767
      %6343 = vmatprep.subr.mxu0 0.0
      %6344 = vmatpush1.msra.mxu0 %v5768
      %6345 = vmatprep.subr.mxu0 0.0
      %6346 = vmatpush1.msra.mxu0 %v5769
      %6347 = vmatprep.subr.mxu0 0.0
      %6348 = vmatpush1.msra.mxu0 %v5770
      %6349 = vmatprep.subr.mxu0 0.0
      %6350 = vmatpush1.msra.mxu0 %v5771
      %6351 = vmatprep.subr.mxu0 0.0
      %6352 = vmatpush1.msra.mxu0 %v5772
      %6353 = vmatprep.subr.mxu0 0.0
      %6354 = vmatpush1.msra.mxu0 %v5773
      %6355 = vmatprep.subr.mxu0 0.0
      %6356 = vmatpush1.msra.mxu0 %v5774
      %6357 = vmatprep.subr.mxu0 0.0
      %6358 = vmatpush1.msra.mxu0 %v5775
      %6359 = vmatprep.subr.mxu0 0.0
      %6360 = vmatpush1.msra.mxu0 %v5776
      %6361 = vmatprep.subr.mxu0 0.0
      %6362 = vmatpush1.msra.mxu0 %v5777
      %6363 = vmatprep.subr.mxu0 0.0
      %6364 = vmatpush1.msra.mxu0 %v5778
      %6365 = vmatprep.subr.mxu0 0.0
      %6366 = vmatpush1.msra.mxu0 %v5779
      %6367 = vmatprep.subr.mxu0 0.0
      %6368 = vmatpush1.msra.mxu0 %v5780
      %6369 = vmatprep.subr.mxu0 0.0
      %6370 = vmatpush1.msra.mxu0 %v5781
      %6371 = vmatprep.subr.mxu0 0.0
      %6372 = vmatpush1.msra.mxu0 %v5782
      %6373 = vmatprep.subr.mxu0 0.0
      %6374 = vmatpush1.msra.mxu0 %v5783
      %6375 = vmatprep.mubr.f32.mxu0 %v6027
      %6376 = vmatmul.mubr.f32.gmra.mrb[0].mxu0 %v6023
      %v6377 = vpop.f32.mrb[0].mxu0
      %v6378 = vadd.f32 %v6308, %v6377
      %v6379 = vpop.f32.mrb[0].mxu0
      %6380 = vdwg.mxu0
      %6381 = vmatprep.subr.mxu0 0.0
      %6382 = vmatpush1.msra.mxu0 %v5784
      %6383 = vmatprep.subr.mxu0 0.0
      %6384 = vmatpush1.msra.mxu0 %v5785
      %6385 = vmatprep.subr.mxu0 0.0
      %6386 = vmatpush1.msra.mxu0 %v5786
      %6387 = vmatprep.subr.mxu0 0.0
      %6388 = vmatpush1.msra.mxu0 %v5787
      %6389 = vmatprep.subr.mxu0 0.0
      %6390 = vmatpush1.msra.mxu0 %v5788
      %6391 = vmatprep.subr.mxu0 0.0
      %6392 = vmatpush1.msra.mxu0 %v5789
      %6393 = vmatprep.subr.mxu0 0.0
      %6394 = vmatpush1.msra.mxu0 %v5790
      %6395 = vmatprep.subr.mxu0 0.0
      %6396 = vmatpush1.msra.mxu0 %v5791
      %6397 = vmatprep.subr.mxu0 0.0
      %6398 = vmatpush1.msra.mxu0 %v5792
      %6399 = vmatprep.subr.mxu0 0.0
      %6400 = vmatpush1.msra.mxu0 %v5793
      %6401 = vmatprep.subr.mxu0 0.0
      %6402 = vmatpush1.msra.mxu0 %v5794
      %6403 = vmatprep.subr.mxu0 0.0
      %6404 = vmatpush1.msra.mxu0 %v5795
      %6405 = vmatprep.subr.mxu0 0.0
      %6406 = vmatpush1.msra.mxu0 %v5796
      %6407 = vmatprep.subr.mxu0 0.0
      %6408 = vmatpush1.msra.mxu0 %v5797
      %6409 = vmatprep.subr.mxu0 0.0
      %6410 = vmatpush1.msra.mxu0 %v5798
      %6411 = vmatprep.subr.mxu0 0.0
      %6412 = vmatpush1.msra.mxu0 %v5799
      %6413 = vmatprep.subr.mxu0 0.0
      %6414 = vmatpush1.msra.mxu0 %v5800
      %6415 = vmatprep.subr.mxu0 0.0
      %6416 = vmatpush1.msra.mxu0 %v5801
      %6417 = vmatprep.subr.mxu0 0.0
      %6418 = vmatpush1.msra.mxu0 %v5802
      %6419 = vmatprep.subr.mxu0 0.0
      %6420 = vmatpush1.msra.mxu0 %v5803
      %6421 = vmatprep.subr.mxu0 0.0
      %6422 = vmatpush1.msra.mxu0 %v5804
      %6423 = vmatprep.subr.mxu0 0.0
      %6424 = vmatpush1.msra.mxu0 %v5805
      %6425 = vmatprep.subr.mxu0 0.0
      %6426 = vmatpush1.msra.mxu0 %v5806
      %6427 = vmatprep.subr.mxu0 0.0
      %6428 = vmatpush1.msra.mxu0 %v5807
      %6429 = vmatprep.subr.mxu0 0.0
      %6430 = vmatpush1.msra.mxu0 %v5808
      %6431 = vmatprep.subr.mxu0 0.0
      %6432 = vmatpush1.msra.mxu0 %v5809
      %6433 = vmatprep.subr.mxu0 0.0
      %6434 = vmatpush1.msra.mxu0 %v5810
      %6435 = vmatprep.subr.mxu0 0.0
      %6436 = vmatpush1.msra.mxu0 %v5811
      %6437 = vmatprep.subr.mxu0 0.0
      %6438 = vmatpush1.msra.mxu0 %v5812
      %6439 = vmatprep.subr.mxu0 0.0
      %6440 = vmatpush1.msra.mxu0 %v5813
      %6441 = vmatprep.subr.mxu0 0.0
      %6442 = vmatpush1.msra.mxu0 %v5814
      %6443 = vmatprep.subr.mxu0 0.0
      %6444 = vmatpush1.msra.mxu0 %v5815
      %6445 = vmatprep.mubr.f32.mxu0 %v6035
      %6446 = vmatmul.mubr.f32.gmra.mrb[0].mxu0 %v6031
      %v6447 = vpop.f32.mrb[0].mxu0
      %v6448 = vadd.f32 %v6378, %v6447
      %v6449 = vpop.f32.mrb[0].mxu0
      %6450 = vdwg.mxu0
      %6451 = vmatprep.subr.mxu0 0.0
      %6452 = vmatpush1.msra.mxu0 %v5816
      %6453 = vmatprep.subr.mxu0 0.0
      %6454 = vmatpush1.msra.mxu0 %v5817
      %6455 = vmatprep.subr.mxu0 0.0
      %6456 = vmatpush1.msra.mxu0 %v5818
      %6457 = vmatprep.subr.mxu0 0.0
      %6458 = vmatpush1.msra.mxu0 %v5819
      %6459 = vmatprep.subr.mxu0 0.0
      %6460 = vmatpush1.msra.mxu0 %v5820
      %6461 = vmatprep.subr.mxu0 0.0
      %6462 = vmatpush1.msra.mxu0 %v5821
      %6463 = vmatprep.subr.mxu0 0.0
      %6464 = vmatpush1.msra.mxu0 %v5822
      %6465 = vmatprep.subr.mxu0 0.0
      %6466 = vmatpush1.msra.mxu0 %v5823
      %6467 = vmatprep.subr.mxu0 0.0
      %6468 = vmatpush1.msra.mxu0 %v5824
      %6469 = vmatprep.subr.mxu0 0.0
      %6470 = vmatpush1.msra.mxu0 %v5825
      %6471 = vmatprep.subr.mxu0 0.0
      %6472 = vmatpush1.msra.mxu0 %v5826
      %6473 = vmatprep.subr.mxu0 0.0
      %6474 = vmatpush1.msra.mxu0 %v5827
      %6475 = vmatprep.subr.mxu0 0.0
      %6476 = vmatpush1.msra.mxu0 %v5828
      %6477 = vmatprep.subr.mxu0 0.0
      %6478 = vmatpush1.msra.mxu0 %v5829
      %6479 = vmatprep.subr.mxu0 0.0
      %6480 = vmatpush1.msra.mxu0 %v5830
      %6481 = vmatprep.subr.mxu0 0.0
      %6482 = vmatpush1.msra.mxu0 %v5831
      %6483 = vmatprep.subr.mxu0 0.0
      %6484 = vmatpush1.msra.mxu0 %v5832
      %6485 = vmatprep.subr.mxu0 0.0
      %6486 = vmatpush1.msra.mxu0 %v5833
      %6487 = vmatprep.subr.mxu0 0.0
      %6488 = vmatpush1.msra.mxu0 %v5834
      %6489 = vmatprep.subr.mxu0 0.0
      %6490 = vmatpush1.msra.mxu0 %v5835
      %6491 = vmatprep.subr.mxu0 0.0
      %6492 = vmatpush1.msra.mxu0 %v5836
      %6493 = vmatprep.subr.mxu0 0.0
      %6494 = vmatpush1.msra.mxu0 %v5837
      %6495 = vmatprep.subr.mxu0 0.0
      %6496 = vmatpush1.msra.mxu0 %v5838
      %6497 = vmatprep.subr.mxu0 0.0
      %6498 = vmatpush1.msra.mxu0 %v5839
      %6499 = vmatprep.subr.mxu0 0.0
      %6500 = vmatpush1.msra.mxu0 %v5840
      %6501 = vmatprep.subr.mxu0 0.0
      %6502 = vmatpush1.msra.mxu0 %v5841
      %6503 = vmatprep.subr.mxu0 0.0
      %6504 = vmatpush1.msra.mxu0 %v5842
      %6505 = vmatprep.subr.mxu0 0.0
      %6506 = vmatpush1.msra.mxu0 %v5843
      %6507 = vmatprep.subr.mxu0 0.0
      %6508 = vmatpush1.msra.mxu0 %v5844
      %6509 = vmatprep.subr.mxu0 0.0
      %6510 = vmatpush1.msra.mxu0 %v5845
      %6511 = vmatprep.subr.mxu0 0.0
      %6512 = vmatpush1.msra.mxu0 %v5846
      %6513 = vmatprep.subr.mxu0 0.0
      %6514 = vmatpush1.msra.mxu0 %v5847
      %6515 = vmatprep.mubr.f32.mxu0 %v6043
      %6516 = vmatmul.mubr.f32.gmra.mrb[0].mxu0 %v6039
      %v6517 = vpop.f32.mrb[0].mxu0
      %v6518 = vadd.f32 %v6448, %v6517
      %v6519 = vpop.f32.mrb[0].mxu0
      %6520 = vdwg.mxu0
      %6521 = vmatprep.subr.mxu0 0.0
      %6522 = vmatpush1.msra.mxu0 %v5848
      %6523 = vmatprep.subr.mxu0 0.0
      %6524 = vmatpush1.msra.mxu0 %v5849
      %6525 = vmatprep.subr.mxu0 0.0
      %6526 = vmatpush1.msra.mxu0 %v5850
      %6527 = vmatprep.subr.mxu0 0.0
      %6528 = vmatpush1.msra.mxu0 %v5851
      %6529 = vmatprep.subr.mxu0 0.0
      %6530 = vmatpush1.msra.mxu0 %v5852
      %6531 = vmatprep.subr.mxu0 0.0
      %6532 = vmatpush1.msra.mxu0 %v5853
      %6533 = vmatprep.subr.mxu0 0.0
      %6534 = vmatpush1.msra.mxu0 %v5854
      %6535 = vmatprep.subr.mxu0 0.0
      %6536 = vmatpush1.msra.mxu0 %v5855
      %6537 = vmatprep.subr.mxu0 0.0
      %6538 = vmatpush1.msra.mxu0 %v5856
      %6539 = vmatprep.subr.mxu0 0.0
      %6540 = vmatpush1.msra.mxu0 %v5857
      %6541 = vmatprep.subr.mxu0 0.0
      %6542 = vmatpush1.msra.mxu0 %v5858
      %6543 = vmatprep.subr.mxu0 0.0
      %6544 = vmatpush1.msra.mxu0 %v5859
      %6545 = vmatprep.subr.mxu0 0.0
      %6546 = vmatpush1.msra.mxu0 %v5860
      %6547 = vmatprep.subr.mxu0 0.0
      %6548 = vmatpush1.msra.mxu0 %v5861
      %6549 = vmatprep.subr.mxu0 0.0
      %6550 = vmatpush1.msra.mxu0 %v5862
      %6551 = vmatprep.subr.mxu0 0.0
      %6552 = vmatpush1.msra.mxu0 %v5863
      %6553 = vmatprep.subr.mxu0 0.0
      %6554 = vmatpush1.msra.mxu0 %v5864
      %6555 = vmatprep.subr.mxu0 0.0
      %6556 = vmatpush1.msra.mxu0 %v5865
      %6557 = vmatprep.subr.mxu0 0.0
      %6558 = vmatpush1.msra.mxu0 %v5866
      %6559 = vmatprep.subr.mxu0 0.0
      %6560 = vmatpush1.msra.mxu0 %v5867
      %6561 = vmatprep.subr.mxu0 0.0
      %6562 = vmatpush1.msra.mxu0 %v5868
      %6563 = vmatprep.subr.mxu0 0.0
      %6564 = vmatpush1.msra.mxu0 %v5869
      %6565 = vmatprep.subr.mxu0 0.0
      %6566 = vmatpush1.msra.mxu0 %v5870
      %6567 = vmatprep.subr.mxu0 0.0
      %6568 = vmatpush1.msra.mxu0 %v5871
      %6569 = vmatprep.subr.mxu0 0.0
      %6570 = vmatpush1.msra.mxu0 %v5872
      %6571 = vmatprep.subr.mxu0 0.0
      %6572 = vmatpush1.msra.mxu0 %v5873
      %6573 = vmatprep.subr.mxu0 0.0
      %6574 = vmatpush1.msra.mxu0 %v5874
      %6575 = vmatprep.subr.mxu0 0.0
      %6576 = vmatpush1.msra.mxu0 %v5875
      %6577 = vmatprep.subr.mxu0 0.0
      %6578 = vmatpush1.msra.mxu0 %v5876
      %6579 = vmatprep.subr.mxu0 0.0
      %6580 = vmatpush1.msra.mxu0 %v5877
      %6581 = vmatprep.subr.mxu0 0.0
      %6582 = vmatpush1.msra.mxu0 %v5878
      %6583 = vmatprep.subr.mxu0 0.0
      %6584 = vmatpush1.msra.mxu0 %v5879
      %6585 = vmatprep.mubr.f32.mxu0 %v6051
      %6586 = vmatmul.mubr.f32.gmra.mrb[0].mxu0 %v6047
      %v6587 = vpop.f32.mrb[0].mxu0
      %v6588 = vadd.f32 %v6518, %v6587
      %v6589 = vpop.f32.mrb[0].mxu0
      %6590 = vdwg.mxu0
      %6591 = vmatprep.subr.mxu0 0.0
      %6592 = vmatpush1.msra.mxu0 %v5880
      %6593 = vmatprep.subr.mxu0 0.0
      %6594 = vmatpush1.msra.mxu0 %v5881
      %6595 = vmatprep.subr.mxu0 0.0
      %6596 = vmatpush1.msra.mxu0 %v5882
      %6597 = vmatprep.subr.mxu0 0.0
      %6598 = vmatpush1.msra.mxu0 %v5883
      %6599 = vmatprep.subr.mxu0 0.0
      %6600 = vmatpush1.msra.mxu0 %v5884
      %6601 = vmatprep.subr.mxu0 0.0
      %6602 = vmatpush1.msra.mxu0 %v5885
      %6603 = vmatprep.subr.mxu0 0.0
      %6604 = vmatpush1.msra.mxu0 %v5886
      %6605 = vmatprep.subr.mxu0 0.0
      %6606 = vmatpush1.msra.mxu0 %v5887
      %6607 = vmatprep.subr.mxu0 0.0
      %6608 = vmatpush1.msra.mxu0 %v5888
      %6609 = vmatprep.subr.mxu0 0.0
      %6610 = vmatpush1.msra.mxu0 %v5889
      %6611 = vmatprep.subr.mxu0 0.0
      %6612 = vmatpush1.msra.mxu0 %v5890
      %6613 = vmatprep.subr.mxu0 0.0
      %6614 = vmatpush1.msra.mxu0 %v5891
      %6615 = vmatprep.subr.mxu0 0.0
      %6616 = vmatpush1.msra.mxu0 %v5892
      %6617 = vmatprep.subr.mxu0 0.0
      %6618 = vmatpush1.msra.mxu0 %v5893
      %6619 = vmatprep.subr.mxu0 0.0
      %6620 = vmatpush1.msra.mxu0 %v5894
      %6621 = vmatprep.subr.mxu0 0.0
      %6622 = vmatpush1.msra.mxu0 %v5895
      %6623 = vmatprep.subr.mxu0 0.0
      %6624 = vmatpush1.msra.mxu0 %v5896
      %6625 = vmatprep.subr.mxu0 0.0
      %6626 = vmatpush1.msra.mxu0 %v5897
      %6627 = vmatprep.subr.mxu0 0.0
      %6628 = vmatpush1.msra.mxu0 %v5898
      %6629 = vmatprep.subr.mxu0 0.0
      %6630 = vmatpush1.msra.mxu0 %v5899
      %6631 = vmatprep.subr.mxu0 0.0
      %6632 = vmatpush1.msra.mxu0 %v5900
      %6633 = vmatprep.subr.mxu0 0.0
      %6634 = vmatpush1.msra.mxu0 %v5901
      %6635 = vmatprep.subr.mxu0 0.0
      %6636 = vmatpush1.msra.mxu0 %v5902
      %6637 = vmatprep.subr.mxu0 0.0
      %6638 = vmatpush1.msra.mxu0 %v5903
      %6639 = vmatprep.subr.mxu0 0.0
      %6640 = vmatpush1.msra.mxu0 %v5904
      %6641 = vmatprep.subr.mxu0 0.0
      %6642 = vmatpush1.msra.mxu0 %v5905
      %6643 = vmatprep.subr.mxu0 0.0
      %6644 = vmatpush1.msra.mxu0 %v5906
      %6645 = vmatprep.subr.mxu0 0.0
      %6646 = vmatpush1.msra.mxu0 %v5907
      %6647 = vmatprep.subr.mxu0 0.0
      %6648 = vmatpush1.msra.mxu0 %v5908
      %6649 = vmatprep.subr.mxu0 0.0
      %6650 = vmatpush1.msra.mxu0 %v5909
      %6651 = vmatprep.subr.mxu0 0.0
      %6652 = vmatpush1.msra.mxu0 %v5910
      %6653 = vmatprep.subr.mxu0 0.0
      %6654 = vmatpush1.msra.mxu0 %v5911
      %6655 = vmatprep.mubr.f32.mxu0 %v6059
      %6656 = vmatmul.mubr.f32.gmra.mrb[0].mxu0 %v6055
      %v6657 = vpop.f32.mrb[0].mxu0
      %v6658 = vadd.f32 %v6588, %v6657
      %v6659 = vpop.f32.mrb[0].mxu0
      %6660 = vdwg.mxu0
      %6661 = vmatprep.subr.mxu0 0.0
      %6662 = vmatpush1.msra.mxu0 %v5912
      %6663 = vmatprep.subr.mxu0 0.0
      %6664 = vmatpush1.msra.mxu0 %v5913
      %6665 = vmatprep.subr.mxu0 0.0
      %6666 = vmatpush1.msra.mxu0 %v5914
      %6667 = vmatprep.subr.mxu0 0.0
      %6668 = vmatpush1.msra.mxu0 %v5915
      %6669 = vmatprep.subr.mxu0 0.0
      %6670 = vmatpush1.msra.mxu0 %v5916
      %6671 = vmatprep.subr.mxu0 0.0
      %6672 = vmatpush1.msra.mxu0 %v5917
      %6673 = vmatprep.subr.mxu0 0.0
      %6674 = vmatpush1.msra.mxu0 %v5918
      %6675 = vmatprep.subr.mxu0 0.0
      %6676 = vmatpush1.msra.mxu0 %v5919
      %6677 = vmatprep.subr.mxu0 0.0
      %6678 = vmatpush1.msra.mxu0 %v5920
      %6679 = vmatprep.subr.mxu0 0.0
      %6680 = vmatpush1.msra.mxu0 %v5921
      %6681 = vmatprep.subr.mxu0 0.0
      %6682 = vmatpush1.msra.mxu0 %v5922
      %6683 = vmatprep.subr.mxu0 0.0
      %6684 = vmatpush1.msra.mxu0 %v5923
      %6685 = vmatprep.subr.mxu0 0.0
      %6686 = vmatpush1.msra.mxu0 %v5924
      %6687 = vmatprep.subr.mxu0 0.0
      %6688 = vmatpush1.msra.mxu0 %v5925
      %6689 = vmatprep.subr.mxu0 0.0
      %6690 = vmatpush1.msra.mxu0 %v5926
      %6691 = vmatprep.subr.mxu0 0.0
      %6692 = vmatpush1.msra.mxu0 %v5927
      %6693 = vmatprep.subr.mxu0 0.0
      %6694 = vmatpush1.msra.mxu0 %v5928
      %6695 = vmatprep.subr.mxu0 0.0
      %6696 = vmatpush1.msra.mxu0 %v5929
      %6697 = vmatprep.subr.mxu0 0.0
      %6698 = vmatpush1.msra.mxu0 %v5930
      %6699 = vmatprep.subr.mxu0 0.0
      %6700 = vmatpush1.msra.mxu0 %v5931
      %6701 = vmatprep.subr.mxu0 0.0
      %6702 = vmatpush1.msra.mxu0 %v5932
      %6703 = vmatprep.subr.mxu0 0.0
      %6704 = vmatpush1.msra.mxu0 %v5933
      %6705 = vmatprep.subr.mxu0 0.0
      %6706 = vmatpush1.msra.mxu0 %v5934
      %6707 = vmatprep.subr.mxu0 0.0
      %6708 = vmatpush1.msra.mxu0 %v5935
      %6709 = vmatprep.subr.mxu0 0.0
      %6710 = vmatpush1.msra.mxu0 %v5936
      %6711 = vmatprep.subr.mxu0 0.0
      %6712 = vmatpush1.msra.mxu0 %v5937
      %6713 = vmatprep.subr.mxu0 0.0
      %6714 = vmatpush1.msra.mxu0 %v5938
      %6715 = vmatprep.subr.mxu0 0.0
      %6716 = vmatpush1.msra.mxu0 %v5939
      %6717 = vmatprep.subr.mxu0 0.0
      %6718 = vmatpush1.msra.mxu0 %v5940
      %6719 = vmatprep.subr.mxu0 0.0
      %6720 = vmatpush1.msra.mxu0 %v5941
      %6721 = vmatprep.subr.mxu0 0.0
      %6722 = vmatpush1.msra.mxu0 %v5942
      %6723 = vmatprep.subr.mxu0 0.0
      %6724 = vmatpush1.msra.mxu0 %v5943
      %6725 = vmatprep.mubr.f32.mxu0 %v6067
      %6726 = vmatmul.mubr.f32.gmra.mrb[0].mxu0 %v6063
      %v6727 = vpop.f32.mrb[0].mxu0
      %v6728 = vadd.f32 %v6658, %v6727
      %v6729 = vpop.f32.mrb[0].mxu0
      %6730 = vdwg.mxu0
      %6731 = vmatprep.subr.mxu0 0.0
      %6732 = vmatpush1.msra.mxu0 %v5944
      %6733 = vmatprep.subr.mxu0 0.0
      %6734 = vmatpush1.msra.mxu0 %v5945
      %6735 = vmatprep.subr.mxu0 0.0
      %6736 = vmatpush1.msra.mxu0 %v5946
      %6737 = vmatprep.subr.mxu0 0.0
      %6738 = vmatpush1.msra.mxu0 %v5947
      %6739 = vmatprep.subr.mxu0 0.0
      %6740 = vmatpush1.msra.mxu0 %v5948
      %6741 = vmatprep.subr.mxu0 0.0
      %6742 = vmatpush1.msra.mxu0 %v5949
      %6743 = vmatprep.subr.mxu0 0.0
      %6744 = vmatpush1.msra.mxu0 %v5950
      %6745 = vmatprep.subr.mxu0 0.0
      %6746 = vmatpush1.msra.mxu0 %v5951
      %6747 = vmatprep.subr.mxu0 0.0
      %6748 = vmatpush1.msra.mxu0 %v5952
      %6749 = vmatprep.subr.mxu0 0.0
      %6750 = vmatpush1.msra.mxu0 %v5953
      %6751 = vmatprep.subr.mxu0 0.0
      %6752 = vmatpush1.msra.mxu0 %v5954
      %6753 = vmatprep.subr.mxu0 0.0
      %6754 = vmatpush1.msra.mxu0 %v5955
      %6755 = vmatprep.subr.mxu0 0.0
      %6756 = vmatpush1.msra.mxu0 %v5956
      %6757 = vmatprep.subr.mxu0 0.0
      %6758 = vmatpush1.msra.mxu0 %v5957
      %6759 = vmatprep.subr.mxu0 0.0
      %6760 = vmatpush1.msra.mxu0 %v5958
      %6761 = vmatprep.subr.mxu0 0.0
      %6762 = vmatpush1.msra.mxu0 %v5959
      %6763 = vmatprep.subr.mxu0 0.0
      %6764 = vmatpush1.msra.mxu0 %v5960
      %6765 = vmatprep.subr.mxu0 0.0
      %6766 = vmatpush1.msra.mxu0 %v5961
      %6767 = vmatprep.subr.mxu0 0.0
      %6768 = vmatpush1.msra.mxu0 %v5962
      %6769 = vmatprep.subr.mxu0 0.0
      %6770 = vmatpush1.msra.mxu0 %v5963
      %6771 = vmatprep.subr.mxu0 0.0
      %6772 = vmatpush1.msra.mxu0 %v5964
      %6773 = vmatprep.subr.mxu0 0.0
      %6774 = vmatpush1.msra.mxu0 %v5965
      %6775 = vmatprep.subr.mxu0 0.0
      %6776 = vmatpush1.msra.mxu0 %v5966
      %6777 = vmatprep.subr.mxu0 0.0
      %6778 = vmatpush1.msra.mxu0 %v5967
      %6779 = vmatprep.subr.mxu0 0.0
      %6780 = vmatpush1.msra.mxu0 %v5968
      %6781 = vmatprep.subr.mxu0 0.0
      %6782 = vmatpush1.msra.mxu0 %v5969
      %6783 = vmatprep.subr.mxu0 0.0
      %6784 = vmatpush1.msra.mxu0 %v5970
      %6785 = vmatprep.subr.mxu0 0.0
      %6786 = vmatpush1.msra.mxu0 %v5971
      %6787 = vmatprep.subr.mxu0 0.0
      %6788 = vmatpush1.msra.mxu0 %v5972
      %6789 = vmatprep.subr.mxu0 0.0
      %6790 = vmatpush1.msra.mxu0 %v5973
      %6791 = vmatprep.subr.mxu0 0.0
      %6792 = vmatpush1.msra.mxu0 %v5974
      %6793 = vmatprep.subr.mxu0 0.0
      %6794 = vmatpush1.msra.mxu0 %v5975
      %6795 = vmatprep.mubr.f32.mxu0 %v6075
      %6796 = vmatmul.mubr.f32.gmra.mrb[0].mxu0 %v6071
      %v6797 = vpop.f32.mrb[0].mxu0
      %v6798 = vadd.f32 %v6728, %v6797
      %v6799 = vpop.f32.mrb[0].mxu0
      %6800 = vdwg.mxu0
      %6801 = vmatprep.subr.mxu0 0.0
      %6802 = vmatpush1.msra.mxu0 %v5976
      %6803 = vmatprep.subr.mxu0 0.0
      %6804 = vmatpush1.msra.mxu0 %v5977
      %6805 = vmatprep.subr.mxu0 0.0
      %6806 = vmatpush1.msra.mxu0 %v5978
      %6807 = vmatprep.subr.mxu0 0.0
      %6808 = vmatpush1.msra.mxu0 %v5979
      %6809 = vmatprep.subr.mxu0 0.0
      %6810 = vmatpush1.msra.mxu0 %v5980
      %6811 = vmatprep.subr.mxu0 0.0
      %6812 = vmatpush1.msra.mxu0 %v5981
      %6813 = vmatprep.subr.mxu0 0.0
      %6814 = vmatpush1.msra.mxu0 %v5982
      %6815 = vmatprep.subr.mxu0 0.0
      %6816 = vmatpush1.msra.mxu0 %v5983
      %6817 = vmatprep.subr.mxu0 0.0
      %6818 = vmatpush1.msra.mxu0 %v5984
      %6819 = vmatprep.subr.mxu0 0.0
      %6820 = vmatpush1.msra.mxu0 %v5985
      %6821 = vmatprep.subr.mxu0 0.0
      %6822 = vmatpush1.msra.mxu0 %v5986
      %6823 = vmatprep.subr.mxu0 0.0
      %6824 = vmatpush1.msra.mxu0 %v5987
      %6825 = vmatprep.subr.mxu0 0.0
      %6826 = vmatpush1.msra.mxu0 %v5988
      %6827 = vmatprep.subr.mxu0 0.0
      %6828 = vmatpush1.msra.mxu0 %v5989
      %6829 = vmatprep.subr.mxu0 0.0
      %6830 = vmatpush1.msra.mxu0 %v5990
      %6831 = vmatprep.subr.mxu0 0.0
      %6832 = vmatpush1.msra.mxu0 %v5991
      %6833 = vmatprep.subr.mxu0 0.0
      %6834 = vmatpush1.msra.mxu0 0.0
      %6835 = vmatprep.subr.mxu0 0.0
      %6836 = vmatpush1.msra.mxu0 0.0
      %6837 = vmatprep.subr.mxu0 0.0
      %6838 = vmatpush1.msra.mxu0 0.0
      %6839 = vmatprep.subr.mxu0 0.0
      %6840 = vmatpush1.msra.mxu0 0.0
      %6841 = vmatprep.subr.mxu0 0.0
      %6842 = vmatpush1.msra.mxu0 0.0
      %6843 = vmatprep.subr.mxu0 0.0
      %6844 = vmatpush1.msra.mxu0 0.0
      %6845 = vmatprep.subr.mxu0 0.0
      %6846 = vmatpush1.msra.mxu0 0.0
      %6847 = vmatprep.subr.mxu0 0.0
      %6848 = vmatpush1.msra.mxu0 0.0
      %6849 = vmatprep.subr.mxu0 0.0
      %6850 = vmatpush1.msra.mxu0 0.0
      %6851 = vmatprep.subr.mxu0 0.0
      %6852 = vmatpush1.msra.mxu0 0.0
      %6853 = vmatprep.subr.mxu0 0.0
      %6854 = vmatpush1.msra.mxu0 0.0
      %6855 = vmatprep.subr.mxu0 0.0
      %6856 = vmatpush1.msra.mxu0 0.0
      %6857 = vmatprep.subr.mxu0 0.0
      %6858 = vmatpush1.msra.mxu0 0.0
      %6859 = vmatprep.subr.mxu0 0.0
      %6860 = vmatpush1.msra.mxu0 0.0
      %6861 = vmatprep.subr.mxu0 0.0
      %6862 = vmatpush1.msra.mxu0 0.0
      %6863 = vmatprep.subr.mxu0 0.0
      %6864 = vmatpush1.msra.mxu0 0.0
      %6865 = vmatprep.mubr.f32.mxu0 0.0
      %6866 = vmatmul.mubr.f32.gmra.mrb[0].mxu0 %v6079
      %v6867 = vpop.f32.mrb[0].mxu0
      %v6868 = vadd.f32 %v6798, %v6867
      %v6869 = vpop.f32.mrb[0].mxu0
      %6870 = vdwg.mxu0
      %6871 = vst [vmem:[%s382] sm:$0x1] %v6868
      %p6872 = scmp.lt.s32.totalorder %s22, 1
      %s6873 = scalar_select %p6872, %s22, 1
      %s6874 = scalar_lea.vmem %s11, %s6873
      // Predicated region
      $region65: #{encoder_forward.1} parent=63 // pred_check
        %p6875 = pneg %p276
      $region66: #{encoder_forward.1} parent=63 // pred_check_branch
        %6877 = sbr.rel (%p6875) target = $region68
      $region67: #{encoder_forward.1} parent=63 // pred_region
        _
      $region68: #{encoder_forward.1} parent=63 // pred_fallthru
        _
    $region64: #{encoder_forward.1} parent=5 // pred_fallthru
      _
    %p6878 = scmp.le.s32.totalorder 2, %s17
    // Predicated region
    $region69: #{encoder_forward.1} parent=5 // pred_check
      %p6879 = pneg %p6878
    $region70: #{encoder_forward.1} parent=5 // pred_check_branch
      %6881 = sbr.rel (%p6879) target = $region72
    $region71: #{encoder_forward.1} parent=5 // pred_region
      %s6882 = ssub.s32 %s17, 2
      // Predicated region
      $region73: #{encoder_forward.1} parent=71 // pred_check
        %p6883 = pneg %p282
      $region74: #{encoder_forward.1} parent=71 // pred_check_branch
        %6885 = sbr.rel (%p6883) target = $region76
      $region75: #{encoder_forward.1} parent=71 // pred_region
        %p6886 = scmp.lt.s32.totalorder %s23, 1
        %s6887 = scalar_select %p6886, %s23, 1
        %s6888 = scalar_lea.vmem %s11, %s6887
      $region76: #{encoder_forward.1} parent=71 // pred_fallthru
        _
    $region72: #{encoder_forward.1} parent=5 // pred_fallthru
      _
  $region6: #{encoder_forward.1} parent=0 // loop_footer
    %s21 = sadd.s32 1, %s17
  $region7: #{encoder_forward.1} parent=0 // loop_footer_branch
    %16 = sbr.rel target = $region3
  $region8: #{encoder_forward.1} parent=0 // loop_exit
    _

</llo_original>
